<compile_context>
chip_gen: v7x
topology: tpu7x:2x2x1
jax: 0.10.0
libtpu: 0.0.40
codegen_flags: <defaults>
</compile_context>

<pallas_src>
import functools

import jax
import jax.numpy as jnp
import numpy as np
from jax.experimental import pallas as pl
from jax.experimental.pallas import tpu as pltpu


NUM_ACTIONS = 600          # fc2 logical output width
NUM_ACTIONS_PAD = 640      # padded to a multiple of 128 for lane-dense stores


# ----------------------------- Pallas kernels ------------------------------

def _conv_stack_kernel(x_ref, m_ref, w1_ref, b1_ref, w2_ref, b2_ref, o_ref,
                       pad1_ref, pad2_ref, *, n, width, pad):
    """conv1(3x3,p=1)+ReLU -> conv2(3x3,p=1)+ReLU, fully in VMEM.

    Activations are (B*H*W, C) rows in (b, h, w) order.  For tap (dy, dx) a
    3x3 / pad=1 conv is a row shift by s = (dy-1)*W + (dx-1) of the activation
    plus a per-row validity mask (m_ref) that zeroes taps falling outside the
    HxW image (this also kills cross-row / cross-batch bleed of the flattened
    layout).  Each activation is copied once into a zero-padded VMEM scratch
    so every shifted tap is a cheap static slice.
    """

    def conv3x3_relu(pad_ref, act, w_ref, b_ref):
        pad_ref[...] = jnp.zeros_like(pad_ref)
        pad_ref[pad:pad + n, :] = act
        acc = None
        for k in range(9):
            dy, dx = divmod(k, 3)
            s = (dy - 1) * width + (dx - 1)
            # Masking the tap before the dot is cheaper than after
            # (Cin < Cout for both convs) and mathematically identical:
            # diag(m) @ (A @ W) == (diag(m) @ A) @ W.
            tap = pad_ref[pad + s:pad + s + n, :] * m_ref[:, k:k + 1]
            d = jnp.dot(tap, w_ref[k], preferred_element_type=jnp.float32)
            acc = d if acc is None else acc + d
        return jnp.maximum(acc + b_ref[...], 0.0)

    a1 = conv3x3_relu(pad1_ref, x_ref[...], w1_ref, b1_ref)
    o_ref[...] = conv3x3_relu(pad2_ref, a1, w2_ref, b2_ref)


def _fc_stack_kernel(x_ref, w1_ref, b1_ref, w2_ref, b2_ref, o_ref):
    """fc1 + ReLU + fc2 fused; bf16 operands on the MXU, f32 accumulation."""
    h = jnp.dot(x_ref[...].astype(jnp.bfloat16), w1_ref[...],
                preferred_element_type=jnp.float32)
    h = jnp.maximum(h + b1_ref[...], 0.0)
    y = jnp.dot(h.astype(jnp.bfloat16), w2_ref[...],
                preferred_element_type=jnp.float32)
    o_ref[...] = y + b2_ref[...]


# ------------------------------ JAX wrappers -------------------------------

@functools.lru_cache(maxsize=None)
def _tap_masks(batch, height, width):
    """(B*H*W, 9) f32 validity mask for each of the 9 taps (host-side const)."""
    n = np.arange(batch * height * width)
    h = (n % (height * width)) // width
    w = n % width
    cols = []
    for dy in range(3):
        for dx in range(3):
            hh, ww = h + dy - 1, w + dx - 1
            cols.append((hh >= 0) & (hh < height) & (ww >= 0) & (ww < width))
    return np.stack(cols, axis=1).astype(np.float32)


def conv_stack(x2d, masks, w1, b1, w2, b2, *, width):
    n, cin = x2d.shape
    c1, c2 = w1.shape[-1], w2.shape[-1]
    pad = width + 1                      # covers the largest tap row-shift
    kernel = functools.partial(_conv_stack_kernel, n=n, width=width, pad=pad)
    return pl.pallas_call(
        kernel,
        grid=(1,),
        in_specs=[
            pl.BlockSpec((n, cin), lambda i: (0, 0)),
            pl.BlockSpec((n, 9), lambda i: (0, 0)),
            pl.BlockSpec((9, cin, c1), lambda i: (0, 0, 0)),
            pl.BlockSpec((1, c1), lambda i: (0, 0)),
            pl.BlockSpec((9, c1, c2), lambda i: (0, 0, 0)),
            pl.BlockSpec((1, c2), lambda i: (0, 0)),
        ],
        out_specs=pl.BlockSpec((n, c2), lambda i: (0, 0)),
        out_shape=jax.ShapeDtypeStruct((n, c2), jnp.float32),
        scratch_shapes=[
            pltpu.VMEM((n + 2 * pad, cin), jnp.float32),
            pltpu.VMEM((n + 2 * pad, c1), jnp.float32),
        ],
    )(x2d, masks, w1, b1, w2, b2)


def fc_stack(x, w1, b1, w2, b2):
    m, k1 = x.shape
    n1, n2 = w1.shape[1], w2.shape[1]
    return pl.pallas_call(
        _fc_stack_kernel,
        grid=(1,),
        in_specs=[
            pl.BlockSpec((m, k1), lambda i: (0, 0)),
            pl.BlockSpec((k1, n1), lambda i: (0, 0)),
            pl.BlockSpec((1, n1), lambda i: (0, 0)),
            pl.BlockSpec((n1, n2), lambda i: (0, 0)),
            pl.BlockSpec((1, n2), lambda i: (0, 0)),
        ],
        out_specs=pl.BlockSpec((m, n2), lambda i: (0, 0)),
        out_shape=jax.ShapeDtypeStruct((m, n2), jnp.float32),
    )(x, w1, b1, w2, b2)


def init_params(key):
    """Parameters in kernel-friendly layouts.

    convN_w : (9, Cin, Cout), i.e. HWIO (3,3,Cin,Cout) with the two spatial
              dims collapsed.  From a torch checkpoint (Cout, Cin, 3, 3):
              w.permute(2, 3, 1, 0).reshape(9, Cin, Cout).
    fc1_w   : (3136, 512) bf16 with rows in NHWC-flatten (h, w, c) order,
              i.e. PyTorch's (c, h, w) view(-1, 64*7*7) order is folded into
              the weight.  From torch fc1.weight (512, 3136):
              w.reshape(512, 64, 7, 7).permute(2, 3, 1, 0).reshape(3136, 512).
    fc2_w   : (512, 640) bf16; last 40 output columns zero (lane padding).
    """
    ks = jax.random.split(key, 8)

    def u(k, shape, fan_in, dtype=jnp.float32):
        bound = 1.0 / float(fan_in) ** 0.5
        return jax.random.uniform(k, shape, jnp.float32, -bound, bound).astype(dtype)

    fc2_w = jnp.pad(u(ks[6], (512, NUM_ACTIONS), 512, jnp.bfloat16),
                    ((0, 0), (0, NUM_ACTIONS_PAD - NUM_ACTIONS)))
    fc2_b = jnp.pad(u(ks[7], (1, NUM_ACTIONS), 512),
                    ((0, 0), (0, NUM_ACTIONS_PAD - NUM_ACTIONS)))
    return {
        "conv1_w": u(ks[0], (9, 6, 32), 6 * 9),
        "conv1_b": u(ks[1], (1, 32), 6 * 9),
        "conv2_w": u(ks[2], (9, 32, 64), 32 * 9),
        "conv2_b": u(ks[3], (1, 64), 32 * 9),
        "fc1_w":   u(ks[4], (64 * 7 * 7, 512), 64 * 7 * 7, jnp.bfloat16),
        "fc1_b":   u(ks[5], (1, 512), 64 * 7 * 7),
        "fc2_w":   fc2_w,
        "fc2_b":   fc2_b,
    }


@jax.jit
def dqn_forward(params, x_nchw):
    B, C, H, W = x_nchw.shape
    c2 = params["conv2_w"].shape[-1]
    # NCHW -> (B*H*W, C) rows in (b, h, w) order (tiny layout glue).
    x2d = jnp.transpose(x_nchw, (0, 2, 3, 1)).reshape(B * H * W, C)
    masks = jnp.asarray(_tap_masks(B, H, W))
    a2 = conv_stack(
        x2d, masks,
        params["conv1_w"], params["conv1_b"],
        params["conv2_w"], params["conv2_b"],
        width=W)
    # (B*H*W, 64) -> (B, H*W*64) is a FREE row-major reshape; fc1_w rows are
    # stored in the same (h, w, c) order so no runtime transpose is needed.
    xf = a2.reshape(B, H * W * c2)
    out = fc_stack(xf, params["fc1_w"], params["fc1_b"],
                   params["fc2_w"], params["fc2_b"])
    return out[:, :NUM_ACTIONS]


# Pure-JAX reference (same parameter layouts, same bf16 rounding of fc inputs).
def dqn_reference(params, x_nchw):
    def conv(x, w9, b):
        cin, cout = w9.shape[1], w9.shape[2]
        w = w9.reshape(3, 3, cin, cout)
        y = jax.lax.conv_general_dilated(
            x, w, window_strides=(1, 1), padding="SAME",
            dimension_numbers=("NHWC", "HWIO", "NHWC"),
            precision=jax.lax.Precision.HIGHEST)
        return jax.nn.relu(y + b.reshape(1, 1, 1, -1))

    x = jnp.transpose(x_nchw, (0, 2, 3, 1))
    x = conv(x, params["conv1_w"], params["conv1_b"])
    x = conv(x, params["conv2_w"], params["conv2_b"])
    x = x.reshape(x.shape[0], -1)                       # (h, w, c) flatten
    h = jnp.dot(x.astype(jnp.bfloat16), params["fc1_w"],
                preferred_element_type=jnp.float32)
    h = jax.nn.relu(h + params["fc1_b"])
    y = jnp.dot(h.astype(jnp.bfloat16), params["fc2_w"],
                preferred_element_type=jnp.float32) + params["fc2_b"]
    return y[:, :NUM_ACTIONS]


if __name__ == "__main__":
    key = jax.random.PRNGKey(0)
    k_param, k_x = jax.random.split(key)
    params = init_params(k_param)

    # flattened_size = 64*7*7 implies 7x7 spatial input with 6 channels.
    x = jax.random.normal(k_x, (2, 6, 7, 7), jnp.float32)   # NCHW like PyTorch

    out = jax.block_until_ready(dqn_forward(params, x))
    assert out.shape == (2, NUM_ACTIONS) and out.dtype == jnp.float32

    ref = jax.block_until_ready(dqn_reference(params, x))
    max_err = float(jnp.max(jnp.abs(out - ref)))
    assert jnp.allclose(out, ref, rtol=5e-3, atol=5e-3), max_err

    print("KERNEL_OK")
</pallas_src>

<mosaic_0001>
module attributes {stable_mosaic.version = 11 : i64} {
  func.func @_conv_stack_kernel(%arg0: i32, %arg1: memref<98x6xf32, #tpu.memory_space<vmem>>, %arg2: memref<98x9xf32, #tpu.memory_space<vmem>>, %arg3: memref<9x6x32xf32, #tpu.memory_space<vmem>>, %arg4: memref<1x32xf32, #tpu.memory_space<vmem>>, %arg5: memref<9x32x64xf32, #tpu.memory_space<vmem>>, %arg6: memref<1x64xf32, #tpu.memory_space<vmem>>, %arg7: memref<98x64xf32, #tpu.memory_space<vmem>>, %arg8: memref<114x6xf32, #tpu.memory_space<vmem>>, %arg9: memref<114x32xf32, #tpu.memory_space<vmem>>) attributes {dimension_semantics = [#tpu.dimension_semantics<arbitrary>], iteration_bounds = array<i64: 1>, scalar_prefetch = 0 : i64, scratch_operands = 2 : i64, tpu.core_type = #tpu.core_type<tc>, window_params = [{pipeline_mode = #tpu.pipeline_mode<synchronous>, transform_indices = @transform_0, window_bounds = array<i64: 98, 6>}, {pipeline_mode = #tpu.pipeline_mode<synchronous>, transform_indices = @transform_1, window_bounds = array<i64: 98, 9>}, {pipeline_mode = #tpu.pipeline_mode<synchronous>, transform_indices = @transform_2, window_bounds = array<i64: 9, 6, 32>}, {pipeline_mode = #tpu.pipeline_mode<synchronous>, transform_indices = @transform_3, window_bounds = array<i64: 1, 32>}, {pipeline_mode = #tpu.pipeline_mode<synchronous>, transform_indices = @transform_4, window_bounds = array<i64: 9, 32, 64>}, {pipeline_mode = #tpu.pipeline_mode<synchronous>, transform_indices = @transform_5, window_bounds = array<i64: 1, 64>}, {pipeline_mode = #tpu.pipeline_mode<synchronous>, transform_indices = @transform_6, window_bounds = array<i64: 98, 64>}]} {
    %c0 = arith.constant 0 : index
    %c0_0 = arith.constant 0 : index
    %0 = vector.load %arg1[%c0, %c0_0] : memref<98x6xf32, #tpu.memory_space<vmem>>, vector<98x6xf32>
    %cst = arith.constant 0.000000e+00 : f32
    %1 = vector.broadcast %cst : f32 to vector<114x6xf32>
    %c0_1 = arith.constant 0 : index
    %c0_2 = arith.constant 0 : index
    %2 = vector.load %arg8[%c0_1, %c0_2] : memref<114x6xf32, #tpu.memory_space<vmem>>, vector<114x6xf32>
    tpu.vector_store %arg8[%c0_1, %c0_2], %1 {strides = array<i32>} : memref<114x6xf32, #tpu.memory_space<vmem>>, vector<114x6xf32>,
    %c8 = arith.constant 8 : index
    %c0_3 = arith.constant 0 : index
    %3 = vector.load %arg8[%c8, %c0_3] : memref<114x6xf32, #tpu.memory_space<vmem>>, vector<98x6xf32>
    tpu.vector_store %arg8[%c8, %c0_3], %0 {strides = array<i32>} : memref<114x6xf32, #tpu.memory_space<vmem>>, vector<98x6xf32>,
    %c0_4 = arith.constant 0 : index
    %c0_5 = arith.constant 0 : index
    %4 = vector.load %arg8[%c0_4, %c0_5] : memref<114x6xf32, #tpu.memory_space<vmem>>, vector<98x6xf32>
    %c0_6 = arith.constant 0 : index
    %c0_7 = arith.constant 0 : index
    %5 = vector.load %arg2[%c0_6, %c0_7] : memref<98x9xf32, #tpu.memory_space<vmem>>, vector<98x1xf32>
    %6 = vector.broadcast %5 : vector<98x1xf32> to vector<98x6xf32>
    %7 = arith.mulf %4, %6 : vector<98x6xf32>
    %c0_8 = arith.constant 0 : index
    %c0_9 = arith.constant 0 : index
    %c0_10 = arith.constant 0 : index
    %8 = vector.load %arg3[%c0_8, %c0_9, %c0_10] : memref<9x6x32xf32, #tpu.memory_space<vmem>>, vector<1x6x32xf32>
    %9 = vector.shape_cast %8 : vector<1x6x32xf32> to vector<6x32xf32>
    %cst_11 = arith.constant dense<0.000000e+00> : vector<98x32xf32>
    %10 = tpu.matmul %7, %9, %cst_11 {dimension_numbers = #tpu.dot_dimension_numbers<[1], [0], [0], [1], [0, 0, 1, 1], [], []>} : vector<98x6xf32>, vector<6x32xf32>, vector<98x32xf32> -> vector<98x32xf32>
    %c1 = arith.constant 1 : index
    %c0_12 = arith.constant 0 : index
    %11 = vector.load %arg8[%c1, %c0_12] : memref<114x6xf32, #tpu.memory_space<vmem>>, vector<98x6xf32>
    %c0_13 = arith.constant 0 : index
    %c1_14 = arith.constant 1 : index
    %12 = vector.load %arg2[%c0_13, %c1_14] : memref<98x9xf32, #tpu.memory_space<vmem>>, vector<98x1xf32>
    %13 = vector.broadcast %12 : vector<98x1xf32> to vector<98x6xf32>
    %14 = arith.mulf %11, %13 : vector<98x6xf32>
    %c1_15 = arith.constant 1 : index
    %c0_16 = arith.constant 0 : index
    %c0_17 = arith.constant 0 : index
    %15 = vector.load %arg3[%c1_15, %c0_16, %c0_17] : memref<9x6x32xf32, #tpu.memory_space<vmem>>, vector<1x6x32xf32>
    %16 = vector.shape_cast %15 : vector<1x6x32xf32> to vector<6x32xf32>
    %cst_18 = arith.constant dense<0.000000e+00> : vector<98x32xf32>
    %17 = tpu.matmul %14, %16, %cst_18 {dimension_numbers = #tpu.dot_dimension_numbers<[1], [0], [0], [1], [0, 0, 1, 1], [], []>} : vector<98x6xf32>, vector<6x32xf32>, vector<98x32xf32> -> vector<98x32xf32>
    %18 = arith.addf %10, %17 : vector<98x32xf32>
    %c2 = arith.constant 2 : index
    %c0_19 = arith.constant 0 : index
    %19 = vector.load %arg8[%c2, %c0_19] : memref<114x6xf32, #tpu.memory_space<vmem>>, vector<98x6xf32>
    %c0_20 = arith.constant 0 : index
    %c2_21 = arith.constant 2 : index
    %20 = vector.load %arg2[%c0_20, %c2_21] : memref<98x9xf32, #tpu.memory_space<vmem>>, vector<98x1xf32>
    %21 = vector.broadcast %20 : vector<98x1xf32> to vector<98x6xf32>
    %22 = arith.mulf %19, %21 : vector<98x6xf32>
    %c2_22 = arith.constant 2 : index
    %c0_23 = arith.constant 0 : index
    %c0_24 = arith.constant 0 : index
    %23 = vector.load %arg3[%c2_22, %c0_23, %c0_24] : memref<9x6x32xf32, #tpu.memory_space<vmem>>, vector<1x6x32xf32>
    %24 = vector.shape_cast %23 : vector<1x6x32xf32> to vector<6x32xf32>
    %cst_25 = arith.constant dense<0.000000e+00> : vector<98x32xf32>
    %25 = tpu.matmul %22, %24, %cst_25 {dimension_numbers = #tpu.dot_dimension_numbers<[1], [0], [0], [1], [0, 0, 1, 1], [], []>} : vector<98x6xf32>, vector<6x32xf32>, vector<98x32xf32> -> vector<98x32xf32>
    %26 = arith.addf %18, %25 : vector<98x32xf32>
    %c7 = arith.constant 7 : index
    %c0_26 = arith.constant 0 : index
    %27 = vector.load %arg8[%c7, %c0_26] : memref<114x6xf32, #tpu.memory_space<vmem>>, vector<98x6xf32>
    %c0_27 = arith.constant 0 : index
    %c3 = arith.constant 3 : index
    %28 = vector.load %arg2[%c0_27, %c3] : memref<98x9xf32, #tpu.memory_space<vmem>>, vector<98x1xf32>
    %29 = vector.broadcast %28 : vector<98x1xf32> to vector<98x6xf32>
    %30 = arith.mulf %27, %29 : vector<98x6xf32>
    %c3_28 = arith.constant 3 : index
    %c0_29 = arith.constant 0 : index
    %c0_30 = arith.constant 0 : index
    %31 = vector.load %arg3[%c3_28, %c0_29, %c0_30] : memref<9x6x32xf32, #tpu.memory_space<vmem>>, vector<1x6x32xf32>
    %32 = vector.shape_cast %31 : vector<1x6x32xf32> to vector<6x32xf32>
    %cst_31 = arith.constant dense<0.000000e+00> : vector<98x32xf32>
    %33 = tpu.matmul %30, %32, %cst_31 {dimension_numbers = #tpu.dot_dimension_numbers<[1], [0], [0], [1], [0, 0, 1, 1], [], []>} : vector<98x6xf32>, vector<6x32xf32>, vector<98x32xf32> -> vector<98x32xf32>
    %34 = arith.addf %26, %33 : vector<98x32xf32>
    %c8_32 = arith.constant 8 : index
    %c0_33 = arith.constant 0 : index
    %35 = vector.load %arg8[%c8_32, %c0_33] : memref<114x6xf32, #tpu.memory_space<vmem>>, vector<98x6xf32>
    %c0_34 = arith.constant 0 : index
    %c4 = arith.constant 4 : index
    %36 = vector.load %arg2[%c0_34, %c4] : memref<98x9xf32, #tpu.memory_space<vmem>>, vector<98x1xf32>
    %37 = vector.broadcast %36 : vector<98x1xf32> to vector<98x6xf32>
    %38 = arith.mulf %35, %37 : vector<98x6xf32>
    %c4_35 = arith.constant 4 : index
    %c0_36 = arith.constant 0 : index
    %c0_37 = arith.constant 0 : index
    %39 = vector.load %arg3[%c4_35, %c0_36, %c0_37] : memref<9x6x32xf32, #tpu.memory_space<vmem>>, vector<1x6x32xf32>
    %40 = vector.shape_cast %39 : vector<1x6x32xf32> to vector<6x32xf32>
    %cst_38 = arith.constant dense<0.000000e+00> : vector<98x32xf32>
    %41 = tpu.matmul %38, %40, %cst_38 {dimension_numbers = #tpu.dot_dimension_numbers<[1], [0], [0], [1], [0, 0, 1, 1], [], []>} : vector<98x6xf32>, vector<6x32xf32>, vector<98x32xf32> -> vector<98x32xf32>
    %42 = arith.addf %34, %41 : vector<98x32xf32>
    %c9 = arith.constant 9 : index
    %c0_39 = arith.constant 0 : index
    %43 = vector.load %arg8[%c9, %c0_39] : memref<114x6xf32, #tpu.memory_space<vmem>>, vector<98x6xf32>
    %c0_40 = arith.constant 0 : index
    %c5 = arith.constant 5 : index
    %44 = vector.load %arg2[%c0_40, %c5] : memref<98x9xf32, #tpu.memory_space<vmem>>, vector<98x1xf32>
    %45 = vector.broadcast %44 : vector<98x1xf32> to vector<98x6xf32>
    %46 = arith.mulf %43, %45 : vector<98x6xf32>
    %c5_41 = arith.constant 5 : index
    %c0_42 = arith.constant 0 : index
    %c0_43 = arith.constant 0 : index
    %47 = vector.load %arg3[%c5_41, %c0_42, %c0_43] : memref<9x6x32xf32, #tpu.memory_space<vmem>>, vector<1x6x32xf32>
    %48 = vector.shape_cast %47 : vector<1x6x32xf32> to vector<6x32xf32>
    %cst_44 = arith.constant dense<0.000000e+00> : vector<98x32xf32>
    %49 = tpu.matmul %46, %48, %cst_44 {dimension_numbers = #tpu.dot_dimension_numbers<[1], [0], [0], [1], [0, 0, 1, 1], [], []>} : vector<98x6xf32>, vector<6x32xf32>, vector<98x32xf32> -> vector<98x32xf32>
    %50 = arith.addf %42, %49 : vector<98x32xf32>
    %c14 = arith.constant 14 : index
    %c0_45 = arith.constant 0 : index
    %51 = vector.load %arg8[%c14, %c0_45] : memref<114x6xf32, #tpu.memory_space<vmem>>, vector<98x6xf32>
    %c0_46 = arith.constant 0 : index
    %c6 = arith.constant 6 : index
    %52 = vector.load %arg2[%c0_46, %c6] : memref<98x9xf32, #tpu.memory_space<vmem>>, vector<98x1xf32>
    %53 = vector.broadcast %52 : vector<98x1xf32> to vector<98x6xf32>
    %54 = arith.mulf %51, %53 : vector<98x6xf32>
    %c6_47 = arith.constant 6 : index
    %c0_48 = arith.constant 0 : index
    %c0_49 = arith.constant 0 : index
    %55 = vector.load %arg3[%c6_47, %c0_48, %c0_49] : memref<9x6x32xf32, #tpu.memory_space<vmem>>, vector<1x6x32xf32>
    %56 = vector.shape_cast %55 : vector<1x6x32xf32> to vector<6x32xf32>
    %cst_50 = arith.constant dense<0.000000e+00> : vector<98x32xf32>
    %57 = tpu.matmul %54, %56, %cst_50 {dimension_numbers = #tpu.dot_dimension_numbers<[1], [0], [0], [1], [0, 0, 1, 1], [], []>} : vector<98x6xf32>, vector<6x32xf32>, vector<98x32xf32> -> vector<98x32xf32>
    %58 = arith.addf %50, %57 : vector<98x32xf32>
    %c15 = arith.constant 15 : index
    %c0_51 = arith.constant 0 : index
    %59 = vector.load %arg8[%c15, %c0_51] : memref<114x6xf32, #tpu.memory_space<vmem>>, vector<98x6xf32>
    %c0_52 = arith.constant 0 : index
    %c7_53 = arith.constant 7 : index
    %60 = vector.load %arg2[%c0_52, %c7_53] : memref<98x9xf32, #tpu.memory_space<vmem>>, vector<98x1xf32>
    %61 = vector.broadcast %60 : vector<98x1xf32> to vector<98x6xf32>
    %62 = arith.mulf %59, %61 : vector<98x6xf32>
    %c7_54 = arith.constant 7 : index
    %c0_55 = arith.constant 0 : index
    %c0_56 = arith.constant 0 : index
    %63 = vector.load %arg3[%c7_54, %c0_55, %c0_56] : memref<9x6x32xf32, #tpu.memory_space<vmem>>, vector<1x6x32xf32>
    %64 = vector.shape_cast %63 : vector<1x6x32xf32> to vector<6x32xf32>
    %cst_57 = arith.constant dense<0.000000e+00> : vector<98x32xf32>
    %65 = tpu.matmul %62, %64, %cst_57 {dimension_numbers = #tpu.dot_dimension_numbers<[1], [0], [0], [1], [0, 0, 1, 1], [], []>} : vector<98x6xf32>, vector<6x32xf32>, vector<98x32xf32> -> vector<98x32xf32>
    %66 = arith.addf %58, %65 : vector<98x32xf32>
    %c16 = arith.constant 16 : index
    %c0_58 = arith.constant 0 : index
    %67 = vector.load %arg8[%c16, %c0_58] : memref<114x6xf32, #tpu.memory_space<vmem>>, vector<98x6xf32>
    %c0_59 = arith.constant 0 : index
    %c8_60 = arith.constant 8 : index
    %68 = vector.load %arg2[%c0_59, %c8_60] : memref<98x9xf32, #tpu.memory_space<vmem>>, vector<98x1xf32>
    %69 = vector.broadcast %68 : vector<98x1xf32> to vector<98x6xf32>
    %70 = arith.mulf %67, %69 : vector<98x6xf32>
    %c8_61 = arith.constant 8 : index
    %c0_62 = arith.constant 0 : index
    %c0_63 = arith.constant 0 : index
    %71 = vector.load %arg3[%c8_61, %c0_62, %c0_63] : memref<9x6x32xf32, #tpu.memory_space<vmem>>, vector<1x6x32xf32>
    %72 = vector.shape_cast %71 : vector<1x6x32xf32> to vector<6x32xf32>
    %cst_64 = arith.constant dense<0.000000e+00> : vector<98x32xf32>
    %73 = tpu.matmul %70, %72, %cst_64 {dimension_numbers = #tpu.dot_dimension_numbers<[1], [0], [0], [1], [0, 0, 1, 1], [], []>} : vector<98x6xf32>, vector<6x32xf32>, vector<98x32xf32> -> vector<98x32xf32>
    %74 = arith.addf %66, %73 : vector<98x32xf32>
    %c0_65 = arith.constant 0 : index
    %c0_66 = arith.constant 0 : index
    %75 = vector.load %arg4[%c0_65, %c0_66] : memref<1x32xf32, #tpu.memory_space<vmem>>, vector<1x32xf32>
    %76 = vector.broadcast %75 : vector<1x32xf32> to vector<98x32xf32>
    %77 = arith.addf %74, %76 : vector<98x32xf32>
    %cst_67 = arith.constant 0.000000e+00 : f32
    %78 = vector.broadcast %cst_67 : f32 to vector<98x32xf32>
    %79 = arith.maximumf %77, %78 : vector<98x32xf32>
    %cst_68 = arith.constant 0.000000e+00 : f32
    %80 = vector.broadcast %cst_68 : f32 to vector<114x32xf32>
    %c0_69 = arith.constant 0 : index
    %c0_70 = arith.constant 0 : index
    %81 = vector.load %arg9[%c0_69, %c0_70] : memref<114x32xf32, #tpu.memory_space<vmem>>, vector<114x32xf32>
    tpu.vector_store %arg9[%c0_69, %c0_70], %80 {strides = array<i32>} : memref<114x32xf32, #tpu.memory_space<vmem>>, vector<114x32xf32>,
    %c8_71 = arith.constant 8 : index
    %c0_72 = arith.constant 0 : index
    %82 = vector.load %arg9[%c8_71, %c0_72] : memref<114x32xf32, #tpu.memory_space<vmem>>, vector<98x32xf32>
    tpu.vector_store %arg9[%c8_71, %c0_72], %79 {strides = array<i32>} : memref<114x32xf32, #tpu.memory_space<vmem>>, vector<98x32xf32>,
    %c0_73 = arith.constant 0 : index
    %c0_74 = arith.constant 0 : index
    %83 = vector.load %arg9[%c0_73, %c0_74] : memref<114x32xf32, #tpu.memory_space<vmem>>, vector<98x32xf32>
    %c0_75 = arith.constant 0 : index
    %c0_76 = arith.constant 0 : index
    %84 = vector.load %arg2[%c0_75, %c0_76] : memref<98x9xf32, #tpu.memory_space<vmem>>, vector<98x1xf32>
    %85 = vector.broadcast %84 : vector<98x1xf32> to vector<98x32xf32>
    %86 = arith.mulf %83, %85 : vector<98x32xf32>
    %c0_77 = arith.constant 0 : index
    %c0_78 = arith.constant 0 : index
    %c0_79 = arith.constant 0 : index
    %87 = vector.load %arg5[%c0_77, %c0_78, %c0_79] : memref<9x32x64xf32, #tpu.memory_space<vmem>>, vector<1x32x64xf32>
    %88 = vector.shape_cast %87 : vector<1x32x64xf32> to vector<32x64xf32>
    %cst_80 = arith.constant dense<0.000000e+00> : vector<98x64xf32>
    %89 = tpu.matmul %86, %88, %cst_80 {dimension_numbers = #tpu.dot_dimension_numbers<[1], [0], [0], [1], [0, 0, 1, 1], [], []>} : vector<98x32xf32>, vector<32x64xf32>, vector<98x64xf32> -> vector<98x64xf32>
    %c1_81 = arith.constant 1 : index
    %c0_82 = arith.constant 0 : index
    %90 = vector.load %arg9[%c1_81, %c0_82] : memref<114x32xf32, #tpu.memory_space<vmem>>, vector<98x32xf32>
    %c0_83 = arith.constant 0 : index
    %c1_84 = arith.constant 1 : index
    %91 = vector.load %arg2[%c0_83, %c1_84] : memref<98x9xf32, #tpu.memory_space<vmem>>, vector<98x1xf32>
    %92 = vector.broadcast %91 : vector<98x1xf32> to vector<98x32xf32>
    %93 = arith.mulf %90, %92 : vector<98x32xf32>
    %c1_85 = arith.constant 1 : index
    %c0_86 = arith.constant 0 : index
    %c0_87 = arith.constant 0 : index
    %94 = vector.load %arg5[%c1_85, %c0_86, %c0_87] : memref<9x32x64xf32, #tpu.memory_space<vmem>>, vector<1x32x64xf32>
    %95 = vector.shape_cast %94 : vector<1x32x64xf32> to vector<32x64xf32>
    %cst_88 = arith.constant dense<0.000000e+00> : vector<98x64xf32>
    %96 = tpu.matmul %93, %95, %cst_88 {dimension_numbers = #tpu.dot_dimension_numbers<[1], [0], [0], [1], [0, 0, 1, 1], [], []>} : vector<98x32xf32>, vector<32x64xf32>, vector<98x64xf32> -> vector<98x64xf32>
    %97 = arith.addf %89, %96 : vector<98x64xf32>
    %c2_89 = arith.constant 2 : index
    %c0_90 = arith.constant 0 : index
    %98 = vector.load %arg9[%c2_89, %c0_90] : memref<114x32xf32, #tpu.memory_space<vmem>>, vector<98x32xf32>
    %c0_91 = arith.constant 0 : index
    %c2_92 = arith.constant 2 : index
    %99 = vector.load %arg2[%c0_91, %c2_92] : memref<98x9xf32, #tpu.memory_space<vmem>>, vector<98x1xf32>
    %100 = vector.broadcast %99 : vector<98x1xf32> to vector<98x32xf32>
    %101 = arith.mulf %98, %100 : vector<98x32xf32>
    %c2_93 = arith.constant 2 : index
    %c0_94 = arith.constant 0 : index
    %c0_95 = arith.constant 0 : index
    %102 = vector.load %arg5[%c2_93, %c0_94, %c0_95] : memref<9x32x64xf32, #tpu.memory_space<vmem>>, vector<1x32x64xf32>
    %103 = vector.shape_cast %102 : vector<1x32x64xf32> to vector<32x64xf32>
    %cst_96 = arith.constant dense<0.000000e+00> : vector<98x64xf32>
    %104 = tpu.matmul %101, %103, %cst_96 {dimension_numbers = #tpu.dot_dimension_numbers<[1], [0], [0], [1], [0, 0, 1, 1], [], []>} : vector<98x32xf32>, vector<32x64xf32>, vector<98x64xf32> -> vector<98x64xf32>
    %105 = arith.addf %97, %104 : vector<98x64xf32>
    %c7_97 = arith.constant 7 : index
    %c0_98 = arith.constant 0 : index
    %106 = vector.load %arg9[%c7_97, %c0_98] : memref<114x32xf32, #tpu.memory_space<vmem>>, vector<98x32xf32>
    %c0_99 = arith.constant 0 : index
    %c3_100 = arith.constant 3 : index
    %107 = vector.load %arg2[%c0_99, %c3_100] : memref<98x9xf32, #tpu.memory_space<vmem>>, vector<98x1xf32>
    %108 = vector.broadcast %107 : vector<98x1xf32> to vector<98x32xf32>
    %109 = arith.mulf %106, %108 : vector<98x32xf32>
    %c3_101 = arith.constant 3 : index
    %c0_102 = arith.constant 0 : index
    %c0_103 = arith.constant 0 : index
    %110 = vector.load %arg5[%c3_101, %c0_102, %c0_103] : memref<9x32x64xf32, #tpu.memory_space<vmem>>, vector<1x32x64xf32>
    %111 = vector.shape_cast %110 : vector<1x32x64xf32> to vector<32x64xf32>
    %cst_104 = arith.constant dense<0.000000e+00> : vector<98x64xf32>
    %112 = tpu.matmul %109, %111, %cst_104 {dimension_numbers = #tpu.dot_dimension_numbers<[1], [0], [0], [1], [0, 0, 1, 1], [], []>} : vector<98x32xf32>, vector<32x64xf32>, vector<98x64xf32> -> vector<98x64xf32>
    %113 = arith.addf %105, %112 : vector<98x64xf32>
    %c8_105 = arith.constant 8 : index
    %c0_106 = arith.constant 0 : index
    %114 = vector.load %arg9[%c8_105, %c0_106] : memref<114x32xf32, #tpu.memory_space<vmem>>, vector<98x32xf32>
    %c0_107 = arith.constant 0 : index
    %c4_108 = arith.constant 4 : index
    %115 = vector.load %arg2[%c0_107, %c4_108] : memref<98x9xf32, #tpu.memory_space<vmem>>, vector<98x1xf32>
    %116 = vector.broadcast %115 : vector<98x1xf32> to vector<98x32xf32>
    %117 = arith.mulf %114, %116 : vector<98x32xf32>
    %c4_109 = arith.constant 4 : index
    %c0_110 = arith.constant 0 : index
    %c0_111 = arith.constant 0 : index
    %118 = vector.load %arg5[%c4_109, %c0_110, %c0_111] : memref<9x32x64xf32, #tpu.memory_space<vmem>>, vector<1x32x64xf32>
    %119 = vector.shape_cast %118 : vector<1x32x64xf32> to vector<32x64xf32>
    %cst_112 = arith.constant dense<0.000000e+00> : vector<98x64xf32>
    %120 = tpu.matmul %117, %119, %cst_112 {dimension_numbers = #tpu.dot_dimension_numbers<[1], [0], [0], [1], [0, 0, 1, 1], [], []>} : vector<98x32xf32>, vector<32x64xf32>, vector<98x64xf32> -> vector<98x64xf32>
    %121 = arith.addf %113, %120 : vector<98x64xf32>
    %c9_113 = arith.constant 9 : index
    %c0_114 = arith.constant 0 : index
    %122 = vector.load %arg9[%c9_113, %c0_114] : memref<114x32xf32, #tpu.memory_space<vmem>>, vector<98x32xf32>
    %c0_115 = arith.constant 0 : index
    %c5_116 = arith.constant 5 : index
    %123 = vector.load %arg2[%c0_115, %c5_116] : memref<98x9xf32, #tpu.memory_space<vmem>>, vector<98x1xf32>
    %124 = vector.broadcast %123 : vector<98x1xf32> to vector<98x32xf32>
    %125 = arith.mulf %122, %124 : vector<98x32xf32>
    %c5_117 = arith.constant 5 : index
    %c0_118 = arith.constant 0 : index
    %c0_119 = arith.constant 0 : index
    %126 = vector.load %arg5[%c5_117, %c0_118, %c0_119] : memref<9x32x64xf32, #tpu.memory_space<vmem>>, vector<1x32x64xf32>
    %127 = vector.shape_cast %126 : vector<1x32x64xf32> to vector<32x64xf32>
    %cst_120 = arith.constant dense<0.000000e+00> : vector<98x64xf32>
    %128 = tpu.matmul %125, %127, %cst_120 {dimension_numbers = #tpu.dot_dimension_numbers<[1], [0], [0], [1], [0, 0, 1, 1], [], []>} : vector<98x32xf32>, vector<32x64xf32>, vector<98x64xf32> -> vector<98x64xf32>
    %129 = arith.addf %121, %128 : vector<98x64xf32>
    %c14_121 = arith.constant 14 : index
    %c0_122 = arith.constant 0 : index
    %130 = vector.load %arg9[%c14_121, %c0_122] : memref<114x32xf32, #tpu.memory_space<vmem>>, vector<98x32xf32>
    %c0_123 = arith.constant 0 : index
    %c6_124 = arith.constant 6 : index
    %131 = vector.load %arg2[%c0_123, %c6_124] : memref<98x9xf32, #tpu.memory_space<vmem>>, vector<98x1xf32>
    %132 = vector.broadcast %131 : vector<98x1xf32> to vector<98x32xf32>
    %133 = arith.mulf %130, %132 : vector<98x32xf32>
    %c6_125 = arith.constant 6 : index
    %c0_126 = arith.constant 0 : index
    %c0_127 = arith.constant 0 : index
    %134 = vector.load %arg5[%c6_125, %c0_126, %c0_127] : memref<9x32x64xf32, #tpu.memory_space<vmem>>, vector<1x32x64xf32>
    %135 = vector.shape_cast %134 : vector<1x32x64xf32> to vector<32x64xf32>
    %cst_128 = arith.constant dense<0.000000e+00> : vector<98x64xf32>
    %136 = tpu.matmul %133, %135, %cst_128 {dimension_numbers = #tpu.dot_dimension_numbers<[1], [0], [0], [1], [0, 0, 1, 1], [], []>} : vector<98x32xf32>, vector<32x64xf32>, vector<98x64xf32> -> vector<98x64xf32>
    %137 = arith.addf %129, %136 : vector<98x64xf32>
    %c15_129 = arith.constant 15 : index
    %c0_130 = arith.constant 0 : index
    %138 = vector.load %arg9[%c15_129, %c0_130] : memref<114x32xf32, #tpu.memory_space<vmem>>, vector<98x32xf32>
    %c0_131 = arith.constant 0 : index
    %c7_132 = arith.constant 7 : index
    %139 = vector.load %arg2[%c0_131, %c7_132] : memref<98x9xf32, #tpu.memory_space<vmem>>, vector<98x1xf32>
    %140 = vector.broadcast %139 : vector<98x1xf32> to vector<98x32xf32>
    %141 = arith.mulf %138, %140 : vector<98x32xf32>
    %c7_133 = arith.constant 7 : index
    %c0_134 = arith.constant 0 : index
    %c0_135 = arith.constant 0 : index
    %142 = vector.load %arg5[%c7_133, %c0_134, %c0_135] : memref<9x32x64xf32, #tpu.memory_space<vmem>>, vector<1x32x64xf32>
    %143 = vector.shape_cast %142 : vector<1x32x64xf32> to vector<32x64xf32>
    %cst_136 = arith.constant dense<0.000000e+00> : vector<98x64xf32>
    %144 = tpu.matmul %141, %143, %cst_136 {dimension_numbers = #tpu.dot_dimension_numbers<[1], [0], [0], [1], [0, 0, 1, 1], [], []>} : vector<98x32xf32>, vector<32x64xf32>, vector<98x64xf32> -> vector<98x64xf32>
    %145 = arith.addf %137, %144 : vector<98x64xf32>
    %c16_137 = arith.constant 16 : index
    %c0_138 = arith.constant 0 : index
    %146 = vector.load %arg9[%c16_137, %c0_138] : memref<114x32xf32, #tpu.memory_space<vmem>>, vector<98x32xf32>
    %c0_139 = arith.constant 0 : index
    %c8_140 = arith.constant 8 : index
    %147 = vector.load %arg2[%c0_139, %c8_140] : memref<98x9xf32, #tpu.memory_space<vmem>>, vector<98x1xf32>
    %148 = vector.broadcast %147 : vector<98x1xf32> to vector<98x32xf32>
    %149 = arith.mulf %146, %148 : vector<98x32xf32>
    %c8_141 = arith.constant 8 : index
    %c0_142 = arith.constant 0 : index
    %c0_143 = arith.constant 0 : index
    %150 = vector.load %arg5[%c8_141, %c0_142, %c0_143] : memref<9x32x64xf32, #tpu.memory_space<vmem>>, vector<1x32x64xf32>
    %151 = vector.shape_cast %150 : vector<1x32x64xf32> to vector<32x64xf32>
    %cst_144 = arith.constant dense<0.000000e+00> : vector<98x64xf32>
    %152 = tpu.matmul %149, %151, %cst_144 {dimension_numbers = #tpu.dot_dimension_numbers<[1], [0], [0], [1], [0, 0, 1, 1], [], []>} : vector<98x32xf32>, vector<32x64xf32>, vector<98x64xf32> -> vector<98x64xf32>
    %153 = arith.addf %145, %152 : vector<98x64xf32>
    %c0_145 = arith.constant 0 : index
    %c0_146 = arith.constant 0 : index
    %154 = vector.load %arg6[%c0_145, %c0_146] : memref<1x64xf32, #tpu.memory_space<vmem>>, vector<1x64xf32>
    %155 = vector.broadcast %154 : vector<1x64xf32> to vector<98x64xf32>
    %156 = arith.addf %153, %155 : vector<98x64xf32>
    %cst_147 = arith.constant 0.000000e+00 : f32
    %157 = vector.broadcast %cst_147 : f32 to vector<98x64xf32>
    %158 = arith.maximumf %156, %157 : vector<98x64xf32>
    %c0_148 = arith.constant 0 : index
    %c0_149 = arith.constant 0 : index
    %159 = vector.load %arg7[%c0_148, %c0_149] : memref<98x64xf32, #tpu.memory_space<vmem>>, vector<98x64xf32>
    tpu.vector_store %arg7[%c0_148, %c0_149], %158 {strides = array<i32>} : memref<98x64xf32, #tpu.memory_space<vmem>>, vector<98x64xf32>,
    return
  }
  func.func @transform_0(%arg0: i32) -> (i32, i32) {
    %c0_i32 = arith.constant 0 : i32
    %c0_i32_0 = arith.constant 0 : i32
    %c0_i32_1 = arith.constant 0 : i32
    return %c0_i32, %c0_i32_0 : i32, i32
  }
  func.func @transform_1(%arg0: i32) -> (i32, i32) {
    %c0_i32 = arith.constant 0 : i32
    %c0_i32_0 = arith.constant 0 : i32
    %c0_i32_1 = arith.constant 0 : i32
    return %c0_i32, %c0_i32_0 : i32, i32
  }
  func.func @transform_2(%arg0: i32) -> (i32, i32, i32) {
    %c0_i32 = arith.constant 0 : i32
    %c0_i32_0 = arith.constant 0 : i32
    %c0_i32_1 = arith.constant 0 : i32
    %c0_i32_2 = arith.constant 0 : i32
    return %c0_i32, %c0_i32_0, %c0_i32_1 : i32, i32, i32
  }
  func.func @transform_3(%arg0: i32) -> (i32, i32) {
    %c0_i32 = arith.constant 0 : i32
    %c0_i32_0 = arith.constant 0 : i32
    %c0_i32_1 = arith.constant 0 : i32
    return %c0_i32, %c0_i32_0 : i32, i32
  }
  func.func @transform_4(%arg0: i32) -> (i32, i32, i32) {
    %c0_i32 = arith.constant 0 : i32
    %c0_i32_0 = arith.constant 0 : i32
    %c0_i32_1 = arith.constant 0 : i32
    %c0_i32_2 = arith.constant 0 : i32
    return %c0_i32, %c0_i32_0, %c0_i32_1 : i32, i32, i32
  }
  func.func @transform_5(%arg0: i32) -> (i32, i32) {
    %c0_i32 = arith.constant 0 : i32
    %c0_i32_0 = arith.constant 0 : i32
    %c0_i32_1 = arith.constant 0 : i32
    return %c0_i32, %c0_i32_0 : i32, i32
  }
  func.func @transform_6(%arg0: i32) -> (i32, i32) {
    %c0_i32 = arith.constant 0 : i32
    %c0_i32_0 = arith.constant 0 : i32
    %c0_i32_1 = arith.constant 0 : i32
    return %c0_i32, %c0_i32_0 : i32, i32
  }
}

module attributes {stable_mosaic.version = 11 : i64} {
  func.func @_fc_stack_kernel(%arg0: i32, %arg1: memref<2x3136xf32, #tpu.memory_space<vmem>>, %arg2: memref<3136x512xbf16, #tpu.memory_space<vmem>>, %arg3: memref<1x512xf32, #tpu.memory_space<vmem>>, %arg4: memref<512x640xbf16, #tpu.memory_space<vmem>>, %arg5: memref<1x640xf32, #tpu.memory_space<vmem>>, %arg6: memref<2x640xf32, #tpu.memory_space<vmem>>) attributes {dimension_semantics = [#tpu.dimension_semantics<arbitrary>], iteration_bounds = array<i64: 1>, scalar_prefetch = 0 : i64, scratch_operands = 0 : i64, tpu.core_type = #tpu.core_type<tc>, window_params = [{pipeline_mode = #tpu.pipeline_mode<synchronous>, transform_indices = @transform_0, window_bounds = array<i64: 2, 3136>}, {pipeline_mode = #tpu.pipeline_mode<synchronous>, transform_indices = @transform_1, window_bounds = array<i64: 3136, 512>}, {pipeline_mode = #tpu.pipeline_mode<synchronous>, transform_indices = @transform_2, window_bounds = array<i64: 1, 512>}, {pipeline_mode = #tpu.pipeline_mode<synchronous>, transform_indices = @transform_3, window_bounds = array<i64: 512, 640>}, {pipeline_mode = #tpu.pipeline_mode<synchronous>, transform_indices = @transform_4, window_bounds = array<i64: 1, 640>}, {pipeline_mode = #tpu.pipeline_mode<synchronous>, transform_indices = @transform_5, window_bounds = array<i64: 2, 640>}]} {
    %c0 = arith.constant 0 : index
    %c0_0 = arith.constant 0 : index
    %0 = vector.load %arg1[%c0, %c0_0] : memref<2x3136xf32, #tpu.memory_space<vmem>>, vector<2x3136xf32>
    %1 = arith.truncf %0 : vector<2x3136xf32> to vector<2x3136xbf16>
    %c0_1 = arith.constant 0 : index
    %c0_2 = arith.constant 0 : index
    %2 = vector.load %arg2[%c0_1, %c0_2] : memref<3136x512xbf16, #tpu.memory_space<vmem>>, vector<3136x512xbf16>
    %cst = arith.constant dense<0.000000e+00> : vector<2x512xf32>
    %3 = tpu.matmul %1, %2, %cst {dimension_numbers = #tpu.dot_dimension_numbers<[1], [0], [0], [1], [0, 0, 1, 1], [], []>} : vector<2x3136xbf16>, vector<3136x512xbf16>, vector<2x512xf32> -> vector<2x512xf32>
    %c0_3 = arith.constant 0 : index
    %c0_4 = arith.constant 0 : index
    %4 = vector.load %arg3[%c0_3, %c0_4] : memref<1x512xf32, #tpu.memory_space<vmem>>, vector<1x512xf32>
    %5 = vector.broadcast %4 : vector<1x512xf32> to vector<2x512xf32>
    %6 = arith.addf %3, %5 : vector<2x512xf32>
    %cst_5 = arith.constant 0.000000e+00 : f32
    %7 = vector.broadcast %cst_5 : f32 to vector<2x512xf32>
    %8 = arith.maximumf %6, %7 : vector<2x512xf32>
    %9 = arith.truncf %8 : vector<2x512xf32> to vector<2x512xbf16>
    %c0_6 = arith.constant 0 : index
    %c0_7 = arith.constant 0 : index
    %10 = vector.load %arg4[%c0_6, %c0_7] : memref<512x640xbf16, #tpu.memory_space<vmem>>, vector<512x640xbf16>
    %cst_8 = arith.constant dense<0.000000e+00> : vector<2x640xf32>
    %11 = tpu.matmul %9, %10, %cst_8 {dimension_numbers = #tpu.dot_dimension_numbers<[1], [0], [0], [1], [0, 0, 1, 1], [], []>} : vector<2x512xbf16>, vector<512x640xbf16>, vector<2x640xf32> -> vector<2x640xf32>
    %c0_9 = arith.constant 0 : index
    %c0_10 = arith.constant 0 : index
    %12 = vector.load %arg5[%c0_9, %c0_10] : memref<1x640xf32, #tpu.memory_space<vmem>>, vector<1x640xf32>
    %13 = vector.broadcast %12 : vector<1x640xf32> to vector<2x640xf32>
    %14 = arith.addf %11, %13 : vector<2x640xf32>
    %c0_11 = arith.constant 0 : index
    %c0_12 = arith.constant 0 : index
    %15 = vector.load %arg6[%c0_11, %c0_12] : memref<2x640xf32, #tpu.memory_space<vmem>>, vector<2x640xf32>
    tpu.vector_store %arg6[%c0_11, %c0_12], %14 {strides = array<i32>} : memref<2x640xf32, #tpu.memory_space<vmem>>, vector<2x640xf32>,
    return
  }
  func.func @transform_0(%arg0: i32) -> (i32, i32) {
    %c0_i32 = arith.constant 0 : i32
    %c0_i32_0 = arith.constant 0 : i32
    %c0_i32_1 = arith.constant 0 : i32
    return %c0_i32, %c0_i32_0 : i32, i32
  }
  func.func @transform_1(%arg0: i32) -> (i32, i32) {
    %c0_i32 = arith.constant 0 : i32
    %c0_i32_0 = arith.constant 0 : i32
    %c0_i32_1 = arith.constant 0 : i32
    return %c0_i32, %c0_i32_0 : i32, i32
  }
  func.func @transform_2(%arg0: i32) -> (i32, i32) {
    %c0_i32 = arith.constant 0 : i32
    %c0_i32_0 = arith.constant 0 : i32
    %c0_i32_1 = arith.constant 0 : i32
    return %c0_i32, %c0_i32_0 : i32, i32
  }
  func.func @transform_3(%arg0: i32) -> (i32, i32) {
    %c0_i32 = arith.constant 0 : i32
    %c0_i32_0 = arith.constant 0 : i32
    %c0_i32_1 = arith.constant 0 : i32
    return %c0_i32, %c0_i32_0 : i32, i32
  }
  func.func @transform_4(%arg0: i32) -> (i32, i32) {
    %c0_i32 = arith.constant 0 : i32
    %c0_i32_0 = arith.constant 0 : i32
    %c0_i32_1 = arith.constant 0 : i32
    return %c0_i32, %c0_i32_0 : i32, i32
  }
  func.func @transform_5(%arg0: i32) -> (i32, i32) {
    %c0_i32 = arith.constant 0 : i32
    %c0_i32_0 = arith.constant 0 : i32
    %c0_i32_1 = arith.constant 0 : i32
    return %c0_i32, %c0_i32_0 : i32, i32
  }
}

</mosaic_0001>

<llo_original>
// kernel: dqn_forward.2
$region0: #{dqn_forward.2}
  #allocation0 [shape = 'u32[]', space=smem, size = 0x4, offset = 0x4, fixed_abs, tag = 'smem constant byte address 0x4 - core index']
  #allocation1 [shape = 'u32[144,128]{1,0:T(1,128)}', space=vmem, size = 0x12000, scoped, tag = 'internal scratch']
  #allocation2 [shape = 'f32[114,6]{1,0:T(8,128)}', space=vmem, size = 0xf000, scoped, tag = 'scratch operand']
  #allocation3 [shape = 'f32[114,32]{1,0:T(8,128)}', space=vmem, size = 0xf000, scoped, tag = 'scratch operand']
  %s0 = inlined_call_operand.vmem [shape: f32[98,6], index: 0, kind: input, shape index: {}]
  %s1 = inlined_call_operand.hbm [shape: f32[98,9], index: 1, kind: input, shape index: {}]
  %s2 = inlined_call_operand.hbm [shape: f32[9,6,32], index: 2, kind: input, shape index: {}]
  %s3 = inlined_call_operand.hbm [shape: f32[1,32], index: 3, kind: input, shape index: {}]
  %s4 = inlined_call_operand.hbm [shape: f32[9,32,64], index: 4, kind: input, shape index: {}]
  %s5 = inlined_call_operand.hbm [shape: f32[1,64], index: 5, kind: input, shape index: {}]
  %s6 = inlined_call_operand.vmem [shape: f32[98,64], index: 6, kind: output, shape index: {}]
  %s7 = sld [smem:[#allocation0]]
  $region54: #{dqn_forward.2} parent=0
    _
  %s9 = ssub.s32 1, %s7
  %s10 = scalar_select 0, %s9, %s7
  $region1: #{dqn_forward.2} parent=0
    #allocation4 [shape = 'u8[53248]{0}', space=vmem, size = 0xd000, scoped, tag = 'input window, operand 1, single buffered']
    #allocation5 [shape = 's32[1]{0}', space=sflag, size = 0x4, scoped, tag = 'scoped memory for dqn_forward.2']
    #allocation6 [shape = 'u8[36864]{0}', space=vmem, size = 0x9000, scoped, tag = 'input window, operand 2, single buffered']
    #allocation7 [shape = 's32[1]{0}', space=sflag, size = 0x4, scoped, tag = 'scoped memory for dqn_forward.2']
    #allocation8 [shape = 'u8[512]{0}', space=vmem, size = 0x400, scoped, tag = 'input window, operand 3, single buffered']
    #allocation9 [shape = 'u8[147456]{0}', space=vmem, size = 0x24000, scoped, tag = 'input window, operand 4, single buffered']
    #allocation10 [shape = 's32[1]{0}', space=sflag, size = 0x4, scoped, tag = 'scoped memory for dqn_forward.2']
    #allocation11 [shape = 'u8[512]{0}', space=vmem, size = 0x400, scoped, tag = 'input window, operand 5, single buffered']
    %11 = vsyncpa [#allocation5], 0
    %12 = vsyncpa [#allocation7], 0
    %13 = vsyncpa [#allocation10], 0
    // Predicated region
    $region2: #{dqn_forward.2} parent=1 // pred_check
      _
    $region3: #{dqn_forward.2} parent=1 // pred_check_branch
      %15 = sbr.rel (0) target = $region5
    $region4: #{dqn_forward.2} parent=1 // pred_region
      _
    $region5: #{dqn_forward.2} parent=1 // pred_fallthru
      _
    // Predicated region
    $region6: #{dqn_forward.2} parent=1 // pred_check
      _
    $region7: #{dqn_forward.2} parent=1 // pred_check_branch
      %17 = sbr.rel (0) target = $region9
    $region8: #{dqn_forward.2} parent=1 // pred_region
      %s19 = ssub.s32 1664, 1664
      %20 = vsyncadd [#allocation5], %s19
      %s21 = sshll.u32 [#allocation4], 4
      %s22 = int_to_ptr.vmem [resolvable:$true] %s21
      %27 = dma.hbm_to_vmem [thread:$0]  %s1, 1664, %s22, [#allocation5], 128, 128, 8
    $region9: #{dqn_forward.2} parent=1 // pred_fallthru
      _
    // Predicated region
    $region10: #{dqn_forward.2} parent=1 // pred_check
      _
    $region11: #{dqn_forward.2} parent=1 // pred_check_branch
      %29 = sbr.rel (0) target = $region13
    $region12: #{dqn_forward.2} parent=1 // pred_region
      %s31 = ssub.s32 1152, 1152
      %32 = vsyncadd [#allocation7], %s31
      %s33 = sshll.u32 [#allocation6], 4
      %s34 = int_to_ptr.vmem [resolvable:$true] %s33
      %39 = dma.hbm_to_vmem [thread:$0]  %s2, 1152, %s34, [#allocation7], 128, 128, 8
    $region13: #{dqn_forward.2} parent=1 // pred_fallthru
      _
    // Predicated region
    $region14: #{dqn_forward.2} parent=1 // pred_check
      _
    $region15: #{dqn_forward.2} parent=1 // pred_check_branch
      %41 = sbr.rel (0) target = $region17
    $region16: #{dqn_forward.2} parent=1 // pred_region
      %s43 = ssub.s32 16, 16
      %44 = vsyncadd [#allocation7], %s43
      %s46 = sshll.u32 [#allocation8], 4
      %s47 = int_to_ptr.vmem [resolvable:$true] %s46
      %49 = dma.hbm_to_vmem [thread:$0]  %s3, 16, %s47, [#allocation7]
    $region17: #{dqn_forward.2} parent=1 // pred_fallthru
      _
    // Predicated region
    $region18: #{dqn_forward.2} parent=1 // pred_check
      _
    $region19: #{dqn_forward.2} parent=1 // pred_check_branch
      %51 = sbr.rel (0) target = $region21
    $region20: #{dqn_forward.2} parent=1 // pred_region
      %s53 = ssub.s32 4608, 4608
      %54 = vsyncadd [#allocation10], %s53
      %s55 = sshll.u32 [#allocation9], 4
      %s56 = int_to_ptr.vmem [resolvable:$true] %s55
      %61 = dma.hbm_to_vmem [thread:$0]  %s4, 4608, %s56, [#allocation10], 128, 128, 8
    $region21: #{dqn_forward.2} parent=1 // pred_fallthru
      _
    // Predicated region
    $region22: #{dqn_forward.2} parent=1 // pred_check
      _
    $region23: #{dqn_forward.2} parent=1 // pred_check_branch
      %63 = sbr.rel (0) target = $region25
    $region24: #{dqn_forward.2} parent=1 // pred_region
      %s65 = ssub.s32 16, 16
      %66 = vsyncadd [#allocation10], %s65
      %s68 = sshll.u32 [#allocation11], 4
      %s69 = int_to_ptr.vmem [resolvable:$true] %s68
      %71 = dma.hbm_to_vmem [thread:$0]  %s5, 16, %s69, [#allocation10]
    $region25: #{dqn_forward.2} parent=1 // pred_fallthru
      _
    // Predicated region
    $region26: #{dqn_forward.2} parent=1 // pred_check
      _
    $region27: #{dqn_forward.2} parent=1 // pred_check_branch
      %73 = sbr.rel (0) target = $region29
    $region28: #{dqn_forward.2} parent=1 // pred_region
      %74 = dma.done [#allocation5], 1664
    $region29: #{dqn_forward.2} parent=1 // pred_fallthru
      _
    // Predicated region
    $region30: #{dqn_forward.2} parent=1 // pred_check
      _
    $region31: #{dqn_forward.2} parent=1 // pred_check_branch
      %76 = sbr.rel (0) target = $region33
    $region32: #{dqn_forward.2} parent=1 // pred_region
      %77 = dma.done [#allocation7], 1152
    $region33: #{dqn_forward.2} parent=1 // pred_fallthru
      _
    // Predicated region
    $region34: #{dqn_forward.2} parent=1 // pred_check
      _
    $region35: #{dqn_forward.2} parent=1 // pred_check_branch
      %79 = sbr.rel (0) target = $region37
    $region36: #{dqn_forward.2} parent=1 // pred_region
      %80 = dma.done [#allocation7], 16
    $region37: #{dqn_forward.2} parent=1 // pred_fallthru
      _
    // Predicated region
    $region38: #{dqn_forward.2} parent=1 // pred_check
      _
    $region39: #{dqn_forward.2} parent=1 // pred_check_branch
      %82 = sbr.rel (0) target = $region41
    $region40: #{dqn_forward.2} parent=1 // pred_region
      %83 = dma.done [#allocation10], 4608
    $region41: #{dqn_forward.2} parent=1 // pred_fallthru
      _
    // Predicated region
    $region42: #{dqn_forward.2} parent=1 // pred_check
      _
    $region43: #{dqn_forward.2} parent=1 // pred_check_branch
      %85 = sbr.rel (0) target = $region45
    $region44: #{dqn_forward.2} parent=1 // pred_region
      %86 = dma.done [#allocation10], 16
    $region45: #{dqn_forward.2} parent=1 // pred_fallthru
      _
    %v87 = vld [vmem:[%s0] sm:$0xff]
    %v88 = vld [vmem:[%s0 + $0x8] sm:$0xff]
    %v89 = vld [vmem:[%s0 + $0x10] sm:$0xff]
    %v90 = vld [vmem:[%s0 + $0x18] sm:$0xff]
    %v91 = vld [vmem:[%s0 + $0x20] sm:$0xff]
    %v92 = vld [vmem:[%s0 + $0x28] sm:$0xff]
    %v93 = vld [vmem:[%s0 + $0x30] sm:$0xff]
    %v94 = vld [vmem:[%s0 + $0x38] sm:$0xff]
    %v95 = vld [vmem:[%s0 + $0x40] sm:$0xff]
    %v96 = vld [vmem:[%s0 + $0x48] sm:$0xff]
    %v97 = vld [vmem:[%s0 + $0x50] sm:$0xff]
    %v98 = vld [vmem:[%s0 + $0x58] sm:$0xff]
    %v99 = vld [vmem:[%s0 + $0x60] sm:$0x3]
    %vm100 = vcmask 48128
    %101 = vst.msk [vmem:[#allocation2] sm:$0xff] %vm100, 0.0
    %102 = vst.msk [vmem:[#allocation2 + $0x8] sm:$0xff] %vm100, 0.0
    %103 = vst.msk [vmem:[#allocation2 + $0x10] sm:$0xff] %vm100, 0.0
    %104 = vst.msk [vmem:[#allocation2 + $0x18] sm:$0xff] %vm100, 0.0
    %105 = vst.msk [vmem:[#allocation2 + $0x20] sm:$0xff] %vm100, 0.0
    %106 = vst.msk [vmem:[#allocation2 + $0x28] sm:$0xff] %vm100, 0.0
    %107 = vst.msk [vmem:[#allocation2 + $0x30] sm:$0xff] %vm100, 0.0
    %108 = vst.msk [vmem:[#allocation2 + $0x38] sm:$0xff] %vm100, 0.0
    %109 = vst.msk [vmem:[#allocation2 + $0x40] sm:$0xff] %vm100, 0.0
    %110 = vst.msk [vmem:[#allocation2 + $0x48] sm:$0xff] %vm100, 0.0
    %111 = vst.msk [vmem:[#allocation2 + $0x50] sm:$0xff] %vm100, 0.0
    %112 = vst.msk [vmem:[#allocation2 + $0x58] sm:$0xff] %vm100, 0.0
    %113 = vst.msk [vmem:[#allocation2 + $0x60] sm:$0xff] %vm100, 0.0
    %114 = vst.msk [vmem:[#allocation2 + $0x68] sm:$0xff] %vm100, 0.0
    %vm115 = vcmask 41984
    %116 = vst.msk [vmem:[#allocation2 + $0x70] sm:$0x3] %vm115, 0.0
    %117 = vst.msk [vmem:[#allocation2 + $0x8] sm:$0xff] %vm100, %v87
    %118 = vst.msk [vmem:[#allocation2 + $0x10] sm:$0xff] %vm100, %v88
    %119 = vst.msk [vmem:[#allocation2 + $0x18] sm:$0xff] %vm100, %v89
    %120 = vst.msk [vmem:[#allocation2 + $0x20] sm:$0xff] %vm100, %v90
    %121 = vst.msk [vmem:[#allocation2 + $0x28] sm:$0xff] %vm100, %v91
    %122 = vst.msk [vmem:[#allocation2 + $0x30] sm:$0xff] %vm100, %v92
    %123 = vst.msk [vmem:[#allocation2 + $0x38] sm:$0xff] %vm100, %v93
    %124 = vst.msk [vmem:[#allocation2 + $0x40] sm:$0xff] %vm100, %v94
    %125 = vst.msk [vmem:[#allocation2 + $0x48] sm:$0xff] %vm100, %v95
    %126 = vst.msk [vmem:[#allocation2 + $0x50] sm:$0xff] %vm100, %v96
    %127 = vst.msk [vmem:[#allocation2 + $0x58] sm:$0xff] %vm100, %v97
    %128 = vst.msk [vmem:[#allocation2 + $0x60] sm:$0xff] %vm100, %v98
    %129 = vst.msk [vmem:[#allocation2 + $0x68] sm:$0x3] %vm115, %v99
    %v130 = vld [vmem:[#allocation2] sm:$0xff]
    %v131 = vld [vmem:[#allocation2 + $0x8] sm:$0xff]
    %v132 = vld [vmem:[#allocation2 + $0x10] sm:$0xff]
    %v133 = vld [vmem:[#allocation2 + $0x18] sm:$0xff]
    %v134 = vld [vmem:[#allocation2 + $0x20] sm:$0xff]
    %v135 = vld [vmem:[#allocation2 + $0x28] sm:$0xff]
    %v136 = vld [vmem:[#allocation2 + $0x30] sm:$0xff]
    %v137 = vld [vmem:[#allocation2 + $0x38] sm:$0xff]
    %v138 = vld [vmem:[#allocation2 + $0x40] sm:$0xff]
    %v139 = vld [vmem:[#allocation2 + $0x48] sm:$0xff]
    %v140 = vld [vmem:[#allocation2 + $0x50] sm:$0xff]
    %v141 = vld [vmem:[#allocation2 + $0x58] sm:$0xff]
    %v142 = vld [vmem:[#allocation2 + $0x60] sm:$0x3]
    %v143 = vld [vmem:[#allocation4] sm:$0xff]
    %v144 = vld [vmem:[#allocation4 + $0x8] sm:$0xff]
    %v145 = vld [vmem:[#allocation4 + $0x10] sm:$0xff]
    %v146 = vld [vmem:[#allocation4 + $0x18] sm:$0xff]
    %v147 = vld [vmem:[#allocation4 + $0x20] sm:$0xff]
    %v148 = vld [vmem:[#allocation4 + $0x28] sm:$0xff]
    %v149 = vld [vmem:[#allocation4 + $0x30] sm:$0xff]
    %v150 = vld [vmem:[#allocation4 + $0x38] sm:$0xff]
    %v151 = vld [vmem:[#allocation4 + $0x40] sm:$0xff]
    %v152 = vld [vmem:[#allocation4 + $0x48] sm:$0xff]
    %v153 = vld [vmem:[#allocation4 + $0x50] sm:$0xff]
    %v154 = vld [vmem:[#allocation4 + $0x58] sm:$0xff]
    %v155 = vld [vmem:[#allocation4 + $0x60] sm:$0x3]
    %157 = vset.pattern.permute.xlu0 0
    %158 = vperm.xlu0 %157, %v143
    %v159 = vpop.permute.xlu0 %158
    %162 = vset.pattern.permute.xlu0 0
    %163 = vperm.xlu0 %162, %v144
    %v164 = vpop.permute.xlu0 %163
    %167 = vset.pattern.permute.xlu0 0
    %168 = vperm.xlu0 %167, %v145
    %v169 = vpop.permute.xlu0 %168
    %172 = vset.pattern.permute.xlu0 0
    %173 = vperm.xlu0 %172, %v146
    %v174 = vpop.permute.xlu0 %173
    %177 = vset.pattern.permute.xlu0 0
    %178 = vperm.xlu0 %177, %v147
    %v179 = vpop.permute.xlu0 %178
    %182 = vset.pattern.permute.xlu0 0
    %183 = vperm.xlu0 %182, %v148
    %v184 = vpop.permute.xlu0 %183
    %187 = vset.pattern.permute.xlu0 0
    %188 = vperm.xlu0 %187, %v149
    %v189 = vpop.permute.xlu0 %188
    %192 = vset.pattern.permute.xlu0 0
    %193 = vperm.xlu0 %192, %v150
    %v194 = vpop.permute.xlu0 %193
    %197 = vset.pattern.permute.xlu0 0
    %198 = vperm.xlu0 %197, %v151
    %v199 = vpop.permute.xlu0 %198
    %202 = vset.pattern.permute.xlu0 0
    %203 = vperm.xlu0 %202, %v152
    %v204 = vpop.permute.xlu0 %203
    %207 = vset.pattern.permute.xlu0 0
    %208 = vperm.xlu0 %207, %v153
    %v209 = vpop.permute.xlu0 %208
    %212 = vset.pattern.permute.xlu0 0
    %213 = vperm.xlu0 %212, %v154
    %v214 = vpop.permute.xlu0 %213
    %217 = vset.pattern.permute.xlu0 0
    %218 = vperm.xlu0 %217, %v155
    %v219 = vpop.permute.xlu0 %218
    %v221 = vmul.f32 %v130, %v159
    %v222 = vmul.f32 %v131, %v164
    %v223 = vmul.f32 %v132, %v169
    %v224 = vmul.f32 %v133, %v174
    %v225 = vmul.f32 %v134, %v179
    %v226 = vmul.f32 %v135, %v184
    %v227 = vmul.f32 %v136, %v189
    %v228 = vmul.f32 %v137, %v194
    %v229 = vmul.f32 %v138, %v199
    %v230 = vmul.f32 %v139, %v204
    %v231 = vmul.f32 %v140, %v209
    %v232 = vmul.f32 %v141, %v214
    %v233 = vmul.f32 %v142, %v219
    %v234 = vld [vmem:[#allocation6] sm:$0x3f]
    %v235 = vld [vmem:[#allocation2 + $0x1] sm:$0xff]
    %v236 = vld [vmem:[#allocation2 + $0x9] sm:$0xff]
    %v237 = vld [vmem:[#allocation2 + $0x11] sm:$0xff]
    %v238 = vld [vmem:[#allocation2 + $0x19] sm:$0xff]
    %v239 = vld [vmem:[#allocation2 + $0x21] sm:$0xff]
    %v240 = vld [vmem:[#allocation2 + $0x29] sm:$0xff]
    %v241 = vld [vmem:[#allocation2 + $0x31] sm:$0xff]
    %v242 = vld [vmem:[#allocation2 + $0x39] sm:$0xff]
    %v243 = vld [vmem:[#allocation2 + $0x41] sm:$0xff]
    %v244 = vld [vmem:[#allocation2 + $0x49] sm:$0xff]
    %v245 = vld [vmem:[#allocation2 + $0x51] sm:$0xff]
    %v246 = vld [vmem:[#allocation2 + $0x59] sm:$0xff]
    %v247 = vld [vmem:[#allocation2 + $0x61] sm:$0x3]
    %248 = vset.pattern.permute.xlu0 1
    %249 = vperm.xlu0 %248, %v143
    %v250 = vpop.permute.xlu0 %249
    %252 = vset.pattern.permute.xlu0 1
    %253 = vperm.xlu0 %252, %v144
    %v254 = vpop.permute.xlu0 %253
    %256 = vset.pattern.permute.xlu0 1
    %257 = vperm.xlu0 %256, %v145
    %v258 = vpop.permute.xlu0 %257
    %260 = vset.pattern.permute.xlu0 1
    %261 = vperm.xlu0 %260, %v146
    %v262 = vpop.permute.xlu0 %261
    %264 = vset.pattern.permute.xlu0 1
    %265 = vperm.xlu0 %264, %v147
    %v266 = vpop.permute.xlu0 %265
    %268 = vset.pattern.permute.xlu0 1
    %269 = vperm.xlu0 %268, %v148
    %v270 = vpop.permute.xlu0 %269
    %272 = vset.pattern.permute.xlu0 1
    %273 = vperm.xlu0 %272, %v149
    %v274 = vpop.permute.xlu0 %273
    %276 = vset.pattern.permute.xlu0 1
    %277 = vperm.xlu0 %276, %v150
    %v278 = vpop.permute.xlu0 %277
    %280 = vset.pattern.permute.xlu0 1
    %281 = vperm.xlu0 %280, %v151
    %v282 = vpop.permute.xlu0 %281
    %284 = vset.pattern.permute.xlu0 1
    %285 = vperm.xlu0 %284, %v152
    %v286 = vpop.permute.xlu0 %285
    %288 = vset.pattern.permute.xlu0 1
    %289 = vperm.xlu0 %288, %v153
    %v290 = vpop.permute.xlu0 %289
    %292 = vset.pattern.permute.xlu0 1
    %293 = vperm.xlu0 %292, %v154
    %v294 = vpop.permute.xlu0 %293
    %296 = vset.pattern.permute.xlu0 1
    %297 = vperm.xlu0 %296, %v155
    %v298 = vpop.permute.xlu0 %297
    %v300 = vmul.f32 %v235, %v250
    %v301 = vmul.f32 %v236, %v254
    %v302 = vmul.f32 %v237, %v258
    %v303 = vmul.f32 %v238, %v262
    %v304 = vmul.f32 %v239, %v266
    %v305 = vmul.f32 %v240, %v270
    %v306 = vmul.f32 %v241, %v274
    %v307 = vmul.f32 %v242, %v278
    %v308 = vmul.f32 %v243, %v282
    %v309 = vmul.f32 %v244, %v286
    %v310 = vmul.f32 %v245, %v290
    %v311 = vmul.f32 %v246, %v294
    %v312 = vmul.f32 %v247, %v298
    %s313 = scalar_lea.vmem [#allocation6], 8
    %v314 = vld [vmem:[%s313] sm:$0x3f]
    %v316 = vsel %vm100, %v300, 0
    %v319 = vsel %vm100, %v301, 0
    %v322 = vsel %vm100, %v302, 0
    %v325 = vsel %vm100, %v303, 0
    %v328 = vsel %vm100, %v304, 0
    %v331 = vsel %vm100, %v305, 0
    %v334 = vsel %vm100, %v306, 0
    %v337 = vsel %vm100, %v307, 0
    %v340 = vsel %vm100, %v308, 0
    %v343 = vsel %vm100, %v309, 0
    %v346 = vsel %vm100, %v310, 0
    %v349 = vsel %vm100, %v311, 0
    %v352 = vsel %vm100, %v312, 0
    %vm354 = vcmask 1045504
    %v356 = vsel %vm354, %v314, 0
    %358 = vmatprep.subr.mxu0 0.0
    %359 = vmatpush1.msra.mxu0 %v356
    %360 = vmatprep.subr.mxu0 0.0
    %361 = vmatpush1.msra.mxu0 0.0
    %362 = vmatprep.subr.mxu0 0.0
    %363 = vmatpush1.msra.mxu0 0.0
    %364 = vmatprep.subr.mxu0 0.0
    %365 = vmatpush1.msra.mxu0 0.0
    %366 = vmatprep.subr.mxu0 0.0
    %367 = vmatpush1.msra.mxu0 0.0
    %368 = vmatprep.subr.mxu0 0.0
    %369 = vmatpush1.msra.mxu0 0.0
    %370 = vmatprep.subr.mxu0 0.0
    %371 = vmatpush1.msra.mxu0 0.0
    %372 = vmatprep.subr.mxu0 0.0
    %373 = vmatpush1.msra.mxu0 0.0
    %374 = vmatprep.subr.mxu0 0.0
    %375 = vmatpush1.msra.mxu0 0.0
    %376 = vmatprep.subr.mxu0 0.0
    %377 = vmatpush1.msra.mxu0 0.0
    %378 = vmatprep.subr.mxu0 0.0
    %379 = vmatpush1.msra.mxu0 0.0
    %380 = vmatprep.subr.mxu0 0.0
    %381 = vmatpush1.msra.mxu0 0.0
    %382 = vmatprep.subr.mxu0 0.0
    %383 = vmatpush1.msra.mxu0 0.0
    %384 = vmatprep.subr.mxu0 0.0
    %385 = vmatpush1.msra.mxu0 0.0
    %386 = vmatprep.subr.mxu0 0.0
    %387 = vmatpush1.msra.mxu0 0.0
    %388 = vmatprep.subr.mxu0 0.0
    %389 = vmatpush1.msra.mxu0 0.0
    %390 = vmatprep.subr.mxu0 0.0
    %391 = vmatpush1.msra.mxu0 0.0
    %392 = vmatprep.subr.mxu0 0.0
    %393 = vmatpush1.msra.mxu0 0.0
    %394 = vmatprep.subr.mxu0 0.0
    %395 = vmatpush1.msra.mxu0 0.0
    %396 = vmatprep.subr.mxu0 0.0
    %397 = vmatpush1.msra.mxu0 0.0
    %398 = vmatprep.subr.mxu0 0.0
    %399 = vmatpush1.msra.mxu0 0.0
    %400 = vmatprep.subr.mxu0 0.0
    %401 = vmatpush1.msra.mxu0 0.0
    %402 = vmatprep.subr.mxu0 0.0
    %403 = vmatpush1.msra.mxu0 0.0
    %404 = vmatprep.subr.mxu0 0.0
    %405 = vmatpush1.msra.mxu0 0.0
    %406 = vmatprep.subr.mxu0 0.0
    %407 = vmatpush1.msra.mxu0 0.0
    %408 = vmatprep.subr.mxu0 0.0
    %409 = vmatpush1.msra.mxu0 0.0
    %410 = vmatprep.subr.mxu0 0.0
    %411 = vmatpush1.msra.mxu0 0.0
    %412 = vmatprep.subr.mxu0 0.0
    %413 = vmatpush1.msra.mxu0 0.0
    %414 = vmatprep.subr.mxu0 0.0
    %415 = vmatpush1.msra.mxu0 0.0
    %416 = vmatprep.subr.mxu0 0.0
    %417 = vmatpush1.msra.mxu0 0.0
    %418 = vmatprep.subr.mxu0 0.0
    %419 = vmatpush1.msra.mxu0 0.0
    %420 = vmatprep.subr.mxu0 0.0
    %421 = vmatpush1.msra.mxu0 0.0
    %422 = vmatprep.mubr.f32.mxu0 0.0
    %423 = vmatmul.mubr.f32.gmra.mrb[0].mxu0 %v316
    %v424 = vpop.f32.mrb[0].mxu0
    %v425 = vadd.f32 0.0, %v424
    %v426 = vpop.f32.mrb[0].mxu0
    %427 = vmatprep.mubr.f32.mxu0 0.0
    %428 = vmatmul.mubr.f32.gmra.mrb[0].mxu0 %v319
    %v429 = vpop.f32.mrb[0].mxu0
    %v430 = vadd.f32 0.0, %v429
    %v431 = vpop.f32.mrb[0].mxu0
    %432 = vmatprep.mubr.f32.mxu0 0.0
    %433 = vmatmul.mubr.f32.gmra.mrb[0].mxu0 %v322
    %v434 = vpop.f32.mrb[0].mxu0
    %v435 = vadd.f32 0.0, %v434
    %v436 = vpop.f32.mrb[0].mxu0
    %437 = vmatprep.mubr.f32.mxu0 0.0
    %438 = vmatmul.mubr.f32.gmra.mrb[0].mxu0 %v325
    %v439 = vpop.f32.mrb[0].mxu0
    %v440 = vadd.f32 0.0, %v439
    %v441 = vpop.f32.mrb[0].mxu0
    %442 = vmatprep.mubr.f32.mxu0 0.0
    %443 = vmatmul.mubr.f32.gmra.mrb[0].mxu0 %v328
    %v444 = vpop.f32.mrb[0].mxu0
    %v445 = vadd.f32 0.0, %v444
    %v446 = vpop.f32.mrb[0].mxu0
    %447 = vmatprep.mubr.f32.mxu0 0.0
    %448 = vmatmul.mubr.f32.gmra.mrb[0].mxu0 %v331
    %v449 = vpop.f32.mrb[0].mxu0
    %v450 = vadd.f32 0.0, %v449
    %v451 = vpop.f32.mrb[0].mxu0
    %452 = vmatprep.mubr.f32.mxu0 0.0
    %453 = vmatmul.mubr.f32.gmra.mrb[0].mxu0 %v334
    %v454 = vpop.f32.mrb[0].mxu0
    %v455 = vadd.f32 0.0, %v454
    %v456 = vpop.f32.mrb[0].mxu0
    %457 = vmatprep.mubr.f32.mxu0 0.0
    %458 = vmatmul.mubr.f32.gmra.mrb[0].mxu0 %v337
    %v459 = vpop.f32.mrb[0].mxu0
    %v460 = vadd.f32 0.0, %v459
    %v461 = vpop.f32.mrb[0].mxu0
    %462 = vmatprep.mubr.f32.mxu0 0.0
    %463 = vmatmul.mubr.f32.gmra.mrb[0].mxu0 %v340
    %v464 = vpop.f32.mrb[0].mxu0
    %v465 = vadd.f32 0.0, %v464
    %v466 = vpop.f32.mrb[0].mxu0
    %467 = vmatprep.mubr.f32.mxu0 0.0
    %468 = vmatmul.mubr.f32.gmra.mrb[0].mxu0 %v343
    %v469 = vpop.f32.mrb[0].mxu0
    %v470 = vadd.f32 0.0, %v469
    %v471 = vpop.f32.mrb[0].mxu0
    %472 = vmatprep.mubr.f32.mxu0 0.0
    %473 = vmatmul.mubr.f32.gmra.mrb[0].mxu0 %v346
    %v474 = vpop.f32.mrb[0].mxu0
    %v475 = vadd.f32 0.0, %v474
    %v476 = vpop.f32.mrb[0].mxu0
    %477 = vmatprep.mubr.f32.mxu0 0.0
    %478 = vmatmul.mubr.f32.gmra.mrb[0].mxu0 %v349
    %v479 = vpop.f32.mrb[0].mxu0
    %v480 = vadd.f32 0.0, %v479
    %v481 = vpop.f32.mrb[0].mxu0
    %482 = vmatprep.mubr.f32.mxu0 0.0
    %483 = vmatmul.mubr.f32.gmra.mrb[0].mxu0 %v352
    %v484 = vpop.f32.mrb[0].mxu0
    %v485 = vadd.f32 0.0, %v484
    %v486 = vpop.f32.mrb[0].mxu0
    %487 = vdwg.mxu0
    %v489 = vsel %vm100, %v221, 0
    %v492 = vsel %vm100, %v222, 0
    %v495 = vsel %vm100, %v223, 0
    %v498 = vsel %vm100, %v224, 0
    %v501 = vsel %vm100, %v225, 0
    %v504 = vsel %vm100, %v226, 0
    %v507 = vsel %vm100, %v227, 0
    %v510 = vsel %vm100, %v228, 0
    %v513 = vsel %vm100, %v229, 0
    %v516 = vsel %vm100, %v230, 0
    %v519 = vsel %vm100, %v231, 0
    %v522 = vsel %vm100, %v232, 0
    %v525 = vsel %vm100, %v233, 0
    %v528 = vsel %vm354, %v234, 0
    %530 = vmatprep.subr.mxu0 0.0
    %531 = vmatpush1.msra.mxu0 %v528
    %532 = vmatprep.subr.mxu0 0.0
    %533 = vmatpush1.msra.mxu0 0.0
    %534 = vmatprep.subr.mxu0 0.0
    %535 = vmatpush1.msra.mxu0 0.0
    %536 = vmatprep.subr.mxu0 0.0
    %537 = vmatpush1.msra.mxu0 0.0
    %538 = vmatprep.subr.mxu0 0.0
    %539 = vmatpush1.msra.mxu0 0.0
    %540 = vmatprep.subr.mxu0 0.0
    %541 = vmatpush1.msra.mxu0 0.0
    %542 = vmatprep.subr.mxu0 0.0
    %543 = vmatpush1.msra.mxu0 0.0
    %544 = vmatprep.subr.mxu0 0.0
    %545 = vmatpush1.msra.mxu0 0.0
    %546 = vmatprep.subr.mxu0 0.0
    %547 = vmatpush1.msra.mxu0 0.0
    %548 = vmatprep.subr.mxu0 0.0
    %549 = vmatpush1.msra.mxu0 0.0
    %550 = vmatprep.subr.mxu0 0.0
    %551 = vmatpush1.msra.mxu0 0.0
    %552 = vmatprep.subr.mxu0 0.0
    %553 = vmatpush1.msra.mxu0 0.0
    %554 = vmatprep.subr.mxu0 0.0
    %555 = vmatpush1.msra.mxu0 0.0
    %556 = vmatprep.subr.mxu0 0.0
    %557 = vmatpush1.msra.mxu0 0.0
    %558 = vmatprep.subr.mxu0 0.0
    %559 = vmatpush1.msra.mxu0 0.0
    %560 = vmatprep.subr.mxu0 0.0
    %561 = vmatpush1.msra.mxu0 0.0
    %562 = vmatprep.subr.mxu0 0.0
    %563 = vmatpush1.msra.mxu0 0.0
    %564 = vmatprep.subr.mxu0 0.0
    %565 = vmatpush1.msra.mxu0 0.0
    %566 = vmatprep.subr.mxu0 0.0
    %567 = vmatpush1.msra.mxu0 0.0
    %568 = vmatprep.subr.mxu0 0.0
    %569 = vmatpush1.msra.mxu0 0.0
    %570 = vmatprep.subr.mxu0 0.0
    %571 = vmatpush1.msra.mxu0 0.0
    %572 = vmatprep.subr.mxu0 0.0
    %573 = vmatpush1.msra.mxu0 0.0
    %574 = vmatprep.subr.mxu0 0.0
    %575 = vmatpush1.msra.mxu0 0.0
    %576 = vmatprep.subr.mxu0 0.0
    %577 = vmatpush1.msra.mxu0 0.0
    %578 = vmatprep.subr.mxu0 0.0
    %579 = vmatpush1.msra.mxu0 0.0
    %580 = vmatprep.subr.mxu0 0.0
    %581 = vmatpush1.msra.mxu0 0.0
    %582 = vmatprep.subr.mxu0 0.0
    %583 = vmatpush1.msra.mxu0 0.0
    %584 = vmatprep.subr.mxu0 0.0
    %585 = vmatpush1.msra.mxu0 0.0
    %586 = vmatprep.subr.mxu0 0.0
    %587 = vmatpush1.msra.mxu0 0.0
    %588 = vmatprep.subr.mxu0 0.0
    %589 = vmatpush1.msra.mxu0 0.0
    %590 = vmatprep.subr.mxu0 0.0
    %591 = vmatpush1.msra.mxu0 0.0
    %592 = vmatprep.subr.mxu0 0.0
    %593 = vmatpush1.msra.mxu0 0.0
    %594 = vmatprep.mubr.f32.mxu0 0.0
    %595 = vmatmul.mubr.f32.gmra.mrb[0].mxu0 %v489
    %v596 = vpop.f32.mrb[0].mxu0
    %v597 = vadd.f32 %v425, %v596
    %v598 = vpop.f32.mrb[0].mxu0
    %599 = vmatprep.mubr.f32.mxu0 0.0
    %600 = vmatmul.mubr.f32.gmra.mrb[0].mxu0 %v492
    %v601 = vpop.f32.mrb[0].mxu0
    %v602 = vadd.f32 %v430, %v601
    %v603 = vpop.f32.mrb[0].mxu0
    %604 = vmatprep.mubr.f32.mxu0 0.0
    %605 = vmatmul.mubr.f32.gmra.mrb[0].mxu0 %v495
    %v606 = vpop.f32.mrb[0].mxu0
    %v607 = vadd.f32 %v435, %v606
    %v608 = vpop.f32.mrb[0].mxu0
    %609 = vmatprep.mubr.f32.mxu0 0.0
    %610 = vmatmul.mubr.f32.gmra.mrb[0].mxu0 %v498
    %v611 = vpop.f32.mrb[0].mxu0
    %v612 = vadd.f32 %v440, %v611
    %v613 = vpop.f32.mrb[0].mxu0
    %614 = vmatprep.mubr.f32.mxu0 0.0
    %615 = vmatmul.mubr.f32.gmra.mrb[0].mxu0 %v501
    %v616 = vpop.f32.mrb[0].mxu0
    %v617 = vadd.f32 %v445, %v616
    %v618 = vpop.f32.mrb[0].mxu0
    %619 = vmatprep.mubr.f32.mxu0 0.0
    %620 = vmatmul.mubr.f32.gmra.mrb[0].mxu0 %v504
    %v621 = vpop.f32.mrb[0].mxu0
    %v622 = vadd.f32 %v450, %v621
    %v623 = vpop.f32.mrb[0].mxu0
    %624 = vmatprep.mubr.f32.mxu0 0.0
    %625 = vmatmul.mubr.f32.gmra.mrb[0].mxu0 %v507
    %v626 = vpop.f32.mrb[0].mxu0
    %v627 = vadd.f32 %v455, %v626
    %v628 = vpop.f32.mrb[0].mxu0
    %629 = vmatprep.mubr.f32.mxu0 0.0
    %630 = vmatmul.mubr.f32.gmra.mrb[0].mxu0 %v510
    %v631 = vpop.f32.mrb[0].mxu0
    %v632 = vadd.f32 %v460, %v631
    %v633 = vpop.f32.mrb[0].mxu0
    %634 = vmatprep.mubr.f32.mxu0 0.0
    %635 = vmatmul.mubr.f32.gmra.mrb[0].mxu0 %v513
    %v636 = vpop.f32.mrb[0].mxu0
    %v637 = vadd.f32 %v465, %v636
    %v638 = vpop.f32.mrb[0].mxu0
    %639 = vmatprep.mubr.f32.mxu0 0.0
    %640 = vmatmul.mubr.f32.gmra.mrb[0].mxu0 %v516
    %v641 = vpop.f32.mrb[0].mxu0
    %v642 = vadd.f32 %v470, %v641
    %v643 = vpop.f32.mrb[0].mxu0
    %644 = vmatprep.mubr.f32.mxu0 0.0
    %645 = vmatmul.mubr.f32.gmra.mrb[0].mxu0 %v519
    %v646 = vpop.f32.mrb[0].mxu0
    %v647 = vadd.f32 %v475, %v646
    %v648 = vpop.f32.mrb[0].mxu0
    %649 = vmatprep.mubr.f32.mxu0 0.0
    %650 = vmatmul.mubr.f32.gmra.mrb[0].mxu0 %v522
    %v651 = vpop.f32.mrb[0].mxu0
    %v652 = vadd.f32 %v480, %v651
    %v653 = vpop.f32.mrb[0].mxu0
    %654 = vmatprep.mubr.f32.mxu0 0.0
    %655 = vmatmul.mubr.f32.gmra.mrb[0].mxu0 %v525
    %v656 = vpop.f32.mrb[0].mxu0
    %v657 = vadd.f32 %v485, %v656
    %v658 = vpop.f32.mrb[0].mxu0
    %659 = vdwg.mxu0
    %v660 = vld [vmem:[#allocation2 + $0x2] sm:$0xff]
    %v661 = vld [vmem:[#allocation2 + $0xa] sm:$0xff]
    %v662 = vld [vmem:[#allocation2 + $0x12] sm:$0xff]
    %v663 = vld [vmem:[#allocation2 + $0x1a] sm:$0xff]
    %v664 = vld [vmem:[#allocation2 + $0x22] sm:$0xff]
    %v665 = vld [vmem:[#allocation2 + $0x2a] sm:$0xff]
    %v666 = vld [vmem:[#allocation2 + $0x32] sm:$0xff]
    %v667 = vld [vmem:[#allocation2 + $0x3a] sm:$0xff]
    %v668 = vld [vmem:[#allocation2 + $0x42] sm:$0xff]
    %v669 = vld [vmem:[#allocation2 + $0x4a] sm:$0xff]
    %v670 = vld [vmem:[#allocation2 + $0x52] sm:$0xff]
    %v671 = vld [vmem:[#allocation2 + $0x5a] sm:$0xff]
    %v672 = vld [vmem:[#allocation2 + $0x62] sm:$0x3]
    %673 = vset.pattern.permute.xlu0 2
    %674 = vperm.xlu0 %673, %v143
    %v675 = vpop.permute.xlu0 %674
    %677 = vset.pattern.permute.xlu0 2
    %678 = vperm.xlu0 %677, %v144
    %v679 = vpop.permute.xlu0 %678
    %681 = vset.pattern.permute.xlu0 2
    %682 = vperm.xlu0 %681, %v145
    %v683 = vpop.permute.xlu0 %682
    %685 = vset.pattern.permute.xlu0 2
    %686 = vperm.xlu0 %685, %v146
    %v687 = vpop.permute.xlu0 %686
    %689 = vset.pattern.permute.xlu0 2
    %690 = vperm.xlu0 %689, %v147
    %v691 = vpop.permute.xlu0 %690
    %693 = vset.pattern.permute.xlu0 2
    %694 = vperm.xlu0 %693, %v148
    %v695 = vpop.permute.xlu0 %694
    %697 = vset.pattern.permute.xlu0 2
    %698 = vperm.xlu0 %697, %v149
    %v699 = vpop.permute.xlu0 %698
    %701 = vset.pattern.permute.xlu0 2
    %702 = vperm.xlu0 %701, %v150
    %v703 = vpop.permute.xlu0 %702
    %705 = vset.pattern.permute.xlu0 2
    %706 = vperm.xlu0 %705, %v151
    %v707 = vpop.permute.xlu0 %706
    %709 = vset.pattern.permute.xlu0 2
    %710 = vperm.xlu0 %709, %v152
    %v711 = vpop.permute.xlu0 %710
    %713 = vset.pattern.permute.xlu0 2
    %714 = vperm.xlu0 %713, %v153
    %v715 = vpop.permute.xlu0 %714
    %717 = vset.pattern.permute.xlu0 2
    %718 = vperm.xlu0 %717, %v154
    %v719 = vpop.permute.xlu0 %718
    %721 = vset.pattern.permute.xlu0 2
    %722 = vperm.xlu0 %721, %v155
    %v723 = vpop.permute.xlu0 %722
    %v725 = vmul.f32 %v660, %v675
    %v726 = vmul.f32 %v661, %v679
    %v727 = vmul.f32 %v662, %v683
    %v728 = vmul.f32 %v663, %v687
    %v729 = vmul.f32 %v664, %v691
    %v730 = vmul.f32 %v665, %v695
    %v731 = vmul.f32 %v666, %v699
    %v732 = vmul.f32 %v667, %v703
    %v733 = vmul.f32 %v668, %v707
    %v734 = vmul.f32 %v669, %v711
    %v735 = vmul.f32 %v670, %v715
    %v736 = vmul.f32 %v671, %v719
    %v737 = vmul.f32 %v672, %v723
    %s738 = scalar_lea.vmem [#allocation6], 16
    %v739 = vld [vmem:[%s738] sm:$0x3f]
    %v741 = vsel %vm100, %v725, 0
    %v744 = vsel %vm100, %v726, 0
    %v747 = vsel %vm100, %v727, 0
    %v750 = vsel %vm100, %v728, 0
    %v753 = vsel %vm100, %v729, 0
    %v756 = vsel %vm100, %v730, 0
    %v759 = vsel %vm100, %v731, 0
    %v762 = vsel %vm100, %v732, 0
    %v765 = vsel %vm100, %v733, 0
    %v768 = vsel %vm100, %v734, 0
    %v771 = vsel %vm100, %v735, 0
    %v774 = vsel %vm100, %v736, 0
    %v777 = vsel %vm100, %v737, 0
    %v780 = vsel %vm354, %v739, 0
    %782 = vmatprep.subr.mxu0 0.0
    %783 = vmatpush1.msra.mxu0 %v780
    %784 = vmatprep.subr.mxu0 0.0
    %785 = vmatpush1.msra.mxu0 0.0
    %786 = vmatprep.subr.mxu0 0.0
    %787 = vmatpush1.msra.mxu0 0.0
    %788 = vmatprep.subr.mxu0 0.0
    %789 = vmatpush1.msra.mxu0 0.0
    %790 = vmatprep.subr.mxu0 0.0
    %791 = vmatpush1.msra.mxu0 0.0
    %792 = vmatprep.subr.mxu0 0.0
    %793 = vmatpush1.msra.mxu0 0.0
    %794 = vmatprep.subr.mxu0 0.0
    %795 = vmatpush1.msra.mxu0 0.0
    %796 = vmatprep.subr.mxu0 0.0
    %797 = vmatpush1.msra.mxu0 0.0
    %798 = vmatprep.subr.mxu0 0.0
    %799 = vmatpush1.msra.mxu0 0.0
    %800 = vmatprep.subr.mxu0 0.0
    %801 = vmatpush1.msra.mxu0 0.0
    %802 = vmatprep.subr.mxu0 0.0
    %803 = vmatpush1.msra.mxu0 0.0
    %804 = vmatprep.subr.mxu0 0.0
    %805 = vmatpush1.msra.mxu0 0.0
    %806 = vmatprep.subr.mxu0 0.0
    %807 = vmatpush1.msra.mxu0 0.0
    %808 = vmatprep.subr.mxu0 0.0
    %809 = vmatpush1.msra.mxu0 0.0
    %810 = vmatprep.subr.mxu0 0.0
    %811 = vmatpush1.msra.mxu0 0.0
    %812 = vmatprep.subr.mxu0 0.0
    %813 = vmatpush1.msra.mxu0 0.0
    %814 = vmatprep.subr.mxu0 0.0
    %815 = vmatpush1.msra.mxu0 0.0
    %816 = vmatprep.subr.mxu0 0.0
    %817 = vmatpush1.msra.mxu0 0.0
    %818 = vmatprep.subr.mxu0 0.0
    %819 = vmatpush1.msra.mxu0 0.0
    %820 = vmatprep.subr.mxu0 0.0
    %821 = vmatpush1.msra.mxu0 0.0
    %822 = vmatprep.subr.mxu0 0.0
    %823 = vmatpush1.msra.mxu0 0.0
    %824 = vmatprep.subr.mxu0 0.0
    %825 = vmatpush1.msra.mxu0 0.0
    %826 = vmatprep.subr.mxu0 0.0
    %827 = vmatpush1.msra.mxu0 0.0
    %828 = vmatprep.subr.mxu0 0.0
    %829 = vmatpush1.msra.mxu0 0.0
    %830 = vmatprep.subr.mxu0 0.0
    %831 = vmatpush1.msra.mxu0 0.0
    %832 = vmatprep.subr.mxu0 0.0
    %833 = vmatpush1.msra.mxu0 0.0
    %834 = vmatprep.subr.mxu0 0.0
    %835 = vmatpush1.msra.mxu0 0.0
    %836 = vmatprep.subr.mxu0 0.0
    %837 = vmatpush1.msra.mxu0 0.0
    %838 = vmatprep.subr.mxu0 0.0
    %839 = vmatpush1.msra.mxu0 0.0
    %840 = vmatprep.subr.mxu0 0.0
    %841 = vmatpush1.msra.mxu0 0.0
    %842 = vmatprep.subr.mxu0 0.0
    %843 = vmatpush1.msra.mxu0 0.0
    %844 = vmatprep.subr.mxu0 0.0
    %845 = vmatpush1.msra.mxu0 0.0
    %846 = vmatprep.mubr.f32.mxu0 0.0
    %847 = vmatmul.mubr.f32.gmra.mrb[0].mxu0 %v741
    %v848 = vpop.f32.mrb[0].mxu0
    %v849 = vadd.f32 0.0, %v848
    %v850 = vpop.f32.mrb[0].mxu0
    %851 = vmatprep.mubr.f32.mxu0 0.0
    %852 = vmatmul.mubr.f32.gmra.mrb[0].mxu0 %v744
    %v853 = vpop.f32.mrb[0].mxu0
    %v854 = vadd.f32 0.0, %v853
    %v855 = vpop.f32.mrb[0].mxu0
    %856 = vmatprep.mubr.f32.mxu0 0.0
    %857 = vmatmul.mubr.f32.gmra.mrb[0].mxu0 %v747
    %v858 = vpop.f32.mrb[0].mxu0
    %v859 = vadd.f32 0.0, %v858
    %v860 = vpop.f32.mrb[0].mxu0
    %861 = vmatprep.mubr.f32.mxu0 0.0
    %862 = vmatmul.mubr.f32.gmra.mrb[0].mxu0 %v750
    %v863 = vpop.f32.mrb[0].mxu0
    %v864 = vadd.f32 0.0, %v863
    %v865 = vpop.f32.mrb[0].mxu0
    %866 = vmatprep.mubr.f32.mxu0 0.0
    %867 = vmatmul.mubr.f32.gmra.mrb[0].mxu0 %v753
    %v868 = vpop.f32.mrb[0].mxu0
    %v869 = vadd.f32 0.0, %v868
    %v870 = vpop.f32.mrb[0].mxu0
    %871 = vmatprep.mubr.f32.mxu0 0.0
    %872 = vmatmul.mubr.f32.gmra.mrb[0].mxu0 %v756
    %v873 = vpop.f32.mrb[0].mxu0
    %v874 = vadd.f32 0.0, %v873
    %v875 = vpop.f32.mrb[0].mxu0
    %876 = vmatprep.mubr.f32.mxu0 0.0
    %877 = vmatmul.mubr.f32.gmra.mrb[0].mxu0 %v759
    %v878 = vpop.f32.mrb[0].mxu0
    %v879 = vadd.f32 0.0, %v878
    %v880 = vpop.f32.mrb[0].mxu0
    %881 = vmatprep.mubr.f32.mxu0 0.0
    %882 = vmatmul.mubr.f32.gmra.mrb[0].mxu0 %v762
    %v883 = vpop.f32.mrb[0].mxu0
    %v884 = vadd.f32 0.0, %v883
    %v885 = vpop.f32.mrb[0].mxu0
    %886 = vmatprep.mubr.f32.mxu0 0.0
    %887 = vmatmul.mubr.f32.gmra.mrb[0].mxu0 %v765
    %v888 = vpop.f32.mrb[0].mxu0
    %v889 = vadd.f32 0.0, %v888
    %v890 = vpop.f32.mrb[0].mxu0
    %891 = vmatprep.mubr.f32.mxu0 0.0
    %892 = vmatmul.mubr.f32.gmra.mrb[0].mxu0 %v768
    %v893 = vpop.f32.mrb[0].mxu0
    %v894 = vadd.f32 0.0, %v893
    %v895 = vpop.f32.mrb[0].mxu0
    %896 = vmatprep.mubr.f32.mxu0 0.0
    %897 = vmatmul.mubr.f32.gmra.mrb[0].mxu0 %v771
    %v898 = vpop.f32.mrb[0].mxu0
    %v899 = vadd.f32 0.0, %v898
    %v900 = vpop.f32.mrb[0].mxu0
    %901 = vmatprep.mubr.f32.mxu0 0.0
    %902 = vmatmul.mubr.f32.gmra.mrb[0].mxu0 %v774
    %v903 = vpop.f32.mrb[0].mxu0
    %v904 = vadd.f32 0.0, %v903
    %v905 = vpop.f32.mrb[0].mxu0
    %906 = vmatprep.mubr.f32.mxu0 0.0
    %907 = vmatmul.mubr.f32.gmra.mrb[0].mxu0 %v777
    %v908 = vpop.f32.mrb[0].mxu0
    %v909 = vadd.f32 0.0, %v908
    %v910 = vpop.f32.mrb[0].mxu0
    %911 = vdwg.mxu0
    %v912 = vadd.f32 %v597, %v849
    %v913 = vadd.f32 %v602, %v854
    %v914 = vadd.f32 %v607, %v859
    %v915 = vadd.f32 %v612, %v864
    %v916 = vadd.f32 %v617, %v869
    %v917 = vadd.f32 %v622, %v874
    %v918 = vadd.f32 %v627, %v879
    %v919 = vadd.f32 %v632, %v884
    %v920 = vadd.f32 %v637, %v889
    %v921 = vadd.f32 %v642, %v894
    %v922 = vadd.f32 %v647, %v899
    %v923 = vadd.f32 %v652, %v904
    %v924 = vadd.f32 %v657, %v909
    %v925 = vld [vmem:[#allocation2 + $0x7] sm:$0xff]
    %v926 = vld [vmem:[#allocation2 + $0xf] sm:$0xff]
    %v927 = vld [vmem:[#allocation2 + $0x17] sm:$0xff]
    %v928 = vld [vmem:[#allocation2 + $0x1f] sm:$0xff]
    %v929 = vld [vmem:[#allocation2 + $0x27] sm:$0xff]
    %v930 = vld [vmem:[#allocation2 + $0x2f] sm:$0xff]
    %v931 = vld [vmem:[#allocation2 + $0x37] sm:$0xff]
    %v932 = vld [vmem:[#allocation2 + $0x3f] sm:$0xff]
    %v933 = vld [vmem:[#allocation2 + $0x47] sm:$0xff]
    %v934 = vld [vmem:[#allocation2 + $0x4f] sm:$0xff]
    %v935 = vld [vmem:[#allocation2 + $0x57] sm:$0xff]
    %v936 = vld [vmem:[#allocation2 + $0x5f] sm:$0xff]
    %v937 = vld [vmem:[#allocation2 + $0x67] sm:$0x3]
    %938 = vset.pattern.permute.xlu0 3
    %939 = vperm.xlu0 %938, %v143
    %v940 = vpop.permute.xlu0 %939
    %942 = vset.pattern.permute.xlu0 3
    %943 = vperm.xlu0 %942, %v144
    %v944 = vpop.permute.xlu0 %943
    %946 = vset.pattern.permute.xlu0 3
    %947 = vperm.xlu0 %946, %v145
    %v948 = vpop.permute.xlu0 %947
    %950 = vset.pattern.permute.xlu0 3
    %951 = vperm.xlu0 %950, %v146
    %v952 = vpop.permute.xlu0 %951
    %954 = vset.pattern.permute.xlu0 3
    %955 = vperm.xlu0 %954, %v147
    %v956 = vpop.permute.xlu0 %955
    %958 = vset.pattern.permute.xlu0 3
    %959 = vperm.xlu0 %958, %v148
    %v960 = vpop.permute.xlu0 %959
    %962 = vset.pattern.permute.xlu0 3
    %963 = vperm.xlu0 %962, %v149
    %v964 = vpop.permute.xlu0 %963
    %966 = vset.pattern.permute.xlu0 3
    %967 = vperm.xlu0 %966, %v150
    %v968 = vpop.permute.xlu0 %967
    %970 = vset.pattern.permute.xlu0 3
    %971 = vperm.xlu0 %970, %v151
    %v972 = vpop.permute.xlu0 %971
    %974 = vset.pattern.permute.xlu0 3
    %975 = vperm.xlu0 %974, %v152
    %v976 = vpop.permute.xlu0 %975
    %978 = vset.pattern.permute.xlu0 3
    %979 = vperm.xlu0 %978, %v153
    %v980 = vpop.permute.xlu0 %979
    %982 = vset.pattern.permute.xlu0 3
    %983 = vperm.xlu0 %982, %v154
    %v984 = vpop.permute.xlu0 %983
    %986 = vset.pattern.permute.xlu0 3
    %987 = vperm.xlu0 %986, %v155
    %v988 = vpop.permute.xlu0 %987
    %v990 = vmul.f32 %v925, %v940
    %v991 = vmul.f32 %v926, %v944
    %v992 = vmul.f32 %v927, %v948
    %v993 = vmul.f32 %v928, %v952
    %v994 = vmul.f32 %v929, %v956
    %v995 = vmul.f32 %v930, %v960
    %v996 = vmul.f32 %v931, %v964
    %v997 = vmul.f32 %v932, %v968
    %v998 = vmul.f32 %v933, %v972
    %v999 = vmul.f32 %v934, %v976
    %v1000 = vmul.f32 %v935, %v980
    %v1001 = vmul.f32 %v936, %v984
    %v1002 = vmul.f32 %v937, %v988
    %s1003 = scalar_lea.vmem [#allocation6], 24
    %v1004 = vld [vmem:[%s1003] sm:$0x3f]
    %v1006 = vsel %vm100, %v990, 0
    %v1009 = vsel %vm100, %v991, 0
    %v1012 = vsel %vm100, %v992, 0
    %v1015 = vsel %vm100, %v993, 0
    %v1018 = vsel %vm100, %v994, 0
    %v1021 = vsel %vm100, %v995, 0
    %v1024 = vsel %vm100, %v996, 0
    %v1027 = vsel %vm100, %v997, 0
    %v1030 = vsel %vm100, %v998, 0
    %v1033 = vsel %vm100, %v999, 0
    %v1036 = vsel %vm100, %v1000, 0
    %v1039 = vsel %vm100, %v1001, 0
    %v1042 = vsel %vm100, %v1002, 0
    %v1045 = vsel %vm354, %v1004, 0
    %1047 = vmatprep.subr.mxu0 0.0
    %1048 = vmatpush1.msra.mxu0 %v1045
    %1049 = vmatprep.subr.mxu0 0.0
    %1050 = vmatpush1.msra.mxu0 0.0
    %1051 = vmatprep.subr.mxu0 0.0
    %1052 = vmatpush1.msra.mxu0 0.0
    %1053 = vmatprep.subr.mxu0 0.0
    %1054 = vmatpush1.msra.mxu0 0.0
    %1055 = vmatprep.subr.mxu0 0.0
    %1056 = vmatpush1.msra.mxu0 0.0
    %1057 = vmatprep.subr.mxu0 0.0
    %1058 = vmatpush1.msra.mxu0 0.0
    %1059 = vmatprep.subr.mxu0 0.0
    %1060 = vmatpush1.msra.mxu0 0.0
    %1061 = vmatprep.subr.mxu0 0.0
    %1062 = vmatpush1.msra.mxu0 0.0
    %1063 = vmatprep.subr.mxu0 0.0
    %1064 = vmatpush1.msra.mxu0 0.0
    %1065 = vmatprep.subr.mxu0 0.0
    %1066 = vmatpush1.msra.mxu0 0.0
    %1067 = vmatprep.subr.mxu0 0.0
    %1068 = vmatpush1.msra.mxu0 0.0
    %1069 = vmatprep.subr.mxu0 0.0
    %1070 = vmatpush1.msra.mxu0 0.0
    %1071 = vmatprep.subr.mxu0 0.0
    %1072 = vmatpush1.msra.mxu0 0.0
    %1073 = vmatprep.subr.mxu0 0.0
    %1074 = vmatpush1.msra.mxu0 0.0
    %1075 = vmatprep.subr.mxu0 0.0
    %1076 = vmatpush1.msra.mxu0 0.0
    %1077 = vmatprep.subr.mxu0 0.0
    %1078 = vmatpush1.msra.mxu0 0.0
    %1079 = vmatprep.subr.mxu0 0.0
    %1080 = vmatpush1.msra.mxu0 0.0
    %1081 = vmatprep.subr.mxu0 0.0
    %1082 = vmatpush1.msra.mxu0 0.0
    %1083 = vmatprep.subr.mxu0 0.0
    %1084 = vmatpush1.msra.mxu0 0.0
    %1085 = vmatprep.subr.mxu0 0.0
    %1086 = vmatpush1.msra.mxu0 0.0
    %1087 = vmatprep.subr.mxu0 0.0
    %1088 = vmatpush1.msra.mxu0 0.0
    %1089 = vmatprep.subr.mxu0 0.0
    %1090 = vmatpush1.msra.mxu0 0.0
    %1091 = vmatprep.subr.mxu0 0.0
    %1092 = vmatpush1.msra.mxu0 0.0
    %1093 = vmatprep.subr.mxu0 0.0
    %1094 = vmatpush1.msra.mxu0 0.0
    %1095 = vmatprep.subr.mxu0 0.0
    %1096 = vmatpush1.msra.mxu0 0.0
    %1097 = vmatprep.subr.mxu0 0.0
    %1098 = vmatpush1.msra.mxu0 0.0
    %1099 = vmatprep.subr.mxu0 0.0
    %1100 = vmatpush1.msra.mxu0 0.0
    %1101 = vmatprep.subr.mxu0 0.0
    %1102 = vmatpush1.msra.mxu0 0.0
    %1103 = vmatprep.subr.mxu0 0.0
    %1104 = vmatpush1.msra.mxu0 0.0
    %1105 = vmatprep.subr.mxu0 0.0
    %1106 = vmatpush1.msra.mxu0 0.0
    %1107 = vmatprep.subr.mxu0 0.0
    %1108 = vmatpush1.msra.mxu0 0.0
    %1109 = vmatprep.subr.mxu0 0.0
    %1110 = vmatpush1.msra.mxu0 0.0
    %1111 = vmatprep.mubr.f32.mxu0 0.0
    %1112 = vmatmul.mubr.f32.gmra.mrb[0].mxu0 %v1006
    %v1113 = vpop.f32.mrb[0].mxu0
    %v1114 = vadd.f32 0.0, %v1113
    %v1115 = vpop.f32.mrb[0].mxu0
    %1116 = vmatprep.mubr.f32.mxu0 0.0
    %1117 = vmatmul.mubr.f32.gmra.mrb[0].mxu0 %v1009
    %v1118 = vpop.f32.mrb[0].mxu0
    %v1119 = vadd.f32 0.0, %v1118
    %v1120 = vpop.f32.mrb[0].mxu0
    %1121 = vmatprep.mubr.f32.mxu0 0.0
    %1122 = vmatmul.mubr.f32.gmra.mrb[0].mxu0 %v1012
    %v1123 = vpop.f32.mrb[0].mxu0
    %v1124 = vadd.f32 0.0, %v1123
    %v1125 = vpop.f32.mrb[0].mxu0
    %1126 = vmatprep.mubr.f32.mxu0 0.0
    %1127 = vmatmul.mubr.f32.gmra.mrb[0].mxu0 %v1015
    %v1128 = vpop.f32.mrb[0].mxu0
    %v1129 = vadd.f32 0.0, %v1128
    %v1130 = vpop.f32.mrb[0].mxu0
    %1131 = vmatprep.mubr.f32.mxu0 0.0
    %1132 = vmatmul.mubr.f32.gmra.mrb[0].mxu0 %v1018
    %v1133 = vpop.f32.mrb[0].mxu0
    %v1134 = vadd.f32 0.0, %v1133
    %v1135 = vpop.f32.mrb[0].mxu0
    %1136 = vmatprep.mubr.f32.mxu0 0.0
    %1137 = vmatmul.mubr.f32.gmra.mrb[0].mxu0 %v1021
    %v1138 = vpop.f32.mrb[0].mxu0
    %v1139 = vadd.f32 0.0, %v1138
    %v1140 = vpop.f32.mrb[0].mxu0
    %1141 = vmatprep.mubr.f32.mxu0 0.0
    %1142 = vmatmul.mubr.f32.gmra.mrb[0].mxu0 %v1024
    %v1143 = vpop.f32.mrb[0].mxu0
    %v1144 = vadd.f32 0.0, %v1143
    %v1145 = vpop.f32.mrb[0].mxu0
    %1146 = vmatprep.mubr.f32.mxu0 0.0
    %1147 = vmatmul.mubr.f32.gmra.mrb[0].mxu0 %v1027
    %v1148 = vpop.f32.mrb[0].mxu0
    %v1149 = vadd.f32 0.0, %v1148
    %v1150 = vpop.f32.mrb[0].mxu0
    %1151 = vmatprep.mubr.f32.mxu0 0.0
    %1152 = vmatmul.mubr.f32.gmra.mrb[0].mxu0 %v1030
    %v1153 = vpop.f32.mrb[0].mxu0
    %v1154 = vadd.f32 0.0, %v1153
    %v1155 = vpop.f32.mrb[0].mxu0
    %1156 = vmatprep.mubr.f32.mxu0 0.0
    %1157 = vmatmul.mubr.f32.gmra.mrb[0].mxu0 %v1033
    %v1158 = vpop.f32.mrb[0].mxu0
    %v1159 = vadd.f32 0.0, %v1158
    %v1160 = vpop.f32.mrb[0].mxu0
    %1161 = vmatprep.mubr.f32.mxu0 0.0
    %1162 = vmatmul.mubr.f32.gmra.mrb[0].mxu0 %v1036
    %v1163 = vpop.f32.mrb[0].mxu0
    %v1164 = vadd.f32 0.0, %v1163
    %v1165 = vpop.f32.mrb[0].mxu0
    %1166 = vmatprep.mubr.f32.mxu0 0.0
    %1167 = vmatmul.mubr.f32.gmra.mrb[0].mxu0 %v1039
    %v1168 = vpop.f32.mrb[0].mxu0
    %v1169 = vadd.f32 0.0, %v1168
    %v1170 = vpop.f32.mrb[0].mxu0
    %1171 = vmatprep.mubr.f32.mxu0 0.0
    %1172 = vmatmul.mubr.f32.gmra.mrb[0].mxu0 %v1042
    %v1173 = vpop.f32.mrb[0].mxu0
    %v1174 = vadd.f32 0.0, %v1173
    %v1175 = vpop.f32.mrb[0].mxu0
    %1176 = vdwg.mxu0
    %v1177 = vadd.f32 %v912, %v1114
    %v1178 = vadd.f32 %v913, %v1119
    %v1179 = vadd.f32 %v914, %v1124
    %v1180 = vadd.f32 %v915, %v1129
    %v1181 = vadd.f32 %v916, %v1134
    %v1182 = vadd.f32 %v917, %v1139
    %v1183 = vadd.f32 %v918, %v1144
    %v1184 = vadd.f32 %v919, %v1149
    %v1185 = vadd.f32 %v920, %v1154
    %v1186 = vadd.f32 %v921, %v1159
    %v1187 = vadd.f32 %v922, %v1164
    %v1188 = vadd.f32 %v923, %v1169
    %v1189 = vadd.f32 %v924, %v1174
    %v1190 = vld [vmem:[#allocation2 + $0x8] sm:$0xff]
    %v1191 = vld [vmem:[#allocation2 + $0x10] sm:$0xff]
    %v1192 = vld [vmem:[#allocation2 + $0x18] sm:$0xff]
    %v1193 = vld [vmem:[#allocation2 + $0x20] sm:$0xff]
    %v1194 = vld [vmem:[#allocation2 + $0x28] sm:$0xff]
    %v1195 = vld [vmem:[#allocation2 + $0x30] sm:$0xff]
    %v1196 = vld [vmem:[#allocation2 + $0x38] sm:$0xff]
    %v1197 = vld [vmem:[#allocation2 + $0x40] sm:$0xff]
    %v1198 = vld [vmem:[#allocation2 + $0x48] sm:$0xff]
    %v1199 = vld [vmem:[#allocation2 + $0x50] sm:$0xff]
    %v1200 = vld [vmem:[#allocation2 + $0x58] sm:$0xff]
    %v1201 = vld [vmem:[#allocation2 + $0x60] sm:$0xff]
    %v1202 = vld [vmem:[#allocation2 + $0x68] sm:$0x3]
    %1203 = vset.pattern.permute.xlu0 4
    %1204 = vperm.xlu0 %1203, %v143
    %v1205 = vpop.permute.xlu0 %1204
    %1207 = vset.pattern.permute.xlu0 4
    %1208 = vperm.xlu0 %1207, %v144
    %v1209 = vpop.permute.xlu0 %1208
    %1211 = vset.pattern.permute.xlu0 4
    %1212 = vperm.xlu0 %1211, %v145
    %v1213 = vpop.permute.xlu0 %1212
    %1215 = vset.pattern.permute.xlu0 4
    %1216 = vperm.xlu0 %1215, %v146
    %v1217 = vpop.permute.xlu0 %1216
    %1219 = vset.pattern.permute.xlu0 4
    %1220 = vperm.xlu0 %1219, %v147
    %v1221 = vpop.permute.xlu0 %1220
    %1223 = vset.pattern.permute.xlu0 4
    %1224 = vperm.xlu0 %1223, %v148
    %v1225 = vpop.permute.xlu0 %1224
    %1227 = vset.pattern.permute.xlu0 4
    %1228 = vperm.xlu0 %1227, %v149
    %v1229 = vpop.permute.xlu0 %1228
    %1231 = vset.pattern.permute.xlu0 4
    %1232 = vperm.xlu0 %1231, %v150
    %v1233 = vpop.permute.xlu0 %1232
    %1235 = vset.pattern.permute.xlu0 4
    %1236 = vperm.xlu0 %1235, %v151
    %v1237 = vpop.permute.xlu0 %1236
    %1239 = vset.pattern.permute.xlu0 4
    %1240 = vperm.xlu0 %1239, %v152
    %v1241 = vpop.permute.xlu0 %1240
    %1243 = vset.pattern.permute.xlu0 4
    %1244 = vperm.xlu0 %1243, %v153
    %v1245 = vpop.permute.xlu0 %1244
    %1247 = vset.pattern.permute.xlu0 4
    %1248 = vperm.xlu0 %1247, %v154
    %v1249 = vpop.permute.xlu0 %1248
    %1251 = vset.pattern.permute.xlu0 4
    %1252 = vperm.xlu0 %1251, %v155
    %v1253 = vpop.permute.xlu0 %1252
    %v1255 = vmul.f32 %v1190, %v1205
    %v1256 = vmul.f32 %v1191, %v1209
    %v1257 = vmul.f32 %v1192, %v1213
    %v1258 = vmul.f32 %v1193, %v1217
    %v1259 = vmul.f32 %v1194, %v1221
    %v1260 = vmul.f32 %v1195, %v1225
    %v1261 = vmul.f32 %v1196, %v1229
    %v1262 = vmul.f32 %v1197, %v1233
    %v1263 = vmul.f32 %v1198, %v1237
    %v1264 = vmul.f32 %v1199, %v1241
    %v1265 = vmul.f32 %v1200, %v1245
    %v1266 = vmul.f32 %v1201, %v1249
    %v1267 = vmul.f32 %v1202, %v1253
    %s1268 = scalar_lea.vmem [#allocation6], 32
    %v1269 = vld [vmem:[%s1268] sm:$0x3f]
    %v1271 = vsel %vm100, %v1255, 0
    %v1274 = vsel %vm100, %v1256, 0
    %v1277 = vsel %vm100, %v1257, 0
    %v1280 = vsel %vm100, %v1258, 0
    %v1283 = vsel %vm100, %v1259, 0
    %v1286 = vsel %vm100, %v1260, 0
    %v1289 = vsel %vm100, %v1261, 0
    %v1292 = vsel %vm100, %v1262, 0
    %v1295 = vsel %vm100, %v1263, 0
    %v1298 = vsel %vm100, %v1264, 0
    %v1301 = vsel %vm100, %v1265, 0
    %v1304 = vsel %vm100, %v1266, 0
    %v1307 = vsel %vm100, %v1267, 0
    %v1310 = vsel %vm354, %v1269, 0
    %1312 = vmatprep.subr.mxu0 0.0
    %1313 = vmatpush1.msra.mxu0 %v1310
    %1314 = vmatprep.subr.mxu0 0.0
    %1315 = vmatpush1.msra.mxu0 0.0
    %1316 = vmatprep.subr.mxu0 0.0
    %1317 = vmatpush1.msra.mxu0 0.0
    %1318 = vmatprep.subr.mxu0 0.0
    %1319 = vmatpush1.msra.mxu0 0.0
    %1320 = vmatprep.subr.mxu0 0.0
    %1321 = vmatpush1.msra.mxu0 0.0
    %1322 = vmatprep.subr.mxu0 0.0
    %1323 = vmatpush1.msra.mxu0 0.0
    %1324 = vmatprep.subr.mxu0 0.0
    %1325 = vmatpush1.msra.mxu0 0.0
    %1326 = vmatprep.subr.mxu0 0.0
    %1327 = vmatpush1.msra.mxu0 0.0
    %1328 = vmatprep.subr.mxu0 0.0
    %1329 = vmatpush1.msra.mxu0 0.0
    %1330 = vmatprep.subr.mxu0 0.0
    %1331 = vmatpush1.msra.mxu0 0.0
    %1332 = vmatprep.subr.mxu0 0.0
    %1333 = vmatpush1.msra.mxu0 0.0
    %1334 = vmatprep.subr.mxu0 0.0
    %1335 = vmatpush1.msra.mxu0 0.0
    %1336 = vmatprep.subr.mxu0 0.0
    %1337 = vmatpush1.msra.mxu0 0.0
    %1338 = vmatprep.subr.mxu0 0.0
    %1339 = vmatpush1.msra.mxu0 0.0
    %1340 = vmatprep.subr.mxu0 0.0
    %1341 = vmatpush1.msra.mxu0 0.0
    %1342 = vmatprep.subr.mxu0 0.0
    %1343 = vmatpush1.msra.mxu0 0.0
    %1344 = vmatprep.subr.mxu0 0.0
    %1345 = vmatpush1.msra.mxu0 0.0
    %1346 = vmatprep.subr.mxu0 0.0
    %1347 = vmatpush1.msra.mxu0 0.0
    %1348 = vmatprep.subr.mxu0 0.0
    %1349 = vmatpush1.msra.mxu0 0.0
    %1350 = vmatprep.subr.mxu0 0.0
    %1351 = vmatpush1.msra.mxu0 0.0
    %1352 = vmatprep.subr.mxu0 0.0
    %1353 = vmatpush1.msra.mxu0 0.0
    %1354 = vmatprep.subr.mxu0 0.0
    %1355 = vmatpush1.msra.mxu0 0.0
    %1356 = vmatprep.subr.mxu0 0.0
    %1357 = vmatpush1.msra.mxu0 0.0
    %1358 = vmatprep.subr.mxu0 0.0
    %1359 = vmatpush1.msra.mxu0 0.0
    %1360 = vmatprep.subr.mxu0 0.0
    %1361 = vmatpush1.msra.mxu0 0.0
    %1362 = vmatprep.subr.mxu0 0.0
    %1363 = vmatpush1.msra.mxu0 0.0
    %1364 = vmatprep.subr.mxu0 0.0
    %1365 = vmatpush1.msra.mxu0 0.0
    %1366 = vmatprep.subr.mxu0 0.0
    %1367 = vmatpush1.msra.mxu0 0.0
    %1368 = vmatprep.subr.mxu0 0.0
    %1369 = vmatpush1.msra.mxu0 0.0
    %1370 = vmatprep.subr.mxu0 0.0
    %1371 = vmatpush1.msra.mxu0 0.0
    %1372 = vmatprep.subr.mxu0 0.0
    %1373 = vmatpush1.msra.mxu0 0.0
    %1374 = vmatprep.subr.mxu0 0.0
    %1375 = vmatpush1.msra.mxu0 0.0
    %1376 = vmatprep.mubr.f32.mxu0 0.0
    %1377 = vmatmul.mubr.f32.gmra.mrb[0].mxu0 %v1271
    %v1378 = vpop.f32.mrb[0].mxu0
    %v1379 = vadd.f32 0.0, %v1378
    %v1380 = vpop.f32.mrb[0].mxu0
    %1381 = vmatprep.mubr.f32.mxu0 0.0
    %1382 = vmatmul.mubr.f32.gmra.mrb[0].mxu0 %v1274
    %v1383 = vpop.f32.mrb[0].mxu0
    %v1384 = vadd.f32 0.0, %v1383
    %v1385 = vpop.f32.mrb[0].mxu0
    %1386 = vmatprep.mubr.f32.mxu0 0.0
    %1387 = vmatmul.mubr.f32.gmra.mrb[0].mxu0 %v1277
    %v1388 = vpop.f32.mrb[0].mxu0
    %v1389 = vadd.f32 0.0, %v1388
    %v1390 = vpop.f32.mrb[0].mxu0
    %1391 = vmatprep.mubr.f32.mxu0 0.0
    %1392 = vmatmul.mubr.f32.gmra.mrb[0].mxu0 %v1280
    %v1393 = vpop.f32.mrb[0].mxu0
    %v1394 = vadd.f32 0.0, %v1393
    %v1395 = vpop.f32.mrb[0].mxu0
    %1396 = vmatprep.mubr.f32.mxu0 0.0
    %1397 = vmatmul.mubr.f32.gmra.mrb[0].mxu0 %v1283
    %v1398 = vpop.f32.mrb[0].mxu0
    %v1399 = vadd.f32 0.0, %v1398
    %v1400 = vpop.f32.mrb[0].mxu0
    %1401 = vmatprep.mubr.f32.mxu0 0.0
    %1402 = vmatmul.mubr.f32.gmra.mrb[0].mxu0 %v1286
    %v1403 = vpop.f32.mrb[0].mxu0
    %v1404 = vadd.f32 0.0, %v1403
    %v1405 = vpop.f32.mrb[0].mxu0
    %1406 = vmatprep.mubr.f32.mxu0 0.0
    %1407 = vmatmul.mubr.f32.gmra.mrb[0].mxu0 %v1289
    %v1408 = vpop.f32.mrb[0].mxu0
    %v1409 = vadd.f32 0.0, %v1408
    %v1410 = vpop.f32.mrb[0].mxu0
    %1411 = vmatprep.mubr.f32.mxu0 0.0
    %1412 = vmatmul.mubr.f32.gmra.mrb[0].mxu0 %v1292
    %v1413 = vpop.f32.mrb[0].mxu0
    %v1414 = vadd.f32 0.0, %v1413
    %v1415 = vpop.f32.mrb[0].mxu0
    %1416 = vmatprep.mubr.f32.mxu0 0.0
    %1417 = vmatmul.mubr.f32.gmra.mrb[0].mxu0 %v1295
    %v1418 = vpop.f32.mrb[0].mxu0
    %v1419 = vadd.f32 0.0, %v1418
    %v1420 = vpop.f32.mrb[0].mxu0
    %1421 = vmatprep.mubr.f32.mxu0 0.0
    %1422 = vmatmul.mubr.f32.gmra.mrb[0].mxu0 %v1298
    %v1423 = vpop.f32.mrb[0].mxu0
    %v1424 = vadd.f32 0.0, %v1423
    %v1425 = vpop.f32.mrb[0].mxu0
    %1426 = vmatprep.mubr.f32.mxu0 0.0
    %1427 = vmatmul.mubr.f32.gmra.mrb[0].mxu0 %v1301
    %v1428 = vpop.f32.mrb[0].mxu0
    %v1429 = vadd.f32 0.0, %v1428
    %v1430 = vpop.f32.mrb[0].mxu0
    %1431 = vmatprep.mubr.f32.mxu0 0.0
    %1432 = vmatmul.mubr.f32.gmra.mrb[0].mxu0 %v1304
    %v1433 = vpop.f32.mrb[0].mxu0
    %v1434 = vadd.f32 0.0, %v1433
    %v1435 = vpop.f32.mrb[0].mxu0
    %1436 = vmatprep.mubr.f32.mxu0 0.0
    %1437 = vmatmul.mubr.f32.gmra.mrb[0].mxu0 %v1307
    %v1438 = vpop.f32.mrb[0].mxu0
    %v1439 = vadd.f32 0.0, %v1438
    %v1440 = vpop.f32.mrb[0].mxu0
    %1441 = vdwg.mxu0
    %v1442 = vadd.f32 %v1177, %v1379
    %v1443 = vadd.f32 %v1178, %v1384
    %v1444 = vadd.f32 %v1179, %v1389
    %v1445 = vadd.f32 %v1180, %v1394
    %v1446 = vadd.f32 %v1181, %v1399
    %v1447 = vadd.f32 %v1182, %v1404
    %v1448 = vadd.f32 %v1183, %v1409
    %v1449 = vadd.f32 %v1184, %v1414
    %v1450 = vadd.f32 %v1185, %v1419
    %v1451 = vadd.f32 %v1186, %v1424
    %v1452 = vadd.f32 %v1187, %v1429
    %v1453 = vadd.f32 %v1188, %v1434
    %v1454 = vadd.f32 %v1189, %v1439
    %v1455 = vld [vmem:[#allocation2 + $0x9] sm:$0xff]
    %v1456 = vld [vmem:[#allocation2 + $0x11] sm:$0xff]
    %v1457 = vld [vmem:[#allocation2 + $0x19] sm:$0xff]
    %v1458 = vld [vmem:[#allocation2 + $0x21] sm:$0xff]
    %v1459 = vld [vmem:[#allocation2 + $0x29] sm:$0xff]
    %v1460 = vld [vmem:[#allocation2 + $0x31] sm:$0xff]
    %v1461 = vld [vmem:[#allocation2 + $0x39] sm:$0xff]
    %v1462 = vld [vmem:[#allocation2 + $0x41] sm:$0xff]
    %v1463 = vld [vmem:[#allocation2 + $0x49] sm:$0xff]
    %v1464 = vld [vmem:[#allocation2 + $0x51] sm:$0xff]
    %v1465 = vld [vmem:[#allocation2 + $0x59] sm:$0xff]
    %v1466 = vld [vmem:[#allocation2 + $0x61] sm:$0xff]
    %v1467 = vld [vmem:[#allocation2 + $0x69] sm:$0x3]
    %1468 = vset.pattern.permute.xlu0 5
    %1469 = vperm.xlu0 %1468, %v143
    %v1470 = vpop.permute.xlu0 %1469
    %1472 = vset.pattern.permute.xlu0 5
    %1473 = vperm.xlu0 %1472, %v144
    %v1474 = vpop.permute.xlu0 %1473
    %1476 = vset.pattern.permute.xlu0 5
    %1477 = vperm.xlu0 %1476, %v145
    %v1478 = vpop.permute.xlu0 %1477
    %1480 = vset.pattern.permute.xlu0 5
    %1481 = vperm.xlu0 %1480, %v146
    %v1482 = vpop.permute.xlu0 %1481
    %1484 = vset.pattern.permute.xlu0 5
    %1485 = vperm.xlu0 %1484, %v147
    %v1486 = vpop.permute.xlu0 %1485
    %1488 = vset.pattern.permute.xlu0 5
    %1489 = vperm.xlu0 %1488, %v148
    %v1490 = vpop.permute.xlu0 %1489
    %1492 = vset.pattern.permute.xlu0 5
    %1493 = vperm.xlu0 %1492, %v149
    %v1494 = vpop.permute.xlu0 %1493
    %1496 = vset.pattern.permute.xlu0 5
    %1497 = vperm.xlu0 %1496, %v150
    %v1498 = vpop.permute.xlu0 %1497
    %1500 = vset.pattern.permute.xlu0 5
    %1501 = vperm.xlu0 %1500, %v151
    %v1502 = vpop.permute.xlu0 %1501
    %1504 = vset.pattern.permute.xlu0 5
    %1505 = vperm.xlu0 %1504, %v152
    %v1506 = vpop.permute.xlu0 %1505
    %1508 = vset.pattern.permute.xlu0 5
    %1509 = vperm.xlu0 %1508, %v153
    %v1510 = vpop.permute.xlu0 %1509
    %1512 = vset.pattern.permute.xlu0 5
    %1513 = vperm.xlu0 %1512, %v154
    %v1514 = vpop.permute.xlu0 %1513
    %1516 = vset.pattern.permute.xlu0 5
    %1517 = vperm.xlu0 %1516, %v155
    %v1518 = vpop.permute.xlu0 %1517
    %v1520 = vmul.f32 %v1455, %v1470
    %v1521 = vmul.f32 %v1456, %v1474
    %v1522 = vmul.f32 %v1457, %v1478
    %v1523 = vmul.f32 %v1458, %v1482
    %v1524 = vmul.f32 %v1459, %v1486
    %v1525 = vmul.f32 %v1460, %v1490
    %v1526 = vmul.f32 %v1461, %v1494
    %v1527 = vmul.f32 %v1462, %v1498
    %v1528 = vmul.f32 %v1463, %v1502
    %v1529 = vmul.f32 %v1464, %v1506
    %v1530 = vmul.f32 %v1465, %v1510
    %v1531 = vmul.f32 %v1466, %v1514
    %v1532 = vmul.f32 %v1467, %v1518
    %s1533 = scalar_lea.vmem [#allocation6], 40
    %v1534 = vld [vmem:[%s1533] sm:$0x3f]
    %v1536 = vsel %vm100, %v1520, 0
    %v1539 = vsel %vm100, %v1521, 0
    %v1542 = vsel %vm100, %v1522, 0
    %v1545 = vsel %vm100, %v1523, 0
    %v1548 = vsel %vm100, %v1524, 0
    %v1551 = vsel %vm100, %v1525, 0
    %v1554 = vsel %vm100, %v1526, 0
    %v1557 = vsel %vm100, %v1527, 0
    %v1560 = vsel %vm100, %v1528, 0
    %v1563 = vsel %vm100, %v1529, 0
    %v1566 = vsel %vm100, %v1530, 0
    %v1569 = vsel %vm100, %v1531, 0
    %v1572 = vsel %vm100, %v1532, 0
    %v1575 = vsel %vm354, %v1534, 0
    %1577 = vmatprep.subr.mxu0 0.0
    %1578 = vmatpush1.msra.mxu0 %v1575
    %1579 = vmatprep.subr.mxu0 0.0
    %1580 = vmatpush1.msra.mxu0 0.0
    %1581 = vmatprep.subr.mxu0 0.0
    %1582 = vmatpush1.msra.mxu0 0.0
    %1583 = vmatprep.subr.mxu0 0.0
    %1584 = vmatpush1.msra.mxu0 0.0
    %1585 = vmatprep.subr.mxu0 0.0
    %1586 = vmatpush1.msra.mxu0 0.0
    %1587 = vmatprep.subr.mxu0 0.0
    %1588 = vmatpush1.msra.mxu0 0.0
    %1589 = vmatprep.subr.mxu0 0.0
    %1590 = vmatpush1.msra.mxu0 0.0
    %1591 = vmatprep.subr.mxu0 0.0
    %1592 = vmatpush1.msra.mxu0 0.0
    %1593 = vmatprep.subr.mxu0 0.0
    %1594 = vmatpush1.msra.mxu0 0.0
    %1595 = vmatprep.subr.mxu0 0.0
    %1596 = vmatpush1.msra.mxu0 0.0
    %1597 = vmatprep.subr.mxu0 0.0
    %1598 = vmatpush1.msra.mxu0 0.0
    %1599 = vmatprep.subr.mxu0 0.0
    %1600 = vmatpush1.msra.mxu0 0.0
    %1601 = vmatprep.subr.mxu0 0.0
    %1602 = vmatpush1.msra.mxu0 0.0
    %1603 = vmatprep.subr.mxu0 0.0
    %1604 = vmatpush1.msra.mxu0 0.0
    %1605 = vmatprep.subr.mxu0 0.0
    %1606 = vmatpush1.msra.mxu0 0.0
    %1607 = vmatprep.subr.mxu0 0.0
    %1608 = vmatpush1.msra.mxu0 0.0
    %1609 = vmatprep.subr.mxu0 0.0
    %1610 = vmatpush1.msra.mxu0 0.0
    %1611 = vmatprep.subr.mxu0 0.0
    %1612 = vmatpush1.msra.mxu0 0.0
    %1613 = vmatprep.subr.mxu0 0.0
    %1614 = vmatpush1.msra.mxu0 0.0
    %1615 = vmatprep.subr.mxu0 0.0
    %1616 = vmatpush1.msra.mxu0 0.0
    %1617 = vmatprep.subr.mxu0 0.0
    %1618 = vmatpush1.msra.mxu0 0.0
    %1619 = vmatprep.subr.mxu0 0.0
    %1620 = vmatpush1.msra.mxu0 0.0
    %1621 = vmatprep.subr.mxu0 0.0
    %1622 = vmatpush1.msra.mxu0 0.0
    %1623 = vmatprep.subr.mxu0 0.0
    %1624 = vmatpush1.msra.mxu0 0.0
    %1625 = vmatprep.subr.mxu0 0.0
    %1626 = vmatpush1.msra.mxu0 0.0
    %1627 = vmatprep.subr.mxu0 0.0
    %1628 = vmatpush1.msra.mxu0 0.0
    %1629 = vmatprep.subr.mxu0 0.0
    %1630 = vmatpush1.msra.mxu0 0.0
    %1631 = vmatprep.subr.mxu0 0.0
    %1632 = vmatpush1.msra.mxu0 0.0
    %1633 = vmatprep.subr.mxu0 0.0
    %1634 = vmatpush1.msra.mxu0 0.0
    %1635 = vmatprep.subr.mxu0 0.0
    %1636 = vmatpush1.msra.mxu0 0.0
    %1637 = vmatprep.subr.mxu0 0.0
    %1638 = vmatpush1.msra.mxu0 0.0
    %1639 = vmatprep.subr.mxu0 0.0
    %1640 = vmatpush1.msra.mxu0 0.0
    %1641 = vmatprep.mubr.f32.mxu0 0.0
    %1642 = vmatmul.mubr.f32.gmra.mrb[0].mxu0 %v1536
    %v1643 = vpop.f32.mrb[0].mxu0
    %v1644 = vadd.f32 0.0, %v1643
    %v1645 = vpop.f32.mrb[0].mxu0
    %1646 = vmatprep.mubr.f32.mxu0 0.0
    %1647 = vmatmul.mubr.f32.gmra.mrb[0].mxu0 %v1539
    %v1648 = vpop.f32.mrb[0].mxu0
    %v1649 = vadd.f32 0.0, %v1648
    %v1650 = vpop.f32.mrb[0].mxu0
    %1651 = vmatprep.mubr.f32.mxu0 0.0
    %1652 = vmatmul.mubr.f32.gmra.mrb[0].mxu0 %v1542
    %v1653 = vpop.f32.mrb[0].mxu0
    %v1654 = vadd.f32 0.0, %v1653
    %v1655 = vpop.f32.mrb[0].mxu0
    %1656 = vmatprep.mubr.f32.mxu0 0.0
    %1657 = vmatmul.mubr.f32.gmra.mrb[0].mxu0 %v1545
    %v1658 = vpop.f32.mrb[0].mxu0
    %v1659 = vadd.f32 0.0, %v1658
    %v1660 = vpop.f32.mrb[0].mxu0
    %1661 = vmatprep.mubr.f32.mxu0 0.0
    %1662 = vmatmul.mubr.f32.gmra.mrb[0].mxu0 %v1548
    %v1663 = vpop.f32.mrb[0].mxu0
    %v1664 = vadd.f32 0.0, %v1663
    %v1665 = vpop.f32.mrb[0].mxu0
    %1666 = vmatprep.mubr.f32.mxu0 0.0
    %1667 = vmatmul.mubr.f32.gmra.mrb[0].mxu0 %v1551
    %v1668 = vpop.f32.mrb[0].mxu0
    %v1669 = vadd.f32 0.0, %v1668
    %v1670 = vpop.f32.mrb[0].mxu0
    %1671 = vmatprep.mubr.f32.mxu0 0.0
    %1672 = vmatmul.mubr.f32.gmra.mrb[0].mxu0 %v1554
    %v1673 = vpop.f32.mrb[0].mxu0
    %v1674 = vadd.f32 0.0, %v1673
    %v1675 = vpop.f32.mrb[0].mxu0
    %1676 = vmatprep.mubr.f32.mxu0 0.0
    %1677 = vmatmul.mubr.f32.gmra.mrb[0].mxu0 %v1557
    %v1678 = vpop.f32.mrb[0].mxu0
    %v1679 = vadd.f32 0.0, %v1678
    %v1680 = vpop.f32.mrb[0].mxu0
    %1681 = vmatprep.mubr.f32.mxu0 0.0
    %1682 = vmatmul.mubr.f32.gmra.mrb[0].mxu0 %v1560
    %v1683 = vpop.f32.mrb[0].mxu0
    %v1684 = vadd.f32 0.0, %v1683
    %v1685 = vpop.f32.mrb[0].mxu0
    %1686 = vmatprep.mubr.f32.mxu0 0.0
    %1687 = vmatmul.mubr.f32.gmra.mrb[0].mxu0 %v1563
    %v1688 = vpop.f32.mrb[0].mxu0
    %v1689 = vadd.f32 0.0, %v1688
    %v1690 = vpop.f32.mrb[0].mxu0
    %1691 = vmatprep.mubr.f32.mxu0 0.0
    %1692 = vmatmul.mubr.f32.gmra.mrb[0].mxu0 %v1566
    %v1693 = vpop.f32.mrb[0].mxu0
    %v1694 = vadd.f32 0.0, %v1693
    %v1695 = vpop.f32.mrb[0].mxu0
    %1696 = vmatprep.mubr.f32.mxu0 0.0
    %1697 = vmatmul.mubr.f32.gmra.mrb[0].mxu0 %v1569
    %v1698 = vpop.f32.mrb[0].mxu0
    %v1699 = vadd.f32 0.0, %v1698
    %v1700 = vpop.f32.mrb[0].mxu0
    %1701 = vmatprep.mubr.f32.mxu0 0.0
    %1702 = vmatmul.mubr.f32.gmra.mrb[0].mxu0 %v1572
    %v1703 = vpop.f32.mrb[0].mxu0
    %v1704 = vadd.f32 0.0, %v1703
    %v1705 = vpop.f32.mrb[0].mxu0
    %1706 = vdwg.mxu0
    %v1707 = vadd.f32 %v1442, %v1644
    %v1708 = vadd.f32 %v1443, %v1649
    %v1709 = vadd.f32 %v1444, %v1654
    %v1710 = vadd.f32 %v1445, %v1659
    %v1711 = vadd.f32 %v1446, %v1664
    %v1712 = vadd.f32 %v1447, %v1669
    %v1713 = vadd.f32 %v1448, %v1674
    %v1714 = vadd.f32 %v1449, %v1679
    %v1715 = vadd.f32 %v1450, %v1684
    %v1716 = vadd.f32 %v1451, %v1689
    %v1717 = vadd.f32 %v1452, %v1694
    %v1718 = vadd.f32 %v1453, %v1699
    %v1719 = vadd.f32 %v1454, %v1704
    %v1720 = vld [vmem:[#allocation2 + $0xe] sm:$0xff]
    %v1721 = vld [vmem:[#allocation2 + $0x16] sm:$0xff]
    %v1722 = vld [vmem:[#allocation2 + $0x1e] sm:$0xff]
    %v1723 = vld [vmem:[#allocation2 + $0x26] sm:$0xff]
    %v1724 = vld [vmem:[#allocation2 + $0x2e] sm:$0xff]
    %v1725 = vld [vmem:[#allocation2 + $0x36] sm:$0xff]
    %v1726 = vld [vmem:[#allocation2 + $0x3e] sm:$0xff]
    %v1727 = vld [vmem:[#allocation2 + $0x46] sm:$0xff]
    %v1728 = vld [vmem:[#allocation2 + $0x4e] sm:$0xff]
    %v1729 = vld [vmem:[#allocation2 + $0x56] sm:$0xff]
    %v1730 = vld [vmem:[#allocation2 + $0x5e] sm:$0xff]
    %v1731 = vld [vmem:[#allocation2 + $0x66] sm:$0xff]
    %v1732 = vld [vmem:[#allocation2 + $0x6e] sm:$0x3]
    %1733 = vset.pattern.permute.xlu0 6
    %1734 = vperm.xlu0 %1733, %v143
    %v1735 = vpop.permute.xlu0 %1734
    %1737 = vset.pattern.permute.xlu0 6
    %1738 = vperm.xlu0 %1737, %v144
    %v1739 = vpop.permute.xlu0 %1738
    %1741 = vset.pattern.permute.xlu0 6
    %1742 = vperm.xlu0 %1741, %v145
    %v1743 = vpop.permute.xlu0 %1742
    %1745 = vset.pattern.permute.xlu0 6
    %1746 = vperm.xlu0 %1745, %v146
    %v1747 = vpop.permute.xlu0 %1746
    %1749 = vset.pattern.permute.xlu0 6
    %1750 = vperm.xlu0 %1749, %v147
    %v1751 = vpop.permute.xlu0 %1750
    %1753 = vset.pattern.permute.xlu0 6
    %1754 = vperm.xlu0 %1753, %v148
    %v1755 = vpop.permute.xlu0 %1754
    %1757 = vset.pattern.permute.xlu0 6
    %1758 = vperm.xlu0 %1757, %v149
    %v1759 = vpop.permute.xlu0 %1758
    %1761 = vset.pattern.permute.xlu0 6
    %1762 = vperm.xlu0 %1761, %v150
    %v1763 = vpop.permute.xlu0 %1762
    %1765 = vset.pattern.permute.xlu0 6
    %1766 = vperm.xlu0 %1765, %v151
    %v1767 = vpop.permute.xlu0 %1766
    %1769 = vset.pattern.permute.xlu0 6
    %1770 = vperm.xlu0 %1769, %v152
    %v1771 = vpop.permute.xlu0 %1770
    %1773 = vset.pattern.permute.xlu0 6
    %1774 = vperm.xlu0 %1773, %v153
    %v1775 = vpop.permute.xlu0 %1774
    %1777 = vset.pattern.permute.xlu0 6
    %1778 = vperm.xlu0 %1777, %v154
    %v1779 = vpop.permute.xlu0 %1778
    %1781 = vset.pattern.permute.xlu0 6
    %1782 = vperm.xlu0 %1781, %v155
    %v1783 = vpop.permute.xlu0 %1782
    %v1785 = vmul.f32 %v1720, %v1735
    %v1786 = vmul.f32 %v1721, %v1739
    %v1787 = vmul.f32 %v1722, %v1743
    %v1788 = vmul.f32 %v1723, %v1747
    %v1789 = vmul.f32 %v1724, %v1751
    %v1790 = vmul.f32 %v1725, %v1755
    %v1791 = vmul.f32 %v1726, %v1759
    %v1792 = vmul.f32 %v1727, %v1763
    %v1793 = vmul.f32 %v1728, %v1767
    %v1794 = vmul.f32 %v1729, %v1771
    %v1795 = vmul.f32 %v1730, %v1775
    %v1796 = vmul.f32 %v1731, %v1779
    %v1797 = vmul.f32 %v1732, %v1783
    %s1798 = scalar_lea.vmem [#allocation6], 48
    %v1799 = vld [vmem:[%s1798] sm:$0x3f]
    %v1801 = vsel %vm100, %v1785, 0
    %v1804 = vsel %vm100, %v1786, 0
    %v1807 = vsel %vm100, %v1787, 0
    %v1810 = vsel %vm100, %v1788, 0
    %v1813 = vsel %vm100, %v1789, 0
    %v1816 = vsel %vm100, %v1790, 0
    %v1819 = vsel %vm100, %v1791, 0
    %v1822 = vsel %vm100, %v1792, 0
    %v1825 = vsel %vm100, %v1793, 0
    %v1828 = vsel %vm100, %v1794, 0
    %v1831 = vsel %vm100, %v1795, 0
    %v1834 = vsel %vm100, %v1796, 0
    %v1837 = vsel %vm100, %v1797, 0
    %v1840 = vsel %vm354, %v1799, 0
    %1842 = vmatprep.subr.mxu0 0.0
    %1843 = vmatpush1.msra.mxu0 %v1840
    %1844 = vmatprep.subr.mxu0 0.0
    %1845 = vmatpush1.msra.mxu0 0.0
    %1846 = vmatprep.subr.mxu0 0.0
    %1847 = vmatpush1.msra.mxu0 0.0
    %1848 = vmatprep.subr.mxu0 0.0
    %1849 = vmatpush1.msra.mxu0 0.0
    %1850 = vmatprep.subr.mxu0 0.0
    %1851 = vmatpush1.msra.mxu0 0.0
    %1852 = vmatprep.subr.mxu0 0.0
    %1853 = vmatpush1.msra.mxu0 0.0
    %1854 = vmatprep.subr.mxu0 0.0
    %1855 = vmatpush1.msra.mxu0 0.0
    %1856 = vmatprep.subr.mxu0 0.0
    %1857 = vmatpush1.msra.mxu0 0.0
    %1858 = vmatprep.subr.mxu0 0.0
    %1859 = vmatpush1.msra.mxu0 0.0
    %1860 = vmatprep.subr.mxu0 0.0
    %1861 = vmatpush1.msra.mxu0 0.0
    %1862 = vmatprep.subr.mxu0 0.0
    %1863 = vmatpush1.msra.mxu0 0.0
    %1864 = vmatprep.subr.mxu0 0.0
    %1865 = vmatpush1.msra.mxu0 0.0
    %1866 = vmatprep.subr.mxu0 0.0
    %1867 = vmatpush1.msra.mxu0 0.0
    %1868 = vmatprep.subr.mxu0 0.0
    %1869 = vmatpush1.msra.mxu0 0.0
    %1870 = vmatprep.subr.mxu0 0.0
    %1871 = vmatpush1.msra.mxu0 0.0
    %1872 = vmatprep.subr.mxu0 0.0
    %1873 = vmatpush1.msra.mxu0 0.0
    %1874 = vmatprep.subr.mxu0 0.0
    %1875 = vmatpush1.msra.mxu0 0.0
    %1876 = vmatprep.subr.mxu0 0.0
    %1877 = vmatpush1.msra.mxu0 0.0
    %1878 = vmatprep.subr.mxu0 0.0
    %1879 = vmatpush1.msra.mxu0 0.0
    %1880 = vmatprep.subr.mxu0 0.0
    %1881 = vmatpush1.msra.mxu0 0.0
    %1882 = vmatprep.subr.mxu0 0.0
    %1883 = vmatpush1.msra.mxu0 0.0
    %1884 = vmatprep.subr.mxu0 0.0
    %1885 = vmatpush1.msra.mxu0 0.0
    %1886 = vmatprep.subr.mxu0 0.0
    %1887 = vmatpush1.msra.mxu0 0.0
    %1888 = vmatprep.subr.mxu0 0.0
    %1889 = vmatpush1.msra.mxu0 0.0
    %1890 = vmatprep.subr.mxu0 0.0
    %1891 = vmatpush1.msra.mxu0 0.0
    %1892 = vmatprep.subr.mxu0 0.0
    %1893 = vmatpush1.msra.mxu0 0.0
    %1894 = vmatprep.subr.mxu0 0.0
    %1895 = vmatpush1.msra.mxu0 0.0
    %1896 = vmatprep.subr.mxu0 0.0
    %1897 = vmatpush1.msra.mxu0 0.0
    %1898 = vmatprep.subr.mxu0 0.0
    %1899 = vmatpush1.msra.mxu0 0.0
    %1900 = vmatprep.subr.mxu0 0.0
    %1901 = vmatpush1.msra.mxu0 0.0
    %1902 = vmatprep.subr.mxu0 0.0
    %1903 = vmatpush1.msra.mxu0 0.0
    %1904 = vmatprep.subr.mxu0 0.0
    %1905 = vmatpush1.msra.mxu0 0.0
    %1906 = vmatprep.mubr.f32.mxu0 0.0
    %1907 = vmatmul.mubr.f32.gmra.mrb[0].mxu0 %v1801
    %v1908 = vpop.f32.mrb[0].mxu0
    %v1909 = vadd.f32 0.0, %v1908
    %v1910 = vpop.f32.mrb[0].mxu0
    %1911 = vmatprep.mubr.f32.mxu0 0.0
    %1912 = vmatmul.mubr.f32.gmra.mrb[0].mxu0 %v1804
    %v1913 = vpop.f32.mrb[0].mxu0
    %v1914 = vadd.f32 0.0, %v1913
    %v1915 = vpop.f32.mrb[0].mxu0
    %1916 = vmatprep.mubr.f32.mxu0 0.0
    %1917 = vmatmul.mubr.f32.gmra.mrb[0].mxu0 %v1807
    %v1918 = vpop.f32.mrb[0].mxu0
    %v1919 = vadd.f32 0.0, %v1918
    %v1920 = vpop.f32.mrb[0].mxu0
    %1921 = vmatprep.mubr.f32.mxu0 0.0
    %1922 = vmatmul.mubr.f32.gmra.mrb[0].mxu0 %v1810
    %v1923 = vpop.f32.mrb[0].mxu0
    %v1924 = vadd.f32 0.0, %v1923
    %v1925 = vpop.f32.mrb[0].mxu0
    %1926 = vmatprep.mubr.f32.mxu0 0.0
    %1927 = vmatmul.mubr.f32.gmra.mrb[0].mxu0 %v1813
    %v1928 = vpop.f32.mrb[0].mxu0
    %v1929 = vadd.f32 0.0, %v1928
    %v1930 = vpop.f32.mrb[0].mxu0
    %1931 = vmatprep.mubr.f32.mxu0 0.0
    %1932 = vmatmul.mubr.f32.gmra.mrb[0].mxu0 %v1816
    %v1933 = vpop.f32.mrb[0].mxu0
    %v1934 = vadd.f32 0.0, %v1933
    %v1935 = vpop.f32.mrb[0].mxu0
    %1936 = vmatprep.mubr.f32.mxu0 0.0
    %1937 = vmatmul.mubr.f32.gmra.mrb[0].mxu0 %v1819
    %v1938 = vpop.f32.mrb[0].mxu0
    %v1939 = vadd.f32 0.0, %v1938
    %v1940 = vpop.f32.mrb[0].mxu0
    %1941 = vmatprep.mubr.f32.mxu0 0.0
    %1942 = vmatmul.mubr.f32.gmra.mrb[0].mxu0 %v1822
    %v1943 = vpop.f32.mrb[0].mxu0
    %v1944 = vadd.f32 0.0, %v1943
    %v1945 = vpop.f32.mrb[0].mxu0
    %1946 = vmatprep.mubr.f32.mxu0 0.0
    %1947 = vmatmul.mubr.f32.gmra.mrb[0].mxu0 %v1825
    %v1948 = vpop.f32.mrb[0].mxu0
    %v1949 = vadd.f32 0.0, %v1948
    %v1950 = vpop.f32.mrb[0].mxu0
    %1951 = vmatprep.mubr.f32.mxu0 0.0
    %1952 = vmatmul.mubr.f32.gmra.mrb[0].mxu0 %v1828
    %v1953 = vpop.f32.mrb[0].mxu0
    %v1954 = vadd.f32 0.0, %v1953
    %v1955 = vpop.f32.mrb[0].mxu0
    %1956 = vmatprep.mubr.f32.mxu0 0.0
    %1957 = vmatmul.mubr.f32.gmra.mrb[0].mxu0 %v1831
    %v1958 = vpop.f32.mrb[0].mxu0
    %v1959 = vadd.f32 0.0, %v1958
    %v1960 = vpop.f32.mrb[0].mxu0
    %1961 = vmatprep.mubr.f32.mxu0 0.0
    %1962 = vmatmul.mubr.f32.gmra.mrb[0].mxu0 %v1834
    %v1963 = vpop.f32.mrb[0].mxu0
    %v1964 = vadd.f32 0.0, %v1963
    %v1965 = vpop.f32.mrb[0].mxu0
    %1966 = vmatprep.mubr.f32.mxu0 0.0
    %1967 = vmatmul.mubr.f32.gmra.mrb[0].mxu0 %v1837
    %v1968 = vpop.f32.mrb[0].mxu0
    %v1969 = vadd.f32 0.0, %v1968
    %v1970 = vpop.f32.mrb[0].mxu0
    %1971 = vdwg.mxu0
    %v1972 = vadd.f32 %v1707, %v1909
    %v1973 = vadd.f32 %v1708, %v1914
    %v1974 = vadd.f32 %v1709, %v1919
    %v1975 = vadd.f32 %v1710, %v1924
    %v1976 = vadd.f32 %v1711, %v1929
    %v1977 = vadd.f32 %v1712, %v1934
    %v1978 = vadd.f32 %v1713, %v1939
    %v1979 = vadd.f32 %v1714, %v1944
    %v1980 = vadd.f32 %v1715, %v1949
    %v1981 = vadd.f32 %v1716, %v1954
    %v1982 = vadd.f32 %v1717, %v1959
    %v1983 = vadd.f32 %v1718, %v1964
    %v1984 = vadd.f32 %v1719, %v1969
    %v1985 = vld [vmem:[#allocation2 + $0xf] sm:$0xff]
    %v1986 = vld [vmem:[#allocation2 + $0x17] sm:$0xff]
    %v1987 = vld [vmem:[#allocation2 + $0x1f] sm:$0xff]
    %v1988 = vld [vmem:[#allocation2 + $0x27] sm:$0xff]
    %v1989 = vld [vmem:[#allocation2 + $0x2f] sm:$0xff]
    %v1990 = vld [vmem:[#allocation2 + $0x37] sm:$0xff]
    %v1991 = vld [vmem:[#allocation2 + $0x3f] sm:$0xff]
    %v1992 = vld [vmem:[#allocation2 + $0x47] sm:$0xff]
    %v1993 = vld [vmem:[#allocation2 + $0x4f] sm:$0xff]
    %v1994 = vld [vmem:[#allocation2 + $0x57] sm:$0xff]
    %v1995 = vld [vmem:[#allocation2 + $0x5f] sm:$0xff]
    %v1996 = vld [vmem:[#allocation2 + $0x67] sm:$0xff]
    %v1997 = vld [vmem:[#allocation2 + $0x6f] sm:$0x3]
    %1998 = vset.pattern.permute.xlu0 7
    %1999 = vperm.xlu0 %1998, %v143
    %v2000 = vpop.permute.xlu0 %1999
    %2002 = vset.pattern.permute.xlu0 7
    %2003 = vperm.xlu0 %2002, %v144
    %v2004 = vpop.permute.xlu0 %2003
    %2006 = vset.pattern.permute.xlu0 7
    %2007 = vperm.xlu0 %2006, %v145
    %v2008 = vpop.permute.xlu0 %2007
    %2010 = vset.pattern.permute.xlu0 7
    %2011 = vperm.xlu0 %2010, %v146
    %v2012 = vpop.permute.xlu0 %2011
    %2014 = vset.pattern.permute.xlu0 7
    %2015 = vperm.xlu0 %2014, %v147
    %v2016 = vpop.permute.xlu0 %2015
    %2018 = vset.pattern.permute.xlu0 7
    %2019 = vperm.xlu0 %2018, %v148
    %v2020 = vpop.permute.xlu0 %2019
    %2022 = vset.pattern.permute.xlu0 7
    %2023 = vperm.xlu0 %2022, %v149
    %v2024 = vpop.permute.xlu0 %2023
    %2026 = vset.pattern.permute.xlu0 7
    %2027 = vperm.xlu0 %2026, %v150
    %v2028 = vpop.permute.xlu0 %2027
    %2030 = vset.pattern.permute.xlu0 7
    %2031 = vperm.xlu0 %2030, %v151
    %v2032 = vpop.permute.xlu0 %2031
    %2034 = vset.pattern.permute.xlu0 7
    %2035 = vperm.xlu0 %2034, %v152
    %v2036 = vpop.permute.xlu0 %2035
    %2038 = vset.pattern.permute.xlu0 7
    %2039 = vperm.xlu0 %2038, %v153
    %v2040 = vpop.permute.xlu0 %2039
    %2042 = vset.pattern.permute.xlu0 7
    %2043 = vperm.xlu0 %2042, %v154
    %v2044 = vpop.permute.xlu0 %2043
    %2046 = vset.pattern.permute.xlu0 7
    %2047 = vperm.xlu0 %2046, %v155
    %v2048 = vpop.permute.xlu0 %2047
    %v2050 = vmul.f32 %v1985, %v2000
    %v2051 = vmul.f32 %v1986, %v2004
    %v2052 = vmul.f32 %v1987, %v2008
    %v2053 = vmul.f32 %v1988, %v2012
    %v2054 = vmul.f32 %v1989, %v2016
    %v2055 = vmul.f32 %v1990, %v2020
    %v2056 = vmul.f32 %v1991, %v2024
    %v2057 = vmul.f32 %v1992, %v2028
    %v2058 = vmul.f32 %v1993, %v2032
    %v2059 = vmul.f32 %v1994, %v2036
    %v2060 = vmul.f32 %v1995, %v2040
    %v2061 = vmul.f32 %v1996, %v2044
    %v2062 = vmul.f32 %v1997, %v2048
    %s2063 = scalar_lea.vmem [#allocation6], 56
    %v2064 = vld [vmem:[%s2063] sm:$0x3f]
    %v2066 = vsel %vm100, %v2050, 0
    %v2069 = vsel %vm100, %v2051, 0
    %v2072 = vsel %vm100, %v2052, 0
    %v2075 = vsel %vm100, %v2053, 0
    %v2078 = vsel %vm100, %v2054, 0
    %v2081 = vsel %vm100, %v2055, 0
    %v2084 = vsel %vm100, %v2056, 0
    %v2087 = vsel %vm100, %v2057, 0
    %v2090 = vsel %vm100, %v2058, 0
    %v2093 = vsel %vm100, %v2059, 0
    %v2096 = vsel %vm100, %v2060, 0
    %v2099 = vsel %vm100, %v2061, 0
    %v2102 = vsel %vm100, %v2062, 0
    %v2105 = vsel %vm354, %v2064, 0
    %2107 = vmatprep.subr.mxu0 0.0
    %2108 = vmatpush1.msra.mxu0 %v2105
    %2109 = vmatprep.subr.mxu0 0.0
    %2110 = vmatpush1.msra.mxu0 0.0
    %2111 = vmatprep.subr.mxu0 0.0
    %2112 = vmatpush1.msra.mxu0 0.0
    %2113 = vmatprep.subr.mxu0 0.0
    %2114 = vmatpush1.msra.mxu0 0.0
    %2115 = vmatprep.subr.mxu0 0.0
    %2116 = vmatpush1.msra.mxu0 0.0
    %2117 = vmatprep.subr.mxu0 0.0
    %2118 = vmatpush1.msra.mxu0 0.0
    %2119 = vmatprep.subr.mxu0 0.0
    %2120 = vmatpush1.msra.mxu0 0.0
    %2121 = vmatprep.subr.mxu0 0.0
    %2122 = vmatpush1.msra.mxu0 0.0
    %2123 = vmatprep.subr.mxu0 0.0
    %2124 = vmatpush1.msra.mxu0 0.0
    %2125 = vmatprep.subr.mxu0 0.0
    %2126 = vmatpush1.msra.mxu0 0.0
    %2127 = vmatprep.subr.mxu0 0.0
    %2128 = vmatpush1.msra.mxu0 0.0
    %2129 = vmatprep.subr.mxu0 0.0
    %2130 = vmatpush1.msra.mxu0 0.0
    %2131 = vmatprep.subr.mxu0 0.0
    %2132 = vmatpush1.msra.mxu0 0.0
    %2133 = vmatprep.subr.mxu0 0.0
    %2134 = vmatpush1.msra.mxu0 0.0
    %2135 = vmatprep.subr.mxu0 0.0
    %2136 = vmatpush1.msra.mxu0 0.0
    %2137 = vmatprep.subr.mxu0 0.0
    %2138 = vmatpush1.msra.mxu0 0.0
    %2139 = vmatprep.subr.mxu0 0.0
    %2140 = vmatpush1.msra.mxu0 0.0
    %2141 = vmatprep.subr.mxu0 0.0
    %2142 = vmatpush1.msra.mxu0 0.0
    %2143 = vmatprep.subr.mxu0 0.0
    %2144 = vmatpush1.msra.mxu0 0.0
    %2145 = vmatprep.subr.mxu0 0.0
    %2146 = vmatpush1.msra.mxu0 0.0
    %2147 = vmatprep.subr.mxu0 0.0
    %2148 = vmatpush1.msra.mxu0 0.0
    %2149 = vmatprep.subr.mxu0 0.0
    %2150 = vmatpush1.msra.mxu0 0.0
    %2151 = vmatprep.subr.mxu0 0.0
    %2152 = vmatpush1.msra.mxu0 0.0
    %2153 = vmatprep.subr.mxu0 0.0
    %2154 = vmatpush1.msra.mxu0 0.0
    %2155 = vmatprep.subr.mxu0 0.0
    %2156 = vmatpush1.msra.mxu0 0.0
    %2157 = vmatprep.subr.mxu0 0.0
    %2158 = vmatpush1.msra.mxu0 0.0
    %2159 = vmatprep.subr.mxu0 0.0
    %2160 = vmatpush1.msra.mxu0 0.0
    %2161 = vmatprep.subr.mxu0 0.0
    %2162 = vmatpush1.msra.mxu0 0.0
    %2163 = vmatprep.subr.mxu0 0.0
    %2164 = vmatpush1.msra.mxu0 0.0
    %2165 = vmatprep.subr.mxu0 0.0
    %2166 = vmatpush1.msra.mxu0 0.0
    %2167 = vmatprep.subr.mxu0 0.0
    %2168 = vmatpush1.msra.mxu0 0.0
    %2169 = vmatprep.subr.mxu0 0.0
    %2170 = vmatpush1.msra.mxu0 0.0
    %2171 = vmatprep.mubr.f32.mxu0 0.0
    %2172 = vmatmul.mubr.f32.gmra.mrb[0].mxu0 %v2066
    %v2173 = vpop.f32.mrb[0].mxu0
    %v2174 = vadd.f32 0.0, %v2173
    %v2175 = vpop.f32.mrb[0].mxu0
    %2176 = vmatprep.mubr.f32.mxu0 0.0
    %2177 = vmatmul.mubr.f32.gmra.mrb[0].mxu0 %v2069
    %v2178 = vpop.f32.mrb[0].mxu0
    %v2179 = vadd.f32 0.0, %v2178
    %v2180 = vpop.f32.mrb[0].mxu0
    %2181 = vmatprep.mubr.f32.mxu0 0.0
    %2182 = vmatmul.mubr.f32.gmra.mrb[0].mxu0 %v2072
    %v2183 = vpop.f32.mrb[0].mxu0
    %v2184 = vadd.f32 0.0, %v2183
    %v2185 = vpop.f32.mrb[0].mxu0
    %2186 = vmatprep.mubr.f32.mxu0 0.0
    %2187 = vmatmul.mubr.f32.gmra.mrb[0].mxu0 %v2075
    %v2188 = vpop.f32.mrb[0].mxu0
    %v2189 = vadd.f32 0.0, %v2188
    %v2190 = vpop.f32.mrb[0].mxu0
    %2191 = vmatprep.mubr.f32.mxu0 0.0
    %2192 = vmatmul.mubr.f32.gmra.mrb[0].mxu0 %v2078
    %v2193 = vpop.f32.mrb[0].mxu0
    %v2194 = vadd.f32 0.0, %v2193
    %v2195 = vpop.f32.mrb[0].mxu0
    %2196 = vmatprep.mubr.f32.mxu0 0.0
    %2197 = vmatmul.mubr.f32.gmra.mrb[0].mxu0 %v2081
    %v2198 = vpop.f32.mrb[0].mxu0
    %v2199 = vadd.f32 0.0, %v2198
    %v2200 = vpop.f32.mrb[0].mxu0
    %2201 = vmatprep.mubr.f32.mxu0 0.0
    %2202 = vmatmul.mubr.f32.gmra.mrb[0].mxu0 %v2084
    %v2203 = vpop.f32.mrb[0].mxu0
    %v2204 = vadd.f32 0.0, %v2203
    %v2205 = vpop.f32.mrb[0].mxu0
    %2206 = vmatprep.mubr.f32.mxu0 0.0
    %2207 = vmatmul.mubr.f32.gmra.mrb[0].mxu0 %v2087
    %v2208 = vpop.f32.mrb[0].mxu0
    %v2209 = vadd.f32 0.0, %v2208
    %v2210 = vpop.f32.mrb[0].mxu0
    %2211 = vmatprep.mubr.f32.mxu0 0.0
    %2212 = vmatmul.mubr.f32.gmra.mrb[0].mxu0 %v2090
    %v2213 = vpop.f32.mrb[0].mxu0
    %v2214 = vadd.f32 0.0, %v2213
    %v2215 = vpop.f32.mrb[0].mxu0
    %2216 = vmatprep.mubr.f32.mxu0 0.0
    %2217 = vmatmul.mubr.f32.gmra.mrb[0].mxu0 %v2093
    %v2218 = vpop.f32.mrb[0].mxu0
    %v2219 = vadd.f32 0.0, %v2218
    %v2220 = vpop.f32.mrb[0].mxu0
    %2221 = vmatprep.mubr.f32.mxu0 0.0
    %2222 = vmatmul.mubr.f32.gmra.mrb[0].mxu0 %v2096
    %v2223 = vpop.f32.mrb[0].mxu0
    %v2224 = vadd.f32 0.0, %v2223
    %v2225 = vpop.f32.mrb[0].mxu0
    %2226 = vmatprep.mubr.f32.mxu0 0.0
    %2227 = vmatmul.mubr.f32.gmra.mrb[0].mxu0 %v2099
    %v2228 = vpop.f32.mrb[0].mxu0
    %v2229 = vadd.f32 0.0, %v2228
    %v2230 = vpop.f32.mrb[0].mxu0
    %2231 = vmatprep.mubr.f32.mxu0 0.0
    %2232 = vmatmul.mubr.f32.gmra.mrb[0].mxu0 %v2102
    %v2233 = vpop.f32.mrb[0].mxu0
    %v2234 = vadd.f32 0.0, %v2233
    %v2235 = vpop.f32.mrb[0].mxu0
    %2236 = vdwg.mxu0
    %v2237 = vadd.f32 %v1972, %v2174
    %v2238 = vadd.f32 %v1973, %v2179
    %v2239 = vadd.f32 %v1974, %v2184
    %v2240 = vadd.f32 %v1975, %v2189
    %v2241 = vadd.f32 %v1976, %v2194
    %v2242 = vadd.f32 %v1977, %v2199
    %v2243 = vadd.f32 %v1978, %v2204
    %v2244 = vadd.f32 %v1979, %v2209
    %v2245 = vadd.f32 %v1980, %v2214
    %v2246 = vadd.f32 %v1981, %v2219
    %v2247 = vadd.f32 %v1982, %v2224
    %v2248 = vadd.f32 %v1983, %v2229
    %v2249 = vadd.f32 %v1984, %v2234
    %v2250 = vld [vmem:[#allocation2 + $0x10] sm:$0xff]
    %v2251 = vld [vmem:[#allocation2 + $0x18] sm:$0xff]
    %v2252 = vld [vmem:[#allocation2 + $0x20] sm:$0xff]
    %v2253 = vld [vmem:[#allocation2 + $0x28] sm:$0xff]
    %v2254 = vld [vmem:[#allocation2 + $0x30] sm:$0xff]
    %v2255 = vld [vmem:[#allocation2 + $0x38] sm:$0xff]
    %v2256 = vld [vmem:[#allocation2 + $0x40] sm:$0xff]
    %v2257 = vld [vmem:[#allocation2 + $0x48] sm:$0xff]
    %v2258 = vld [vmem:[#allocation2 + $0x50] sm:$0xff]
    %v2259 = vld [vmem:[#allocation2 + $0x58] sm:$0xff]
    %v2260 = vld [vmem:[#allocation2 + $0x60] sm:$0xff]
    %v2261 = vld [vmem:[#allocation2 + $0x68] sm:$0xff]
    %v2262 = vld [vmem:[#allocation2 + $0x70] sm:$0x3]
    %2263 = vset.pattern.permute.xlu0 8
    %2264 = vperm.xlu0 %2263, %v143
    %v2265 = vpop.permute.xlu0 %2264
    %2267 = vset.pattern.permute.xlu0 8
    %2268 = vperm.xlu0 %2267, %v144
    %v2269 = vpop.permute.xlu0 %2268
    %2271 = vset.pattern.permute.xlu0 8
    %2272 = vperm.xlu0 %2271, %v145
    %v2273 = vpop.permute.xlu0 %2272
    %2275 = vset.pattern.permute.xlu0 8
    %2276 = vperm.xlu0 %2275, %v146
    %v2277 = vpop.permute.xlu0 %2276
    %2279 = vset.pattern.permute.xlu0 8
    %2280 = vperm.xlu0 %2279, %v147
    %v2281 = vpop.permute.xlu0 %2280
    %2283 = vset.pattern.permute.xlu0 8
    %2284 = vperm.xlu0 %2283, %v148
    %v2285 = vpop.permute.xlu0 %2284
    %2287 = vset.pattern.permute.xlu0 8
    %2288 = vperm.xlu0 %2287, %v149
    %v2289 = vpop.permute.xlu0 %2288
    %2291 = vset.pattern.permute.xlu0 8
    %2292 = vperm.xlu0 %2291, %v150
    %v2293 = vpop.permute.xlu0 %2292
    %2295 = vset.pattern.permute.xlu0 8
    %2296 = vperm.xlu0 %2295, %v151
    %v2297 = vpop.permute.xlu0 %2296
    %2299 = vset.pattern.permute.xlu0 8
    %2300 = vperm.xlu0 %2299, %v152
    %v2301 = vpop.permute.xlu0 %2300
    %2303 = vset.pattern.permute.xlu0 8
    %2304 = vperm.xlu0 %2303, %v153
    %v2305 = vpop.permute.xlu0 %2304
    %2307 = vset.pattern.permute.xlu0 8
    %2308 = vperm.xlu0 %2307, %v154
    %v2309 = vpop.permute.xlu0 %2308
    %2311 = vset.pattern.permute.xlu0 8
    %2312 = vperm.xlu0 %2311, %v155
    %v2313 = vpop.permute.xlu0 %2312
    %v2315 = vmul.f32 %v2250, %v2265
    %v2316 = vmul.f32 %v2251, %v2269
    %v2317 = vmul.f32 %v2252, %v2273
    %v2318 = vmul.f32 %v2253, %v2277
    %v2319 = vmul.f32 %v2254, %v2281
    %v2320 = vmul.f32 %v2255, %v2285
    %v2321 = vmul.f32 %v2256, %v2289
    %v2322 = vmul.f32 %v2257, %v2293
    %v2323 = vmul.f32 %v2258, %v2297
    %v2324 = vmul.f32 %v2259, %v2301
    %v2325 = vmul.f32 %v2260, %v2305
    %v2326 = vmul.f32 %v2261, %v2309
    %v2327 = vmul.f32 %v2262, %v2313
    %s2328 = scalar_lea.vmem [#allocation6], 64
    %v2329 = vld [vmem:[%s2328] sm:$0x3f]
    %v2331 = vsel %vm100, %v2315, 0
    %v2334 = vsel %vm100, %v2316, 0
    %v2337 = vsel %vm100, %v2317, 0
    %v2340 = vsel %vm100, %v2318, 0
    %v2343 = vsel %vm100, %v2319, 0
    %v2346 = vsel %vm100, %v2320, 0
    %v2349 = vsel %vm100, %v2321, 0
    %v2352 = vsel %vm100, %v2322, 0
    %v2355 = vsel %vm100, %v2323, 0
    %v2358 = vsel %vm100, %v2324, 0
    %v2361 = vsel %vm100, %v2325, 0
    %v2364 = vsel %vm100, %v2326, 0
    %v2367 = vsel %vm100, %v2327, 0
    %v2370 = vsel %vm354, %v2329, 0
    %2372 = vmatprep.subr.mxu0 0.0
    %2373 = vmatpush1.msra.mxu0 %v2370
    %2374 = vmatprep.subr.mxu0 0.0
    %2375 = vmatpush1.msra.mxu0 0.0
    %2376 = vmatprep.subr.mxu0 0.0
    %2377 = vmatpush1.msra.mxu0 0.0
    %2378 = vmatprep.subr.mxu0 0.0
    %2379 = vmatpush1.msra.mxu0 0.0
    %2380 = vmatprep.subr.mxu0 0.0
    %2381 = vmatpush1.msra.mxu0 0.0
    %2382 = vmatprep.subr.mxu0 0.0
    %2383 = vmatpush1.msra.mxu0 0.0
    %2384 = vmatprep.subr.mxu0 0.0
    %2385 = vmatpush1.msra.mxu0 0.0
    %2386 = vmatprep.subr.mxu0 0.0
    %2387 = vmatpush1.msra.mxu0 0.0
    %2388 = vmatprep.subr.mxu0 0.0
    %2389 = vmatpush1.msra.mxu0 0.0
    %2390 = vmatprep.subr.mxu0 0.0
    %2391 = vmatpush1.msra.mxu0 0.0
    %2392 = vmatprep.subr.mxu0 0.0
    %2393 = vmatpush1.msra.mxu0 0.0
    %2394 = vmatprep.subr.mxu0 0.0
    %2395 = vmatpush1.msra.mxu0 0.0
    %2396 = vmatprep.subr.mxu0 0.0
    %2397 = vmatpush1.msra.mxu0 0.0
    %2398 = vmatprep.subr.mxu0 0.0
    %2399 = vmatpush1.msra.mxu0 0.0
    %2400 = vmatprep.subr.mxu0 0.0
    %2401 = vmatpush1.msra.mxu0 0.0
    %2402 = vmatprep.subr.mxu0 0.0
    %2403 = vmatpush1.msra.mxu0 0.0
    %2404 = vmatprep.subr.mxu0 0.0
    %2405 = vmatpush1.msra.mxu0 0.0
    %2406 = vmatprep.subr.mxu0 0.0
    %2407 = vmatpush1.msra.mxu0 0.0
    %2408 = vmatprep.subr.mxu0 0.0
    %2409 = vmatpush1.msra.mxu0 0.0
    %2410 = vmatprep.subr.mxu0 0.0
    %2411 = vmatpush1.msra.mxu0 0.0
    %2412 = vmatprep.subr.mxu0 0.0
    %2413 = vmatpush1.msra.mxu0 0.0
    %2414 = vmatprep.subr.mxu0 0.0
    %2415 = vmatpush1.msra.mxu0 0.0
    %2416 = vmatprep.subr.mxu0 0.0
    %2417 = vmatpush1.msra.mxu0 0.0
    %2418 = vmatprep.subr.mxu0 0.0
    %2419 = vmatpush1.msra.mxu0 0.0
    %2420 = vmatprep.subr.mxu0 0.0
    %2421 = vmatpush1.msra.mxu0 0.0
    %2422 = vmatprep.subr.mxu0 0.0
    %2423 = vmatpush1.msra.mxu0 0.0
    %2424 = vmatprep.subr.mxu0 0.0
    %2425 = vmatpush1.msra.mxu0 0.0
    %2426 = vmatprep.subr.mxu0 0.0
    %2427 = vmatpush1.msra.mxu0 0.0
    %2428 = vmatprep.subr.mxu0 0.0
    %2429 = vmatpush1.msra.mxu0 0.0
    %2430 = vmatprep.subr.mxu0 0.0
    %2431 = vmatpush1.msra.mxu0 0.0
    %2432 = vmatprep.subr.mxu0 0.0
    %2433 = vmatpush1.msra.mxu0 0.0
    %2434 = vmatprep.subr.mxu0 0.0
    %2435 = vmatpush1.msra.mxu0 0.0
    %2436 = vmatprep.mubr.f32.mxu0 0.0
    %2437 = vmatmul.mubr.f32.gmra.mrb[0].mxu0 %v2331
    %v2438 = vpop.f32.mrb[0].mxu0
    %v2439 = vadd.f32 0.0, %v2438
    %v2440 = vpop.f32.mrb[0].mxu0
    %2441 = vmatprep.mubr.f32.mxu0 0.0
    %2442 = vmatmul.mubr.f32.gmra.mrb[0].mxu0 %v2334
    %v2443 = vpop.f32.mrb[0].mxu0
    %v2444 = vadd.f32 0.0, %v2443
    %v2445 = vpop.f32.mrb[0].mxu0
    %2446 = vmatprep.mubr.f32.mxu0 0.0
    %2447 = vmatmul.mubr.f32.gmra.mrb[0].mxu0 %v2337
    %v2448 = vpop.f32.mrb[0].mxu0
    %v2449 = vadd.f32 0.0, %v2448
    %v2450 = vpop.f32.mrb[0].mxu0
    %2451 = vmatprep.mubr.f32.mxu0 0.0
    %2452 = vmatmul.mubr.f32.gmra.mrb[0].mxu0 %v2340
    %v2453 = vpop.f32.mrb[0].mxu0
    %v2454 = vadd.f32 0.0, %v2453
    %v2455 = vpop.f32.mrb[0].mxu0
    %2456 = vmatprep.mubr.f32.mxu0 0.0
    %2457 = vmatmul.mubr.f32.gmra.mrb[0].mxu0 %v2343
    %v2458 = vpop.f32.mrb[0].mxu0
    %v2459 = vadd.f32 0.0, %v2458
    %v2460 = vpop.f32.mrb[0].mxu0
    %2461 = vmatprep.mubr.f32.mxu0 0.0
    %2462 = vmatmul.mubr.f32.gmra.mrb[0].mxu0 %v2346
    %v2463 = vpop.f32.mrb[0].mxu0
    %v2464 = vadd.f32 0.0, %v2463
    %v2465 = vpop.f32.mrb[0].mxu0
    %2466 = vmatprep.mubr.f32.mxu0 0.0
    %2467 = vmatmul.mubr.f32.gmra.mrb[0].mxu0 %v2349
    %v2468 = vpop.f32.mrb[0].mxu0
    %v2469 = vadd.f32 0.0, %v2468
    %v2470 = vpop.f32.mrb[0].mxu0
    %2471 = vmatprep.mubr.f32.mxu0 0.0
    %2472 = vmatmul.mubr.f32.gmra.mrb[0].mxu0 %v2352
    %v2473 = vpop.f32.mrb[0].mxu0
    %v2474 = vadd.f32 0.0, %v2473
    %v2475 = vpop.f32.mrb[0].mxu0
    %2476 = vmatprep.mubr.f32.mxu0 0.0
    %2477 = vmatmul.mubr.f32.gmra.mrb[0].mxu0 %v2355
    %v2478 = vpop.f32.mrb[0].mxu0
    %v2479 = vadd.f32 0.0, %v2478
    %v2480 = vpop.f32.mrb[0].mxu0
    %2481 = vmatprep.mubr.f32.mxu0 0.0
    %2482 = vmatmul.mubr.f32.gmra.mrb[0].mxu0 %v2358
    %v2483 = vpop.f32.mrb[0].mxu0
    %v2484 = vadd.f32 0.0, %v2483
    %v2485 = vpop.f32.mrb[0].mxu0
    %2486 = vmatprep.mubr.f32.mxu0 0.0
    %2487 = vmatmul.mubr.f32.gmra.mrb[0].mxu0 %v2361
    %v2488 = vpop.f32.mrb[0].mxu0
    %v2489 = vadd.f32 0.0, %v2488
    %v2490 = vpop.f32.mrb[0].mxu0
    %2491 = vmatprep.mubr.f32.mxu0 0.0
    %2492 = vmatmul.mubr.f32.gmra.mrb[0].mxu0 %v2364
    %v2493 = vpop.f32.mrb[0].mxu0
    %v2494 = vadd.f32 0.0, %v2493
    %v2495 = vpop.f32.mrb[0].mxu0
    %2496 = vmatprep.mubr.f32.mxu0 0.0
    %2497 = vmatmul.mubr.f32.gmra.mrb[0].mxu0 %v2367
    %v2498 = vpop.f32.mrb[0].mxu0
    %v2499 = vadd.f32 0.0, %v2498
    %v2500 = vpop.f32.mrb[0].mxu0
    %2501 = vdwg.mxu0
    %v2502 = vadd.f32 %v2237, %v2439
    %v2503 = vadd.f32 %v2238, %v2444
    %v2504 = vadd.f32 %v2239, %v2449
    %v2505 = vadd.f32 %v2240, %v2454
    %v2506 = vadd.f32 %v2241, %v2459
    %v2507 = vadd.f32 %v2242, %v2464
    %v2508 = vadd.f32 %v2243, %v2469
    %v2509 = vadd.f32 %v2244, %v2474
    %v2510 = vadd.f32 %v2245, %v2479
    %v2511 = vadd.f32 %v2246, %v2484
    %v2512 = vadd.f32 %v2247, %v2489
    %v2513 = vadd.f32 %v2248, %v2494
    %v2514 = vadd.f32 %v2249, %v2499
    %v2515 = vld [vmem:[#allocation8] sm:$0x1]
    %v2517 = vlaneseq
    %v2518 = vshrl.u32 %v2517, 7
    %v2519 = vsub.s32 0, %v2518
    %v2520 = vrot.slane %v2515, %v2519
    %v2522 = vadd.f32 %v2502, %v2520
    %v2523 = vadd.f32 %v2503, %v2520
    %v2524 = vadd.f32 %v2504, %v2520
    %v2525 = vadd.f32 %v2505, %v2520
    %v2526 = vadd.f32 %v2506, %v2520
    %v2527 = vadd.f32 %v2507, %v2520
    %v2528 = vadd.f32 %v2508, %v2520
    %v2529 = vadd.f32 %v2509, %v2520
    %v2530 = vadd.f32 %v2510, %v2520
    %v2531 = vadd.f32 %v2511, %v2520
    %v2532 = vadd.f32 %v2512, %v2520
    %v2533 = vadd.f32 %v2513, %v2520
    %v2534 = vadd.f32 %v2514, %v2520
    %v2535 = vmax.f32 %v2522, 0.0
    %v2536 = vmax.f32 %v2523, 0.0
    %v2537 = vmax.f32 %v2524, 0.0
    %v2538 = vmax.f32 %v2525, 0.0
    %v2539 = vmax.f32 %v2526, 0.0
    %v2540 = vmax.f32 %v2527, 0.0
    %v2541 = vmax.f32 %v2528, 0.0
    %v2542 = vmax.f32 %v2529, 0.0
    %v2543 = vmax.f32 %v2530, 0.0
    %v2544 = vmax.f32 %v2531, 0.0
    %v2545 = vmax.f32 %v2532, 0.0
    %v2546 = vmax.f32 %v2533, 0.0
    %v2547 = vmax.f32 %v2534, 0.0
    %vm2548 = vcmask 261120
    %2549 = vst.msk [vmem:[#allocation3] sm:$0xff] %vm2548, 0.0
    %2550 = vst.msk [vmem:[#allocation3 + $0x8] sm:$0xff] %vm2548, 0.0
    %2551 = vst.msk [vmem:[#allocation3 + $0x10] sm:$0xff] %vm2548, 0.0
    %2552 = vst.msk [vmem:[#allocation3 + $0x18] sm:$0xff] %vm2548, 0.0
    %2553 = vst.msk [vmem:[#allocation3 + $0x20] sm:$0xff] %vm2548, 0.0
    %2554 = vst.msk [vmem:[#allocation3 + $0x28] sm:$0xff] %vm2548, 0.0
    %2555 = vst.msk [vmem:[#allocation3 + $0x30] sm:$0xff] %vm2548, 0.0
    %2556 = vst.msk [vmem:[#allocation3 + $0x38] sm:$0xff] %vm2548, 0.0
    %2557 = vst.msk [vmem:[#allocation3 + $0x40] sm:$0xff] %vm2548, 0.0
    %2558 = vst.msk [vmem:[#allocation3 + $0x48] sm:$0xff] %vm2548, 0.0
    %2559 = vst.msk [vmem:[#allocation3 + $0x50] sm:$0xff] %vm2548, 0.0
    %2560 = vst.msk [vmem:[#allocation3 + $0x58] sm:$0xff] %vm2548, 0.0
    %2561 = vst.msk [vmem:[#allocation3 + $0x60] sm:$0xff] %vm2548, 0.0
    %2562 = vst.msk [vmem:[#allocation3 + $0x68] sm:$0xff] %vm2548, 0.0
    %vm2563 = vcmask 254976
    %2564 = vst.msk [vmem:[#allocation3 + $0x70] sm:$0x3] %vm2563, 0.0
    %2565 = vst.msk [vmem:[#allocation3 + $0x8] sm:$0xff] %vm2548, %v2535
    %2566 = vst.msk [vmem:[#allocation3 + $0x10] sm:$0xff] %vm2548, %v2536
    %2567 = vst.msk [vmem:[#allocation3 + $0x18] sm:$0xff] %vm2548, %v2537
    %2568 = vst.msk [vmem:[#allocation3 + $0x20] sm:$0xff] %vm2548, %v2538
    %2569 = vst.msk [vmem:[#allocation3 + $0x28] sm:$0xff] %vm2548, %v2539
    %2570 = vst.msk [vmem:[#allocation3 + $0x30] sm:$0xff] %vm2548, %v2540
    %2571 = vst.msk [vmem:[#allocation3 + $0x38] sm:$0xff] %vm2548, %v2541
    %2572 = vst.msk [vmem:[#allocation3 + $0x40] sm:$0xff] %vm2548, %v2542
    %2573 = vst.msk [vmem:[#allocation3 + $0x48] sm:$0xff] %vm2548, %v2543
    %2574 = vst.msk [vmem:[#allocation3 + $0x50] sm:$0xff] %vm2548, %v2544
    %2575 = vst.msk [vmem:[#allocation3 + $0x58] sm:$0xff] %vm2548, %v2545
    %2576 = vst.msk [vmem:[#allocation3 + $0x60] sm:$0xff] %vm2548, %v2546
    %2577 = vst.msk [vmem:[#allocation3 + $0x68] sm:$0x3] %vm2563, %v2547
    %v2578 = vld [vmem:[#allocation3] sm:$0xff]
    %v2579 = vld [vmem:[#allocation3 + $0x8] sm:$0xff]
    %v2580 = vld [vmem:[#allocation3 + $0x10] sm:$0xff]
    %v2581 = vld [vmem:[#allocation3 + $0x18] sm:$0xff]
    %v2582 = vld [vmem:[#allocation3 + $0x20] sm:$0xff]
    %v2583 = vld [vmem:[#allocation3 + $0x28] sm:$0xff]
    %v2584 = vld [vmem:[#allocation3 + $0x30] sm:$0xff]
    %v2585 = vld [vmem:[#allocation3 + $0x38] sm:$0xff]
    %v2586 = vld [vmem:[#allocation3 + $0x40] sm:$0xff]
    %v2587 = vld [vmem:[#allocation3 + $0x48] sm:$0xff]
    %v2588 = vld [vmem:[#allocation3 + $0x50] sm:$0xff]
    %v2589 = vld [vmem:[#allocation3 + $0x58] sm:$0xff]
    %v2590 = vld [vmem:[#allocation3 + $0x60] sm:$0x3]
    %v2591 = vld [vmem:[#allocation4] sm:$0xff]
    %v2592 = vld [vmem:[#allocation4 + $0x8] sm:$0xff]
    %v2593 = vld [vmem:[#allocation4 + $0x10] sm:$0xff]
    %v2594 = vld [vmem:[#allocation4 + $0x18] sm:$0xff]
    %v2595 = vld [vmem:[#allocation4 + $0x20] sm:$0xff]
    %v2596 = vld [vmem:[#allocation4 + $0x28] sm:$0xff]
    %v2597 = vld [vmem:[#allocation4 + $0x30] sm:$0xff]
    %v2598 = vld [vmem:[#allocation4 + $0x38] sm:$0xff]
    %v2599 = vld [vmem:[#allocation4 + $0x40] sm:$0xff]
    %v2600 = vld [vmem:[#allocation4 + $0x48] sm:$0xff]
    %v2601 = vld [vmem:[#allocation4 + $0x50] sm:$0xff]
    %v2602 = vld [vmem:[#allocation4 + $0x58] sm:$0xff]
    %v2603 = vld [vmem:[#allocation4 + $0x60] sm:$0x3]
    %2605 = vset.pattern.permute.xlu0 0
    %2606 = vperm.xlu0 %2605, %v2591
    %v2607 = vpop.permute.xlu0 %2606
    %2610 = vset.pattern.permute.xlu0 0
    %2611 = vperm.xlu0 %2610, %v2592
    %v2612 = vpop.permute.xlu0 %2611
    %2615 = vset.pattern.permute.xlu0 0
    %2616 = vperm.xlu0 %2615, %v2593
    %v2617 = vpop.permute.xlu0 %2616
    %2620 = vset.pattern.permute.xlu0 0
    %2621 = vperm.xlu0 %2620, %v2594
    %v2622 = vpop.permute.xlu0 %2621
    %2625 = vset.pattern.permute.xlu0 0
    %2626 = vperm.xlu0 %2625, %v2595
    %v2627 = vpop.permute.xlu0 %2626
    %2630 = vset.pattern.permute.xlu0 0
    %2631 = vperm.xlu0 %2630, %v2596
    %v2632 = vpop.permute.xlu0 %2631
    %2635 = vset.pattern.permute.xlu0 0
    %2636 = vperm.xlu0 %2635, %v2597
    %v2637 = vpop.permute.xlu0 %2636
    %2640 = vset.pattern.permute.xlu0 0
    %2641 = vperm.xlu0 %2640, %v2598
    %v2642 = vpop.permute.xlu0 %2641
    %2645 = vset.pattern.permute.xlu0 0
    %2646 = vperm.xlu0 %2645, %v2599
    %v2647 = vpop.permute.xlu0 %2646
    %2650 = vset.pattern.permute.xlu0 0
    %2651 = vperm.xlu0 %2650, %v2600
    %v2652 = vpop.permute.xlu0 %2651
    %2655 = vset.pattern.permute.xlu0 0
    %2656 = vperm.xlu0 %2655, %v2601
    %v2657 = vpop.permute.xlu0 %2656
    %2660 = vset.pattern.permute.xlu0 0
    %2661 = vperm.xlu0 %2660, %v2602
    %v2662 = vpop.permute.xlu0 %2661
    %2665 = vset.pattern.permute.xlu0 0
    %2666 = vperm.xlu0 %2665, %v2603
    %v2667 = vpop.permute.xlu0 %2666
    %v2669 = vmul.f32 %v2578, %v2607
    %v2670 = vmul.f32 %v2579, %v2612
    %v2671 = vmul.f32 %v2580, %v2617
    %v2672 = vmul.f32 %v2581, %v2622
    %v2673 = vmul.f32 %v2582, %v2627
    %v2674 = vmul.f32 %v2583, %v2632
    %v2675 = vmul.f32 %v2584, %v2637
    %v2676 = vmul.f32 %v2585, %v2642
    %v2677 = vmul.f32 %v2586, %v2647
    %v2678 = vmul.f32 %v2587, %v2652
    %v2679 = vmul.f32 %v2588, %v2657
    %v2680 = vmul.f32 %v2589, %v2662
    %v2681 = vmul.f32 %v2590, %v2667
    %v2682 = vld [vmem:[#allocation9] sm:$0xff]
    %v2683 = vld [vmem:[#allocation9 + $0x8] sm:$0xff]
    %v2684 = vld [vmem:[#allocation9 + $0x10] sm:$0xff]
    %v2685 = vld [vmem:[#allocation9 + $0x18] sm:$0xff]
    %v2686 = vld [vmem:[#allocation3 + $0x1] sm:$0xff]
    %v2687 = vld [vmem:[#allocation3 + $0x9] sm:$0xff]
    %v2688 = vld [vmem:[#allocation3 + $0x11] sm:$0xff]
    %v2689 = vld [vmem:[#allocation3 + $0x19] sm:$0xff]
    %v2690 = vld [vmem:[#allocation3 + $0x21] sm:$0xff]
    %v2691 = vld [vmem:[#allocation3 + $0x29] sm:$0xff]
    %v2692 = vld [vmem:[#allocation3 + $0x31] sm:$0xff]
    %v2693 = vld [vmem:[#allocation3 + $0x39] sm:$0xff]
    %v2694 = vld [vmem:[#allocation3 + $0x41] sm:$0xff]
    %v2695 = vld [vmem:[#allocation3 + $0x49] sm:$0xff]
    %v2696 = vld [vmem:[#allocation3 + $0x51] sm:$0xff]
    %v2697 = vld [vmem:[#allocation3 + $0x59] sm:$0xff]
    %v2698 = vld [vmem:[#allocation3 + $0x61] sm:$0x3]
    %2699 = vset.pattern.permute.xlu0 1
    %2700 = vperm.xlu0 %2699, %v2591
    %v2701 = vpop.permute.xlu0 %2700
    %2703 = vset.pattern.permute.xlu0 1
    %2704 = vperm.xlu0 %2703, %v2592
    %v2705 = vpop.permute.xlu0 %2704
    %2707 = vset.pattern.permute.xlu0 1
    %2708 = vperm.xlu0 %2707, %v2593
    %v2709 = vpop.permute.xlu0 %2708
    %2711 = vset.pattern.permute.xlu0 1
    %2712 = vperm.xlu0 %2711, %v2594
    %v2713 = vpop.permute.xlu0 %2712
    %2715 = vset.pattern.permute.xlu0 1
    %2716 = vperm.xlu0 %2715, %v2595
    %v2717 = vpop.permute.xlu0 %2716
    %2719 = vset.pattern.permute.xlu0 1
    %2720 = vperm.xlu0 %2719, %v2596
    %v2721 = vpop.permute.xlu0 %2720
    %2723 = vset.pattern.permute.xlu0 1
    %2724 = vperm.xlu0 %2723, %v2597
    %v2725 = vpop.permute.xlu0 %2724
    %2727 = vset.pattern.permute.xlu0 1
    %2728 = vperm.xlu0 %2727, %v2598
    %v2729 = vpop.permute.xlu0 %2728
    %2731 = vset.pattern.permute.xlu0 1
    %2732 = vperm.xlu0 %2731, %v2599
    %v2733 = vpop.permute.xlu0 %2732
    %2735 = vset.pattern.permute.xlu0 1
    %2736 = vperm.xlu0 %2735, %v2600
    %v2737 = vpop.permute.xlu0 %2736
    %2739 = vset.pattern.permute.xlu0 1
    %2740 = vperm.xlu0 %2739, %v2601
    %v2741 = vpop.permute.xlu0 %2740
    %2743 = vset.pattern.permute.xlu0 1
    %2744 = vperm.xlu0 %2743, %v2602
    %v2745 = vpop.permute.xlu0 %2744
    %2747 = vset.pattern.permute.xlu0 1
    %2748 = vperm.xlu0 %2747, %v2603
    %v2749 = vpop.permute.xlu0 %2748
    %v2751 = vmul.f32 %v2686, %v2701
    %v2752 = vmul.f32 %v2687, %v2705
    %v2753 = vmul.f32 %v2688, %v2709
    %v2754 = vmul.f32 %v2689, %v2713
    %v2755 = vmul.f32 %v2690, %v2717
    %v2756 = vmul.f32 %v2691, %v2721
    %v2757 = vmul.f32 %v2692, %v2725
    %v2758 = vmul.f32 %v2693, %v2729
    %v2759 = vmul.f32 %v2694, %v2733
    %v2760 = vmul.f32 %v2695, %v2737
    %v2761 = vmul.f32 %v2696, %v2741
    %v2762 = vmul.f32 %v2697, %v2745
    %v2763 = vmul.f32 %v2698, %v2749
    %s2764 = scalar_lea.vmem [#allocation9], 32
    %v2765 = vld [vmem:[%s2764] sm:$0xff]
    %v2766 = vld [vmem:[%s2764 + $0x8] sm:$0xff]
    %v2767 = vld [vmem:[%s2764 + $0x10] sm:$0xff]
    %v2768 = vld [vmem:[%s2764 + $0x18] sm:$0xff]
    %v2770 = vsel %vm2548, %v2751, 0
    %v2773 = vsel %vm2548, %v2752, 0
    %v2776 = vsel %vm2548, %v2753, 0
    %v2779 = vsel %vm2548, %v2754, 0
    %v2782 = vsel %vm2548, %v2755, 0
    %v2785 = vsel %vm2548, %v2756, 0
    %v2788 = vsel %vm2548, %v2757, 0
    %v2791 = vsel %vm2548, %v2758, 0
    %v2794 = vsel %vm2548, %v2759, 0
    %v2797 = vsel %vm2548, %v2760, 0
    %v2800 = vsel %vm2548, %v2761, 0
    %v2803 = vsel %vm2548, %v2762, 0
    %v2806 = vsel %vm2548, %v2763, 0
    %2808 = vmatprep.subr.mxu0 0.0
    %2809 = vmatpush1.msra.mxu0 %v2765
    %2810 = vmatprep.subr.mxu0 0.0
    %2811 = vmatpush1.msra.mxu0 %v2766
    %2812 = vmatprep.subr.mxu0 0.0
    %2813 = vmatpush1.msra.mxu0 %v2767
    %2814 = vmatprep.subr.mxu0 0.0
    %2815 = vmatpush1.msra.mxu0 %v2768
    %2816 = vmatprep.subr.mxu0 0.0
    %2817 = vmatpush1.msra.mxu0 0.0
    %2818 = vmatprep.subr.mxu0 0.0
    %2819 = vmatpush1.msra.mxu0 0.0
    %2820 = vmatprep.subr.mxu0 0.0
    %2821 = vmatpush1.msra.mxu0 0.0
    %2822 = vmatprep.subr.mxu0 0.0
    %2823 = vmatpush1.msra.mxu0 0.0
    %2824 = vmatprep.subr.mxu0 0.0
    %2825 = vmatpush1.msra.mxu0 0.0
    %2826 = vmatprep.subr.mxu0 0.0
    %2827 = vmatpush1.msra.mxu0 0.0
    %2828 = vmatprep.subr.mxu0 0.0
    %2829 = vmatpush1.msra.mxu0 0.0
    %2830 = vmatprep.subr.mxu0 0.0
    %2831 = vmatpush1.msra.mxu0 0.0
    %2832 = vmatprep.subr.mxu0 0.0
    %2833 = vmatpush1.msra.mxu0 0.0
    %2834 = vmatprep.subr.mxu0 0.0
    %2835 = vmatpush1.msra.mxu0 0.0
    %2836 = vmatprep.subr.mxu0 0.0
    %2837 = vmatpush1.msra.mxu0 0.0
    %2838 = vmatprep.subr.mxu0 0.0
    %2839 = vmatpush1.msra.mxu0 0.0
    %2840 = vmatprep.subr.mxu0 0.0
    %2841 = vmatpush1.msra.mxu0 0.0
    %2842 = vmatprep.subr.mxu0 0.0
    %2843 = vmatpush1.msra.mxu0 0.0
    %2844 = vmatprep.subr.mxu0 0.0
    %2845 = vmatpush1.msra.mxu0 0.0
    %2846 = vmatprep.subr.mxu0 0.0
    %2847 = vmatpush1.msra.mxu0 0.0
    %2848 = vmatprep.subr.mxu0 0.0
    %2849 = vmatpush1.msra.mxu0 0.0
    %2850 = vmatprep.subr.mxu0 0.0
    %2851 = vmatpush1.msra.mxu0 0.0
    %2852 = vmatprep.subr.mxu0 0.0
    %2853 = vmatpush1.msra.mxu0 0.0
    %2854 = vmatprep.subr.mxu0 0.0
    %2855 = vmatpush1.msra.mxu0 0.0
    %2856 = vmatprep.subr.mxu0 0.0
    %2857 = vmatpush1.msra.mxu0 0.0
    %2858 = vmatprep.subr.mxu0 0.0
    %2859 = vmatpush1.msra.mxu0 0.0
    %2860 = vmatprep.subr.mxu0 0.0
    %2861 = vmatpush1.msra.mxu0 0.0
    %2862 = vmatprep.subr.mxu0 0.0
    %2863 = vmatpush1.msra.mxu0 0.0
    %2864 = vmatprep.subr.mxu0 0.0
    %2865 = vmatpush1.msra.mxu0 0.0
    %2866 = vmatprep.subr.mxu0 0.0
    %2867 = vmatpush1.msra.mxu0 0.0
    %2868 = vmatprep.subr.mxu0 0.0
    %2869 = vmatpush1.msra.mxu0 0.0
    %2870 = vmatprep.subr.mxu0 0.0
    %2871 = vmatpush1.msra.mxu0 0.0
    %2872 = vmatprep.mubr.f32.mxu0 0.0
    %2873 = vmatmul.mubr.f32.gmra.mrb[0].mxu0 %v2770
    %v2874 = vpop.f32.mrb[0].mxu0
    %v2875 = vadd.f32 0.0, %v2874
    %v2876 = vpop.f32.mrb[0].mxu0
    %2877 = vmatprep.mubr.f32.mxu0 0.0
    %2878 = vmatmul.mubr.f32.gmra.mrb[0].mxu0 %v2773
    %v2879 = vpop.f32.mrb[0].mxu0
    %v2880 = vadd.f32 0.0, %v2879
    %v2881 = vpop.f32.mrb[0].mxu0
    %2882 = vmatprep.mubr.f32.mxu0 0.0
    %2883 = vmatmul.mubr.f32.gmra.mrb[0].mxu0 %v2776
    %v2884 = vpop.f32.mrb[0].mxu0
    %v2885 = vadd.f32 0.0, %v2884
    %v2886 = vpop.f32.mrb[0].mxu0
    %2887 = vmatprep.mubr.f32.mxu0 0.0
    %2888 = vmatmul.mubr.f32.gmra.mrb[0].mxu0 %v2779
    %v2889 = vpop.f32.mrb[0].mxu0
    %v2890 = vadd.f32 0.0, %v2889
    %v2891 = vpop.f32.mrb[0].mxu0
    %2892 = vmatprep.mubr.f32.mxu0 0.0
    %2893 = vmatmul.mubr.f32.gmra.mrb[0].mxu0 %v2782
    %v2894 = vpop.f32.mrb[0].mxu0
    %v2895 = vadd.f32 0.0, %v2894
    %v2896 = vpop.f32.mrb[0].mxu0
    %2897 = vmatprep.mubr.f32.mxu0 0.0
    %2898 = vmatmul.mubr.f32.gmra.mrb[0].mxu0 %v2785
    %v2899 = vpop.f32.mrb[0].mxu0
    %v2900 = vadd.f32 0.0, %v2899
    %v2901 = vpop.f32.mrb[0].mxu0
    %2902 = vmatprep.mubr.f32.mxu0 0.0
    %2903 = vmatmul.mubr.f32.gmra.mrb[0].mxu0 %v2788
    %v2904 = vpop.f32.mrb[0].mxu0
    %v2905 = vadd.f32 0.0, %v2904
    %v2906 = vpop.f32.mrb[0].mxu0
    %2907 = vmatprep.mubr.f32.mxu0 0.0
    %2908 = vmatmul.mubr.f32.gmra.mrb[0].mxu0 %v2791
    %v2909 = vpop.f32.mrb[0].mxu0
    %v2910 = vadd.f32 0.0, %v2909
    %v2911 = vpop.f32.mrb[0].mxu0
    %2912 = vmatprep.mubr.f32.mxu0 0.0
    %2913 = vmatmul.mubr.f32.gmra.mrb[0].mxu0 %v2794
    %v2914 = vpop.f32.mrb[0].mxu0
    %v2915 = vadd.f32 0.0, %v2914
    %v2916 = vpop.f32.mrb[0].mxu0
    %2917 = vmatprep.mubr.f32.mxu0 0.0
    %2918 = vmatmul.mubr.f32.gmra.mrb[0].mxu0 %v2797
    %v2919 = vpop.f32.mrb[0].mxu0
    %v2920 = vadd.f32 0.0, %v2919
    %v2921 = vpop.f32.mrb[0].mxu0
    %2922 = vmatprep.mubr.f32.mxu0 0.0
    %2923 = vmatmul.mubr.f32.gmra.mrb[0].mxu0 %v2800
    %v2924 = vpop.f32.mrb[0].mxu0
    %v2925 = vadd.f32 0.0, %v2924
    %v2926 = vpop.f32.mrb[0].mxu0
    %2927 = vmatprep.mubr.f32.mxu0 0.0
    %2928 = vmatmul.mubr.f32.gmra.mrb[0].mxu0 %v2803
    %v2929 = vpop.f32.mrb[0].mxu0
    %v2930 = vadd.f32 0.0, %v2929
    %v2931 = vpop.f32.mrb[0].mxu0
    %2932 = vmatprep.mubr.f32.mxu0 0.0
    %2933 = vmatmul.mubr.f32.gmra.mrb[0].mxu0 %v2806
    %v2934 = vpop.f32.mrb[0].mxu0
    %v2935 = vadd.f32 0.0, %v2934
    %v2936 = vpop.f32.mrb[0].mxu0
    %2937 = vdwg.mxu0
    %v2939 = vsel %vm2548, %v2669, 0
    %v2942 = vsel %vm2548, %v2670, 0
    %v2945 = vsel %vm2548, %v2671, 0
    %v2948 = vsel %vm2548, %v2672, 0
    %v2951 = vsel %vm2548, %v2673, 0
    %v2954 = vsel %vm2548, %v2674, 0
    %v2957 = vsel %vm2548, %v2675, 0
    %v2960 = vsel %vm2548, %v2676, 0
    %v2963 = vsel %vm2548, %v2677, 0
    %v2966 = vsel %vm2548, %v2678, 0
    %v2969 = vsel %vm2548, %v2679, 0
    %v2972 = vsel %vm2548, %v2680, 0
    %v2975 = vsel %vm2548, %v2681, 0
    %2977 = vmatprep.subr.mxu0 0.0
    %2978 = vmatpush1.msra.mxu0 %v2682
    %2979 = vmatprep.subr.mxu0 0.0
    %2980 = vmatpush1.msra.mxu0 %v2683
    %2981 = vmatprep.subr.mxu0 0.0
    %2982 = vmatpush1.msra.mxu0 %v2684
    %2983 = vmatprep.subr.mxu0 0.0
    %2984 = vmatpush1.msra.mxu0 %v2685
    %2985 = vmatprep.subr.mxu0 0.0
    %2986 = vmatpush1.msra.mxu0 0.0
    %2987 = vmatprep.subr.mxu0 0.0
    %2988 = vmatpush1.msra.mxu0 0.0
    %2989 = vmatprep.subr.mxu0 0.0
    %2990 = vmatpush1.msra.mxu0 0.0
    %2991 = vmatprep.subr.mxu0 0.0
    %2992 = vmatpush1.msra.mxu0 0.0
    %2993 = vmatprep.subr.mxu0 0.0
    %2994 = vmatpush1.msra.mxu0 0.0
    %2995 = vmatprep.subr.mxu0 0.0
    %2996 = vmatpush1.msra.mxu0 0.0
    %2997 = vmatprep.subr.mxu0 0.0
    %2998 = vmatpush1.msra.mxu0 0.0
    %2999 = vmatprep.subr.mxu0 0.0
    %3000 = vmatpush1.msra.mxu0 0.0
    %3001 = vmatprep.subr.mxu0 0.0
    %3002 = vmatpush1.msra.mxu0 0.0
    %3003 = vmatprep.subr.mxu0 0.0
    %3004 = vmatpush1.msra.mxu0 0.0
    %3005 = vmatprep.subr.mxu0 0.0
    %3006 = vmatpush1.msra.mxu0 0.0
    %3007 = vmatprep.subr.mxu0 0.0
    %3008 = vmatpush1.msra.mxu0 0.0
    %3009 = vmatprep.subr.mxu0 0.0
    %3010 = vmatpush1.msra.mxu0 0.0
    %3011 = vmatprep.subr.mxu0 0.0
    %3012 = vmatpush1.msra.mxu0 0.0
    %3013 = vmatprep.subr.mxu0 0.0
    %3014 = vmatpush1.msra.mxu0 0.0
    %3015 = vmatprep.subr.mxu0 0.0
    %3016 = vmatpush1.msra.mxu0 0.0
    %3017 = vmatprep.subr.mxu0 0.0
    %3018 = vmatpush1.msra.mxu0 0.0
    %3019 = vmatprep.subr.mxu0 0.0
    %3020 = vmatpush1.msra.mxu0 0.0
    %3021 = vmatprep.subr.mxu0 0.0
    %3022 = vmatpush1.msra.mxu0 0.0
    %3023 = vmatprep.subr.mxu0 0.0
    %3024 = vmatpush1.msra.mxu0 0.0
    %3025 = vmatprep.subr.mxu0 0.0
    %3026 = vmatpush1.msra.mxu0 0.0
    %3027 = vmatprep.subr.mxu0 0.0
    %3028 = vmatpush1.msra.mxu0 0.0
    %3029 = vmatprep.subr.mxu0 0.0
    %3030 = vmatpush1.msra.mxu0 0.0
    %3031 = vmatprep.subr.mxu0 0.0
    %3032 = vmatpush1.msra.mxu0 0.0
    %3033 = vmatprep.subr.mxu0 0.0
    %3034 = vmatpush1.msra.mxu0 0.0
    %3035 = vmatprep.subr.mxu0 0.0
    %3036 = vmatpush1.msra.mxu0 0.0
    %3037 = vmatprep.subr.mxu0 0.0
    %3038 = vmatpush1.msra.mxu0 0.0
    %3039 = vmatprep.subr.mxu0 0.0
    %3040 = vmatpush1.msra.mxu0 0.0
    %3041 = vmatprep.mubr.f32.mxu0 0.0
    %3042 = vmatmul.mubr.f32.gmra.mrb[0].mxu0 %v2939
    %v3043 = vpop.f32.mrb[0].mxu0
    %v3044 = vadd.f32 %v2875, %v3043
    %v3045 = vpop.f32.mrb[0].mxu0
    %3046 = vmatprep.mubr.f32.mxu0 0.0
    %3047 = vmatmul.mubr.f32.gmra.mrb[0].mxu0 %v2942
    %v3048 = vpop.f32.mrb[0].mxu0
    %v3049 = vadd.f32 %v2880, %v3048
    %v3050 = vpop.f32.mrb[0].mxu0
    %3051 = vmatprep.mubr.f32.mxu0 0.0
    %3052 = vmatmul.mubr.f32.gmra.mrb[0].mxu0 %v2945
    %v3053 = vpop.f32.mrb[0].mxu0
    %v3054 = vadd.f32 %v2885, %v3053
    %v3055 = vpop.f32.mrb[0].mxu0
    %3056 = vmatprep.mubr.f32.mxu0 0.0
    %3057 = vmatmul.mubr.f32.gmra.mrb[0].mxu0 %v2948
    %v3058 = vpop.f32.mrb[0].mxu0
    %v3059 = vadd.f32 %v2890, %v3058
    %v3060 = vpop.f32.mrb[0].mxu0
    %3061 = vmatprep.mubr.f32.mxu0 0.0
    %3062 = vmatmul.mubr.f32.gmra.mrb[0].mxu0 %v2951
    %v3063 = vpop.f32.mrb[0].mxu0
    %v3064 = vadd.f32 %v2895, %v3063
    %v3065 = vpop.f32.mrb[0].mxu0
    %3066 = vmatprep.mubr.f32.mxu0 0.0
    %3067 = vmatmul.mubr.f32.gmra.mrb[0].mxu0 %v2954
    %v3068 = vpop.f32.mrb[0].mxu0
    %v3069 = vadd.f32 %v2900, %v3068
    %v3070 = vpop.f32.mrb[0].mxu0
    %3071 = vmatprep.mubr.f32.mxu0 0.0
    %3072 = vmatmul.mubr.f32.gmra.mrb[0].mxu0 %v2957
    %v3073 = vpop.f32.mrb[0].mxu0
    %v3074 = vadd.f32 %v2905, %v3073
    %v3075 = vpop.f32.mrb[0].mxu0
    %3076 = vmatprep.mubr.f32.mxu0 0.0
    %3077 = vmatmul.mubr.f32.gmra.mrb[0].mxu0 %v2960
    %v3078 = vpop.f32.mrb[0].mxu0
    %v3079 = vadd.f32 %v2910, %v3078
    %v3080 = vpop.f32.mrb[0].mxu0
    %3081 = vmatprep.mubr.f32.mxu0 0.0
    %3082 = vmatmul.mubr.f32.gmra.mrb[0].mxu0 %v2963
    %v3083 = vpop.f32.mrb[0].mxu0
    %v3084 = vadd.f32 %v2915, %v3083
    %v3085 = vpop.f32.mrb[0].mxu0
    %3086 = vmatprep.mubr.f32.mxu0 0.0
    %3087 = vmatmul.mubr.f32.gmra.mrb[0].mxu0 %v2966
    %v3088 = vpop.f32.mrb[0].mxu0
    %v3089 = vadd.f32 %v2920, %v3088
    %v3090 = vpop.f32.mrb[0].mxu0
    %3091 = vmatprep.mubr.f32.mxu0 0.0
    %3092 = vmatmul.mubr.f32.gmra.mrb[0].mxu0 %v2969
    %v3093 = vpop.f32.mrb[0].mxu0
    %v3094 = vadd.f32 %v2925, %v3093
    %v3095 = vpop.f32.mrb[0].mxu0
    %3096 = vmatprep.mubr.f32.mxu0 0.0
    %3097 = vmatmul.mubr.f32.gmra.mrb[0].mxu0 %v2972
    %v3098 = vpop.f32.mrb[0].mxu0
    %v3099 = vadd.f32 %v2930, %v3098
    %v3100 = vpop.f32.mrb[0].mxu0
    %3101 = vmatprep.mubr.f32.mxu0 0.0
    %3102 = vmatmul.mubr.f32.gmra.mrb[0].mxu0 %v2975
    %v3103 = vpop.f32.mrb[0].mxu0
    %v3104 = vadd.f32 %v2935, %v3103
    %v3105 = vpop.f32.mrb[0].mxu0
    %3106 = vdwg.mxu0
    %v3107 = vld [vmem:[#allocation3 + $0x2] sm:$0xff]
    %v3108 = vld [vmem:[#allocation3 + $0xa] sm:$0xff]
    %v3109 = vld [vmem:[#allocation3 + $0x12] sm:$0xff]
    %v3110 = vld [vmem:[#allocation3 + $0x1a] sm:$0xff]
    %v3111 = vld [vmem:[#allocation3 + $0x22] sm:$0xff]
    %v3112 = vld [vmem:[#allocation3 + $0x2a] sm:$0xff]
    %v3113 = vld [vmem:[#allocation3 + $0x32] sm:$0xff]
    %v3114 = vld [vmem:[#allocation3 + $0x3a] sm:$0xff]
    %v3115 = vld [vmem:[#allocation3 + $0x42] sm:$0xff]
    %v3116 = vld [vmem:[#allocation3 + $0x4a] sm:$0xff]
    %v3117 = vld [vmem:[#allocation3 + $0x52] sm:$0xff]
    %v3118 = vld [vmem:[#allocation3 + $0x5a] sm:$0xff]
    %v3119 = vld [vmem:[#allocation3 + $0x62] sm:$0x3]
    %3120 = vset.pattern.permute.xlu0 2
    %3121 = vperm.xlu0 %3120, %v2591
    %v3122 = vpop.permute.xlu0 %3121
    %3124 = vset.pattern.permute.xlu0 2
    %3125 = vperm.xlu0 %3124, %v2592
    %v3126 = vpop.permute.xlu0 %3125
    %3128 = vset.pattern.permute.xlu0 2
    %3129 = vperm.xlu0 %3128, %v2593
    %v3130 = vpop.permute.xlu0 %3129
    %3132 = vset.pattern.permute.xlu0 2
    %3133 = vperm.xlu0 %3132, %v2594
    %v3134 = vpop.permute.xlu0 %3133
    %3136 = vset.pattern.permute.xlu0 2
    %3137 = vperm.xlu0 %3136, %v2595
    %v3138 = vpop.permute.xlu0 %3137
    %3140 = vset.pattern.permute.xlu0 2
    %3141 = vperm.xlu0 %3140, %v2596
    %v3142 = vpop.permute.xlu0 %3141
    %3144 = vset.pattern.permute.xlu0 2
    %3145 = vperm.xlu0 %3144, %v2597
    %v3146 = vpop.permute.xlu0 %3145
    %3148 = vset.pattern.permute.xlu0 2
    %3149 = vperm.xlu0 %3148, %v2598
    %v3150 = vpop.permute.xlu0 %3149
    %3152 = vset.pattern.permute.xlu0 2
    %3153 = vperm.xlu0 %3152, %v2599
    %v3154 = vpop.permute.xlu0 %3153
    %3156 = vset.pattern.permute.xlu0 2
    %3157 = vperm.xlu0 %3156, %v2600
    %v3158 = vpop.permute.xlu0 %3157
    %3160 = vset.pattern.permute.xlu0 2
    %3161 = vperm.xlu0 %3160, %v2601
    %v3162 = vpop.permute.xlu0 %3161
    %3164 = vset.pattern.permute.xlu0 2
    %3165 = vperm.xlu0 %3164, %v2602
    %v3166 = vpop.permute.xlu0 %3165
    %3168 = vset.pattern.permute.xlu0 2
    %3169 = vperm.xlu0 %3168, %v2603
    %v3170 = vpop.permute.xlu0 %3169
    %v3172 = vmul.f32 %v3107, %v3122
    %v3173 = vmul.f32 %v3108, %v3126
    %v3174 = vmul.f32 %v3109, %v3130
    %v3175 = vmul.f32 %v3110, %v3134
    %v3176 = vmul.f32 %v3111, %v3138
    %v3177 = vmul.f32 %v3112, %v3142
    %v3178 = vmul.f32 %v3113, %v3146
    %v3179 = vmul.f32 %v3114, %v3150
    %v3180 = vmul.f32 %v3115, %v3154
    %v3181 = vmul.f32 %v3116, %v3158
    %v3182 = vmul.f32 %v3117, %v3162
    %v3183 = vmul.f32 %v3118, %v3166
    %v3184 = vmul.f32 %v3119, %v3170
    %s3185 = scalar_lea.vmem [#allocation9], 64
    %v3186 = vld [vmem:[%s3185] sm:$0xff]
    %v3187 = vld [vmem:[%s3185 + $0x8] sm:$0xff]
    %v3188 = vld [vmem:[%s3185 + $0x10] sm:$0xff]
    %v3189 = vld [vmem:[%s3185 + $0x18] sm:$0xff]
    %v3191 = vsel %vm2548, %v3172, 0
    %v3194 = vsel %vm2548, %v3173, 0
    %v3197 = vsel %vm2548, %v3174, 0
    %v3200 = vsel %vm2548, %v3175, 0
    %v3203 = vsel %vm2548, %v3176, 0
    %v3206 = vsel %vm2548, %v3177, 0
    %v3209 = vsel %vm2548, %v3178, 0
    %v3212 = vsel %vm2548, %v3179, 0
    %v3215 = vsel %vm2548, %v3180, 0
    %v3218 = vsel %vm2548, %v3181, 0
    %v3221 = vsel %vm2548, %v3182, 0
    %v3224 = vsel %vm2548, %v3183, 0
    %v3227 = vsel %vm2548, %v3184, 0
    %3229 = vmatprep.subr.mxu0 0.0
    %3230 = vmatpush1.msra.mxu0 %v3186
    %3231 = vmatprep.subr.mxu0 0.0
    %3232 = vmatpush1.msra.mxu0 %v3187
    %3233 = vmatprep.subr.mxu0 0.0
    %3234 = vmatpush1.msra.mxu0 %v3188
    %3235 = vmatprep.subr.mxu0 0.0
    %3236 = vmatpush1.msra.mxu0 %v3189
    %3237 = vmatprep.subr.mxu0 0.0
    %3238 = vmatpush1.msra.mxu0 0.0
    %3239 = vmatprep.subr.mxu0 0.0
    %3240 = vmatpush1.msra.mxu0 0.0
    %3241 = vmatprep.subr.mxu0 0.0
    %3242 = vmatpush1.msra.mxu0 0.0
    %3243 = vmatprep.subr.mxu0 0.0
    %3244 = vmatpush1.msra.mxu0 0.0
    %3245 = vmatprep.subr.mxu0 0.0
    %3246 = vmatpush1.msra.mxu0 0.0
    %3247 = vmatprep.subr.mxu0 0.0
    %3248 = vmatpush1.msra.mxu0 0.0
    %3249 = vmatprep.subr.mxu0 0.0
    %3250 = vmatpush1.msra.mxu0 0.0
    %3251 = vmatprep.subr.mxu0 0.0
    %3252 = vmatpush1.msra.mxu0 0.0
    %3253 = vmatprep.subr.mxu0 0.0
    %3254 = vmatpush1.msra.mxu0 0.0
    %3255 = vmatprep.subr.mxu0 0.0
    %3256 = vmatpush1.msra.mxu0 0.0
    %3257 = vmatprep.subr.mxu0 0.0
    %3258 = vmatpush1.msra.mxu0 0.0
    %3259 = vmatprep.subr.mxu0 0.0
    %3260 = vmatpush1.msra.mxu0 0.0
    %3261 = vmatprep.subr.mxu0 0.0
    %3262 = vmatpush1.msra.mxu0 0.0
    %3263 = vmatprep.subr.mxu0 0.0
    %3264 = vmatpush1.msra.mxu0 0.0
    %3265 = vmatprep.subr.mxu0 0.0
    %3266 = vmatpush1.msra.mxu0 0.0
    %3267 = vmatprep.subr.mxu0 0.0
    %3268 = vmatpush1.msra.mxu0 0.0
    %3269 = vmatprep.subr.mxu0 0.0
    %3270 = vmatpush1.msra.mxu0 0.0
    %3271 = vmatprep.subr.mxu0 0.0
    %3272 = vmatpush1.msra.mxu0 0.0
    %3273 = vmatprep.subr.mxu0 0.0
    %3274 = vmatpush1.msra.mxu0 0.0
    %3275 = vmatprep.subr.mxu0 0.0
    %3276 = vmatpush1.msra.mxu0 0.0
    %3277 = vmatprep.subr.mxu0 0.0
    %3278 = vmatpush1.msra.mxu0 0.0
    %3279 = vmatprep.subr.mxu0 0.0
    %3280 = vmatpush1.msra.mxu0 0.0
    %3281 = vmatprep.subr.mxu0 0.0
    %3282 = vmatpush1.msra.mxu0 0.0
    %3283 = vmatprep.subr.mxu0 0.0
    %3284 = vmatpush1.msra.mxu0 0.0
    %3285 = vmatprep.subr.mxu0 0.0
    %3286 = vmatpush1.msra.mxu0 0.0
    %3287 = vmatprep.subr.mxu0 0.0
    %3288 = vmatpush1.msra.mxu0 0.0
    %3289 = vmatprep.subr.mxu0 0.0
    %3290 = vmatpush1.msra.mxu0 0.0
    %3291 = vmatprep.subr.mxu0 0.0
    %3292 = vmatpush1.msra.mxu0 0.0
    %3293 = vmatprep.mubr.f32.mxu0 0.0
    %3294 = vmatmul.mubr.f32.gmra.mrb[0].mxu0 %v3191
    %v3295 = vpop.f32.mrb[0].mxu0
    %v3296 = vadd.f32 0.0, %v3295
    %v3297 = vpop.f32.mrb[0].mxu0
    %3298 = vmatprep.mubr.f32.mxu0 0.0
    %3299 = vmatmul.mubr.f32.gmra.mrb[0].mxu0 %v3194
    %v3300 = vpop.f32.mrb[0].mxu0
    %v3301 = vadd.f32 0.0, %v3300
    %v3302 = vpop.f32.mrb[0].mxu0
    %3303 = vmatprep.mubr.f32.mxu0 0.0
    %3304 = vmatmul.mubr.f32.gmra.mrb[0].mxu0 %v3197
    %v3305 = vpop.f32.mrb[0].mxu0
    %v3306 = vadd.f32 0.0, %v3305
    %v3307 = vpop.f32.mrb[0].mxu0
    %3308 = vmatprep.mubr.f32.mxu0 0.0
    %3309 = vmatmul.mubr.f32.gmra.mrb[0].mxu0 %v3200
    %v3310 = vpop.f32.mrb[0].mxu0
    %v3311 = vadd.f32 0.0, %v3310
    %v3312 = vpop.f32.mrb[0].mxu0
    %3313 = vmatprep.mubr.f32.mxu0 0.0
    %3314 = vmatmul.mubr.f32.gmra.mrb[0].mxu0 %v3203
    %v3315 = vpop.f32.mrb[0].mxu0
    %v3316 = vadd.f32 0.0, %v3315
    %v3317 = vpop.f32.mrb[0].mxu0
    %3318 = vmatprep.mubr.f32.mxu0 0.0
    %3319 = vmatmul.mubr.f32.gmra.mrb[0].mxu0 %v3206
    %v3320 = vpop.f32.mrb[0].mxu0
    %v3321 = vadd.f32 0.0, %v3320
    %v3322 = vpop.f32.mrb[0].mxu0
    %3323 = vmatprep.mubr.f32.mxu0 0.0
    %3324 = vmatmul.mubr.f32.gmra.mrb[0].mxu0 %v3209
    %v3325 = vpop.f32.mrb[0].mxu0
    %v3326 = vadd.f32 0.0, %v3325
    %v3327 = vpop.f32.mrb[0].mxu0
    %3328 = vmatprep.mubr.f32.mxu0 0.0
    %3329 = vmatmul.mubr.f32.gmra.mrb[0].mxu0 %v3212
    %v3330 = vpop.f32.mrb[0].mxu0
    %v3331 = vadd.f32 0.0, %v3330
    %v3332 = vpop.f32.mrb[0].mxu0
    %3333 = vmatprep.mubr.f32.mxu0 0.0
    %3334 = vmatmul.mubr.f32.gmra.mrb[0].mxu0 %v3215
    %v3335 = vpop.f32.mrb[0].mxu0
    %v3336 = vadd.f32 0.0, %v3335
    %v3337 = vpop.f32.mrb[0].mxu0
    %3338 = vmatprep.mubr.f32.mxu0 0.0
    %3339 = vmatmul.mubr.f32.gmra.mrb[0].mxu0 %v3218
    %v3340 = vpop.f32.mrb[0].mxu0
    %v3341 = vadd.f32 0.0, %v3340
    %v3342 = vpop.f32.mrb[0].mxu0
    %3343 = vmatprep.mubr.f32.mxu0 0.0
    %3344 = vmatmul.mubr.f32.gmra.mrb[0].mxu0 %v3221
    %v3345 = vpop.f32.mrb[0].mxu0
    %v3346 = vadd.f32 0.0, %v3345
    %v3347 = vpop.f32.mrb[0].mxu0
    %3348 = vmatprep.mubr.f32.mxu0 0.0
    %3349 = vmatmul.mubr.f32.gmra.mrb[0].mxu0 %v3224
    %v3350 = vpop.f32.mrb[0].mxu0
    %v3351 = vadd.f32 0.0, %v3350
    %v3352 = vpop.f32.mrb[0].mxu0
    %3353 = vmatprep.mubr.f32.mxu0 0.0
    %3354 = vmatmul.mubr.f32.gmra.mrb[0].mxu0 %v3227
    %v3355 = vpop.f32.mrb[0].mxu0
    %v3356 = vadd.f32 0.0, %v3355
    %v3357 = vpop.f32.mrb[0].mxu0
    %3358 = vdwg.mxu0
    %v3359 = vadd.f32 %v3044, %v3296
    %v3360 = vadd.f32 %v3049, %v3301
    %v3361 = vadd.f32 %v3054, %v3306
    %v3362 = vadd.f32 %v3059, %v3311
    %v3363 = vadd.f32 %v3064, %v3316
    %v3364 = vadd.f32 %v3069, %v3321
    %v3365 = vadd.f32 %v3074, %v3326
    %v3366 = vadd.f32 %v3079, %v3331
    %v3367 = vadd.f32 %v3084, %v3336
    %v3368 = vadd.f32 %v3089, %v3341
    %v3369 = vadd.f32 %v3094, %v3346
    %v3370 = vadd.f32 %v3099, %v3351
    %v3371 = vadd.f32 %v3104, %v3356
    %v3372 = vld [vmem:[#allocation3 + $0x7] sm:$0xff]
    %v3373 = vld [vmem:[#allocation3 + $0xf] sm:$0xff]
    %v3374 = vld [vmem:[#allocation3 + $0x17] sm:$0xff]
    %v3375 = vld [vmem:[#allocation3 + $0x1f] sm:$0xff]
    %v3376 = vld [vmem:[#allocation3 + $0x27] sm:$0xff]
    %v3377 = vld [vmem:[#allocation3 + $0x2f] sm:$0xff]
    %v3378 = vld [vmem:[#allocation3 + $0x37] sm:$0xff]
    %v3379 = vld [vmem:[#allocation3 + $0x3f] sm:$0xff]
    %v3380 = vld [vmem:[#allocation3 + $0x47] sm:$0xff]
    %v3381 = vld [vmem:[#allocation3 + $0x4f] sm:$0xff]
    %v3382 = vld [vmem:[#allocation3 + $0x57] sm:$0xff]
    %v3383 = vld [vmem:[#allocation3 + $0x5f] sm:$0xff]
    %v3384 = vld [vmem:[#allocation3 + $0x67] sm:$0x3]
    %3385 = vset.pattern.permute.xlu0 3
    %3386 = vperm.xlu0 %3385, %v2591
    %v3387 = vpop.permute.xlu0 %3386
    %3389 = vset.pattern.permute.xlu0 3
    %3390 = vperm.xlu0 %3389, %v2592
    %v3391 = vpop.permute.xlu0 %3390
    %3393 = vset.pattern.permute.xlu0 3
    %3394 = vperm.xlu0 %3393, %v2593
    %v3395 = vpop.permute.xlu0 %3394
    %3397 = vset.pattern.permute.xlu0 3
    %3398 = vperm.xlu0 %3397, %v2594
    %v3399 = vpop.permute.xlu0 %3398
    %3401 = vset.pattern.permute.xlu0 3
    %3402 = vperm.xlu0 %3401, %v2595
    %v3403 = vpop.permute.xlu0 %3402
    %3405 = vset.pattern.permute.xlu0 3
    %3406 = vperm.xlu0 %3405, %v2596
    %v3407 = vpop.permute.xlu0 %3406
    %3409 = vset.pattern.permute.xlu0 3
    %3410 = vperm.xlu0 %3409, %v2597
    %v3411 = vpop.permute.xlu0 %3410
    %3413 = vset.pattern.permute.xlu0 3
    %3414 = vperm.xlu0 %3413, %v2598
    %v3415 = vpop.permute.xlu0 %3414
    %3417 = vset.pattern.permute.xlu0 3
    %3418 = vperm.xlu0 %3417, %v2599
    %v3419 = vpop.permute.xlu0 %3418
    %3421 = vset.pattern.permute.xlu0 3
    %3422 = vperm.xlu0 %3421, %v2600
    %v3423 = vpop.permute.xlu0 %3422
    %3425 = vset.pattern.permute.xlu0 3
    %3426 = vperm.xlu0 %3425, %v2601
    %v3427 = vpop.permute.xlu0 %3426
    %3429 = vset.pattern.permute.xlu0 3
    %3430 = vperm.xlu0 %3429, %v2602
    %v3431 = vpop.permute.xlu0 %3430
    %3433 = vset.pattern.permute.xlu0 3
    %3434 = vperm.xlu0 %3433, %v2603
    %v3435 = vpop.permute.xlu0 %3434
    %v3437 = vmul.f32 %v3372, %v3387
    %v3438 = vmul.f32 %v3373, %v3391
    %v3439 = vmul.f32 %v3374, %v3395
    %v3440 = vmul.f32 %v3375, %v3399
    %v3441 = vmul.f32 %v3376, %v3403
    %v3442 = vmul.f32 %v3377, %v3407
    %v3443 = vmul.f32 %v3378, %v3411
    %v3444 = vmul.f32 %v3379, %v3415
    %v3445 = vmul.f32 %v3380, %v3419
    %v3446 = vmul.f32 %v3381, %v3423
    %v3447 = vmul.f32 %v3382, %v3427
    %v3448 = vmul.f32 %v3383, %v3431
    %v3449 = vmul.f32 %v3384, %v3435
    %s3450 = scalar_lea.vmem [#allocation9], 96
    %v3451 = vld [vmem:[%s3450] sm:$0xff]
    %v3452 = vld [vmem:[%s3450 + $0x8] sm:$0xff]
    %v3453 = vld [vmem:[%s3450 + $0x10] sm:$0xff]
    %v3454 = vld [vmem:[%s3450 + $0x18] sm:$0xff]
    %v3456 = vsel %vm2548, %v3437, 0
    %v3459 = vsel %vm2548, %v3438, 0
    %v3462 = vsel %vm2548, %v3439, 0
    %v3465 = vsel %vm2548, %v3440, 0
    %v3468 = vsel %vm2548, %v3441, 0
    %v3471 = vsel %vm2548, %v3442, 0
    %v3474 = vsel %vm2548, %v3443, 0
    %v3477 = vsel %vm2548, %v3444, 0
    %v3480 = vsel %vm2548, %v3445, 0
    %v3483 = vsel %vm2548, %v3446, 0
    %v3486 = vsel %vm2548, %v3447, 0
    %v3489 = vsel %vm2548, %v3448, 0
    %v3492 = vsel %vm2548, %v3449, 0
    %3494 = vmatprep.subr.mxu0 0.0
    %3495 = vmatpush1.msra.mxu0 %v3451
    %3496 = vmatprep.subr.mxu0 0.0
    %3497 = vmatpush1.msra.mxu0 %v3452
    %3498 = vmatprep.subr.mxu0 0.0
    %3499 = vmatpush1.msra.mxu0 %v3453
    %3500 = vmatprep.subr.mxu0 0.0
    %3501 = vmatpush1.msra.mxu0 %v3454
    %3502 = vmatprep.subr.mxu0 0.0
    %3503 = vmatpush1.msra.mxu0 0.0
    %3504 = vmatprep.subr.mxu0 0.0
    %3505 = vmatpush1.msra.mxu0 0.0
    %3506 = vmatprep.subr.mxu0 0.0
    %3507 = vmatpush1.msra.mxu0 0.0
    %3508 = vmatprep.subr.mxu0 0.0
    %3509 = vmatpush1.msra.mxu0 0.0
    %3510 = vmatprep.subr.mxu0 0.0
    %3511 = vmatpush1.msra.mxu0 0.0
    %3512 = vmatprep.subr.mxu0 0.0
    %3513 = vmatpush1.msra.mxu0 0.0
    %3514 = vmatprep.subr.mxu0 0.0
    %3515 = vmatpush1.msra.mxu0 0.0
    %3516 = vmatprep.subr.mxu0 0.0
    %3517 = vmatpush1.msra.mxu0 0.0
    %3518 = vmatprep.subr.mxu0 0.0
    %3519 = vmatpush1.msra.mxu0 0.0
    %3520 = vmatprep.subr.mxu0 0.0
    %3521 = vmatpush1.msra.mxu0 0.0
    %3522 = vmatprep.subr.mxu0 0.0
    %3523 = vmatpush1.msra.mxu0 0.0
    %3524 = vmatprep.subr.mxu0 0.0
    %3525 = vmatpush1.msra.mxu0 0.0
    %3526 = vmatprep.subr.mxu0 0.0
    %3527 = vmatpush1.msra.mxu0 0.0
    %3528 = vmatprep.subr.mxu0 0.0
    %3529 = vmatpush1.msra.mxu0 0.0
    %3530 = vmatprep.subr.mxu0 0.0
    %3531 = vmatpush1.msra.mxu0 0.0
    %3532 = vmatprep.subr.mxu0 0.0
    %3533 = vmatpush1.msra.mxu0 0.0
    %3534 = vmatprep.subr.mxu0 0.0
    %3535 = vmatpush1.msra.mxu0 0.0
    %3536 = vmatprep.subr.mxu0 0.0
    %3537 = vmatpush1.msra.mxu0 0.0
    %3538 = vmatprep.subr.mxu0 0.0
    %3539 = vmatpush1.msra.mxu0 0.0
    %3540 = vmatprep.subr.mxu0 0.0
    %3541 = vmatpush1.msra.mxu0 0.0
    %3542 = vmatprep.subr.mxu0 0.0
    %3543 = vmatpush1.msra.mxu0 0.0
    %3544 = vmatprep.subr.mxu0 0.0
    %3545 = vmatpush1.msra.mxu0 0.0
    %3546 = vmatprep.subr.mxu0 0.0
    %3547 = vmatpush1.msra.mxu0 0.0
    %3548 = vmatprep.subr.mxu0 0.0
    %3549 = vmatpush1.msra.mxu0 0.0
    %3550 = vmatprep.subr.mxu0 0.0
    %3551 = vmatpush1.msra.mxu0 0.0
    %3552 = vmatprep.subr.mxu0 0.0
    %3553 = vmatpush1.msra.mxu0 0.0
    %3554 = vmatprep.subr.mxu0 0.0
    %3555 = vmatpush1.msra.mxu0 0.0
    %3556 = vmatprep.subr.mxu0 0.0
    %3557 = vmatpush1.msra.mxu0 0.0
    %3558 = vmatprep.mubr.f32.mxu0 0.0
    %3559 = vmatmul.mubr.f32.gmra.mrb[0].mxu0 %v3456
    %v3560 = vpop.f32.mrb[0].mxu0
    %v3561 = vadd.f32 0.0, %v3560
    %v3562 = vpop.f32.mrb[0].mxu0
    %3563 = vmatprep.mubr.f32.mxu0 0.0
    %3564 = vmatmul.mubr.f32.gmra.mrb[0].mxu0 %v3459
    %v3565 = vpop.f32.mrb[0].mxu0
    %v3566 = vadd.f32 0.0, %v3565
    %v3567 = vpop.f32.mrb[0].mxu0
    %3568 = vmatprep.mubr.f32.mxu0 0.0
    %3569 = vmatmul.mubr.f32.gmra.mrb[0].mxu0 %v3462
    %v3570 = vpop.f32.mrb[0].mxu0
    %v3571 = vadd.f32 0.0, %v3570
    %v3572 = vpop.f32.mrb[0].mxu0
    %3573 = vmatprep.mubr.f32.mxu0 0.0
    %3574 = vmatmul.mubr.f32.gmra.mrb[0].mxu0 %v3465
    %v3575 = vpop.f32.mrb[0].mxu0
    %v3576 = vadd.f32 0.0, %v3575
    %v3577 = vpop.f32.mrb[0].mxu0
    %3578 = vmatprep.mubr.f32.mxu0 0.0
    %3579 = vmatmul.mubr.f32.gmra.mrb[0].mxu0 %v3468
    %v3580 = vpop.f32.mrb[0].mxu0
    %v3581 = vadd.f32 0.0, %v3580
    %v3582 = vpop.f32.mrb[0].mxu0
    %3583 = vmatprep.mubr.f32.mxu0 0.0
    %3584 = vmatmul.mubr.f32.gmra.mrb[0].mxu0 %v3471
    %v3585 = vpop.f32.mrb[0].mxu0
    %v3586 = vadd.f32 0.0, %v3585
    %v3587 = vpop.f32.mrb[0].mxu0
    %3588 = vmatprep.mubr.f32.mxu0 0.0
    %3589 = vmatmul.mubr.f32.gmra.mrb[0].mxu0 %v3474
    %v3590 = vpop.f32.mrb[0].mxu0
    %v3591 = vadd.f32 0.0, %v3590
    %v3592 = vpop.f32.mrb[0].mxu0
    %3593 = vmatprep.mubr.f32.mxu0 0.0
    %3594 = vmatmul.mubr.f32.gmra.mrb[0].mxu0 %v3477
    %v3595 = vpop.f32.mrb[0].mxu0
    %v3596 = vadd.f32 0.0, %v3595
    %v3597 = vpop.f32.mrb[0].mxu0
    %3598 = vmatprep.mubr.f32.mxu0 0.0
    %3599 = vmatmul.mubr.f32.gmra.mrb[0].mxu0 %v3480
    %v3600 = vpop.f32.mrb[0].mxu0
    %v3601 = vadd.f32 0.0, %v3600
    %v3602 = vpop.f32.mrb[0].mxu0
    %3603 = vmatprep.mubr.f32.mxu0 0.0
    %3604 = vmatmul.mubr.f32.gmra.mrb[0].mxu0 %v3483
    %v3605 = vpop.f32.mrb[0].mxu0
    %v3606 = vadd.f32 0.0, %v3605
    %v3607 = vpop.f32.mrb[0].mxu0
    %3608 = vmatprep.mubr.f32.mxu0 0.0
    %3609 = vmatmul.mubr.f32.gmra.mrb[0].mxu0 %v3486
    %v3610 = vpop.f32.mrb[0].mxu0
    %v3611 = vadd.f32 0.0, %v3610
    %v3612 = vpop.f32.mrb[0].mxu0
    %3613 = vmatprep.mubr.f32.mxu0 0.0
    %3614 = vmatmul.mubr.f32.gmra.mrb[0].mxu0 %v3489
    %v3615 = vpop.f32.mrb[0].mxu0
    %v3616 = vadd.f32 0.0, %v3615
    %v3617 = vpop.f32.mrb[0].mxu0
    %3618 = vmatprep.mubr.f32.mxu0 0.0
    %3619 = vmatmul.mubr.f32.gmra.mrb[0].mxu0 %v3492
    %v3620 = vpop.f32.mrb[0].mxu0
    %v3621 = vadd.f32 0.0, %v3620
    %v3622 = vpop.f32.mrb[0].mxu0
    %3623 = vdwg.mxu0
    %v3624 = vadd.f32 %v3359, %v3561
    %v3625 = vadd.f32 %v3360, %v3566
    %v3626 = vadd.f32 %v3361, %v3571
    %v3627 = vadd.f32 %v3362, %v3576
    %v3628 = vadd.f32 %v3363, %v3581
    %v3629 = vadd.f32 %v3364, %v3586
    %v3630 = vadd.f32 %v3365, %v3591
    %v3631 = vadd.f32 %v3366, %v3596
    %v3632 = vadd.f32 %v3367, %v3601
    %v3633 = vadd.f32 %v3368, %v3606
    %v3634 = vadd.f32 %v3369, %v3611
    %v3635 = vadd.f32 %v3370, %v3616
    %v3636 = vadd.f32 %v3371, %v3621
    %v3637 = vld [vmem:[#allocation3 + $0x8] sm:$0xff]
    %v3638 = vld [vmem:[#allocation3 + $0x10] sm:$0xff]
    %v3639 = vld [vmem:[#allocation3 + $0x18] sm:$0xff]
    %v3640 = vld [vmem:[#allocation3 + $0x20] sm:$0xff]
    %v3641 = vld [vmem:[#allocation3 + $0x28] sm:$0xff]
    %v3642 = vld [vmem:[#allocation3 + $0x30] sm:$0xff]
    %v3643 = vld [vmem:[#allocation3 + $0x38] sm:$0xff]
    %v3644 = vld [vmem:[#allocation3 + $0x40] sm:$0xff]
    %v3645 = vld [vmem:[#allocation3 + $0x48] sm:$0xff]
    %v3646 = vld [vmem:[#allocation3 + $0x50] sm:$0xff]
    %v3647 = vld [vmem:[#allocation3 + $0x58] sm:$0xff]
    %v3648 = vld [vmem:[#allocation3 + $0x60] sm:$0xff]
    %v3649 = vld [vmem:[#allocation3 + $0x68] sm:$0x3]
    %3650 = vset.pattern.permute.xlu0 4
    %3651 = vperm.xlu0 %3650, %v2591
    %v3652 = vpop.permute.xlu0 %3651
    %3654 = vset.pattern.permute.xlu0 4
    %3655 = vperm.xlu0 %3654, %v2592
    %v3656 = vpop.permute.xlu0 %3655
    %3658 = vset.pattern.permute.xlu0 4
    %3659 = vperm.xlu0 %3658, %v2593
    %v3660 = vpop.permute.xlu0 %3659
    %3662 = vset.pattern.permute.xlu0 4
    %3663 = vperm.xlu0 %3662, %v2594
    %v3664 = vpop.permute.xlu0 %3663
    %3666 = vset.pattern.permute.xlu0 4
    %3667 = vperm.xlu0 %3666, %v2595
    %v3668 = vpop.permute.xlu0 %3667
    %3670 = vset.pattern.permute.xlu0 4
    %3671 = vperm.xlu0 %3670, %v2596
    %v3672 = vpop.permute.xlu0 %3671
    %3674 = vset.pattern.permute.xlu0 4
    %3675 = vperm.xlu0 %3674, %v2597
    %v3676 = vpop.permute.xlu0 %3675
    %3678 = vset.pattern.permute.xlu0 4
    %3679 = vperm.xlu0 %3678, %v2598
    %v3680 = vpop.permute.xlu0 %3679
    %3682 = vset.pattern.permute.xlu0 4
    %3683 = vperm.xlu0 %3682, %v2599
    %v3684 = vpop.permute.xlu0 %3683
    %3686 = vset.pattern.permute.xlu0 4
    %3687 = vperm.xlu0 %3686, %v2600
    %v3688 = vpop.permute.xlu0 %3687
    %3690 = vset.pattern.permute.xlu0 4
    %3691 = vperm.xlu0 %3690, %v2601
    %v3692 = vpop.permute.xlu0 %3691
    %3694 = vset.pattern.permute.xlu0 4
    %3695 = vperm.xlu0 %3694, %v2602
    %v3696 = vpop.permute.xlu0 %3695
    %3698 = vset.pattern.permute.xlu0 4
    %3699 = vperm.xlu0 %3698, %v2603
    %v3700 = vpop.permute.xlu0 %3699
    %v3702 = vmul.f32 %v3637, %v3652
    %v3703 = vmul.f32 %v3638, %v3656
    %v3704 = vmul.f32 %v3639, %v3660
    %v3705 = vmul.f32 %v3640, %v3664
    %v3706 = vmul.f32 %v3641, %v3668
    %v3707 = vmul.f32 %v3642, %v3672
    %v3708 = vmul.f32 %v3643, %v3676
    %v3709 = vmul.f32 %v3644, %v3680
    %v3710 = vmul.f32 %v3645, %v3684
    %v3711 = vmul.f32 %v3646, %v3688
    %v3712 = vmul.f32 %v3647, %v3692
    %v3713 = vmul.f32 %v3648, %v3696
    %v3714 = vmul.f32 %v3649, %v3700
    %s3715 = scalar_lea.vmem [#allocation9], 128
    %v3716 = vld [vmem:[%s3715] sm:$0xff]
    %v3717 = vld [vmem:[%s3715 + $0x8] sm:$0xff]
    %v3718 = vld [vmem:[%s3715 + $0x10] sm:$0xff]
    %v3719 = vld [vmem:[%s3715 + $0x18] sm:$0xff]
    %v3721 = vsel %vm2548, %v3702, 0
    %v3724 = vsel %vm2548, %v3703, 0
    %v3727 = vsel %vm2548, %v3704, 0
    %v3730 = vsel %vm2548, %v3705, 0
    %v3733 = vsel %vm2548, %v3706, 0
    %v3736 = vsel %vm2548, %v3707, 0
    %v3739 = vsel %vm2548, %v3708, 0
    %v3742 = vsel %vm2548, %v3709, 0
    %v3745 = vsel %vm2548, %v3710, 0
    %v3748 = vsel %vm2548, %v3711, 0
    %v3751 = vsel %vm2548, %v3712, 0
    %v3754 = vsel %vm2548, %v3713, 0
    %v3757 = vsel %vm2548, %v3714, 0
    %3759 = vmatprep.subr.mxu0 0.0
    %3760 = vmatpush1.msra.mxu0 %v3716
    %3761 = vmatprep.subr.mxu0 0.0
    %3762 = vmatpush1.msra.mxu0 %v3717
    %3763 = vmatprep.subr.mxu0 0.0
    %3764 = vmatpush1.msra.mxu0 %v3718
    %3765 = vmatprep.subr.mxu0 0.0
    %3766 = vmatpush1.msra.mxu0 %v3719
    %3767 = vmatprep.subr.mxu0 0.0
    %3768 = vmatpush1.msra.mxu0 0.0
    %3769 = vmatprep.subr.mxu0 0.0
    %3770 = vmatpush1.msra.mxu0 0.0
    %3771 = vmatprep.subr.mxu0 0.0
    %3772 = vmatpush1.msra.mxu0 0.0
    %3773 = vmatprep.subr.mxu0 0.0
    %3774 = vmatpush1.msra.mxu0 0.0
    %3775 = vmatprep.subr.mxu0 0.0
    %3776 = vmatpush1.msra.mxu0 0.0
    %3777 = vmatprep.subr.mxu0 0.0
    %3778 = vmatpush1.msra.mxu0 0.0
    %3779 = vmatprep.subr.mxu0 0.0
    %3780 = vmatpush1.msra.mxu0 0.0
    %3781 = vmatprep.subr.mxu0 0.0
    %3782 = vmatpush1.msra.mxu0 0.0
    %3783 = vmatprep.subr.mxu0 0.0
    %3784 = vmatpush1.msra.mxu0 0.0
    %3785 = vmatprep.subr.mxu0 0.0
    %3786 = vmatpush1.msra.mxu0 0.0
    %3787 = vmatprep.subr.mxu0 0.0
    %3788 = vmatpush1.msra.mxu0 0.0
    %3789 = vmatprep.subr.mxu0 0.0
    %3790 = vmatpush1.msra.mxu0 0.0
    %3791 = vmatprep.subr.mxu0 0.0
    %3792 = vmatpush1.msra.mxu0 0.0
    %3793 = vmatprep.subr.mxu0 0.0
    %3794 = vmatpush1.msra.mxu0 0.0
    %3795 = vmatprep.subr.mxu0 0.0
    %3796 = vmatpush1.msra.mxu0 0.0
    %3797 = vmatprep.subr.mxu0 0.0
    %3798 = vmatpush1.msra.mxu0 0.0
    %3799 = vmatprep.subr.mxu0 0.0
    %3800 = vmatpush1.msra.mxu0 0.0
    %3801 = vmatprep.subr.mxu0 0.0
    %3802 = vmatpush1.msra.mxu0 0.0
    %3803 = vmatprep.subr.mxu0 0.0
    %3804 = vmatpush1.msra.mxu0 0.0
    %3805 = vmatprep.subr.mxu0 0.0
    %3806 = vmatpush1.msra.mxu0 0.0
    %3807 = vmatprep.subr.mxu0 0.0
    %3808 = vmatpush1.msra.mxu0 0.0
    %3809 = vmatprep.subr.mxu0 0.0
    %3810 = vmatpush1.msra.mxu0 0.0
    %3811 = vmatprep.subr.mxu0 0.0
    %3812 = vmatpush1.msra.mxu0 0.0
    %3813 = vmatprep.subr.mxu0 0.0
    %3814 = vmatpush1.msra.mxu0 0.0
    %3815 = vmatprep.subr.mxu0 0.0
    %3816 = vmatpush1.msra.mxu0 0.0
    %3817 = vmatprep.subr.mxu0 0.0
    %3818 = vmatpush1.msra.mxu0 0.0
    %3819 = vmatprep.subr.mxu0 0.0
    %3820 = vmatpush1.msra.mxu0 0.0
    %3821 = vmatprep.subr.mxu0 0.0
    %3822 = vmatpush1.msra.mxu0 0.0
    %3823 = vmatprep.mubr.f32.mxu0 0.0
    %3824 = vmatmul.mubr.f32.gmra.mrb[0].mxu0 %v3721
    %v3825 = vpop.f32.mrb[0].mxu0
    %v3826 = vadd.f32 0.0, %v3825
    %v3827 = vpop.f32.mrb[0].mxu0
    %3828 = vmatprep.mubr.f32.mxu0 0.0
    %3829 = vmatmul.mubr.f32.gmra.mrb[0].mxu0 %v3724
    %v3830 = vpop.f32.mrb[0].mxu0
    %v3831 = vadd.f32 0.0, %v3830
    %v3832 = vpop.f32.mrb[0].mxu0
    %3833 = vmatprep.mubr.f32.mxu0 0.0
    %3834 = vmatmul.mubr.f32.gmra.mrb[0].mxu0 %v3727
    %v3835 = vpop.f32.mrb[0].mxu0
    %v3836 = vadd.f32 0.0, %v3835
    %v3837 = vpop.f32.mrb[0].mxu0
    %3838 = vmatprep.mubr.f32.mxu0 0.0
    %3839 = vmatmul.mubr.f32.gmra.mrb[0].mxu0 %v3730
    %v3840 = vpop.f32.mrb[0].mxu0
    %v3841 = vadd.f32 0.0, %v3840
    %v3842 = vpop.f32.mrb[0].mxu0
    %3843 = vmatprep.mubr.f32.mxu0 0.0
    %3844 = vmatmul.mubr.f32.gmra.mrb[0].mxu0 %v3733
    %v3845 = vpop.f32.mrb[0].mxu0
    %v3846 = vadd.f32 0.0, %v3845
    %v3847 = vpop.f32.mrb[0].mxu0
    %3848 = vmatprep.mubr.f32.mxu0 0.0
    %3849 = vmatmul.mubr.f32.gmra.mrb[0].mxu0 %v3736
    %v3850 = vpop.f32.mrb[0].mxu0
    %v3851 = vadd.f32 0.0, %v3850
    %v3852 = vpop.f32.mrb[0].mxu0
    %3853 = vmatprep.mubr.f32.mxu0 0.0
    %3854 = vmatmul.mubr.f32.gmra.mrb[0].mxu0 %v3739
    %v3855 = vpop.f32.mrb[0].mxu0
    %v3856 = vadd.f32 0.0, %v3855
    %v3857 = vpop.f32.mrb[0].mxu0
    %3858 = vmatprep.mubr.f32.mxu0 0.0
    %3859 = vmatmul.mubr.f32.gmra.mrb[0].mxu0 %v3742
    %v3860 = vpop.f32.mrb[0].mxu0
    %v3861 = vadd.f32 0.0, %v3860
    %v3862 = vpop.f32.mrb[0].mxu0
    %3863 = vmatprep.mubr.f32.mxu0 0.0
    %3864 = vmatmul.mubr.f32.gmra.mrb[0].mxu0 %v3745
    %v3865 = vpop.f32.mrb[0].mxu0
    %v3866 = vadd.f32 0.0, %v3865
    %v3867 = vpop.f32.mrb[0].mxu0
    %3868 = vmatprep.mubr.f32.mxu0 0.0
    %3869 = vmatmul.mubr.f32.gmra.mrb[0].mxu0 %v3748
    %v3870 = vpop.f32.mrb[0].mxu0
    %v3871 = vadd.f32 0.0, %v3870
    %v3872 = vpop.f32.mrb[0].mxu0
    %3873 = vmatprep.mubr.f32.mxu0 0.0
    %3874 = vmatmul.mubr.f32.gmra.mrb[0].mxu0 %v3751
    %v3875 = vpop.f32.mrb[0].mxu0
    %v3876 = vadd.f32 0.0, %v3875
    %v3877 = vpop.f32.mrb[0].mxu0
    %3878 = vmatprep.mubr.f32.mxu0 0.0
    %3879 = vmatmul.mubr.f32.gmra.mrb[0].mxu0 %v3754
    %v3880 = vpop.f32.mrb[0].mxu0
    %v3881 = vadd.f32 0.0, %v3880
    %v3882 = vpop.f32.mrb[0].mxu0
    %3883 = vmatprep.mubr.f32.mxu0 0.0
    %3884 = vmatmul.mubr.f32.gmra.mrb[0].mxu0 %v3757
    %v3885 = vpop.f32.mrb[0].mxu0
    %v3886 = vadd.f32 0.0, %v3885
    %v3887 = vpop.f32.mrb[0].mxu0
    %3888 = vdwg.mxu0
    %v3889 = vadd.f32 %v3624, %v3826
    %v3890 = vadd.f32 %v3625, %v3831
    %v3891 = vadd.f32 %v3626, %v3836
    %v3892 = vadd.f32 %v3627, %v3841
    %v3893 = vadd.f32 %v3628, %v3846
    %v3894 = vadd.f32 %v3629, %v3851
    %v3895 = vadd.f32 %v3630, %v3856
    %v3896 = vadd.f32 %v3631, %v3861
    %v3897 = vadd.f32 %v3632, %v3866
    %v3898 = vadd.f32 %v3633, %v3871
    %v3899 = vadd.f32 %v3634, %v3876
    %v3900 = vadd.f32 %v3635, %v3881
    %v3901 = vadd.f32 %v3636, %v3886
    %v3902 = vld [vmem:[#allocation3 + $0x9] sm:$0xff]
    %v3903 = vld [vmem:[#allocation3 + $0x11] sm:$0xff]
    %v3904 = vld [vmem:[#allocation3 + $0x19] sm:$0xff]
    %v3905 = vld [vmem:[#allocation3 + $0x21] sm:$0xff]
    %v3906 = vld [vmem:[#allocation3 + $0x29] sm:$0xff]
    %v3907 = vld [vmem:[#allocation3 + $0x31] sm:$0xff]
    %v3908 = vld [vmem:[#allocation3 + $0x39] sm:$0xff]
    %v3909 = vld [vmem:[#allocation3 + $0x41] sm:$0xff]
    %v3910 = vld [vmem:[#allocation3 + $0x49] sm:$0xff]
    %v3911 = vld [vmem:[#allocation3 + $0x51] sm:$0xff]
    %v3912 = vld [vmem:[#allocation3 + $0x59] sm:$0xff]
    %v3913 = vld [vmem:[#allocation3 + $0x61] sm:$0xff]
    %v3914 = vld [vmem:[#allocation3 + $0x69] sm:$0x3]
    %3915 = vset.pattern.permute.xlu0 5
    %3916 = vperm.xlu0 %3915, %v2591
    %v3917 = vpop.permute.xlu0 %3916
    %3919 = vset.pattern.permute.xlu0 5
    %3920 = vperm.xlu0 %3919, %v2592
    %v3921 = vpop.permute.xlu0 %3920
    %3923 = vset.pattern.permute.xlu0 5
    %3924 = vperm.xlu0 %3923, %v2593
    %v3925 = vpop.permute.xlu0 %3924
    %3927 = vset.pattern.permute.xlu0 5
    %3928 = vperm.xlu0 %3927, %v2594
    %v3929 = vpop.permute.xlu0 %3928
    %3931 = vset.pattern.permute.xlu0 5
    %3932 = vperm.xlu0 %3931, %v2595
    %v3933 = vpop.permute.xlu0 %3932
    %3935 = vset.pattern.permute.xlu0 5
    %3936 = vperm.xlu0 %3935, %v2596
    %v3937 = vpop.permute.xlu0 %3936
    %3939 = vset.pattern.permute.xlu0 5
    %3940 = vperm.xlu0 %3939, %v2597
    %v3941 = vpop.permute.xlu0 %3940
    %3943 = vset.pattern.permute.xlu0 5
    %3944 = vperm.xlu0 %3943, %v2598
    %v3945 = vpop.permute.xlu0 %3944
    %3947 = vset.pattern.permute.xlu0 5
    %3948 = vperm.xlu0 %3947, %v2599
    %v3949 = vpop.permute.xlu0 %3948
    %3951 = vset.pattern.permute.xlu0 5
    %3952 = vperm.xlu0 %3951, %v2600
    %v3953 = vpop.permute.xlu0 %3952
    %3955 = vset.pattern.permute.xlu0 5
    %3956 = vperm.xlu0 %3955, %v2601
    %v3957 = vpop.permute.xlu0 %3956
    %3959 = vset.pattern.permute.xlu0 5
    %3960 = vperm.xlu0 %3959, %v2602
    %v3961 = vpop.permute.xlu0 %3960
    %3963 = vset.pattern.permute.xlu0 5
    %3964 = vperm.xlu0 %3963, %v2603
    %v3965 = vpop.permute.xlu0 %3964
    %v3967 = vmul.f32 %v3902, %v3917
    %v3968 = vmul.f32 %v3903, %v3921
    %v3969 = vmul.f32 %v3904, %v3925
    %v3970 = vmul.f32 %v3905, %v3929
    %v3971 = vmul.f32 %v3906, %v3933
    %v3972 = vmul.f32 %v3907, %v3937
    %v3973 = vmul.f32 %v3908, %v3941
    %v3974 = vmul.f32 %v3909, %v3945
    %v3975 = vmul.f32 %v3910, %v3949
    %v3976 = vmul.f32 %v3911, %v3953
    %v3977 = vmul.f32 %v3912, %v3957
    %v3978 = vmul.f32 %v3913, %v3961
    %v3979 = vmul.f32 %v3914, %v3965
    %s3980 = scalar_lea.vmem [#allocation9], 160
    %v3981 = vld [vmem:[%s3980] sm:$0xff]
    %v3982 = vld [vmem:[%s3980 + $0x8] sm:$0xff]
    %v3983 = vld [vmem:[%s3980 + $0x10] sm:$0xff]
    %v3984 = vld [vmem:[%s3980 + $0x18] sm:$0xff]
    %v3986 = vsel %vm2548, %v3967, 0
    %v3989 = vsel %vm2548, %v3968, 0
    %v3992 = vsel %vm2548, %v3969, 0
    %v3995 = vsel %vm2548, %v3970, 0
    %v3998 = vsel %vm2548, %v3971, 0
    %v4001 = vsel %vm2548, %v3972, 0
    %v4004 = vsel %vm2548, %v3973, 0
    %v4007 = vsel %vm2548, %v3974, 0
    %v4010 = vsel %vm2548, %v3975, 0
    %v4013 = vsel %vm2548, %v3976, 0
    %v4016 = vsel %vm2548, %v3977, 0
    %v4019 = vsel %vm2548, %v3978, 0
    %v4022 = vsel %vm2548, %v3979, 0
    %4024 = vmatprep.subr.mxu0 0.0
    %4025 = vmatpush1.msra.mxu0 %v3981
    %4026 = vmatprep.subr.mxu0 0.0
    %4027 = vmatpush1.msra.mxu0 %v3982
    %4028 = vmatprep.subr.mxu0 0.0
    %4029 = vmatpush1.msra.mxu0 %v3983
    %4030 = vmatprep.subr.mxu0 0.0
    %4031 = vmatpush1.msra.mxu0 %v3984
    %4032 = vmatprep.subr.mxu0 0.0
    %4033 = vmatpush1.msra.mxu0 0.0
    %4034 = vmatprep.subr.mxu0 0.0
    %4035 = vmatpush1.msra.mxu0 0.0
    %4036 = vmatprep.subr.mxu0 0.0
    %4037 = vmatpush1.msra.mxu0 0.0
    %4038 = vmatprep.subr.mxu0 0.0
    %4039 = vmatpush1.msra.mxu0 0.0
    %4040 = vmatprep.subr.mxu0 0.0
    %4041 = vmatpush1.msra.mxu0 0.0
    %4042 = vmatprep.subr.mxu0 0.0
    %4043 = vmatpush1.msra.mxu0 0.0
    %4044 = vmatprep.subr.mxu0 0.0
    %4045 = vmatpush1.msra.mxu0 0.0
    %4046 = vmatprep.subr.mxu0 0.0
    %4047 = vmatpush1.msra.mxu0 0.0
    %4048 = vmatprep.subr.mxu0 0.0
    %4049 = vmatpush1.msra.mxu0 0.0
    %4050 = vmatprep.subr.mxu0 0.0
    %4051 = vmatpush1.msra.mxu0 0.0
    %4052 = vmatprep.subr.mxu0 0.0
    %4053 = vmatpush1.msra.mxu0 0.0
    %4054 = vmatprep.subr.mxu0 0.0
    %4055 = vmatpush1.msra.mxu0 0.0
    %4056 = vmatprep.subr.mxu0 0.0
    %4057 = vmatpush1.msra.mxu0 0.0
    %4058 = vmatprep.subr.mxu0 0.0
    %4059 = vmatpush1.msra.mxu0 0.0
    %4060 = vmatprep.subr.mxu0 0.0
    %4061 = vmatpush1.msra.mxu0 0.0
    %4062 = vmatprep.subr.mxu0 0.0
    %4063 = vmatpush1.msra.mxu0 0.0
    %4064 = vmatprep.subr.mxu0 0.0
    %4065 = vmatpush1.msra.mxu0 0.0
    %4066 = vmatprep.subr.mxu0 0.0
    %4067 = vmatpush1.msra.mxu0 0.0
    %4068 = vmatprep.subr.mxu0 0.0
    %4069 = vmatpush1.msra.mxu0 0.0
    %4070 = vmatprep.subr.mxu0 0.0
    %4071 = vmatpush1.msra.mxu0 0.0
    %4072 = vmatprep.subr.mxu0 0.0
    %4073 = vmatpush1.msra.mxu0 0.0
    %4074 = vmatprep.subr.mxu0 0.0
    %4075 = vmatpush1.msra.mxu0 0.0
    %4076 = vmatprep.subr.mxu0 0.0
    %4077 = vmatpush1.msra.mxu0 0.0
    %4078 = vmatprep.subr.mxu0 0.0
    %4079 = vmatpush1.msra.mxu0 0.0
    %4080 = vmatprep.subr.mxu0 0.0
    %4081 = vmatpush1.msra.mxu0 0.0
    %4082 = vmatprep.subr.mxu0 0.0
    %4083 = vmatpush1.msra.mxu0 0.0
    %4084 = vmatprep.subr.mxu0 0.0
    %4085 = vmatpush1.msra.mxu0 0.0
    %4086 = vmatprep.subr.mxu0 0.0
    %4087 = vmatpush1.msra.mxu0 0.0
    %4088 = vmatprep.mubr.f32.mxu0 0.0
    %4089 = vmatmul.mubr.f32.gmra.mrb[0].mxu0 %v3986
    %v4090 = vpop.f32.mrb[0].mxu0
    %v4091 = vadd.f32 0.0, %v4090
    %v4092 = vpop.f32.mrb[0].mxu0
    %4093 = vmatprep.mubr.f32.mxu0 0.0
    %4094 = vmatmul.mubr.f32.gmra.mrb[0].mxu0 %v3989
    %v4095 = vpop.f32.mrb[0].mxu0
    %v4096 = vadd.f32 0.0, %v4095
    %v4097 = vpop.f32.mrb[0].mxu0
    %4098 = vmatprep.mubr.f32.mxu0 0.0
    %4099 = vmatmul.mubr.f32.gmra.mrb[0].mxu0 %v3992
    %v4100 = vpop.f32.mrb[0].mxu0
    %v4101 = vadd.f32 0.0, %v4100
    %v4102 = vpop.f32.mrb[0].mxu0
    %4103 = vmatprep.mubr.f32.mxu0 0.0
    %4104 = vmatmul.mubr.f32.gmra.mrb[0].mxu0 %v3995
    %v4105 = vpop.f32.mrb[0].mxu0
    %v4106 = vadd.f32 0.0, %v4105
    %v4107 = vpop.f32.mrb[0].mxu0
    %4108 = vmatprep.mubr.f32.mxu0 0.0
    %4109 = vmatmul.mubr.f32.gmra.mrb[0].mxu0 %v3998
    %v4110 = vpop.f32.mrb[0].mxu0
    %v4111 = vadd.f32 0.0, %v4110
    %v4112 = vpop.f32.mrb[0].mxu0
    %4113 = vmatprep.mubr.f32.mxu0 0.0
    %4114 = vmatmul.mubr.f32.gmra.mrb[0].mxu0 %v4001
    %v4115 = vpop.f32.mrb[0].mxu0
    %v4116 = vadd.f32 0.0, %v4115
    %v4117 = vpop.f32.mrb[0].mxu0
    %4118 = vmatprep.mubr.f32.mxu0 0.0
    %4119 = vmatmul.mubr.f32.gmra.mrb[0].mxu0 %v4004
    %v4120 = vpop.f32.mrb[0].mxu0
    %v4121 = vadd.f32 0.0, %v4120
    %v4122 = vpop.f32.mrb[0].mxu0
    %4123 = vmatprep.mubr.f32.mxu0 0.0
    %4124 = vmatmul.mubr.f32.gmra.mrb[0].mxu0 %v4007
    %v4125 = vpop.f32.mrb[0].mxu0
    %v4126 = vadd.f32 0.0, %v4125
    %v4127 = vpop.f32.mrb[0].mxu0
    %4128 = vmatprep.mubr.f32.mxu0 0.0
    %4129 = vmatmul.mubr.f32.gmra.mrb[0].mxu0 %v4010
    %v4130 = vpop.f32.mrb[0].mxu0
    %v4131 = vadd.f32 0.0, %v4130
    %v4132 = vpop.f32.mrb[0].mxu0
    %4133 = vmatprep.mubr.f32.mxu0 0.0
    %4134 = vmatmul.mubr.f32.gmra.mrb[0].mxu0 %v4013
    %v4135 = vpop.f32.mrb[0].mxu0
    %v4136 = vadd.f32 0.0, %v4135
    %v4137 = vpop.f32.mrb[0].mxu0
    %4138 = vmatprep.mubr.f32.mxu0 0.0
    %4139 = vmatmul.mubr.f32.gmra.mrb[0].mxu0 %v4016
    %v4140 = vpop.f32.mrb[0].mxu0
    %v4141 = vadd.f32 0.0, %v4140
    %v4142 = vpop.f32.mrb[0].mxu0
    %4143 = vmatprep.mubr.f32.mxu0 0.0
    %4144 = vmatmul.mubr.f32.gmra.mrb[0].mxu0 %v4019
    %v4145 = vpop.f32.mrb[0].mxu0
    %v4146 = vadd.f32 0.0, %v4145
    %v4147 = vpop.f32.mrb[0].mxu0
    %4148 = vmatprep.mubr.f32.mxu0 0.0
    %4149 = vmatmul.mubr.f32.gmra.mrb[0].mxu0 %v4022
    %v4150 = vpop.f32.mrb[0].mxu0
    %v4151 = vadd.f32 0.0, %v4150
    %v4152 = vpop.f32.mrb[0].mxu0
    %4153 = vdwg.mxu0
    %v4154 = vadd.f32 %v3889, %v4091
    %v4155 = vadd.f32 %v3890, %v4096
    %v4156 = vadd.f32 %v3891, %v4101
    %v4157 = vadd.f32 %v3892, %v4106
    %v4158 = vadd.f32 %v3893, %v4111
    %v4159 = vadd.f32 %v3894, %v4116
    %v4160 = vadd.f32 %v3895, %v4121
    %v4161 = vadd.f32 %v3896, %v4126
    %v4162 = vadd.f32 %v3897, %v4131
    %v4163 = vadd.f32 %v3898, %v4136
    %v4164 = vadd.f32 %v3899, %v4141
    %v4165 = vadd.f32 %v3900, %v4146
    %v4166 = vadd.f32 %v3901, %v4151
    %v4167 = vld [vmem:[#allocation3 + $0xe] sm:$0xff]
    %v4168 = vld [vmem:[#allocation3 + $0x16] sm:$0xff]
    %v4169 = vld [vmem:[#allocation3 + $0x1e] sm:$0xff]
    %v4170 = vld [vmem:[#allocation3 + $0x26] sm:$0xff]
    %v4171 = vld [vmem:[#allocation3 + $0x2e] sm:$0xff]
    %v4172 = vld [vmem:[#allocation3 + $0x36] sm:$0xff]
    %v4173 = vld [vmem:[#allocation3 + $0x3e] sm:$0xff]
    %v4174 = vld [vmem:[#allocation3 + $0x46] sm:$0xff]
    %v4175 = vld [vmem:[#allocation3 + $0x4e] sm:$0xff]
    %v4176 = vld [vmem:[#allocation3 + $0x56] sm:$0xff]
    %v4177 = vld [vmem:[#allocation3 + $0x5e] sm:$0xff]
    %v4178 = vld [vmem:[#allocation3 + $0x66] sm:$0xff]
    %v4179 = vld [vmem:[#allocation3 + $0x6e] sm:$0x3]
    %4180 = vset.pattern.permute.xlu0 6
    %4181 = vperm.xlu0 %4180, %v2591
    %v4182 = vpop.permute.xlu0 %4181
    %4184 = vset.pattern.permute.xlu0 6
    %4185 = vperm.xlu0 %4184, %v2592
    %v4186 = vpop.permute.xlu0 %4185
    %4188 = vset.pattern.permute.xlu0 6
    %4189 = vperm.xlu0 %4188, %v2593
    %v4190 = vpop.permute.xlu0 %4189
    %4192 = vset.pattern.permute.xlu0 6
    %4193 = vperm.xlu0 %4192, %v2594
    %v4194 = vpop.permute.xlu0 %4193
    %4196 = vset.pattern.permute.xlu0 6
    %4197 = vperm.xlu0 %4196, %v2595
    %v4198 = vpop.permute.xlu0 %4197
    %4200 = vset.pattern.permute.xlu0 6
    %4201 = vperm.xlu0 %4200, %v2596
    %v4202 = vpop.permute.xlu0 %4201
    %4204 = vset.pattern.permute.xlu0 6
    %4205 = vperm.xlu0 %4204, %v2597
    %v4206 = vpop.permute.xlu0 %4205
    %4208 = vset.pattern.permute.xlu0 6
    %4209 = vperm.xlu0 %4208, %v2598
    %v4210 = vpop.permute.xlu0 %4209
    %4212 = vset.pattern.permute.xlu0 6
    %4213 = vperm.xlu0 %4212, %v2599
    %v4214 = vpop.permute.xlu0 %4213
    %4216 = vset.pattern.permute.xlu0 6
    %4217 = vperm.xlu0 %4216, %v2600
    %v4218 = vpop.permute.xlu0 %4217
    %4220 = vset.pattern.permute.xlu0 6
    %4221 = vperm.xlu0 %4220, %v2601
    %v4222 = vpop.permute.xlu0 %4221
    %4224 = vset.pattern.permute.xlu0 6
    %4225 = vperm.xlu0 %4224, %v2602
    %v4226 = vpop.permute.xlu0 %4225
    %4228 = vset.pattern.permute.xlu0 6
    %4229 = vperm.xlu0 %4228, %v2603
    %v4230 = vpop.permute.xlu0 %4229
    %v4232 = vmul.f32 %v4167, %v4182
    %v4233 = vmul.f32 %v4168, %v4186
    %v4234 = vmul.f32 %v4169, %v4190
    %v4235 = vmul.f32 %v4170, %v4194
    %v4236 = vmul.f32 %v4171, %v4198
    %v4237 = vmul.f32 %v4172, %v4202
    %v4238 = vmul.f32 %v4173, %v4206
    %v4239 = vmul.f32 %v4174, %v4210
    %v4240 = vmul.f32 %v4175, %v4214
    %v4241 = vmul.f32 %v4176, %v4218
    %v4242 = vmul.f32 %v4177, %v4222
    %v4243 = vmul.f32 %v4178, %v4226
    %v4244 = vmul.f32 %v4179, %v4230
    %s4245 = scalar_lea.vmem [#allocation9], 192
    %v4246 = vld [vmem:[%s4245] sm:$0xff]
    %v4247 = vld [vmem:[%s4245 + $0x8] sm:$0xff]
    %v4248 = vld [vmem:[%s4245 + $0x10] sm:$0xff]
    %v4249 = vld [vmem:[%s4245 + $0x18] sm:$0xff]
    %v4251 = vsel %vm2548, %v4232, 0
    %v4254 = vsel %vm2548, %v4233, 0
    %v4257 = vsel %vm2548, %v4234, 0
    %v4260 = vsel %vm2548, %v4235, 0
    %v4263 = vsel %vm2548, %v4236, 0
    %v4266 = vsel %vm2548, %v4237, 0
    %v4269 = vsel %vm2548, %v4238, 0
    %v4272 = vsel %vm2548, %v4239, 0
    %v4275 = vsel %vm2548, %v4240, 0
    %v4278 = vsel %vm2548, %v4241, 0
    %v4281 = vsel %vm2548, %v4242, 0
    %v4284 = vsel %vm2548, %v4243, 0
    %v4287 = vsel %vm2548, %v4244, 0
    %4289 = vmatprep.subr.mxu0 0.0
    %4290 = vmatpush1.msra.mxu0 %v4246
    %4291 = vmatprep.subr.mxu0 0.0
    %4292 = vmatpush1.msra.mxu0 %v4247
    %4293 = vmatprep.subr.mxu0 0.0
    %4294 = vmatpush1.msra.mxu0 %v4248
    %4295 = vmatprep.subr.mxu0 0.0
    %4296 = vmatpush1.msra.mxu0 %v4249
    %4297 = vmatprep.subr.mxu0 0.0
    %4298 = vmatpush1.msra.mxu0 0.0
    %4299 = vmatprep.subr.mxu0 0.0
    %4300 = vmatpush1.msra.mxu0 0.0
    %4301 = vmatprep.subr.mxu0 0.0
    %4302 = vmatpush1.msra.mxu0 0.0
    %4303 = vmatprep.subr.mxu0 0.0
    %4304 = vmatpush1.msra.mxu0 0.0
    %4305 = vmatprep.subr.mxu0 0.0
    %4306 = vmatpush1.msra.mxu0 0.0
    %4307 = vmatprep.subr.mxu0 0.0
    %4308 = vmatpush1.msra.mxu0 0.0
    %4309 = vmatprep.subr.mxu0 0.0
    %4310 = vmatpush1.msra.mxu0 0.0
    %4311 = vmatprep.subr.mxu0 0.0
    %4312 = vmatpush1.msra.mxu0 0.0
    %4313 = vmatprep.subr.mxu0 0.0
    %4314 = vmatpush1.msra.mxu0 0.0
    %4315 = vmatprep.subr.mxu0 0.0
    %4316 = vmatpush1.msra.mxu0 0.0
    %4317 = vmatprep.subr.mxu0 0.0
    %4318 = vmatpush1.msra.mxu0 0.0
    %4319 = vmatprep.subr.mxu0 0.0
    %4320 = vmatpush1.msra.mxu0 0.0
    %4321 = vmatprep.subr.mxu0 0.0
    %4322 = vmatpush1.msra.mxu0 0.0
    %4323 = vmatprep.subr.mxu0 0.0
    %4324 = vmatpush1.msra.mxu0 0.0
    %4325 = vmatprep.subr.mxu0 0.0
    %4326 = vmatpush1.msra.mxu0 0.0
    %4327 = vmatprep.subr.mxu0 0.0
    %4328 = vmatpush1.msra.mxu0 0.0
    %4329 = vmatprep.subr.mxu0 0.0
    %4330 = vmatpush1.msra.mxu0 0.0
    %4331 = vmatprep.subr.mxu0 0.0
    %4332 = vmatpush1.msra.mxu0 0.0
    %4333 = vmatprep.subr.mxu0 0.0
    %4334 = vmatpush1.msra.mxu0 0.0
    %4335 = vmatprep.subr.mxu0 0.0
    %4336 = vmatpush1.msra.mxu0 0.0
    %4337 = vmatprep.subr.mxu0 0.0
    %4338 = vmatpush1.msra.mxu0 0.0
    %4339 = vmatprep.subr.mxu0 0.0
    %4340 = vmatpush1.msra.mxu0 0.0
    %4341 = vmatprep.subr.mxu0 0.0
    %4342 = vmatpush1.msra.mxu0 0.0
    %4343 = vmatprep.subr.mxu0 0.0
    %4344 = vmatpush1.msra.mxu0 0.0
    %4345 = vmatprep.subr.mxu0 0.0
    %4346 = vmatpush1.msra.mxu0 0.0
    %4347 = vmatprep.subr.mxu0 0.0
    %4348 = vmatpush1.msra.mxu0 0.0
    %4349 = vmatprep.subr.mxu0 0.0
    %4350 = vmatpush1.msra.mxu0 0.0
    %4351 = vmatprep.subr.mxu0 0.0
    %4352 = vmatpush1.msra.mxu0 0.0
    %4353 = vmatprep.mubr.f32.mxu0 0.0
    %4354 = vmatmul.mubr.f32.gmra.mrb[0].mxu0 %v4251
    %v4355 = vpop.f32.mrb[0].mxu0
    %v4356 = vadd.f32 0.0, %v4355
    %v4357 = vpop.f32.mrb[0].mxu0
    %4358 = vmatprep.mubr.f32.mxu0 0.0
    %4359 = vmatmul.mubr.f32.gmra.mrb[0].mxu0 %v4254
    %v4360 = vpop.f32.mrb[0].mxu0
    %v4361 = vadd.f32 0.0, %v4360
    %v4362 = vpop.f32.mrb[0].mxu0
    %4363 = vmatprep.mubr.f32.mxu0 0.0
    %4364 = vmatmul.mubr.f32.gmra.mrb[0].mxu0 %v4257
    %v4365 = vpop.f32.mrb[0].mxu0
    %v4366 = vadd.f32 0.0, %v4365
    %v4367 = vpop.f32.mrb[0].mxu0
    %4368 = vmatprep.mubr.f32.mxu0 0.0
    %4369 = vmatmul.mubr.f32.gmra.mrb[0].mxu0 %v4260
    %v4370 = vpop.f32.mrb[0].mxu0
    %v4371 = vadd.f32 0.0, %v4370
    %v4372 = vpop.f32.mrb[0].mxu0
    %4373 = vmatprep.mubr.f32.mxu0 0.0
    %4374 = vmatmul.mubr.f32.gmra.mrb[0].mxu0 %v4263
    %v4375 = vpop.f32.mrb[0].mxu0
    %v4376 = vadd.f32 0.0, %v4375
    %v4377 = vpop.f32.mrb[0].mxu0
    %4378 = vmatprep.mubr.f32.mxu0 0.0
    %4379 = vmatmul.mubr.f32.gmra.mrb[0].mxu0 %v4266
    %v4380 = vpop.f32.mrb[0].mxu0
    %v4381 = vadd.f32 0.0, %v4380
    %v4382 = vpop.f32.mrb[0].mxu0
    %4383 = vmatprep.mubr.f32.mxu0 0.0
    %4384 = vmatmul.mubr.f32.gmra.mrb[0].mxu0 %v4269
    %v4385 = vpop.f32.mrb[0].mxu0
    %v4386 = vadd.f32 0.0, %v4385
    %v4387 = vpop.f32.mrb[0].mxu0
    %4388 = vmatprep.mubr.f32.mxu0 0.0
    %4389 = vmatmul.mubr.f32.gmra.mrb[0].mxu0 %v4272
    %v4390 = vpop.f32.mrb[0].mxu0
    %v4391 = vadd.f32 0.0, %v4390
    %v4392 = vpop.f32.mrb[0].mxu0
    %4393 = vmatprep.mubr.f32.mxu0 0.0
    %4394 = vmatmul.mubr.f32.gmra.mrb[0].mxu0 %v4275
    %v4395 = vpop.f32.mrb[0].mxu0
    %v4396 = vadd.f32 0.0, %v4395
    %v4397 = vpop.f32.mrb[0].mxu0
    %4398 = vmatprep.mubr.f32.mxu0 0.0
    %4399 = vmatmul.mubr.f32.gmra.mrb[0].mxu0 %v4278
    %v4400 = vpop.f32.mrb[0].mxu0
    %v4401 = vadd.f32 0.0, %v4400
    %v4402 = vpop.f32.mrb[0].mxu0
    %4403 = vmatprep.mubr.f32.mxu0 0.0
    %4404 = vmatmul.mubr.f32.gmra.mrb[0].mxu0 %v4281
    %v4405 = vpop.f32.mrb[0].mxu0
    %v4406 = vadd.f32 0.0, %v4405
    %v4407 = vpop.f32.mrb[0].mxu0
    %4408 = vmatprep.mubr.f32.mxu0 0.0
    %4409 = vmatmul.mubr.f32.gmra.mrb[0].mxu0 %v4284
    %v4410 = vpop.f32.mrb[0].mxu0
    %v4411 = vadd.f32 0.0, %v4410
    %v4412 = vpop.f32.mrb[0].mxu0
    %4413 = vmatprep.mubr.f32.mxu0 0.0
    %4414 = vmatmul.mubr.f32.gmra.mrb[0].mxu0 %v4287
    %v4415 = vpop.f32.mrb[0].mxu0
    %v4416 = vadd.f32 0.0, %v4415
    %v4417 = vpop.f32.mrb[0].mxu0
    %4418 = vdwg.mxu0
    %v4419 = vadd.f32 %v4154, %v4356
    %v4420 = vadd.f32 %v4155, %v4361
    %v4421 = vadd.f32 %v4156, %v4366
    %v4422 = vadd.f32 %v4157, %v4371
    %v4423 = vadd.f32 %v4158, %v4376
    %v4424 = vadd.f32 %v4159, %v4381
    %v4425 = vadd.f32 %v4160, %v4386
    %v4426 = vadd.f32 %v4161, %v4391
    %v4427 = vadd.f32 %v4162, %v4396
    %v4428 = vadd.f32 %v4163, %v4401
    %v4429 = vadd.f32 %v4164, %v4406
    %v4430 = vadd.f32 %v4165, %v4411
    %v4431 = vadd.f32 %v4166, %v4416
    %v4432 = vld [vmem:[#allocation3 + $0xf] sm:$0xff]
    %v4433 = vld [vmem:[#allocation3 + $0x17] sm:$0xff]
    %v4434 = vld [vmem:[#allocation3 + $0x1f] sm:$0xff]
    %v4435 = vld [vmem:[#allocation3 + $0x27] sm:$0xff]
    %v4436 = vld [vmem:[#allocation3 + $0x2f] sm:$0xff]
    %v4437 = vld [vmem:[#allocation3 + $0x37] sm:$0xff]
    %v4438 = vld [vmem:[#allocation3 + $0x3f] sm:$0xff]
    %v4439 = vld [vmem:[#allocation3 + $0x47] sm:$0xff]
    %v4440 = vld [vmem:[#allocation3 + $0x4f] sm:$0xff]
    %v4441 = vld [vmem:[#allocation3 + $0x57] sm:$0xff]
    %v4442 = vld [vmem:[#allocation3 + $0x5f] sm:$0xff]
    %v4443 = vld [vmem:[#allocation3 + $0x67] sm:$0xff]
    %v4444 = vld [vmem:[#allocation3 + $0x6f] sm:$0x3]
    %4445 = vset.pattern.permute.xlu0 7
    %4446 = vperm.xlu0 %4445, %v2591
    %v4447 = vpop.permute.xlu0 %4446
    %4449 = vset.pattern.permute.xlu0 7
    %4450 = vperm.xlu0 %4449, %v2592
    %v4451 = vpop.permute.xlu0 %4450
    %4453 = vset.pattern.permute.xlu0 7
    %4454 = vperm.xlu0 %4453, %v2593
    %v4455 = vpop.permute.xlu0 %4454
    %4457 = vset.pattern.permute.xlu0 7
    %4458 = vperm.xlu0 %4457, %v2594
    %v4459 = vpop.permute.xlu0 %4458
    %4461 = vset.pattern.permute.xlu0 7
    %4462 = vperm.xlu0 %4461, %v2595
    %v4463 = vpop.permute.xlu0 %4462
    %4465 = vset.pattern.permute.xlu0 7
    %4466 = vperm.xlu0 %4465, %v2596
    %v4467 = vpop.permute.xlu0 %4466
    %4469 = vset.pattern.permute.xlu0 7
    %4470 = vperm.xlu0 %4469, %v2597
    %v4471 = vpop.permute.xlu0 %4470
    %4473 = vset.pattern.permute.xlu0 7
    %4474 = vperm.xlu0 %4473, %v2598
    %v4475 = vpop.permute.xlu0 %4474
    %4477 = vset.pattern.permute.xlu0 7
    %4478 = vperm.xlu0 %4477, %v2599
    %v4479 = vpop.permute.xlu0 %4478
    %4481 = vset.pattern.permute.xlu0 7
    %4482 = vperm.xlu0 %4481, %v2600
    %v4483 = vpop.permute.xlu0 %4482
    %4485 = vset.pattern.permute.xlu0 7
    %4486 = vperm.xlu0 %4485, %v2601
    %v4487 = vpop.permute.xlu0 %4486
    %4489 = vset.pattern.permute.xlu0 7
    %4490 = vperm.xlu0 %4489, %v2602
    %v4491 = vpop.permute.xlu0 %4490
    %4493 = vset.pattern.permute.xlu0 7
    %4494 = vperm.xlu0 %4493, %v2603
    %v4495 = vpop.permute.xlu0 %4494
    %v4497 = vmul.f32 %v4432, %v4447
    %v4498 = vmul.f32 %v4433, %v4451
    %v4499 = vmul.f32 %v4434, %v4455
    %v4500 = vmul.f32 %v4435, %v4459
    %v4501 = vmul.f32 %v4436, %v4463
    %v4502 = vmul.f32 %v4437, %v4467
    %v4503 = vmul.f32 %v4438, %v4471
    %v4504 = vmul.f32 %v4439, %v4475
    %v4505 = vmul.f32 %v4440, %v4479
    %v4506 = vmul.f32 %v4441, %v4483
    %v4507 = vmul.f32 %v4442, %v4487
    %v4508 = vmul.f32 %v4443, %v4491
    %v4509 = vmul.f32 %v4444, %v4495
    %s4510 = scalar_lea.vmem [#allocation9], 224
    %v4511 = vld [vmem:[%s4510] sm:$0xff]
    %v4512 = vld [vmem:[%s4510 + $0x8] sm:$0xff]
    %v4513 = vld [vmem:[%s4510 + $0x10] sm:$0xff]
    %v4514 = vld [vmem:[%s4510 + $0x18] sm:$0xff]
    %v4516 = vsel %vm2548, %v4497, 0
    %v4519 = vsel %vm2548, %v4498, 0
    %v4522 = vsel %vm2548, %v4499, 0
    %v4525 = vsel %vm2548, %v4500, 0
    %v4528 = vsel %vm2548, %v4501, 0
    %v4531 = vsel %vm2548, %v4502, 0
    %v4534 = vsel %vm2548, %v4503, 0
    %v4537 = vsel %vm2548, %v4504, 0
    %v4540 = vsel %vm2548, %v4505, 0
    %v4543 = vsel %vm2548, %v4506, 0
    %v4546 = vsel %vm2548, %v4507, 0
    %v4549 = vsel %vm2548, %v4508, 0
    %v4552 = vsel %vm2548, %v4509, 0
    %4554 = vmatprep.subr.mxu0 0.0
    %4555 = vmatpush1.msra.mxu0 %v4511
    %4556 = vmatprep.subr.mxu0 0.0
    %4557 = vmatpush1.msra.mxu0 %v4512
    %4558 = vmatprep.subr.mxu0 0.0
    %4559 = vmatpush1.msra.mxu0 %v4513
    %4560 = vmatprep.subr.mxu0 0.0
    %4561 = vmatpush1.msra.mxu0 %v4514
    %4562 = vmatprep.subr.mxu0 0.0
    %4563 = vmatpush1.msra.mxu0 0.0
    %4564 = vmatprep.subr.mxu0 0.0
    %4565 = vmatpush1.msra.mxu0 0.0
    %4566 = vmatprep.subr.mxu0 0.0
    %4567 = vmatpush1.msra.mxu0 0.0
    %4568 = vmatprep.subr.mxu0 0.0
    %4569 = vmatpush1.msra.mxu0 0.0
    %4570 = vmatprep.subr.mxu0 0.0
    %4571 = vmatpush1.msra.mxu0 0.0
    %4572 = vmatprep.subr.mxu0 0.0
    %4573 = vmatpush1.msra.mxu0 0.0
    %4574 = vmatprep.subr.mxu0 0.0
    %4575 = vmatpush1.msra.mxu0 0.0
    %4576 = vmatprep.subr.mxu0 0.0
    %4577 = vmatpush1.msra.mxu0 0.0
    %4578 = vmatprep.subr.mxu0 0.0
    %4579 = vmatpush1.msra.mxu0 0.0
    %4580 = vmatprep.subr.mxu0 0.0
    %4581 = vmatpush1.msra.mxu0 0.0
    %4582 = vmatprep.subr.mxu0 0.0
    %4583 = vmatpush1.msra.mxu0 0.0
    %4584 = vmatprep.subr.mxu0 0.0
    %4585 = vmatpush1.msra.mxu0 0.0
    %4586 = vmatprep.subr.mxu0 0.0
    %4587 = vmatpush1.msra.mxu0 0.0
    %4588 = vmatprep.subr.mxu0 0.0
    %4589 = vmatpush1.msra.mxu0 0.0
    %4590 = vmatprep.subr.mxu0 0.0
    %4591 = vmatpush1.msra.mxu0 0.0
    %4592 = vmatprep.subr.mxu0 0.0
    %4593 = vmatpush1.msra.mxu0 0.0
    %4594 = vmatprep.subr.mxu0 0.0
    %4595 = vmatpush1.msra.mxu0 0.0
    %4596 = vmatprep.subr.mxu0 0.0
    %4597 = vmatpush1.msra.mxu0 0.0
    %4598 = vmatprep.subr.mxu0 0.0
    %4599 = vmatpush1.msra.mxu0 0.0
    %4600 = vmatprep.subr.mxu0 0.0
    %4601 = vmatpush1.msra.mxu0 0.0
    %4602 = vmatprep.subr.mxu0 0.0
    %4603 = vmatpush1.msra.mxu0 0.0
    %4604 = vmatprep.subr.mxu0 0.0
    %4605 = vmatpush1.msra.mxu0 0.0
    %4606 = vmatprep.subr.mxu0 0.0
    %4607 = vmatpush1.msra.mxu0 0.0
    %4608 = vmatprep.subr.mxu0 0.0
    %4609 = vmatpush1.msra.mxu0 0.0
    %4610 = vmatprep.subr.mxu0 0.0
    %4611 = vmatpush1.msra.mxu0 0.0
    %4612 = vmatprep.subr.mxu0 0.0
    %4613 = vmatpush1.msra.mxu0 0.0
    %4614 = vmatprep.subr.mxu0 0.0
    %4615 = vmatpush1.msra.mxu0 0.0
    %4616 = vmatprep.subr.mxu0 0.0
    %4617 = vmatpush1.msra.mxu0 0.0
    %4618 = vmatprep.mubr.f32.mxu0 0.0
    %4619 = vmatmul.mubr.f32.gmra.mrb[0].mxu0 %v4516
    %v4620 = vpop.f32.mrb[0].mxu0
    %v4621 = vadd.f32 0.0, %v4620
    %v4622 = vpop.f32.mrb[0].mxu0
    %4623 = vmatprep.mubr.f32.mxu0 0.0
    %4624 = vmatmul.mubr.f32.gmra.mrb[0].mxu0 %v4519
    %v4625 = vpop.f32.mrb[0].mxu0
    %v4626 = vadd.f32 0.0, %v4625
    %v4627 = vpop.f32.mrb[0].mxu0
    %4628 = vmatprep.mubr.f32.mxu0 0.0
    %4629 = vmatmul.mubr.f32.gmra.mrb[0].mxu0 %v4522
    %v4630 = vpop.f32.mrb[0].mxu0
    %v4631 = vadd.f32 0.0, %v4630
    %v4632 = vpop.f32.mrb[0].mxu0
    %4633 = vmatprep.mubr.f32.mxu0 0.0
    %4634 = vmatmul.mubr.f32.gmra.mrb[0].mxu0 %v4525
    %v4635 = vpop.f32.mrb[0].mxu0
    %v4636 = vadd.f32 0.0, %v4635
    %v4637 = vpop.f32.mrb[0].mxu0
    %4638 = vmatprep.mubr.f32.mxu0 0.0
    %4639 = vmatmul.mubr.f32.gmra.mrb[0].mxu0 %v4528
    %v4640 = vpop.f32.mrb[0].mxu0
    %v4641 = vadd.f32 0.0, %v4640
    %v4642 = vpop.f32.mrb[0].mxu0
    %4643 = vmatprep.mubr.f32.mxu0 0.0
    %4644 = vmatmul.mubr.f32.gmra.mrb[0].mxu0 %v4531
    %v4645 = vpop.f32.mrb[0].mxu0
    %v4646 = vadd.f32 0.0, %v4645
    %v4647 = vpop.f32.mrb[0].mxu0
    %4648 = vmatprep.mubr.f32.mxu0 0.0
    %4649 = vmatmul.mubr.f32.gmra.mrb[0].mxu0 %v4534
    %v4650 = vpop.f32.mrb[0].mxu0
    %v4651 = vadd.f32 0.0, %v4650
    %v4652 = vpop.f32.mrb[0].mxu0
    %4653 = vmatprep.mubr.f32.mxu0 0.0
    %4654 = vmatmul.mubr.f32.gmra.mrb[0].mxu0 %v4537
    %v4655 = vpop.f32.mrb[0].mxu0
    %v4656 = vadd.f32 0.0, %v4655
    %v4657 = vpop.f32.mrb[0].mxu0
    %4658 = vmatprep.mubr.f32.mxu0 0.0
    %4659 = vmatmul.mubr.f32.gmra.mrb[0].mxu0 %v4540
    %v4660 = vpop.f32.mrb[0].mxu0
    %v4661 = vadd.f32 0.0, %v4660
    %v4662 = vpop.f32.mrb[0].mxu0
    %4663 = vmatprep.mubr.f32.mxu0 0.0
    %4664 = vmatmul.mubr.f32.gmra.mrb[0].mxu0 %v4543
    %v4665 = vpop.f32.mrb[0].mxu0
    %v4666 = vadd.f32 0.0, %v4665
    %v4667 = vpop.f32.mrb[0].mxu0
    %4668 = vmatprep.mubr.f32.mxu0 0.0
    %4669 = vmatmul.mubr.f32.gmra.mrb[0].mxu0 %v4546
    %v4670 = vpop.f32.mrb[0].mxu0
    %v4671 = vadd.f32 0.0, %v4670
    %v4672 = vpop.f32.mrb[0].mxu0
    %4673 = vmatprep.mubr.f32.mxu0 0.0
    %4674 = vmatmul.mubr.f32.gmra.mrb[0].mxu0 %v4549
    %v4675 = vpop.f32.mrb[0].mxu0
    %v4676 = vadd.f32 0.0, %v4675
    %v4677 = vpop.f32.mrb[0].mxu0
    %4678 = vmatprep.mubr.f32.mxu0 0.0
    %4679 = vmatmul.mubr.f32.gmra.mrb[0].mxu0 %v4552
    %v4680 = vpop.f32.mrb[0].mxu0
    %v4681 = vadd.f32 0.0, %v4680
    %v4682 = vpop.f32.mrb[0].mxu0
    %4683 = vdwg.mxu0
    %v4684 = vadd.f32 %v4419, %v4621
    %v4685 = vadd.f32 %v4420, %v4626
    %v4686 = vadd.f32 %v4421, %v4631
    %v4687 = vadd.f32 %v4422, %v4636
    %v4688 = vadd.f32 %v4423, %v4641
    %v4689 = vadd.f32 %v4424, %v4646
    %v4690 = vadd.f32 %v4425, %v4651
    %v4691 = vadd.f32 %v4426, %v4656
    %v4692 = vadd.f32 %v4427, %v4661
    %v4693 = vadd.f32 %v4428, %v4666
    %v4694 = vadd.f32 %v4429, %v4671
    %v4695 = vadd.f32 %v4430, %v4676
    %v4696 = vadd.f32 %v4431, %v4681
    %v4697 = vld [vmem:[#allocation3 + $0x10] sm:$0xff]
    %v4698 = vld [vmem:[#allocation3 + $0x18] sm:$0xff]
    %v4699 = vld [vmem:[#allocation3 + $0x20] sm:$0xff]
    %v4700 = vld [vmem:[#allocation3 + $0x28] sm:$0xff]
    %v4701 = vld [vmem:[#allocation3 + $0x30] sm:$0xff]
    %v4702 = vld [vmem:[#allocation3 + $0x38] sm:$0xff]
    %v4703 = vld [vmem:[#allocation3 + $0x40] sm:$0xff]
    %v4704 = vld [vmem:[#allocation3 + $0x48] sm:$0xff]
    %v4705 = vld [vmem:[#allocation3 + $0x50] sm:$0xff]
    %v4706 = vld [vmem:[#allocation3 + $0x58] sm:$0xff]
    %v4707 = vld [vmem:[#allocation3 + $0x60] sm:$0xff]
    %v4708 = vld [vmem:[#allocation3 + $0x68] sm:$0xff]
    %v4709 = vld [vmem:[#allocation3 + $0x70] sm:$0x3]
    %4710 = vset.pattern.permute.xlu0 8
    %4711 = vperm.xlu0 %4710, %v2591
    %v4712 = vpop.permute.xlu0 %4711
    %4714 = vset.pattern.permute.xlu0 8
    %4715 = vperm.xlu0 %4714, %v2592
    %v4716 = vpop.permute.xlu0 %4715
    %4718 = vset.pattern.permute.xlu0 8
    %4719 = vperm.xlu0 %4718, %v2593
    %v4720 = vpop.permute.xlu0 %4719
    %4722 = vset.pattern.permute.xlu0 8
    %4723 = vperm.xlu0 %4722, %v2594
    %v4724 = vpop.permute.xlu0 %4723
    %4726 = vset.pattern.permute.xlu0 8
    %4727 = vperm.xlu0 %4726, %v2595
    %v4728 = vpop.permute.xlu0 %4727
    %4730 = vset.pattern.permute.xlu0 8
    %4731 = vperm.xlu0 %4730, %v2596
    %v4732 = vpop.permute.xlu0 %4731
    %4734 = vset.pattern.permute.xlu0 8
    %4735 = vperm.xlu0 %4734, %v2597
    %v4736 = vpop.permute.xlu0 %4735
    %4738 = vset.pattern.permute.xlu0 8
    %4739 = vperm.xlu0 %4738, %v2598
    %v4740 = vpop.permute.xlu0 %4739
    %4742 = vset.pattern.permute.xlu0 8
    %4743 = vperm.xlu0 %4742, %v2599
    %v4744 = vpop.permute.xlu0 %4743
    %4746 = vset.pattern.permute.xlu0 8
    %4747 = vperm.xlu0 %4746, %v2600
    %v4748 = vpop.permute.xlu0 %4747
    %4750 = vset.pattern.permute.xlu0 8
    %4751 = vperm.xlu0 %4750, %v2601
    %v4752 = vpop.permute.xlu0 %4751
    %4754 = vset.pattern.permute.xlu0 8
    %4755 = vperm.xlu0 %4754, %v2602
    %v4756 = vpop.permute.xlu0 %4755
    %4758 = vset.pattern.permute.xlu0 8
    %4759 = vperm.xlu0 %4758, %v2603
    %v4760 = vpop.permute.xlu0 %4759
    %v4762 = vmul.f32 %v4697, %v4712
    %v4763 = vmul.f32 %v4698, %v4716
    %v4764 = vmul.f32 %v4699, %v4720
    %v4765 = vmul.f32 %v4700, %v4724
    %v4766 = vmul.f32 %v4701, %v4728
    %v4767 = vmul.f32 %v4702, %v4732
    %v4768 = vmul.f32 %v4703, %v4736
    %v4769 = vmul.f32 %v4704, %v4740
    %v4770 = vmul.f32 %v4705, %v4744
    %v4771 = vmul.f32 %v4706, %v4748
    %v4772 = vmul.f32 %v4707, %v4752
    %v4773 = vmul.f32 %v4708, %v4756
    %v4774 = vmul.f32 %v4709, %v4760
    %s4775 = scalar_lea.vmem [#allocation9], 256
    %v4776 = vld [vmem:[%s4775] sm:$0xff]
    %v4777 = vld [vmem:[%s4775 + $0x8] sm:$0xff]
    %v4778 = vld [vmem:[%s4775 + $0x10] sm:$0xff]
    %v4779 = vld [vmem:[%s4775 + $0x18] sm:$0xff]
    %v4781 = vsel %vm2548, %v4762, 0
    %v4784 = vsel %vm2548, %v4763, 0
    %v4787 = vsel %vm2548, %v4764, 0
    %v4790 = vsel %vm2548, %v4765, 0
    %v4793 = vsel %vm2548, %v4766, 0
    %v4796 = vsel %vm2548, %v4767, 0
    %v4799 = vsel %vm2548, %v4768, 0
    %v4802 = vsel %vm2548, %v4769, 0
    %v4805 = vsel %vm2548, %v4770, 0
    %v4808 = vsel %vm2548, %v4771, 0
    %v4811 = vsel %vm2548, %v4772, 0
    %v4814 = vsel %vm2548, %v4773, 0
    %v4817 = vsel %vm2548, %v4774, 0
    %4819 = vmatprep.subr.mxu0 0.0
    %4820 = vmatpush1.msra.mxu0 %v4776
    %4821 = vmatprep.subr.mxu0 0.0
    %4822 = vmatpush1.msra.mxu0 %v4777
    %4823 = vmatprep.subr.mxu0 0.0
    %4824 = vmatpush1.msra.mxu0 %v4778
    %4825 = vmatprep.subr.mxu0 0.0
    %4826 = vmatpush1.msra.mxu0 %v4779
    %4827 = vmatprep.subr.mxu0 0.0
    %4828 = vmatpush1.msra.mxu0 0.0
    %4829 = vmatprep.subr.mxu0 0.0
    %4830 = vmatpush1.msra.mxu0 0.0
    %4831 = vmatprep.subr.mxu0 0.0
    %4832 = vmatpush1.msra.mxu0 0.0
    %4833 = vmatprep.subr.mxu0 0.0
    %4834 = vmatpush1.msra.mxu0 0.0
    %4835 = vmatprep.subr.mxu0 0.0
    %4836 = vmatpush1.msra.mxu0 0.0
    %4837 = vmatprep.subr.mxu0 0.0
    %4838 = vmatpush1.msra.mxu0 0.0
    %4839 = vmatprep.subr.mxu0 0.0
    %4840 = vmatpush1.msra.mxu0 0.0
    %4841 = vmatprep.subr.mxu0 0.0
    %4842 = vmatpush1.msra.mxu0 0.0
    %4843 = vmatprep.subr.mxu0 0.0
    %4844 = vmatpush1.msra.mxu0 0.0
    %4845 = vmatprep.subr.mxu0 0.0
    %4846 = vmatpush1.msra.mxu0 0.0
    %4847 = vmatprep.subr.mxu0 0.0
    %4848 = vmatpush1.msra.mxu0 0.0
    %4849 = vmatprep.subr.mxu0 0.0
    %4850 = vmatpush1.msra.mxu0 0.0
    %4851 = vmatprep.subr.mxu0 0.0
    %4852 = vmatpush1.msra.mxu0 0.0
    %4853 = vmatprep.subr.mxu0 0.0
    %4854 = vmatpush1.msra.mxu0 0.0
    %4855 = vmatprep.subr.mxu0 0.0
    %4856 = vmatpush1.msra.mxu0 0.0
    %4857 = vmatprep.subr.mxu0 0.0
    %4858 = vmatpush1.msra.mxu0 0.0
    %4859 = vmatprep.subr.mxu0 0.0
    %4860 = vmatpush1.msra.mxu0 0.0
    %4861 = vmatprep.subr.mxu0 0.0
    %4862 = vmatpush1.msra.mxu0 0.0
    %4863 = vmatprep.subr.mxu0 0.0
    %4864 = vmatpush1.msra.mxu0 0.0
    %4865 = vmatprep.subr.mxu0 0.0
    %4866 = vmatpush1.msra.mxu0 0.0
    %4867 = vmatprep.subr.mxu0 0.0
    %4868 = vmatpush1.msra.mxu0 0.0
    %4869 = vmatprep.subr.mxu0 0.0
    %4870 = vmatpush1.msra.mxu0 0.0
    %4871 = vmatprep.subr.mxu0 0.0
    %4872 = vmatpush1.msra.mxu0 0.0
    %4873 = vmatprep.subr.mxu0 0.0
    %4874 = vmatpush1.msra.mxu0 0.0
    %4875 = vmatprep.subr.mxu0 0.0
    %4876 = vmatpush1.msra.mxu0 0.0
    %4877 = vmatprep.subr.mxu0 0.0
    %4878 = vmatpush1.msra.mxu0 0.0
    %4879 = vmatprep.subr.mxu0 0.0
    %4880 = vmatpush1.msra.mxu0 0.0
    %4881 = vmatprep.subr.mxu0 0.0
    %4882 = vmatpush1.msra.mxu0 0.0
    %4883 = vmatprep.mubr.f32.mxu0 0.0
    %4884 = vmatmul.mubr.f32.gmra.mrb[0].mxu0 %v4781
    %v4885 = vpop.f32.mrb[0].mxu0
    %v4886 = vadd.f32 0.0, %v4885
    %v4887 = vpop.f32.mrb[0].mxu0
    %4888 = vmatprep.mubr.f32.mxu0 0.0
    %4889 = vmatmul.mubr.f32.gmra.mrb[0].mxu0 %v4784
    %v4890 = vpop.f32.mrb[0].mxu0
    %v4891 = vadd.f32 0.0, %v4890
    %v4892 = vpop.f32.mrb[0].mxu0
    %4893 = vmatprep.mubr.f32.mxu0 0.0
    %4894 = vmatmul.mubr.f32.gmra.mrb[0].mxu0 %v4787
    %v4895 = vpop.f32.mrb[0].mxu0
    %v4896 = vadd.f32 0.0, %v4895
    %v4897 = vpop.f32.mrb[0].mxu0
    %4898 = vmatprep.mubr.f32.mxu0 0.0
    %4899 = vmatmul.mubr.f32.gmra.mrb[0].mxu0 %v4790
    %v4900 = vpop.f32.mrb[0].mxu0
    %v4901 = vadd.f32 0.0, %v4900
    %v4902 = vpop.f32.mrb[0].mxu0
    %4903 = vmatprep.mubr.f32.mxu0 0.0
    %4904 = vmatmul.mubr.f32.gmra.mrb[0].mxu0 %v4793
    %v4905 = vpop.f32.mrb[0].mxu0
    %v4906 = vadd.f32 0.0, %v4905
    %v4907 = vpop.f32.mrb[0].mxu0
    %4908 = vmatprep.mubr.f32.mxu0 0.0
    %4909 = vmatmul.mubr.f32.gmra.mrb[0].mxu0 %v4796
    %v4910 = vpop.f32.mrb[0].mxu0
    %v4911 = vadd.f32 0.0, %v4910
    %v4912 = vpop.f32.mrb[0].mxu0
    %4913 = vmatprep.mubr.f32.mxu0 0.0
    %4914 = vmatmul.mubr.f32.gmra.mrb[0].mxu0 %v4799
    %v4915 = vpop.f32.mrb[0].mxu0
    %v4916 = vadd.f32 0.0, %v4915
    %v4917 = vpop.f32.mrb[0].mxu0
    %4918 = vmatprep.mubr.f32.mxu0 0.0
    %4919 = vmatmul.mubr.f32.gmra.mrb[0].mxu0 %v4802
    %v4920 = vpop.f32.mrb[0].mxu0
    %v4921 = vadd.f32 0.0, %v4920
    %v4922 = vpop.f32.mrb[0].mxu0
    %4923 = vmatprep.mubr.f32.mxu0 0.0
    %4924 = vmatmul.mubr.f32.gmra.mrb[0].mxu0 %v4805
    %v4925 = vpop.f32.mrb[0].mxu0
    %v4926 = vadd.f32 0.0, %v4925
    %v4927 = vpop.f32.mrb[0].mxu0
    %4928 = vmatprep.mubr.f32.mxu0 0.0
    %4929 = vmatmul.mubr.f32.gmra.mrb[0].mxu0 %v4808
    %v4930 = vpop.f32.mrb[0].mxu0
    %v4931 = vadd.f32 0.0, %v4930
    %v4932 = vpop.f32.mrb[0].mxu0
    %4933 = vmatprep.mubr.f32.mxu0 0.0
    %4934 = vmatmul.mubr.f32.gmra.mrb[0].mxu0 %v4811
    %v4935 = vpop.f32.mrb[0].mxu0
    %v4936 = vadd.f32 0.0, %v4935
    %v4937 = vpop.f32.mrb[0].mxu0
    %4938 = vmatprep.mubr.f32.mxu0 0.0
    %4939 = vmatmul.mubr.f32.gmra.mrb[0].mxu0 %v4814
    %v4940 = vpop.f32.mrb[0].mxu0
    %v4941 = vadd.f32 0.0, %v4940
    %v4942 = vpop.f32.mrb[0].mxu0
    %4943 = vmatprep.mubr.f32.mxu0 0.0
    %4944 = vmatmul.mubr.f32.gmra.mrb[0].mxu0 %v4817
    %v4945 = vpop.f32.mrb[0].mxu0
    %v4946 = vadd.f32 0.0, %v4945
    %v4947 = vpop.f32.mrb[0].mxu0
    %4948 = vdwg.mxu0
    %v4949 = vadd.f32 %v4684, %v4886
    %v4950 = vadd.f32 %v4685, %v4891
    %v4951 = vadd.f32 %v4686, %v4896
    %v4952 = vadd.f32 %v4687, %v4901
    %v4953 = vadd.f32 %v4688, %v4906
    %v4954 = vadd.f32 %v4689, %v4911
    %v4955 = vadd.f32 %v4690, %v4916
    %v4956 = vadd.f32 %v4691, %v4921
    %v4957 = vadd.f32 %v4692, %v4926
    %v4958 = vadd.f32 %v4693, %v4931
    %v4959 = vadd.f32 %v4694, %v4936
    %v4960 = vadd.f32 %v4695, %v4941
    %v4961 = vadd.f32 %v4696, %v4946
    %v4962 = vld [vmem:[#allocation11] sm:$0x1]
    %v4964 = vlaneseq
    %v4965 = vshrl.u32 %v4964, 7
    %v4966 = vsub.s32 0, %v4965
    %v4967 = vrot.slane %v4962, %v4966
    %v4969 = vadd.f32 %v4949, %v4967
    %v4970 = vadd.f32 %v4950, %v4967
    %v4971 = vadd.f32 %v4951, %v4967
    %v4972 = vadd.f32 %v4952, %v4967
    %v4973 = vadd.f32 %v4953, %v4967
    %v4974 = vadd.f32 %v4954, %v4967
    %v4975 = vadd.f32 %v4955, %v4967
    %v4976 = vadd.f32 %v4956, %v4967
    %v4977 = vadd.f32 %v4957, %v4967
    %v4978 = vadd.f32 %v4958, %v4967
    %v4979 = vadd.f32 %v4959, %v4967
    %v4980 = vadd.f32 %v4960, %v4967
    %v4981 = vadd.f32 %v4961, %v4967
    %v4982 = vmax.f32 %v4969, 0.0
    %v4983 = vmax.f32 %v4970, 0.0
    %v4984 = vmax.f32 %v4971, 0.0
    %v4985 = vmax.f32 %v4972, 0.0
    %v4986 = vmax.f32 %v4973, 0.0
    %v4987 = vmax.f32 %v4974, 0.0
    %v4988 = vmax.f32 %v4975, 0.0
    %v4989 = vmax.f32 %v4976, 0.0
    %v4990 = vmax.f32 %v4977, 0.0
    %v4991 = vmax.f32 %v4978, 0.0
    %v4992 = vmax.f32 %v4979, 0.0
    %v4993 = vmax.f32 %v4980, 0.0
    %v4994 = vmax.f32 %v4981, 0.0
    %vm4995 = vcmask 523264
    %4996 = vst.msk [vmem:[%s6] sm:$0xff] %vm4995, %v4982
    %4997 = vst.msk [vmem:[%s6 + $0x8] sm:$0xff] %vm4995, %v4983
    %4998 = vst.msk [vmem:[%s6 + $0x10] sm:$0xff] %vm4995, %v4984
    %4999 = vst.msk [vmem:[%s6 + $0x18] sm:$0xff] %vm4995, %v4985
    %5000 = vst.msk [vmem:[%s6 + $0x20] sm:$0xff] %vm4995, %v4986
    %5001 = vst.msk [vmem:[%s6 + $0x28] sm:$0xff] %vm4995, %v4987
    %5002 = vst.msk [vmem:[%s6 + $0x30] sm:$0xff] %vm4995, %v4988
    %5003 = vst.msk [vmem:[%s6 + $0x38] sm:$0xff] %vm4995, %v4989
    %5004 = vst.msk [vmem:[%s6 + $0x40] sm:$0xff] %vm4995, %v4990
    %5005 = vst.msk [vmem:[%s6 + $0x48] sm:$0xff] %vm4995, %v4991
    %5006 = vst.msk [vmem:[%s6 + $0x50] sm:$0xff] %vm4995, %v4992
    %5007 = vst.msk [vmem:[%s6 + $0x58] sm:$0xff] %vm4995, %v4993
    %vm5008 = vcmask 517120
    %5009 = vst.msk [vmem:[%s6 + $0x60] sm:$0x3] %vm5008, %v4994
    // Predicated region
    $region46: #{dqn_forward.2} parent=1 // pred_check
      _
    $region47: #{dqn_forward.2} parent=1 // pred_check_branch
      %5011 = sbr.rel (0) target = $region49
    $region48: #{dqn_forward.2} parent=1 // pred_region
      _
    $region49: #{dqn_forward.2} parent=1 // pred_fallthru
      _
    // Predicated region
    $region50: #{dqn_forward.2} parent=1 // pred_check
      _
    $region51: #{dqn_forward.2} parent=1 // pred_check_branch
      %5013 = sbr.rel (0) target = $region53
    $region52: #{dqn_forward.2} parent=1 // pred_region
      _
    $region53: #{dqn_forward.2} parent=1 // pred_fallthru
      _
    %5014 = vsyncpa [#allocation5], 1
    %5015 = vsyncpa [#allocation7], 1
    %5016 = vsyncpa [#allocation10], 1

// kernel: dqn_forward.3
$region0: #{dqn_forward.3}
  #allocation0 [shape = 'u32[]', space=smem, size = 0x4, offset = 0x4, fixed_abs, tag = 'smem constant byte address 0x4 - core index']
  #allocation1 [shape = 'u32[144,128]{1,0:T(1,128)}', space=vmem, size = 0x12000, scoped, tag = 'internal scratch']
  %s0 = inlined_call_operand.vmem [shape: f32[2,3136], index: 0, kind: input, shape index: {}]
  %s1 = inlined_call_operand.hbm [shape: bf16[3136,512], index: 1, kind: input, shape index: {}]
  %s2 = inlined_call_operand.hbm [shape: f32[1,512], index: 2, kind: input, shape index: {}]
  %s3 = inlined_call_operand.hbm [shape: bf16[512,640], index: 3, kind: input, shape index: {}]
  %s4 = inlined_call_operand.hbm [shape: f32[1,640], index: 4, kind: input, shape index: {}]
  %s5 = inlined_call_operand.hbm [shape: f32[2,640], index: 5, kind: output, shape index: {}]
  %s6 = sld [smem:[#allocation0]]
  $region46: #{dqn_forward.3} parent=0
    _
  %s8 = ssub.s32 1, %s6
  %s9 = scalar_select 0, %s8, %s6
  $region1: #{dqn_forward.3} parent=0
    #allocation2 [shape = 'u8[3211264]{0}', space=vmem, size = 0x310000, scoped, tag = 'input window, operand 1, single buffered']
    #allocation3 [shape = 's32[1]{0}', space=sflag, size = 0x4, scoped, tag = 'scoped memory for dqn_forward.3']
    #allocation4 [shape = 's32[1]{0}', space=sflag, size = 0x4, scoped, tag = 'scoped memory for dqn_forward.3']
    #allocation5 [shape = 'u8[2048]{0}', space=vmem, size = 0x800, scoped, tag = 'input window, operand 2, single buffered']
    #allocation6 [shape = 's32[1]{0}', space=sflag, size = 0x4, scoped, tag = 'scoped memory for dqn_forward.3']
    #allocation7 [shape = 'u8[655360]{0}', space=vmem, size = 0xa0000, scoped, tag = 'input window, operand 3, single buffered']
    #allocation8 [shape = 'u8[2560]{0}', space=vmem, size = 0xc00, scoped, tag = 'input window, operand 4, single buffered']
    #allocation9 [shape = 's32[1]{0}', space=sflag, size = 0x4, scoped, tag = 'scoped memory for dqn_forward.3']
    #allocation10 [shape = 'u8[5120]{0}', space=vmem, size = 0x1400, scoped, tag = 'output window, operand 0, single buffered']
    %10 = vsyncpa [#allocation3], 0
    %11 = vsyncpa [#allocation6], 0
    %12 = vsyncpa [#allocation9], 0
    %13 = vsyncpa [#allocation4], 0
    // Predicated region
    $region2: #{dqn_forward.3} parent=1 // pred_check
      _
    $region3: #{dqn_forward.3} parent=1 // pred_check_branch
      %15 = sbr.rel (0) target = $region5
    $region4: #{dqn_forward.3} parent=1 // pred_region
      _
    $region5: #{dqn_forward.3} parent=1 // pred_fallthru
      _
    // Predicated region
    $region6: #{dqn_forward.3} parent=1 // pred_check
      _
    $region7: #{dqn_forward.3} parent=1 // pred_check_branch
      %17 = sbr.rel (0) target = $region9
    $region8: #{dqn_forward.3} parent=1 // pred_region
      %s19 = ssub.s32 100352, 100352
      %20 = vsyncadd [#allocation3], %s19
      %s21 = sshll.u32 [#allocation2], 4
      %s22 = int_to_ptr.vmem [resolvable:$true] %s21
      %27 = dma.hbm_to_vmem [thread:$0]  %s1, 100352, %s22, [#allocation3], 256, 256, 16
    $region9: #{dqn_forward.3} parent=1 // pred_fallthru
      _
    // Predicated region
    $region10: #{dqn_forward.3} parent=1 // pred_check
      _
    $region11: #{dqn_forward.3} parent=1 // pred_check_branch
      %29 = sbr.rel (0) target = $region13
    $region12: #{dqn_forward.3} parent=1 // pred_region
      %s31 = ssub.s32 64, 64
      %32 = vsyncadd [#allocation6], %s31
      %s34 = sshll.u32 [#allocation5], 4
      %s35 = int_to_ptr.vmem [resolvable:$true] %s34
      %37 = dma.hbm_to_vmem [thread:$0]  %s2, 64, %s35, [#allocation6]
    $region13: #{dqn_forward.3} parent=1 // pred_fallthru
      _
    // Predicated region
    $region14: #{dqn_forward.3} parent=1 // pred_check
      _
    $region15: #{dqn_forward.3} parent=1 // pred_check_branch
      %39 = sbr.rel (0) target = $region17
    $region16: #{dqn_forward.3} parent=1 // pred_region
      %s41 = ssub.s32 20480, 20480
      %42 = vsyncadd [#allocation6], %s41
      %s43 = sshll.u32 [#allocation7], 4
      %s44 = int_to_ptr.vmem [resolvable:$true] %s43
      %49 = dma.hbm_to_vmem [thread:$0]  %s3, 20480, %s44, [#allocation6], 320, 320, 20
    $region17: #{dqn_forward.3} parent=1 // pred_fallthru
      _
    // Predicated region
    $region18: #{dqn_forward.3} parent=1 // pred_check
      _
    $region19: #{dqn_forward.3} parent=1 // pred_check_branch
      %51 = sbr.rel (0) target = $region21
    $region20: #{dqn_forward.3} parent=1 // pred_region
      %s53 = ssub.s32 80, 80
      %54 = vsyncadd [#allocation9], %s53
      %s56 = sshll.u32 [#allocation8], 4
      %s57 = int_to_ptr.vmem [resolvable:$true] %s56
      %59 = dma.hbm_to_vmem [thread:$0]  %s4, 80, %s57, [#allocation9]
    $region21: #{dqn_forward.3} parent=1 // pred_fallthru
      _
    // Predicated region
    $region22: #{dqn_forward.3} parent=1 // pred_check
      _
    $region23: #{dqn_forward.3} parent=1 // pred_check_branch
      %61 = sbr.rel (0) target = $region25
    $region24: #{dqn_forward.3} parent=1 // pred_region
      %62 = dma.done [#allocation3], 100352
    $region25: #{dqn_forward.3} parent=1 // pred_fallthru
      _
    // Predicated region
    $region26: #{dqn_forward.3} parent=1 // pred_check
      _
    $region27: #{dqn_forward.3} parent=1 // pred_check_branch
      %64 = sbr.rel (0) target = $region29
    $region28: #{dqn_forward.3} parent=1 // pred_region
      %65 = dma.done [#allocation6], 64
    $region29: #{dqn_forward.3} parent=1 // pred_fallthru
      _
    // Predicated region
    $region30: #{dqn_forward.3} parent=1 // pred_check
      _
    $region31: #{dqn_forward.3} parent=1 // pred_check_branch
      %67 = sbr.rel (0) target = $region33
    $region32: #{dqn_forward.3} parent=1 // pred_region
      %68 = dma.done [#allocation6], 20480
    $region33: #{dqn_forward.3} parent=1 // pred_fallthru
      _
    // Predicated region
    $region34: #{dqn_forward.3} parent=1 // pred_check
      _
    $region35: #{dqn_forward.3} parent=1 // pred_check_branch
      %70 = sbr.rel (0) target = $region37
    $region36: #{dqn_forward.3} parent=1 // pred_region
      %71 = dma.done [#allocation9], 80
    $region37: #{dqn_forward.3} parent=1 // pred_fallthru
      _
    %v73 = vld [vmem:[%s0] sm:$0xff]
    %v74 = vld [vmem:[%s0 + $0x8] sm:$0xff]
    %v75 = vld [vmem:[%s0 + $0x10] sm:$0xff]
    %v76 = vld [vmem:[%s0 + $0x18] sm:$0xff]
    %v77 = vld [vmem:[%s0 + $0x20] sm:$0xff]
    %v78 = vld [vmem:[%s0 + $0x28] sm:$0xff]
    %v79 = vld [vmem:[%s0 + $0x30] sm:$0x3]
    %v87 = vcombine.high %v73, %v73
    %v89 = vunpack.c.l.s4 1983009808
    %v90 = vunpack.c.0.s8 %v89
    %v91 = vlaneseq
    %v92 = vshrl.u32 %v91, 7
    %v93 = vsub.s32 %v90, %v92
    %v94 = vrot.slane %v73, %v93
    %v96 = vunpack.c.l.s4 1983009808
    %v97 = vunpack.c.0.s8 %v96
    %v98 = vlaneseq
    %v99 = vshrl.u32 %v98, 7
    %v100 = vsub.s32 %v97, %v99
    %v101 = vrot.slane %v87, %v100
    %v102 = vcombine.high %v94, %v94
    %v103 = vcombine.high %v101, %v101
    %v104 = vcombine.high %v74, %v74
    %v106 = vunpack.c.l.s4 1983009808
    %v107 = vunpack.c.0.s8 %v106
    %v108 = vlaneseq
    %v109 = vshrl.u32 %v108, 7
    %v110 = vsub.s32 %v107, %v109
    %v111 = vrot.slane %v74, %v110
    %v113 = vunpack.c.l.s4 1983009808
    %v114 = vunpack.c.0.s8 %v113
    %v115 = vlaneseq
    %v116 = vshrl.u32 %v115, 7
    %v117 = vsub.s32 %v114, %v116
    %v118 = vrot.slane %v104, %v117
    %v119 = vcombine.high %v111, %v111
    %v120 = vcombine.high %v118, %v118
    %v121 = vcombine.high %v75, %v75
    %v123 = vunpack.c.l.s4 1983009808
    %v124 = vunpack.c.0.s8 %v123
    %v125 = vlaneseq
    %v126 = vshrl.u32 %v125, 7
    %v127 = vsub.s32 %v124, %v126
    %v128 = vrot.slane %v75, %v127
    %v130 = vunpack.c.l.s4 1983009808
    %v131 = vunpack.c.0.s8 %v130
    %v132 = vlaneseq
    %v133 = vshrl.u32 %v132, 7
    %v134 = vsub.s32 %v131, %v133
    %v135 = vrot.slane %v121, %v134
    %v136 = vcombine.high %v128, %v128
    %v137 = vcombine.high %v135, %v135
    %v138 = vcombine.high %v76, %v76
    %v140 = vunpack.c.l.s4 1983009808
    %v141 = vunpack.c.0.s8 %v140
    %v142 = vlaneseq
    %v143 = vshrl.u32 %v142, 7
    %v144 = vsub.s32 %v141, %v143
    %v145 = vrot.slane %v76, %v144
    %v147 = vunpack.c.l.s4 1983009808
    %v148 = vunpack.c.0.s8 %v147
    %v149 = vlaneseq
    %v150 = vshrl.u32 %v149, 7
    %v151 = vsub.s32 %v148, %v150
    %v152 = vrot.slane %v138, %v151
    %v153 = vcombine.high %v145, %v145
    %v154 = vcombine.high %v152, %v152
    %v155 = vcombine.high %v77, %v77
    %v157 = vunpack.c.l.s4 1983009808
    %v158 = vunpack.c.0.s8 %v157
    %v159 = vlaneseq
    %v160 = vshrl.u32 %v159, 7
    %v161 = vsub.s32 %v158, %v160
    %v162 = vrot.slane %v77, %v161
    %v164 = vunpack.c.l.s4 1983009808
    %v165 = vunpack.c.0.s8 %v164
    %v166 = vlaneseq
    %v167 = vshrl.u32 %v166, 7
    %v168 = vsub.s32 %v165, %v167
    %v169 = vrot.slane %v155, %v168
    %v170 = vcombine.high %v162, %v162
    %v171 = vcombine.high %v169, %v169
    %v172 = vcombine.high %v78, %v78
    %v174 = vunpack.c.l.s4 1983009808
    %v175 = vunpack.c.0.s8 %v174
    %v176 = vlaneseq
    %v177 = vshrl.u32 %v176, 7
    %v178 = vsub.s32 %v175, %v177
    %v179 = vrot.slane %v78, %v178
    %v181 = vunpack.c.l.s4 1983009808
    %v182 = vunpack.c.0.s8 %v181
    %v183 = vlaneseq
    %v184 = vshrl.u32 %v183, 7
    %v185 = vsub.s32 %v182, %v184
    %v186 = vrot.slane %v172, %v185
    %v187 = vcombine.high %v179, %v179
    %v188 = vcombine.high %v186, %v186
    %v190 = vunpack.c.l.s4 1983009808
    %v191 = vunpack.c.0.s8 %v190
    %v192 = vlaneseq
    %v193 = vshrl.u32 %v192, 7
    %v194 = vsub.s32 %v191, %v193
    %v195 = vrot.slane %v79, %v194
    %v221 = vpack.c.bf16 %v94, %v94
    %v222 = vpack.c.bf16 %v102, %v102
    %v223 = vpack.c.bf16 %v101, %v101
    %v224 = vpack.c.bf16 %v103, %v103
    %v225 = vpack.c.bf16 %v111, %v111
    %v226 = vpack.c.bf16 %v119, %v119
    %v227 = vpack.c.bf16 %v118, %v118
    %v228 = vpack.c.bf16 %v120, %v120
    %v229 = vpack.c.bf16 %v128, %v128
    %v230 = vpack.c.bf16 %v136, %v136
    %v231 = vpack.c.bf16 %v135, %v135
    %v232 = vpack.c.bf16 %v137, %v137
    %v233 = vpack.c.bf16 %v145, %v145
    %v234 = vpack.c.bf16 %v153, %v153
    %v235 = vpack.c.bf16 %v152, %v152
    %v236 = vpack.c.bf16 %v154, %v154
    %v237 = vpack.c.bf16 %v162, %v162
    %v238 = vpack.c.bf16 %v170, %v170
    %v239 = vpack.c.bf16 %v169, %v169
    %v240 = vpack.c.bf16 %v171, %v171
    %v241 = vpack.c.bf16 %v179, %v179
    %v242 = vpack.c.bf16 %v187, %v187
    %v243 = vpack.c.bf16 %v186, %v186
    %v244 = vpack.c.bf16 %v188, %v188
    %v245 = vpack.c.bf16 %v195, %v195
    %v246 = vld [vmem:[#allocation2] sm:$0xff]
    %v247 = vld [vmem:[#allocation2 + $0x8] sm:$0xff]
    %v248 = vld [vmem:[#allocation2 + $0x10] sm:$0xff]
    %v249 = vld [vmem:[#allocation2 + $0x18] sm:$0xff]
    %v250 = vld [vmem:[#allocation2 + $0x20] sm:$0xff]
    %v251 = vld [vmem:[#allocation2 + $0x28] sm:$0xff]
    %v252 = vld [vmem:[#allocation2 + $0x30] sm:$0xff]
    %v253 = vld [vmem:[#allocation2 + $0x38] sm:$0xff]
    %v254 = vld [vmem:[#allocation2 + $0x40] sm:$0xff]
    %v255 = vld [vmem:[#allocation2 + $0x48] sm:$0xff]
    %v256 = vld [vmem:[#allocation2 + $0x50] sm:$0xff]
    %v257 = vld [vmem:[#allocation2 + $0x58] sm:$0xff]
    %v258 = vld [vmem:[#allocation2 + $0x60] sm:$0xff]
    %v259 = vld [vmem:[#allocation2 + $0x68] sm:$0xff]
    %v260 = vld [vmem:[#allocation2 + $0x70] sm:$0xff]
    %v261 = vld [vmem:[#allocation2 + $0x78] sm:$0xff]
    %v262 = vld [vmem:[#allocation2 + $0x80] sm:$0xff]
    %v263 = vld [vmem:[#allocation2 + $0x88] sm:$0xff]
    %v264 = vld [vmem:[#allocation2 + $0x90] sm:$0xff]
    %v265 = vld [vmem:[#allocation2 + $0x98] sm:$0xff]
    %v266 = vld [vmem:[#allocation2 + $0xa0] sm:$0xff]
    %v267 = vld [vmem:[#allocation2 + $0xa8] sm:$0xff]
    %v268 = vld [vmem:[#allocation2 + $0xb0] sm:$0xff]
    %v269 = vld [vmem:[#allocation2 + $0xb8] sm:$0xff]
    %v270 = vld [vmem:[#allocation2 + $0xc0] sm:$0xff]
    %v271 = vld [vmem:[#allocation2 + $0xc8] sm:$0xff]
    %v272 = vld [vmem:[#allocation2 + $0xd0] sm:$0xff]
    %v273 = vld [vmem:[#allocation2 + $0xd8] sm:$0xff]
    %v274 = vld [vmem:[#allocation2 + $0xe0] sm:$0xff]
    %v275 = vld [vmem:[#allocation2 + $0xe8] sm:$0xff]
    %v276 = vld [vmem:[#allocation2 + $0xf0] sm:$0xff]
    %v277 = vld [vmem:[#allocation2 + $0xf8] sm:$0xff]
    %v278 = vld [vmem:[#allocation2 + $0x100] sm:$0xff]
    %v279 = vld [vmem:[#allocation2 + $0x108] sm:$0xff]
    %v280 = vld [vmem:[#allocation2 + $0x110] sm:$0xff]
    %v281 = vld [vmem:[#allocation2 + $0x118] sm:$0xff]
    %v282 = vld [vmem:[#allocation2 + $0x120] sm:$0xff]
    %v283 = vld [vmem:[#allocation2 + $0x128] sm:$0xff]
    %v284 = vld [vmem:[#allocation2 + $0x130] sm:$0xff]
    %v285 = vld [vmem:[#allocation2 + $0x138] sm:$0xff]
    %v286 = vld [vmem:[#allocation2 + $0x140] sm:$0xff]
    %v287 = vld [vmem:[#allocation2 + $0x148] sm:$0xff]
    %v288 = vld [vmem:[#allocation2 + $0x150] sm:$0xff]
    %v289 = vld [vmem:[#allocation2 + $0x158] sm:$0xff]
    %v290 = vld [vmem:[#allocation2 + $0x160] sm:$0xff]
    %v291 = vld [vmem:[#allocation2 + $0x168] sm:$0xff]
    %v292 = vld [vmem:[#allocation2 + $0x170] sm:$0xff]
    %v293 = vld [vmem:[#allocation2 + $0x178] sm:$0xff]
    %v294 = vld [vmem:[#allocation2 + $0x180] sm:$0xff]
    %v295 = vld [vmem:[#allocation2 + $0x188] sm:$0xff]
    %v296 = vld [vmem:[#allocation2 + $0x190] sm:$0xff]
    %v297 = vld [vmem:[#allocation2 + $0x198] sm:$0xff]
    %v298 = vld [vmem:[#allocation2 + $0x1a0] sm:$0xff]
    %v299 = vld [vmem:[#allocation2 + $0x1a8] sm:$0xff]
    %v300 = vld [vmem:[#allocation2 + $0x1b0] sm:$0xff]
    %v301 = vld [vmem:[#allocation2 + $0x1b8] sm:$0xff]
    %v302 = vld [vmem:[#allocation2 + $0x1c0] sm:$0xff]
    %v303 = vld [vmem:[#allocation2 + $0x1c8] sm:$0xff]
    %v304 = vld [vmem:[#allocation2 + $0x1d0] sm:$0xff]
    %v305 = vld [vmem:[#allocation2 + $0x1d8] sm:$0xff]
    %v306 = vld [vmem:[#allocation2 + $0x1e0] sm:$0xff]
    %v307 = vld [vmem:[#allocation2 + $0x1e8] sm:$0xff]
    %v308 = vld [vmem:[#allocation2 + $0x1f0] sm:$0xff]
    %v309 = vld [vmem:[#allocation2 + $0x1f8] sm:$0xff]
    %v310 = vld [vmem:[#allocation2 + $0x200] sm:$0xff]
    %v311 = vld [vmem:[#allocation2 + $0x208] sm:$0xff]
    %v312 = vld [vmem:[#allocation2 + $0x210] sm:$0xff]
    %v313 = vld [vmem:[#allocation2 + $0x218] sm:$0xff]
    %v314 = vld [vmem:[#allocation2 + $0x220] sm:$0xff]
    %v315 = vld [vmem:[#allocation2 + $0x228] sm:$0xff]
    %v316 = vld [vmem:[#allocation2 + $0x230] sm:$0xff]
    %v317 = vld [vmem:[#allocation2 + $0x238] sm:$0xff]
    %v318 = vld [vmem:[#allocation2 + $0x240] sm:$0xff]
    %v319 = vld [vmem:[#allocation2 + $0x248] sm:$0xff]
    %v320 = vld [vmem:[#allocation2 + $0x250] sm:$0xff]
    %v321 = vld [vmem:[#allocation2 + $0x258] sm:$0xff]
    %v322 = vld [vmem:[#allocation2 + $0x260] sm:$0xff]
    %v323 = vld [vmem:[#allocation2 + $0x268] sm:$0xff]
    %v324 = vld [vmem:[#allocation2 + $0x270] sm:$0xff]
    %v325 = vld [vmem:[#allocation2 + $0x278] sm:$0xff]
    %v326 = vld [vmem:[#allocation2 + $0x280] sm:$0xff]
    %v327 = vld [vmem:[#allocation2 + $0x288] sm:$0xff]
    %v328 = vld [vmem:[#allocation2 + $0x290] sm:$0xff]
    %v329 = vld [vmem:[#allocation2 + $0x298] sm:$0xff]
    %v330 = vld [vmem:[#allocation2 + $0x2a0] sm:$0xff]
    %v331 = vld [vmem:[#allocation2 + $0x2a8] sm:$0xff]
    %v332 = vld [vmem:[#allocation2 + $0x2b0] sm:$0xff]
    %v333 = vld [vmem:[#allocation2 + $0x2b8] sm:$0xff]
    %v334 = vld [vmem:[#allocation2 + $0x2c0] sm:$0xff]
    %v335 = vld [vmem:[#allocation2 + $0x2c8] sm:$0xff]
    %v336 = vld [vmem:[#allocation2 + $0x2d0] sm:$0xff]
    %v337 = vld [vmem:[#allocation2 + $0x2d8] sm:$0xff]
    %v338 = vld [vmem:[#allocation2 + $0x2e0] sm:$0xff]
    %v339 = vld [vmem:[#allocation2 + $0x2e8] sm:$0xff]
    %v340 = vld [vmem:[#allocation2 + $0x2f0] sm:$0xff]
    %v341 = vld [vmem:[#allocation2 + $0x2f8] sm:$0xff]
    %v342 = vld [vmem:[#allocation2 + $0x300] sm:$0xff]
    %v343 = vld [vmem:[#allocation2 + $0x308] sm:$0xff]
    %v344 = vld [vmem:[#allocation2 + $0x310] sm:$0xff]
    %v345 = vld [vmem:[#allocation2 + $0x318] sm:$0xff]
    %v346 = vld [vmem:[#allocation2 + $0x320] sm:$0xff]
    %v347 = vld [vmem:[#allocation2 + $0x328] sm:$0xff]
    %v348 = vld [vmem:[#allocation2 + $0x330] sm:$0xff]
    %v349 = vld [vmem:[#allocation2 + $0x338] sm:$0xff]
    %v350 = vld [vmem:[#allocation2 + $0x340] sm:$0xff]
    %v351 = vld [vmem:[#allocation2 + $0x348] sm:$0xff]
    %v352 = vld [vmem:[#allocation2 + $0x350] sm:$0xff]
    %v353 = vld [vmem:[#allocation2 + $0x358] sm:$0xff]
    %v354 = vld [vmem:[#allocation2 + $0x360] sm:$0xff]
    %v355 = vld [vmem:[#allocation2 + $0x368] sm:$0xff]
    %v356 = vld [vmem:[#allocation2 + $0x370] sm:$0xff]
    %v357 = vld [vmem:[#allocation2 + $0x378] sm:$0xff]
    %v358 = vld [vmem:[#allocation2 + $0x380] sm:$0xff]
    %v359 = vld [vmem:[#allocation2 + $0x388] sm:$0xff]
    %v360 = vld [vmem:[#allocation2 + $0x390] sm:$0xff]
    %v361 = vld [vmem:[#allocation2 + $0x398] sm:$0xff]
    %v362 = vld [vmem:[#allocation2 + $0x3a0] sm:$0xff]
    %v363 = vld [vmem:[#allocation2 + $0x3a8] sm:$0xff]
    %v364 = vld [vmem:[#allocation2 + $0x3b0] sm:$0xff]
    %v365 = vld [vmem:[#allocation2 + $0x3b8] sm:$0xff]
    %v366 = vld [vmem:[#allocation2 + $0x3c0] sm:$0xff]
    %v367 = vld [vmem:[#allocation2 + $0x3c8] sm:$0xff]
    %v368 = vld [vmem:[#allocation2 + $0x3d0] sm:$0xff]
    %v369 = vld [vmem:[#allocation2 + $0x3d8] sm:$0xff]
    %v370 = vld [vmem:[#allocation2 + $0x3e0] sm:$0xff]
    %v371 = vld [vmem:[#allocation2 + $0x3e8] sm:$0xff]
    %v372 = vld [vmem:[#allocation2 + $0x3f0] sm:$0xff]
    %v373 = vld [vmem:[#allocation2 + $0x3f8] sm:$0xff]
    %v374 = vld [vmem:[#allocation2 + $0x400] sm:$0xff]
    %v375 = vld [vmem:[#allocation2 + $0x408] sm:$0xff]
    %v376 = vld [vmem:[#allocation2 + $0x410] sm:$0xff]
    %v377 = vld [vmem:[#allocation2 + $0x418] sm:$0xff]
    %v378 = vld [vmem:[#allocation2 + $0x420] sm:$0xff]
    %v379 = vld [vmem:[#allocation2 + $0x428] sm:$0xff]
    %v380 = vld [vmem:[#allocation2 + $0x430] sm:$0xff]
    %v381 = vld [vmem:[#allocation2 + $0x438] sm:$0xff]
    %v382 = vld [vmem:[#allocation2 + $0x440] sm:$0xff]
    %v383 = vld [vmem:[#allocation2 + $0x448] sm:$0xff]
    %v384 = vld [vmem:[#allocation2 + $0x450] sm:$0xff]
    %v385 = vld [vmem:[#allocation2 + $0x458] sm:$0xff]
    %v386 = vld [vmem:[#allocation2 + $0x460] sm:$0xff]
    %v387 = vld [vmem:[#allocation2 + $0x468] sm:$0xff]
    %v388 = vld [vmem:[#allocation2 + $0x470] sm:$0xff]
    %v389 = vld [vmem:[#allocation2 + $0x478] sm:$0xff]
    %v390 = vld [vmem:[#allocation2 + $0x480] sm:$0xff]
    %v391 = vld [vmem:[#allocation2 + $0x488] sm:$0xff]
    %v392 = vld [vmem:[#allocation2 + $0x490] sm:$0xff]
    %v393 = vld [vmem:[#allocation2 + $0x498] sm:$0xff]
    %v394 = vld [vmem:[#allocation2 + $0x4a0] sm:$0xff]
    %v395 = vld [vmem:[#allocation2 + $0x4a8] sm:$0xff]
    %v396 = vld [vmem:[#allocation2 + $0x4b0] sm:$0xff]
    %v397 = vld [vmem:[#allocation2 + $0x4b8] sm:$0xff]
    %v398 = vld [vmem:[#allocation2 + $0x4c0] sm:$0xff]
    %v399 = vld [vmem:[#allocation2 + $0x4c8] sm:$0xff]
    %v400 = vld [vmem:[#allocation2 + $0x4d0] sm:$0xff]
    %v401 = vld [vmem:[#allocation2 + $0x4d8] sm:$0xff]
    %v402 = vld [vmem:[#allocation2 + $0x4e0] sm:$0xff]
    %v403 = vld [vmem:[#allocation2 + $0x4e8] sm:$0xff]
    %v404 = vld [vmem:[#allocation2 + $0x4f0] sm:$0xff]
    %v405 = vld [vmem:[#allocation2 + $0x4f8] sm:$0xff]
    %v406 = vld [vmem:[#allocation2 + $0x500] sm:$0xff]
    %v407 = vld [vmem:[#allocation2 + $0x508] sm:$0xff]
    %v408 = vld [vmem:[#allocation2 + $0x510] sm:$0xff]
    %v409 = vld [vmem:[#allocation2 + $0x518] sm:$0xff]
    %v410 = vld [vmem:[#allocation2 + $0x520] sm:$0xff]
    %v411 = vld [vmem:[#allocation2 + $0x528] sm:$0xff]
    %v412 = vld [vmem:[#allocation2 + $0x530] sm:$0xff]
    %v413 = vld [vmem:[#allocation2 + $0x538] sm:$0xff]
    %v414 = vld [vmem:[#allocation2 + $0x540] sm:$0xff]
    %v415 = vld [vmem:[#allocation2 + $0x548] sm:$0xff]
    %v416 = vld [vmem:[#allocation2 + $0x550] sm:$0xff]
    %v417 = vld [vmem:[#allocation2 + $0x558] sm:$0xff]
    %v418 = vld [vmem:[#allocation2 + $0x560] sm:$0xff]
    %v419 = vld [vmem:[#allocation2 + $0x568] sm:$0xff]
    %v420 = vld [vmem:[#allocation2 + $0x570] sm:$0xff]
    %v421 = vld [vmem:[#allocation2 + $0x578] sm:$0xff]
    %v422 = vld [vmem:[#allocation2 + $0x580] sm:$0xff]
    %v423 = vld [vmem:[#allocation2 + $0x588] sm:$0xff]
    %v424 = vld [vmem:[#allocation2 + $0x590] sm:$0xff]
    %v425 = vld [vmem:[#allocation2 + $0x598] sm:$0xff]
    %v426 = vld [vmem:[#allocation2 + $0x5a0] sm:$0xff]
    %v427 = vld [vmem:[#allocation2 + $0x5a8] sm:$0xff]
    %v428 = vld [vmem:[#allocation2 + $0x5b0] sm:$0xff]
    %v429 = vld [vmem:[#allocation2 + $0x5b8] sm:$0xff]
    %v430 = vld [vmem:[#allocation2 + $0x5c0] sm:$0xff]
    %v431 = vld [vmem:[#allocation2 + $0x5c8] sm:$0xff]
    %v432 = vld [vmem:[#allocation2 + $0x5d0] sm:$0xff]
    %v433 = vld [vmem:[#allocation2 + $0x5d8] sm:$0xff]
    %v434 = vld [vmem:[#allocation2 + $0x5e0] sm:$0xff]
    %v435 = vld [vmem:[#allocation2 + $0x5e8] sm:$0xff]
    %v436 = vld [vmem:[#allocation2 + $0x5f0] sm:$0xff]
    %v437 = vld [vmem:[#allocation2 + $0x5f8] sm:$0xff]
    %v438 = vld [vmem:[#allocation2 + $0x600] sm:$0xff]
    %v439 = vld [vmem:[#allocation2 + $0x608] sm:$0xff]
    %v440 = vld [vmem:[#allocation2 + $0x610] sm:$0xff]
    %v441 = vld [vmem:[#allocation2 + $0x618] sm:$0xff]
    %v442 = vld [vmem:[#allocation2 + $0x620] sm:$0xff]
    %v443 = vld [vmem:[#allocation2 + $0x628] sm:$0xff]
    %v444 = vld [vmem:[#allocation2 + $0x630] sm:$0xff]
    %v445 = vld [vmem:[#allocation2 + $0x638] sm:$0xff]
    %v446 = vld [vmem:[#allocation2 + $0x640] sm:$0xff]
    %v447 = vld [vmem:[#allocation2 + $0x648] sm:$0xff]
    %v448 = vld [vmem:[#allocation2 + $0x650] sm:$0xff]
    %v449 = vld [vmem:[#allocation2 + $0x658] sm:$0xff]
    %v450 = vld [vmem:[#allocation2 + $0x660] sm:$0xff]
    %v451 = vld [vmem:[#allocation2 + $0x668] sm:$0xff]
    %v452 = vld [vmem:[#allocation2 + $0x670] sm:$0xff]
    %v453 = vld [vmem:[#allocation2 + $0x678] sm:$0xff]
    %v454 = vld [vmem:[#allocation2 + $0x680] sm:$0xff]
    %v455 = vld [vmem:[#allocation2 + $0x688] sm:$0xff]
    %v456 = vld [vmem:[#allocation2 + $0x690] sm:$0xff]
    %v457 = vld [vmem:[#allocation2 + $0x698] sm:$0xff]
    %v458 = vld [vmem:[#allocation2 + $0x6a0] sm:$0xff]
    %v459 = vld [vmem:[#allocation2 + $0x6a8] sm:$0xff]
    %v460 = vld [vmem:[#allocation2 + $0x6b0] sm:$0xff]
    %v461 = vld [vmem:[#allocation2 + $0x6b8] sm:$0xff]
    %v462 = vld [vmem:[#allocation2 + $0x6c0] sm:$0xff]
    %v463 = vld [vmem:[#allocation2 + $0x6c8] sm:$0xff]
    %v464 = vld [vmem:[#allocation2 + $0x6d0] sm:$0xff]
    %v465 = vld [vmem:[#allocation2 + $0x6d8] sm:$0xff]
    %v466 = vld [vmem:[#allocation2 + $0x6e0] sm:$0xff]
    %v467 = vld [vmem:[#allocation2 + $0x6e8] sm:$0xff]
    %v468 = vld [vmem:[#allocation2 + $0x6f0] sm:$0xff]
    %v469 = vld [vmem:[#allocation2 + $0x6f8] sm:$0xff]
    %v470 = vld [vmem:[#allocation2 + $0x700] sm:$0xff]
    %v471 = vld [vmem:[#allocation2 + $0x708] sm:$0xff]
    %v472 = vld [vmem:[#allocation2 + $0x710] sm:$0xff]
    %v473 = vld [vmem:[#allocation2 + $0x718] sm:$0xff]
    %v474 = vld [vmem:[#allocation2 + $0x720] sm:$0xff]
    %v475 = vld [vmem:[#allocation2 + $0x728] sm:$0xff]
    %v476 = vld [vmem:[#allocation2 + $0x730] sm:$0xff]
    %v477 = vld [vmem:[#allocation2 + $0x738] sm:$0xff]
    %v478 = vld [vmem:[#allocation2 + $0x740] sm:$0xff]
    %v479 = vld [vmem:[#allocation2 + $0x748] sm:$0xff]
    %v480 = vld [vmem:[#allocation2 + $0x750] sm:$0xff]
    %v481 = vld [vmem:[#allocation2 + $0x758] sm:$0xff]
    %v482 = vld [vmem:[#allocation2 + $0x760] sm:$0xff]
    %v483 = vld [vmem:[#allocation2 + $0x768] sm:$0xff]
    %v484 = vld [vmem:[#allocation2 + $0x770] sm:$0xff]
    %v485 = vld [vmem:[#allocation2 + $0x778] sm:$0xff]
    %v486 = vld [vmem:[#allocation2 + $0x780] sm:$0xff]
    %v487 = vld [vmem:[#allocation2 + $0x788] sm:$0xff]
    %v488 = vld [vmem:[#allocation2 + $0x790] sm:$0xff]
    %v489 = vld [vmem:[#allocation2 + $0x798] sm:$0xff]
    %v490 = vld [vmem:[#allocation2 + $0x7a0] sm:$0xff]
    %v491 = vld [vmem:[#allocation2 + $0x7a8] sm:$0xff]
    %v492 = vld [vmem:[#allocation2 + $0x7b0] sm:$0xff]
    %v493 = vld [vmem:[#allocation2 + $0x7b8] sm:$0xff]
    %v494 = vld [vmem:[#allocation2 + $0x7c0] sm:$0xff]
    %v495 = vld [vmem:[#allocation2 + $0x7c8] sm:$0xff]
    %v496 = vld [vmem:[#allocation2 + $0x7d0] sm:$0xff]
    %v497 = vld [vmem:[#allocation2 + $0x7d8] sm:$0xff]
    %v498 = vld [vmem:[#allocation2 + $0x7e0] sm:$0xff]
    %v499 = vld [vmem:[#allocation2 + $0x7e8] sm:$0xff]
    %v500 = vld [vmem:[#allocation2 + $0x7f0] sm:$0xff]
    %v501 = vld [vmem:[#allocation2 + $0x7f8] sm:$0xff]
    %v502 = vld [vmem:[#allocation2 + $0x800] sm:$0xff]
    %v503 = vld [vmem:[#allocation2 + $0x808] sm:$0xff]
    %v504 = vld [vmem:[#allocation2 + $0x810] sm:$0xff]
    %v505 = vld [vmem:[#allocation2 + $0x818] sm:$0xff]
    %v506 = vld [vmem:[#allocation2 + $0x820] sm:$0xff]
    %v507 = vld [vmem:[#allocation2 + $0x828] sm:$0xff]
    %v508 = vld [vmem:[#allocation2 + $0x830] sm:$0xff]
    %v509 = vld [vmem:[#allocation2 + $0x838] sm:$0xff]
    %v510 = vld [vmem:[#allocation2 + $0x840] sm:$0xff]
    %v511 = vld [vmem:[#allocation2 + $0x848] sm:$0xff]
    %v512 = vld [vmem:[#allocation2 + $0x850] sm:$0xff]
    %v513 = vld [vmem:[#allocation2 + $0x858] sm:$0xff]
    %v514 = vld [vmem:[#allocation2 + $0x860] sm:$0xff]
    %v515 = vld [vmem:[#allocation2 + $0x868] sm:$0xff]
    %v516 = vld [vmem:[#allocation2 + $0x870] sm:$0xff]
    %v517 = vld [vmem:[#allocation2 + $0x878] sm:$0xff]
    %v518 = vld [vmem:[#allocation2 + $0x880] sm:$0xff]
    %v519 = vld [vmem:[#allocation2 + $0x888] sm:$0xff]
    %v520 = vld [vmem:[#allocation2 + $0x890] sm:$0xff]
    %v521 = vld [vmem:[#allocation2 + $0x898] sm:$0xff]
    %v522 = vld [vmem:[#allocation2 + $0x8a0] sm:$0xff]
    %v523 = vld [vmem:[#allocation2 + $0x8a8] sm:$0xff]
    %v524 = vld [vmem:[#allocation2 + $0x8b0] sm:$0xff]
    %v525 = vld [vmem:[#allocation2 + $0x8b8] sm:$0xff]
    %v526 = vld [vmem:[#allocation2 + $0x8c0] sm:$0xff]
    %v527 = vld [vmem:[#allocation2 + $0x8c8] sm:$0xff]
    %v528 = vld [vmem:[#allocation2 + $0x8d0] sm:$0xff]
    %v529 = vld [vmem:[#allocation2 + $0x8d8] sm:$0xff]
    %v530 = vld [vmem:[#allocation2 + $0x8e0] sm:$0xff]
    %v531 = vld [vmem:[#allocation2 + $0x8e8] sm:$0xff]
    %v532 = vld [vmem:[#allocation2 + $0x8f0] sm:$0xff]
    %v533 = vld [vmem:[#allocation2 + $0x8f8] sm:$0xff]
    %v534 = vld [vmem:[#allocation2 + $0x900] sm:$0xff]
    %v535 = vld [vmem:[#allocation2 + $0x908] sm:$0xff]
    %v536 = vld [vmem:[#allocation2 + $0x910] sm:$0xff]
    %v537 = vld [vmem:[#allocation2 + $0x918] sm:$0xff]
    %v538 = vld [vmem:[#allocation2 + $0x920] sm:$0xff]
    %v539 = vld [vmem:[#allocation2 + $0x928] sm:$0xff]
    %v540 = vld [vmem:[#allocation2 + $0x930] sm:$0xff]
    %v541 = vld [vmem:[#allocation2 + $0x938] sm:$0xff]
    %v542 = vld [vmem:[#allocation2 + $0x940] sm:$0xff]
    %v543 = vld [vmem:[#allocation2 + $0x948] sm:$0xff]
    %v544 = vld [vmem:[#allocation2 + $0x950] sm:$0xff]
    %v545 = vld [vmem:[#allocation2 + $0x958] sm:$0xff]
    %v546 = vld [vmem:[#allocation2 + $0x960] sm:$0xff]
    %v547 = vld [vmem:[#allocation2 + $0x968] sm:$0xff]
    %v548 = vld [vmem:[#allocation2 + $0x970] sm:$0xff]
    %v549 = vld [vmem:[#allocation2 + $0x978] sm:$0xff]
    %v550 = vld [vmem:[#allocation2 + $0x980] sm:$0xff]
    %v551 = vld [vmem:[#allocation2 + $0x988] sm:$0xff]
    %v552 = vld [vmem:[#allocation2 + $0x990] sm:$0xff]
    %v553 = vld [vmem:[#allocation2 + $0x998] sm:$0xff]
    %v554 = vld [vmem:[#allocation2 + $0x9a0] sm:$0xff]
    %v555 = vld [vmem:[#allocation2 + $0x9a8] sm:$0xff]
    %v556 = vld [vmem:[#allocation2 + $0x9b0] sm:$0xff]
    %v557 = vld [vmem:[#allocation2 + $0x9b8] sm:$0xff]
    %v558 = vld [vmem:[#allocation2 + $0x9c0] sm:$0xff]
    %v559 = vld [vmem:[#allocation2 + $0x9c8] sm:$0xff]
    %v560 = vld [vmem:[#allocation2 + $0x9d0] sm:$0xff]
    %v561 = vld [vmem:[#allocation2 + $0x9d8] sm:$0xff]
    %v562 = vld [vmem:[#allocation2 + $0x9e0] sm:$0xff]
    %v563 = vld [vmem:[#allocation2 + $0x9e8] sm:$0xff]
    %v564 = vld [vmem:[#allocation2 + $0x9f0] sm:$0xff]
    %v565 = vld [vmem:[#allocation2 + $0x9f8] sm:$0xff]
    %v566 = vld [vmem:[#allocation2 + $0xa00] sm:$0xff]
    %v567 = vld [vmem:[#allocation2 + $0xa08] sm:$0xff]
    %v568 = vld [vmem:[#allocation2 + $0xa10] sm:$0xff]
    %v569 = vld [vmem:[#allocation2 + $0xa18] sm:$0xff]
    %v570 = vld [vmem:[#allocation2 + $0xa20] sm:$0xff]
    %v571 = vld [vmem:[#allocation2 + $0xa28] sm:$0xff]
    %v572 = vld [vmem:[#allocation2 + $0xa30] sm:$0xff]
    %v573 = vld [vmem:[#allocation2 + $0xa38] sm:$0xff]
    %v574 = vld [vmem:[#allocation2 + $0xa40] sm:$0xff]
    %v575 = vld [vmem:[#allocation2 + $0xa48] sm:$0xff]
    %v576 = vld [vmem:[#allocation2 + $0xa50] sm:$0xff]
    %v577 = vld [vmem:[#allocation2 + $0xa58] sm:$0xff]
    %v578 = vld [vmem:[#allocation2 + $0xa60] sm:$0xff]
    %v579 = vld [vmem:[#allocation2 + $0xa68] sm:$0xff]
    %v580 = vld [vmem:[#allocation2 + $0xa70] sm:$0xff]
    %v581 = vld [vmem:[#allocation2 + $0xa78] sm:$0xff]
    %v582 = vld [vmem:[#allocation2 + $0xa80] sm:$0xff]
    %v583 = vld [vmem:[#allocation2 + $0xa88] sm:$0xff]
    %v584 = vld [vmem:[#allocation2 + $0xa90] sm:$0xff]
    %v585 = vld [vmem:[#allocation2 + $0xa98] sm:$0xff]
    %v586 = vld [vmem:[#allocation2 + $0xaa0] sm:$0xff]
    %v587 = vld [vmem:[#allocation2 + $0xaa8] sm:$0xff]
    %v588 = vld [vmem:[#allocation2 + $0xab0] sm:$0xff]
    %v589 = vld [vmem:[#allocation2 + $0xab8] sm:$0xff]
    %v590 = vld [vmem:[#allocation2 + $0xac0] sm:$0xff]
    %v591 = vld [vmem:[#allocation2 + $0xac8] sm:$0xff]
    %v592 = vld [vmem:[#allocation2 + $0xad0] sm:$0xff]
    %v593 = vld [vmem:[#allocation2 + $0xad8] sm:$0xff]
    %v594 = vld [vmem:[#allocation2 + $0xae0] sm:$0xff]
    %v595 = vld [vmem:[#allocation2 + $0xae8] sm:$0xff]
    %v596 = vld [vmem:[#allocation2 + $0xaf0] sm:$0xff]
    %v597 = vld [vmem:[#allocation2 + $0xaf8] sm:$0xff]
    %v598 = vld [vmem:[#allocation2 + $0xb00] sm:$0xff]
    %v599 = vld [vmem:[#allocation2 + $0xb08] sm:$0xff]
    %v600 = vld [vmem:[#allocation2 + $0xb10] sm:$0xff]
    %v601 = vld [vmem:[#allocation2 + $0xb18] sm:$0xff]
    %v602 = vld [vmem:[#allocation2 + $0xb20] sm:$0xff]
    %v603 = vld [vmem:[#allocation2 + $0xb28] sm:$0xff]
    %v604 = vld [vmem:[#allocation2 + $0xb30] sm:$0xff]
    %v605 = vld [vmem:[#allocation2 + $0xb38] sm:$0xff]
    %v606 = vld [vmem:[#allocation2 + $0xb40] sm:$0xff]
    %v607 = vld [vmem:[#allocation2 + $0xb48] sm:$0xff]
    %v608 = vld [vmem:[#allocation2 + $0xb50] sm:$0xff]
    %v609 = vld [vmem:[#allocation2 + $0xb58] sm:$0xff]
    %v610 = vld [vmem:[#allocation2 + $0xb60] sm:$0xff]
    %v611 = vld [vmem:[#allocation2 + $0xb68] sm:$0xff]
    %v612 = vld [vmem:[#allocation2 + $0xb70] sm:$0xff]
    %v613 = vld [vmem:[#allocation2 + $0xb78] sm:$0xff]
    %v614 = vld [vmem:[#allocation2 + $0xb80] sm:$0xff]
    %v615 = vld [vmem:[#allocation2 + $0xb88] sm:$0xff]
    %v616 = vld [vmem:[#allocation2 + $0xb90] sm:$0xff]
    %v617 = vld [vmem:[#allocation2 + $0xb98] sm:$0xff]
    %v618 = vld [vmem:[#allocation2 + $0xba0] sm:$0xff]
    %v619 = vld [vmem:[#allocation2 + $0xba8] sm:$0xff]
    %v620 = vld [vmem:[#allocation2 + $0xbb0] sm:$0xff]
    %v621 = vld [vmem:[#allocation2 + $0xbb8] sm:$0xff]
    %v622 = vld [vmem:[#allocation2 + $0xbc0] sm:$0xff]
    %v623 = vld [vmem:[#allocation2 + $0xbc8] sm:$0xff]
    %v624 = vld [vmem:[#allocation2 + $0xbd0] sm:$0xff]
    %v625 = vld [vmem:[#allocation2 + $0xbd8] sm:$0xff]
    %v626 = vld [vmem:[#allocation2 + $0xbe0] sm:$0xff]
    %v627 = vld [vmem:[#allocation2 + $0xbe8] sm:$0xff]
    %v628 = vld [vmem:[#allocation2 + $0xbf0] sm:$0xff]
    %v629 = vld [vmem:[#allocation2 + $0xbf8] sm:$0xff]
    %v630 = vld [vmem:[#allocation2 + $0xc00] sm:$0xff]
    %v631 = vld [vmem:[#allocation2 + $0xc08] sm:$0xff]
    %v632 = vld [vmem:[#allocation2 + $0xc10] sm:$0xff]
    %v633 = vld [vmem:[#allocation2 + $0xc18] sm:$0xff]
    %v634 = vld [vmem:[#allocation2 + $0xc20] sm:$0xff]
    %v635 = vld [vmem:[#allocation2 + $0xc28] sm:$0xff]
    %v636 = vld [vmem:[#allocation2 + $0xc30] sm:$0xff]
    %v637 = vld [vmem:[#allocation2 + $0xc38] sm:$0xff]
    %v638 = vld [vmem:[#allocation2 + $0xc40] sm:$0xff]
    %v639 = vld [vmem:[#allocation2 + $0xc48] sm:$0xff]
    %v640 = vld [vmem:[#allocation2 + $0xc50] sm:$0xff]
    %v641 = vld [vmem:[#allocation2 + $0xc58] sm:$0xff]
    %v642 = vld [vmem:[#allocation2 + $0xc60] sm:$0xff]
    %v643 = vld [vmem:[#allocation2 + $0xc68] sm:$0xff]
    %v644 = vld [vmem:[#allocation2 + $0xc70] sm:$0xff]
    %v645 = vld [vmem:[#allocation2 + $0xc78] sm:$0xff]
    %v646 = vld [vmem:[#allocation2 + $0xc80] sm:$0xff]
    %v647 = vld [vmem:[#allocation2 + $0xc88] sm:$0xff]
    %v648 = vld [vmem:[#allocation2 + $0xc90] sm:$0xff]
    %v649 = vld [vmem:[#allocation2 + $0xc98] sm:$0xff]
    %v650 = vld [vmem:[#allocation2 + $0xca0] sm:$0xff]
    %v651 = vld [vmem:[#allocation2 + $0xca8] sm:$0xff]
    %v652 = vld [vmem:[#allocation2 + $0xcb0] sm:$0xff]
    %v653 = vld [vmem:[#allocation2 + $0xcb8] sm:$0xff]
    %v654 = vld [vmem:[#allocation2 + $0xcc0] sm:$0xff]
    %v655 = vld [vmem:[#allocation2 + $0xcc8] sm:$0xff]
    %v656 = vld [vmem:[#allocation2 + $0xcd0] sm:$0xff]
    %v657 = vld [vmem:[#allocation2 + $0xcd8] sm:$0xff]
    %v658 = vld [vmem:[#allocation2 + $0xce0] sm:$0xff]
    %v659 = vld [vmem:[#allocation2 + $0xce8] sm:$0xff]
    %v660 = vld [vmem:[#allocation2 + $0xcf0] sm:$0xff]
    %v661 = vld [vmem:[#allocation2 + $0xcf8] sm:$0xff]
    %v662 = vld [vmem:[#allocation2 + $0xd00] sm:$0xff]
    %v663 = vld [vmem:[#allocation2 + $0xd08] sm:$0xff]
    %v664 = vld [vmem:[#allocation2 + $0xd10] sm:$0xff]
    %v665 = vld [vmem:[#allocation2 + $0xd18] sm:$0xff]
    %v666 = vld [vmem:[#allocation2 + $0xd20] sm:$0xff]
    %v667 = vld [vmem:[#allocation2 + $0xd28] sm:$0xff]
    %v668 = vld [vmem:[#allocation2 + $0xd30] sm:$0xff]
    %v669 = vld [vmem:[#allocation2 + $0xd38] sm:$0xff]
    %v670 = vld [vmem:[#allocation2 + $0xd40] sm:$0xff]
    %v671 = vld [vmem:[#allocation2 + $0xd48] sm:$0xff]
    %v672 = vld [vmem:[#allocation2 + $0xd50] sm:$0xff]
    %v673 = vld [vmem:[#allocation2 + $0xd58] sm:$0xff]
    %v674 = vld [vmem:[#allocation2 + $0xd60] sm:$0xff]
    %v675 = vld [vmem:[#allocation2 + $0xd68] sm:$0xff]
    %v676 = vld [vmem:[#allocation2 + $0xd70] sm:$0xff]
    %v677 = vld [vmem:[#allocation2 + $0xd78] sm:$0xff]
    %v678 = vld [vmem:[#allocation2 + $0xd80] sm:$0xff]
    %v679 = vld [vmem:[#allocation2 + $0xd88] sm:$0xff]
    %v680 = vld [vmem:[#allocation2 + $0xd90] sm:$0xff]
    %v681 = vld [vmem:[#allocation2 + $0xd98] sm:$0xff]
    %v682 = vld [vmem:[#allocation2 + $0xda0] sm:$0xff]
    %v683 = vld [vmem:[#allocation2 + $0xda8] sm:$0xff]
    %v684 = vld [vmem:[#allocation2 + $0xdb0] sm:$0xff]
    %v685 = vld [vmem:[#allocation2 + $0xdb8] sm:$0xff]
    %v686 = vld [vmem:[#allocation2 + $0xdc0] sm:$0xff]
    %v687 = vld [vmem:[#allocation2 + $0xdc8] sm:$0xff]
    %v688 = vld [vmem:[#allocation2 + $0xdd0] sm:$0xff]
    %v689 = vld [vmem:[#allocation2 + $0xdd8] sm:$0xff]
    %v690 = vld [vmem:[#allocation2 + $0xde0] sm:$0xff]
    %v691 = vld [vmem:[#allocation2 + $0xde8] sm:$0xff]
    %v692 = vld [vmem:[#allocation2 + $0xdf0] sm:$0xff]
    %v693 = vld [vmem:[#allocation2 + $0xdf8] sm:$0xff]
    %v694 = vld [vmem:[#allocation2 + $0xe00] sm:$0xff]
    %v695 = vld [vmem:[#allocation2 + $0xe08] sm:$0xff]
    %v696 = vld [vmem:[#allocation2 + $0xe10] sm:$0xff]
    %v697 = vld [vmem:[#allocation2 + $0xe18] sm:$0xff]
    %v698 = vld [vmem:[#allocation2 + $0xe20] sm:$0xff]
    %v699 = vld [vmem:[#allocation2 + $0xe28] sm:$0xff]
    %v700 = vld [vmem:[#allocation2 + $0xe30] sm:$0xff]
    %v701 = vld [vmem:[#allocation2 + $0xe38] sm:$0xff]
    %v702 = vld [vmem:[#allocation2 + $0xe40] sm:$0xff]
    %v703 = vld [vmem:[#allocation2 + $0xe48] sm:$0xff]
    %v704 = vld [vmem:[#allocation2 + $0xe50] sm:$0xff]
    %v705 = vld [vmem:[#allocation2 + $0xe58] sm:$0xff]
    %v706 = vld [vmem:[#allocation2 + $0xe60] sm:$0xff]
    %v707 = vld [vmem:[#allocation2 + $0xe68] sm:$0xff]
    %v708 = vld [vmem:[#allocation2 + $0xe70] sm:$0xff]
    %v709 = vld [vmem:[#allocation2 + $0xe78] sm:$0xff]
    %v710 = vld [vmem:[#allocation2 + $0xe80] sm:$0xff]
    %v711 = vld [vmem:[#allocation2 + $0xe88] sm:$0xff]
    %v712 = vld [vmem:[#allocation2 + $0xe90] sm:$0xff]
    %v713 = vld [vmem:[#allocation2 + $0xe98] sm:$0xff]
    %v714 = vld [vmem:[#allocation2 + $0xea0] sm:$0xff]
    %v715 = vld [vmem:[#allocation2 + $0xea8] sm:$0xff]
    %v716 = vld [vmem:[#allocation2 + $0xeb0] sm:$0xff]
    %v717 = vld [vmem:[#allocation2 + $0xeb8] sm:$0xff]
    %v718 = vld [vmem:[#allocation2 + $0xec0] sm:$0xff]
    %v719 = vld [vmem:[#allocation2 + $0xec8] sm:$0xff]
    %v720 = vld [vmem:[#allocation2 + $0xed0] sm:$0xff]
    %v721 = vld [vmem:[#allocation2 + $0xed8] sm:$0xff]
    %v722 = vld [vmem:[#allocation2 + $0xee0] sm:$0xff]
    %v723 = vld [vmem:[#allocation2 + $0xee8] sm:$0xff]
    %v724 = vld [vmem:[#allocation2 + $0xef0] sm:$0xff]
    %v725 = vld [vmem:[#allocation2 + $0xef8] sm:$0xff]
    %v726 = vld [vmem:[#allocation2 + $0xf00] sm:$0xff]
    %v727 = vld [vmem:[#allocation2 + $0xf08] sm:$0xff]
    %v728 = vld [vmem:[#allocation2 + $0xf10] sm:$0xff]
    %v729 = vld [vmem:[#allocation2 + $0xf18] sm:$0xff]
    %v730 = vld [vmem:[#allocation2 + $0xf20] sm:$0xff]
    %v731 = vld [vmem:[#allocation2 + $0xf28] sm:$0xff]
    %v732 = vld [vmem:[#allocation2 + $0xf30] sm:$0xff]
    %v733 = vld [vmem:[#allocation2 + $0xf38] sm:$0xff]
    %v734 = vld [vmem:[#allocation2 + $0xf40] sm:$0xff]
    %v735 = vld [vmem:[#allocation2 + $0xf48] sm:$0xff]
    %v736 = vld [vmem:[#allocation2 + $0xf50] sm:$0xff]
    %v737 = vld [vmem:[#allocation2 + $0xf58] sm:$0xff]
    %v738 = vld [vmem:[#allocation2 + $0xf60] sm:$0xff]
    %v739 = vld [vmem:[#allocation2 + $0xf68] sm:$0xff]
    %v740 = vld [vmem:[#allocation2 + $0xf70] sm:$0xff]
    %v741 = vld [vmem:[#allocation2 + $0xf78] sm:$0xff]
    %v742 = vld [vmem:[#allocation2 + $0xf80] sm:$0xff]
    %v743 = vld [vmem:[#allocation2 + $0xf88] sm:$0xff]
    %v744 = vld [vmem:[#allocation2 + $0xf90] sm:$0xff]
    %v745 = vld [vmem:[#allocation2 + $0xf98] sm:$0xff]
    %v746 = vld [vmem:[#allocation2 + $0xfa0] sm:$0xff]
    %v747 = vld [vmem:[#allocation2 + $0xfa8] sm:$0xff]
    %v748 = vld [vmem:[#allocation2 + $0xfb0] sm:$0xff]
    %v749 = vld [vmem:[#allocation2 + $0xfb8] sm:$0xff]
    %v750 = vld [vmem:[#allocation2 + $0xfc0] sm:$0xff]
    %v751 = vld [vmem:[#allocation2 + $0xfc8] sm:$0xff]
    %v752 = vld [vmem:[#allocation2 + $0xfd0] sm:$0xff]
    %v753 = vld [vmem:[#allocation2 + $0xfd8] sm:$0xff]
    %v754 = vld [vmem:[#allocation2 + $0xfe0] sm:$0xff]
    %v755 = vld [vmem:[#allocation2 + $0xfe8] sm:$0xff]
    %v756 = vld [vmem:[#allocation2 + $0xff0] sm:$0xff]
    %v757 = vld [vmem:[#allocation2 + $0xff8] sm:$0xff]
    %v758 = vld [vmem:[#allocation2 + $0x1000] sm:$0xff]
    %v759 = vld [vmem:[#allocation2 + $0x1008] sm:$0xff]
    %v760 = vld [vmem:[#allocation2 + $0x1010] sm:$0xff]
    %v761 = vld [vmem:[#allocation2 + $0x1018] sm:$0xff]
    %v762 = vld [vmem:[#allocation2 + $0x1020] sm:$0xff]
    %v763 = vld [vmem:[#allocation2 + $0x1028] sm:$0xff]
    %v764 = vld [vmem:[#allocation2 + $0x1030] sm:$0xff]
    %v765 = vld [vmem:[#allocation2 + $0x1038] sm:$0xff]
    %v766 = vld [vmem:[#allocation2 + $0x1040] sm:$0xff]
    %v767 = vld [vmem:[#allocation2 + $0x1048] sm:$0xff]
    %v768 = vld [vmem:[#allocation2 + $0x1050] sm:$0xff]
    %v769 = vld [vmem:[#allocation2 + $0x1058] sm:$0xff]
    %v770 = vld [vmem:[#allocation2 + $0x1060] sm:$0xff]
    %v771 = vld [vmem:[#allocation2 + $0x1068] sm:$0xff]
    %v772 = vld [vmem:[#allocation2 + $0x1070] sm:$0xff]
    %v773 = vld [vmem:[#allocation2 + $0x1078] sm:$0xff]
    %v774 = vld [vmem:[#allocation2 + $0x1080] sm:$0xff]
    %v775 = vld [vmem:[#allocation2 + $0x1088] sm:$0xff]
    %v776 = vld [vmem:[#allocation2 + $0x1090] sm:$0xff]
    %v777 = vld [vmem:[#allocation2 + $0x1098] sm:$0xff]
    %v778 = vld [vmem:[#allocation2 + $0x10a0] sm:$0xff]
    %v779 = vld [vmem:[#allocation2 + $0x10a8] sm:$0xff]
    %v780 = vld [vmem:[#allocation2 + $0x10b0] sm:$0xff]
    %v781 = vld [vmem:[#allocation2 + $0x10b8] sm:$0xff]
    %v782 = vld [vmem:[#allocation2 + $0x10c0] sm:$0xff]
    %v783 = vld [vmem:[#allocation2 + $0x10c8] sm:$0xff]
    %v784 = vld [vmem:[#allocation2 + $0x10d0] sm:$0xff]
    %v785 = vld [vmem:[#allocation2 + $0x10d8] sm:$0xff]
    %v786 = vld [vmem:[#allocation2 + $0x10e0] sm:$0xff]
    %v787 = vld [vmem:[#allocation2 + $0x10e8] sm:$0xff]
    %v788 = vld [vmem:[#allocation2 + $0x10f0] sm:$0xff]
    %v789 = vld [vmem:[#allocation2 + $0x10f8] sm:$0xff]
    %v790 = vld [vmem:[#allocation2 + $0x1100] sm:$0xff]
    %v791 = vld [vmem:[#allocation2 + $0x1108] sm:$0xff]
    %v792 = vld [vmem:[#allocation2 + $0x1110] sm:$0xff]
    %v793 = vld [vmem:[#allocation2 + $0x1118] sm:$0xff]
    %v794 = vld [vmem:[#allocation2 + $0x1120] sm:$0xff]
    %v795 = vld [vmem:[#allocation2 + $0x1128] sm:$0xff]
    %v796 = vld [vmem:[#allocation2 + $0x1130] sm:$0xff]
    %v797 = vld [vmem:[#allocation2 + $0x1138] sm:$0xff]
    %v798 = vld [vmem:[#allocation2 + $0x1140] sm:$0xff]
    %v799 = vld [vmem:[#allocation2 + $0x1148] sm:$0xff]
    %v800 = vld [vmem:[#allocation2 + $0x1150] sm:$0xff]
    %v801 = vld [vmem:[#allocation2 + $0x1158] sm:$0xff]
    %v802 = vld [vmem:[#allocation2 + $0x1160] sm:$0xff]
    %v803 = vld [vmem:[#allocation2 + $0x1168] sm:$0xff]
    %v804 = vld [vmem:[#allocation2 + $0x1170] sm:$0xff]
    %v805 = vld [vmem:[#allocation2 + $0x1178] sm:$0xff]
    %v806 = vld [vmem:[#allocation2 + $0x1180] sm:$0xff]
    %v807 = vld [vmem:[#allocation2 + $0x1188] sm:$0xff]
    %v808 = vld [vmem:[#allocation2 + $0x1190] sm:$0xff]
    %v809 = vld [vmem:[#allocation2 + $0x1198] sm:$0xff]
    %v810 = vld [vmem:[#allocation2 + $0x11a0] sm:$0xff]
    %v811 = vld [vmem:[#allocation2 + $0x11a8] sm:$0xff]
    %v812 = vld [vmem:[#allocation2 + $0x11b0] sm:$0xff]
    %v813 = vld [vmem:[#allocation2 + $0x11b8] sm:$0xff]
    %v814 = vld [vmem:[#allocation2 + $0x11c0] sm:$0xff]
    %v815 = vld [vmem:[#allocation2 + $0x11c8] sm:$0xff]
    %v816 = vld [vmem:[#allocation2 + $0x11d0] sm:$0xff]
    %v817 = vld [vmem:[#allocation2 + $0x11d8] sm:$0xff]
    %v818 = vld [vmem:[#allocation2 + $0x11e0] sm:$0xff]
    %v819 = vld [vmem:[#allocation2 + $0x11e8] sm:$0xff]
    %v820 = vld [vmem:[#allocation2 + $0x11f0] sm:$0xff]
    %v821 = vld [vmem:[#allocation2 + $0x11f8] sm:$0xff]
    %v822 = vld [vmem:[#allocation2 + $0x1200] sm:$0xff]
    %v823 = vld [vmem:[#allocation2 + $0x1208] sm:$0xff]
    %v824 = vld [vmem:[#allocation2 + $0x1210] sm:$0xff]
    %v825 = vld [vmem:[#allocation2 + $0x1218] sm:$0xff]
    %v826 = vld [vmem:[#allocation2 + $0x1220] sm:$0xff]
    %v827 = vld [vmem:[#allocation2 + $0x1228] sm:$0xff]
    %v828 = vld [vmem:[#allocation2 + $0x1230] sm:$0xff]
    %v829 = vld [vmem:[#allocation2 + $0x1238] sm:$0xff]
    %v830 = vld [vmem:[#allocation2 + $0x1240] sm:$0xff]
    %v831 = vld [vmem:[#allocation2 + $0x1248] sm:$0xff]
    %v832 = vld [vmem:[#allocation2 + $0x1250] sm:$0xff]
    %v833 = vld [vmem:[#allocation2 + $0x1258] sm:$0xff]
    %v834 = vld [vmem:[#allocation2 + $0x1260] sm:$0xff]
    %v835 = vld [vmem:[#allocation2 + $0x1268] sm:$0xff]
    %v836 = vld [vmem:[#allocation2 + $0x1270] sm:$0xff]
    %v837 = vld [vmem:[#allocation2 + $0x1278] sm:$0xff]
    %v838 = vld [vmem:[#allocation2 + $0x1280] sm:$0xff]
    %v839 = vld [vmem:[#allocation2 + $0x1288] sm:$0xff]
    %v840 = vld [vmem:[#allocation2 + $0x1290] sm:$0xff]
    %v841 = vld [vmem:[#allocation2 + $0x1298] sm:$0xff]
    %v842 = vld [vmem:[#allocation2 + $0x12a0] sm:$0xff]
    %v843 = vld [vmem:[#allocation2 + $0x12a8] sm:$0xff]
    %v844 = vld [vmem:[#allocation2 + $0x12b0] sm:$0xff]
    %v845 = vld [vmem:[#allocation2 + $0x12b8] sm:$0xff]
    %v846 = vld [vmem:[#allocation2 + $0x12c0] sm:$0xff]
    %v847 = vld [vmem:[#allocation2 + $0x12c8] sm:$0xff]
    %v848 = vld [vmem:[#allocation2 + $0x12d0] sm:$0xff]
    %v849 = vld [vmem:[#allocation2 + $0x12d8] sm:$0xff]
    %v850 = vld [vmem:[#allocation2 + $0x12e0] sm:$0xff]
    %v851 = vld [vmem:[#allocation2 + $0x12e8] sm:$0xff]
    %v852 = vld [vmem:[#allocation2 + $0x12f0] sm:$0xff]
    %v853 = vld [vmem:[#allocation2 + $0x12f8] sm:$0xff]
    %v854 = vld [vmem:[#allocation2 + $0x1300] sm:$0xff]
    %v855 = vld [vmem:[#allocation2 + $0x1308] sm:$0xff]
    %v856 = vld [vmem:[#allocation2 + $0x1310] sm:$0xff]
    %v857 = vld [vmem:[#allocation2 + $0x1318] sm:$0xff]
    %v858 = vld [vmem:[#allocation2 + $0x1320] sm:$0xff]
    %v859 = vld [vmem:[#allocation2 + $0x1328] sm:$0xff]
    %v860 = vld [vmem:[#allocation2 + $0x1330] sm:$0xff]
    %v861 = vld [vmem:[#allocation2 + $0x1338] sm:$0xff]
    %v862 = vld [vmem:[#allocation2 + $0x1340] sm:$0xff]
    %v863 = vld [vmem:[#allocation2 + $0x1348] sm:$0xff]
    %v864 = vld [vmem:[#allocation2 + $0x1350] sm:$0xff]
    %v865 = vld [vmem:[#allocation2 + $0x1358] sm:$0xff]
    %v866 = vld [vmem:[#allocation2 + $0x1360] sm:$0xff]
    %v867 = vld [vmem:[#allocation2 + $0x1368] sm:$0xff]
    %v868 = vld [vmem:[#allocation2 + $0x1370] sm:$0xff]
    %v869 = vld [vmem:[#allocation2 + $0x1378] sm:$0xff]
    %v870 = vld [vmem:[#allocation2 + $0x1380] sm:$0xff]
    %v871 = vld [vmem:[#allocation2 + $0x1388] sm:$0xff]
    %v872 = vld [vmem:[#allocation2 + $0x1390] sm:$0xff]
    %v873 = vld [vmem:[#allocation2 + $0x1398] sm:$0xff]
    %v874 = vld [vmem:[#allocation2 + $0x13a0] sm:$0xff]
    %v875 = vld [vmem:[#allocation2 + $0x13a8] sm:$0xff]
    %v876 = vld [vmem:[#allocation2 + $0x13b0] sm:$0xff]
    %v877 = vld [vmem:[#allocation2 + $0x13b8] sm:$0xff]
    %v878 = vld [vmem:[#allocation2 + $0x13c0] sm:$0xff]
    %v879 = vld [vmem:[#allocation2 + $0x13c8] sm:$0xff]
    %v880 = vld [vmem:[#allocation2 + $0x13d0] sm:$0xff]
    %v881 = vld [vmem:[#allocation2 + $0x13d8] sm:$0xff]
    %v882 = vld [vmem:[#allocation2 + $0x13e0] sm:$0xff]
    %v883 = vld [vmem:[#allocation2 + $0x13e8] sm:$0xff]
    %v884 = vld [vmem:[#allocation2 + $0x13f0] sm:$0xff]
    %v885 = vld [vmem:[#allocation2 + $0x13f8] sm:$0xff]
    %v886 = vld [vmem:[#allocation2 + $0x1400] sm:$0xff]
    %v887 = vld [vmem:[#allocation2 + $0x1408] sm:$0xff]
    %v888 = vld [vmem:[#allocation2 + $0x1410] sm:$0xff]
    %v889 = vld [vmem:[#allocation2 + $0x1418] sm:$0xff]
    %v890 = vld [vmem:[#allocation2 + $0x1420] sm:$0xff]
    %v891 = vld [vmem:[#allocation2 + $0x1428] sm:$0xff]
    %v892 = vld [vmem:[#allocation2 + $0x1430] sm:$0xff]
    %v893 = vld [vmem:[#allocation2 + $0x1438] sm:$0xff]
    %v894 = vld [vmem:[#allocation2 + $0x1440] sm:$0xff]
    %v895 = vld [vmem:[#allocation2 + $0x1448] sm:$0xff]
    %v896 = vld [vmem:[#allocation2 + $0x1450] sm:$0xff]
    %v897 = vld [vmem:[#allocation2 + $0x1458] sm:$0xff]
    %v898 = vld [vmem:[#allocation2 + $0x1460] sm:$0xff]
    %v899 = vld [vmem:[#allocation2 + $0x1468] sm:$0xff]
    %v900 = vld [vmem:[#allocation2 + $0x1470] sm:$0xff]
    %v901 = vld [vmem:[#allocation2 + $0x1478] sm:$0xff]
    %v902 = vld [vmem:[#allocation2 + $0x1480] sm:$0xff]
    %v903 = vld [vmem:[#allocation2 + $0x1488] sm:$0xff]
    %v904 = vld [vmem:[#allocation2 + $0x1490] sm:$0xff]
    %v905 = vld [vmem:[#allocation2 + $0x1498] sm:$0xff]
    %v906 = vld [vmem:[#allocation2 + $0x14a0] sm:$0xff]
    %v907 = vld [vmem:[#allocation2 + $0x14a8] sm:$0xff]
    %v908 = vld [vmem:[#allocation2 + $0x14b0] sm:$0xff]
    %v909 = vld [vmem:[#allocation2 + $0x14b8] sm:$0xff]
    %v910 = vld [vmem:[#allocation2 + $0x14c0] sm:$0xff]
    %v911 = vld [vmem:[#allocation2 + $0x14c8] sm:$0xff]
    %v912 = vld [vmem:[#allocation2 + $0x14d0] sm:$0xff]
    %v913 = vld [vmem:[#allocation2 + $0x14d8] sm:$0xff]
    %v914 = vld [vmem:[#allocation2 + $0x14e0] sm:$0xff]
    %v915 = vld [vmem:[#allocation2 + $0x14e8] sm:$0xff]
    %v916 = vld [vmem:[#allocation2 + $0x14f0] sm:$0xff]
    %v917 = vld [vmem:[#allocation2 + $0x14f8] sm:$0xff]
    %v918 = vld [vmem:[#allocation2 + $0x1500] sm:$0xff]
    %v919 = vld [vmem:[#allocation2 + $0x1508] sm:$0xff]
    %v920 = vld [vmem:[#allocation2 + $0x1510] sm:$0xff]
    %v921 = vld [vmem:[#allocation2 + $0x1518] sm:$0xff]
    %v922 = vld [vmem:[#allocation2 + $0x1520] sm:$0xff]
    %v923 = vld [vmem:[#allocation2 + $0x1528] sm:$0xff]
    %v924 = vld [vmem:[#allocation2 + $0x1530] sm:$0xff]
    %v925 = vld [vmem:[#allocation2 + $0x1538] sm:$0xff]
    %v926 = vld [vmem:[#allocation2 + $0x1540] sm:$0xff]
    %v927 = vld [vmem:[#allocation2 + $0x1548] sm:$0xff]
    %v928 = vld [vmem:[#allocation2 + $0x1550] sm:$0xff]
    %v929 = vld [vmem:[#allocation2 + $0x1558] sm:$0xff]
    %v930 = vld [vmem:[#allocation2 + $0x1560] sm:$0xff]
    %v931 = vld [vmem:[#allocation2 + $0x1568] sm:$0xff]
    %v932 = vld [vmem:[#allocation2 + $0x1570] sm:$0xff]
    %v933 = vld [vmem:[#allocation2 + $0x1578] sm:$0xff]
    %v934 = vld [vmem:[#allocation2 + $0x1580] sm:$0xff]
    %v935 = vld [vmem:[#allocation2 + $0x1588] sm:$0xff]
    %v936 = vld [vmem:[#allocation2 + $0x1590] sm:$0xff]
    %v937 = vld [vmem:[#allocation2 + $0x1598] sm:$0xff]
    %v938 = vld [vmem:[#allocation2 + $0x15a0] sm:$0xff]
    %v939 = vld [vmem:[#allocation2 + $0x15a8] sm:$0xff]
    %v940 = vld [vmem:[#allocation2 + $0x15b0] sm:$0xff]
    %v941 = vld [vmem:[#allocation2 + $0x15b8] sm:$0xff]
    %v942 = vld [vmem:[#allocation2 + $0x15c0] sm:$0xff]
    %v943 = vld [vmem:[#allocation2 + $0x15c8] sm:$0xff]
    %v944 = vld [vmem:[#allocation2 + $0x15d0] sm:$0xff]
    %v945 = vld [vmem:[#allocation2 + $0x15d8] sm:$0xff]
    %v946 = vld [vmem:[#allocation2 + $0x15e0] sm:$0xff]
    %v947 = vld [vmem:[#allocation2 + $0x15e8] sm:$0xff]
    %v948 = vld [vmem:[#allocation2 + $0x15f0] sm:$0xff]
    %v949 = vld [vmem:[#allocation2 + $0x15f8] sm:$0xff]
    %v950 = vld [vmem:[#allocation2 + $0x1600] sm:$0xff]
    %v951 = vld [vmem:[#allocation2 + $0x1608] sm:$0xff]
    %v952 = vld [vmem:[#allocation2 + $0x1610] sm:$0xff]
    %v953 = vld [vmem:[#allocation2 + $0x1618] sm:$0xff]
    %v954 = vld [vmem:[#allocation2 + $0x1620] sm:$0xff]
    %v955 = vld [vmem:[#allocation2 + $0x1628] sm:$0xff]
    %v956 = vld [vmem:[#allocation2 + $0x1630] sm:$0xff]
    %v957 = vld [vmem:[#allocation2 + $0x1638] sm:$0xff]
    %v958 = vld [vmem:[#allocation2 + $0x1640] sm:$0xff]
    %v959 = vld [vmem:[#allocation2 + $0x1648] sm:$0xff]
    %v960 = vld [vmem:[#allocation2 + $0x1650] sm:$0xff]
    %v961 = vld [vmem:[#allocation2 + $0x1658] sm:$0xff]
    %v962 = vld [vmem:[#allocation2 + $0x1660] sm:$0xff]
    %v963 = vld [vmem:[#allocation2 + $0x1668] sm:$0xff]
    %v964 = vld [vmem:[#allocation2 + $0x1670] sm:$0xff]
    %v965 = vld [vmem:[#allocation2 + $0x1678] sm:$0xff]
    %v966 = vld [vmem:[#allocation2 + $0x1680] sm:$0xff]
    %v967 = vld [vmem:[#allocation2 + $0x1688] sm:$0xff]
    %v968 = vld [vmem:[#allocation2 + $0x1690] sm:$0xff]
    %v969 = vld [vmem:[#allocation2 + $0x1698] sm:$0xff]
    %v970 = vld [vmem:[#allocation2 + $0x16a0] sm:$0xff]
    %v971 = vld [vmem:[#allocation2 + $0x16a8] sm:$0xff]
    %v972 = vld [vmem:[#allocation2 + $0x16b0] sm:$0xff]
    %v973 = vld [vmem:[#allocation2 + $0x16b8] sm:$0xff]
    %v974 = vld [vmem:[#allocation2 + $0x16c0] sm:$0xff]
    %v975 = vld [vmem:[#allocation2 + $0x16c8] sm:$0xff]
    %v976 = vld [vmem:[#allocation2 + $0x16d0] sm:$0xff]
    %v977 = vld [vmem:[#allocation2 + $0x16d8] sm:$0xff]
    %v978 = vld [vmem:[#allocation2 + $0x16e0] sm:$0xff]
    %v979 = vld [vmem:[#allocation2 + $0x16e8] sm:$0xff]
    %v980 = vld [vmem:[#allocation2 + $0x16f0] sm:$0xff]
    %v981 = vld [vmem:[#allocation2 + $0x16f8] sm:$0xff]
    %v982 = vld [vmem:[#allocation2 + $0x1700] sm:$0xff]
    %v983 = vld [vmem:[#allocation2 + $0x1708] sm:$0xff]
    %v984 = vld [vmem:[#allocation2 + $0x1710] sm:$0xff]
    %v985 = vld [vmem:[#allocation2 + $0x1718] sm:$0xff]
    %v986 = vld [vmem:[#allocation2 + $0x1720] sm:$0xff]
    %v987 = vld [vmem:[#allocation2 + $0x1728] sm:$0xff]
    %v988 = vld [vmem:[#allocation2 + $0x1730] sm:$0xff]
    %v989 = vld [vmem:[#allocation2 + $0x1738] sm:$0xff]
    %v990 = vld [vmem:[#allocation2 + $0x1740] sm:$0xff]
    %v991 = vld [vmem:[#allocation2 + $0x1748] sm:$0xff]
    %v992 = vld [vmem:[#allocation2 + $0x1750] sm:$0xff]
    %v993 = vld [vmem:[#allocation2 + $0x1758] sm:$0xff]
    %v994 = vld [vmem:[#allocation2 + $0x1760] sm:$0xff]
    %v995 = vld [vmem:[#allocation2 + $0x1768] sm:$0xff]
    %v996 = vld [vmem:[#allocation2 + $0x1770] sm:$0xff]
    %v997 = vld [vmem:[#allocation2 + $0x1778] sm:$0xff]
    %v998 = vld [vmem:[#allocation2 + $0x1780] sm:$0xff]
    %v999 = vld [vmem:[#allocation2 + $0x1788] sm:$0xff]
    %v1000 = vld [vmem:[#allocation2 + $0x1790] sm:$0xff]
    %v1001 = vld [vmem:[#allocation2 + $0x1798] sm:$0xff]
    %v1002 = vld [vmem:[#allocation2 + $0x17a0] sm:$0xff]
    %v1003 = vld [vmem:[#allocation2 + $0x17a8] sm:$0xff]
    %v1004 = vld [vmem:[#allocation2 + $0x17b0] sm:$0xff]
    %v1005 = vld [vmem:[#allocation2 + $0x17b8] sm:$0xff]
    %v1006 = vld [vmem:[#allocation2 + $0x17c0] sm:$0xff]
    %v1007 = vld [vmem:[#allocation2 + $0x17c8] sm:$0xff]
    %v1008 = vld [vmem:[#allocation2 + $0x17d0] sm:$0xff]
    %v1009 = vld [vmem:[#allocation2 + $0x17d8] sm:$0xff]
    %v1010 = vld [vmem:[#allocation2 + $0x17e0] sm:$0xff]
    %v1011 = vld [vmem:[#allocation2 + $0x17e8] sm:$0xff]
    %v1012 = vld [vmem:[#allocation2 + $0x17f0] sm:$0xff]
    %v1013 = vld [vmem:[#allocation2 + $0x17f8] sm:$0xff]
    %v1014 = vld [vmem:[#allocation2 + $0x1800] sm:$0xff]
    %v1015 = vld [vmem:[#allocation2 + $0x1808] sm:$0xff]
    %v1016 = vld [vmem:[#allocation2 + $0x1810] sm:$0xff]
    %v1017 = vld [vmem:[#allocation2 + $0x1818] sm:$0xff]
    %v1018 = vld [vmem:[#allocation2 + $0x1820] sm:$0xff]
    %v1019 = vld [vmem:[#allocation2 + $0x1828] sm:$0xff]
    %v1020 = vld [vmem:[#allocation2 + $0x1830] sm:$0xff]
    %v1021 = vld [vmem:[#allocation2 + $0x1838] sm:$0xff]
    %v1022 = vld [vmem:[#allocation2 + $0x1840] sm:$0xff]
    %v1023 = vld [vmem:[#allocation2 + $0x1848] sm:$0xff]
    %v1024 = vld [vmem:[#allocation2 + $0x1850] sm:$0xff]
    %v1025 = vld [vmem:[#allocation2 + $0x1858] sm:$0xff]
    %v1026 = vld [vmem:[#allocation2 + $0x1860] sm:$0xff]
    %v1027 = vld [vmem:[#allocation2 + $0x1868] sm:$0xff]
    %v1028 = vld [vmem:[#allocation2 + $0x1870] sm:$0xff]
    %v1029 = vld [vmem:[#allocation2 + $0x1878] sm:$0xff]
    %v1030 = vld [vmem:[#allocation5] sm:$0xf]
    %v1032 = vlaneseq
    %v1033 = vshrl.u32 %v1032, 7
    %v1034 = vsub.s32 0, %v1033
    %v1035 = vrot.slane %v1030, %v1034
    %v1036 = vlaneseq
    %v1037 = vshrl.u32 %v1036, 7
    %v1038 = vsub.s32 1, %v1037
    %v1039 = vrot.slane %v1030, %v1038
    %v1040 = vlaneseq
    %v1041 = vshrl.u32 %v1040, 7
    %v1042 = vsub.s32 2, %v1041
    %v1043 = vrot.slane %v1030, %v1042
    %v1044 = vlaneseq
    %v1045 = vshrl.u32 %v1044, 7
    %v1046 = vsub.s32 3, %v1045
    %v1047 = vrot.slane %v1030, %v1046
    %v1836 = vunpack.c.l.b16 %v246
    %v1837 = vunpack.c.h.b16 %v246
    %v1838 = vunpack.c.l.b16 %v247
    %v1839 = vunpack.c.h.b16 %v247
    %v1840 = vunpack.c.l.b16 %v248
    %v1841 = vunpack.c.h.b16 %v248
    %v1842 = vunpack.c.l.b16 %v249
    %v1843 = vunpack.c.h.b16 %v249
    %v1844 = vunpack.c.l.b16 %v250
    %v1845 = vunpack.c.h.b16 %v250
    %v1846 = vunpack.c.l.b16 %v251
    %v1847 = vunpack.c.h.b16 %v251
    %v1848 = vunpack.c.l.b16 %v252
    %v1849 = vunpack.c.h.b16 %v252
    %v1850 = vunpack.c.l.b16 %v253
    %v1851 = vunpack.c.h.b16 %v253
    %v1852 = vunpack.c.l.b16 %v254
    %v1853 = vunpack.c.h.b16 %v254
    %v1854 = vunpack.c.l.b16 %v255
    %v1855 = vunpack.c.h.b16 %v255
    %v1856 = vunpack.c.l.b16 %v256
    %v1857 = vunpack.c.h.b16 %v256
    %v1858 = vunpack.c.l.b16 %v257
    %v1859 = vunpack.c.h.b16 %v257
    %v1860 = vunpack.c.l.b16 %v258
    %v1861 = vunpack.c.h.b16 %v258
    %v1862 = vunpack.c.l.b16 %v259
    %v1863 = vunpack.c.h.b16 %v259
    %v1864 = vunpack.c.l.b16 %v260
    %v1865 = vunpack.c.h.b16 %v260
    %v1866 = vunpack.c.l.b16 %v261
    %v1867 = vunpack.c.h.b16 %v261
    %v1868 = vunpack.c.l.b16 %v262
    %v1869 = vunpack.c.h.b16 %v262
    %v1870 = vunpack.c.l.b16 %v263
    %v1871 = vunpack.c.h.b16 %v263
    %v1872 = vunpack.c.l.b16 %v264
    %v1873 = vunpack.c.h.b16 %v264
    %v1874 = vunpack.c.l.b16 %v265
    %v1875 = vunpack.c.h.b16 %v265
    %v1876 = vunpack.c.l.b16 %v266
    %v1877 = vunpack.c.h.b16 %v266
    %v1878 = vunpack.c.l.b16 %v267
    %v1879 = vunpack.c.h.b16 %v267
    %v1880 = vunpack.c.l.b16 %v268
    %v1881 = vunpack.c.h.b16 %v268
    %v1882 = vunpack.c.l.b16 %v269
    %v1883 = vunpack.c.h.b16 %v269
    %v1884 = vunpack.c.l.b16 %v270
    %v1885 = vunpack.c.h.b16 %v270
    %v1886 = vunpack.c.l.b16 %v271
    %v1887 = vunpack.c.h.b16 %v271
    %v1888 = vunpack.c.l.b16 %v272
    %v1889 = vunpack.c.h.b16 %v272
    %v1890 = vunpack.c.l.b16 %v273
    %v1891 = vunpack.c.h.b16 %v273
    %v1892 = vunpack.c.l.b16 %v274
    %v1893 = vunpack.c.h.b16 %v274
    %v1894 = vunpack.c.l.b16 %v275
    %v1895 = vunpack.c.h.b16 %v275
    %v1896 = vunpack.c.l.b16 %v276
    %v1897 = vunpack.c.h.b16 %v276
    %v1898 = vunpack.c.l.b16 %v277
    %v1899 = vunpack.c.h.b16 %v277
    %v1900 = vunpack.c.l.b16 %v278
    %v1901 = vunpack.c.h.b16 %v278
    %v1902 = vunpack.c.l.b16 %v279
    %v1903 = vunpack.c.h.b16 %v279
    %v1904 = vunpack.c.l.b16 %v280
    %v1905 = vunpack.c.h.b16 %v280
    %v1906 = vunpack.c.l.b16 %v281
    %v1907 = vunpack.c.h.b16 %v281
    %v1908 = vunpack.c.l.b16 %v282
    %v1909 = vunpack.c.h.b16 %v282
    %v1910 = vunpack.c.l.b16 %v283
    %v1911 = vunpack.c.h.b16 %v283
    %v1912 = vunpack.c.l.b16 %v284
    %v1913 = vunpack.c.h.b16 %v284
    %v1914 = vunpack.c.l.b16 %v285
    %v1915 = vunpack.c.h.b16 %v285
    %v1916 = vunpack.c.l.b16 %v286
    %v1917 = vunpack.c.h.b16 %v286
    %v1918 = vunpack.c.l.b16 %v287
    %v1919 = vunpack.c.h.b16 %v287
    %v1920 = vunpack.c.l.b16 %v288
    %v1921 = vunpack.c.h.b16 %v288
    %v1922 = vunpack.c.l.b16 %v289
    %v1923 = vunpack.c.h.b16 %v289
    %v1924 = vunpack.c.l.b16 %v290
    %v1925 = vunpack.c.h.b16 %v290
    %v1926 = vunpack.c.l.b16 %v291
    %v1927 = vunpack.c.h.b16 %v291
    %v1928 = vunpack.c.l.b16 %v292
    %v1929 = vunpack.c.h.b16 %v292
    %v1930 = vunpack.c.l.b16 %v293
    %v1931 = vunpack.c.h.b16 %v293
    %v1932 = vunpack.c.l.b16 %v294
    %v1933 = vunpack.c.h.b16 %v294
    %v1934 = vunpack.c.l.b16 %v295
    %v1935 = vunpack.c.h.b16 %v295
    %v1936 = vunpack.c.l.b16 %v296
    %v1937 = vunpack.c.h.b16 %v296
    %v1938 = vunpack.c.l.b16 %v297
    %v1939 = vunpack.c.h.b16 %v297
    %v1940 = vunpack.c.l.b16 %v298
    %v1941 = vunpack.c.h.b16 %v298
    %v1942 = vunpack.c.l.b16 %v299
    %v1943 = vunpack.c.h.b16 %v299
    %v1944 = vunpack.c.l.b16 %v300
    %v1945 = vunpack.c.h.b16 %v300
    %v1946 = vunpack.c.l.b16 %v301
    %v1947 = vunpack.c.h.b16 %v301
    %v1948 = vunpack.c.l.b16 %v302
    %v1949 = vunpack.c.h.b16 %v302
    %v1950 = vunpack.c.l.b16 %v303
    %v1951 = vunpack.c.h.b16 %v303
    %v1952 = vunpack.c.l.b16 %v304
    %v1953 = vunpack.c.h.b16 %v304
    %v1954 = vunpack.c.l.b16 %v305
    %v1955 = vunpack.c.h.b16 %v305
    %v1956 = vunpack.c.l.b16 %v306
    %v1957 = vunpack.c.h.b16 %v306
    %v1958 = vunpack.c.l.b16 %v307
    %v1959 = vunpack.c.h.b16 %v307
    %v1960 = vunpack.c.l.b16 %v308
    %v1961 = vunpack.c.h.b16 %v308
    %v1962 = vunpack.c.l.b16 %v309
    %v1963 = vunpack.c.h.b16 %v309
    %v1964 = vunpack.c.l.b16 %v310
    %v1965 = vunpack.c.h.b16 %v310
    %v1966 = vunpack.c.l.b16 %v311
    %v1967 = vunpack.c.h.b16 %v311
    %v1968 = vunpack.c.l.b16 %v312
    %v1969 = vunpack.c.h.b16 %v312
    %v1970 = vunpack.c.l.b16 %v313
    %v1971 = vunpack.c.h.b16 %v313
    %v1972 = vunpack.c.l.b16 %v314
    %v1973 = vunpack.c.h.b16 %v314
    %v1974 = vunpack.c.l.b16 %v315
    %v1975 = vunpack.c.h.b16 %v315
    %v1976 = vunpack.c.l.b16 %v316
    %v1977 = vunpack.c.h.b16 %v316
    %v1978 = vunpack.c.l.b16 %v317
    %v1979 = vunpack.c.h.b16 %v317
    %v1980 = vunpack.c.l.b16 %v318
    %v1981 = vunpack.c.h.b16 %v318
    %v1982 = vunpack.c.l.b16 %v319
    %v1983 = vunpack.c.h.b16 %v319
    %v1984 = vunpack.c.l.b16 %v320
    %v1985 = vunpack.c.h.b16 %v320
    %v1986 = vunpack.c.l.b16 %v321
    %v1987 = vunpack.c.h.b16 %v321
    %v1988 = vunpack.c.l.b16 %v322
    %v1989 = vunpack.c.h.b16 %v322
    %v1990 = vunpack.c.l.b16 %v323
    %v1991 = vunpack.c.h.b16 %v323
    %v1992 = vunpack.c.l.b16 %v324
    %v1993 = vunpack.c.h.b16 %v324
    %v1994 = vunpack.c.l.b16 %v325
    %v1995 = vunpack.c.h.b16 %v325
    %v1996 = vunpack.c.l.b16 %v326
    %v1997 = vunpack.c.h.b16 %v326
    %v1998 = vunpack.c.l.b16 %v327
    %v1999 = vunpack.c.h.b16 %v327
    %v2000 = vunpack.c.l.b16 %v328
    %v2001 = vunpack.c.h.b16 %v328
    %v2002 = vunpack.c.l.b16 %v329
    %v2003 = vunpack.c.h.b16 %v329
    %v2004 = vunpack.c.l.b16 %v330
    %v2005 = vunpack.c.h.b16 %v330
    %v2006 = vunpack.c.l.b16 %v331
    %v2007 = vunpack.c.h.b16 %v331
    %v2008 = vunpack.c.l.b16 %v332
    %v2009 = vunpack.c.h.b16 %v332
    %v2010 = vunpack.c.l.b16 %v333
    %v2011 = vunpack.c.h.b16 %v333
    %v2012 = vunpack.c.l.b16 %v334
    %v2013 = vunpack.c.h.b16 %v334
    %v2014 = vunpack.c.l.b16 %v335
    %v2015 = vunpack.c.h.b16 %v335
    %v2016 = vunpack.c.l.b16 %v336
    %v2017 = vunpack.c.h.b16 %v336
    %v2018 = vunpack.c.l.b16 %v337
    %v2019 = vunpack.c.h.b16 %v337
    %v2020 = vunpack.c.l.b16 %v338
    %v2021 = vunpack.c.h.b16 %v338
    %v2022 = vunpack.c.l.b16 %v339
    %v2023 = vunpack.c.h.b16 %v339
    %v2024 = vunpack.c.l.b16 %v340
    %v2025 = vunpack.c.h.b16 %v340
    %v2026 = vunpack.c.l.b16 %v341
    %v2027 = vunpack.c.h.b16 %v341
    %v2028 = vunpack.c.l.b16 %v342
    %v2029 = vunpack.c.h.b16 %v342
    %v2030 = vunpack.c.l.b16 %v343
    %v2031 = vunpack.c.h.b16 %v343
    %v2032 = vunpack.c.l.b16 %v344
    %v2033 = vunpack.c.h.b16 %v344
    %v2034 = vunpack.c.l.b16 %v345
    %v2035 = vunpack.c.h.b16 %v345
    %v2036 = vunpack.c.l.b16 %v346
    %v2037 = vunpack.c.h.b16 %v346
    %v2038 = vunpack.c.l.b16 %v347
    %v2039 = vunpack.c.h.b16 %v347
    %v2040 = vunpack.c.l.b16 %v348
    %v2041 = vunpack.c.h.b16 %v348
    %v2042 = vunpack.c.l.b16 %v349
    %v2043 = vunpack.c.h.b16 %v349
    %v2044 = vunpack.c.l.b16 %v350
    %v2045 = vunpack.c.h.b16 %v350
    %v2046 = vunpack.c.l.b16 %v351
    %v2047 = vunpack.c.h.b16 %v351
    %v2048 = vunpack.c.l.b16 %v352
    %v2049 = vunpack.c.h.b16 %v352
    %v2050 = vunpack.c.l.b16 %v353
    %v2051 = vunpack.c.h.b16 %v353
    %v2052 = vunpack.c.l.b16 %v354
    %v2053 = vunpack.c.h.b16 %v354
    %v2054 = vunpack.c.l.b16 %v355
    %v2055 = vunpack.c.h.b16 %v355
    %v2056 = vunpack.c.l.b16 %v356
    %v2057 = vunpack.c.h.b16 %v356
    %v2058 = vunpack.c.l.b16 %v357
    %v2059 = vunpack.c.h.b16 %v357
    %v2060 = vunpack.c.l.b16 %v358
    %v2061 = vunpack.c.h.b16 %v358
    %v2062 = vunpack.c.l.b16 %v359
    %v2063 = vunpack.c.h.b16 %v359
    %v2064 = vunpack.c.l.b16 %v360
    %v2065 = vunpack.c.h.b16 %v360
    %v2066 = vunpack.c.l.b16 %v361
    %v2067 = vunpack.c.h.b16 %v361
    %v2068 = vunpack.c.l.b16 %v362
    %v2069 = vunpack.c.h.b16 %v362
    %v2070 = vunpack.c.l.b16 %v363
    %v2071 = vunpack.c.h.b16 %v363
    %v2072 = vunpack.c.l.b16 %v364
    %v2073 = vunpack.c.h.b16 %v364
    %v2074 = vunpack.c.l.b16 %v365
    %v2075 = vunpack.c.h.b16 %v365
    %v2076 = vunpack.c.l.b16 %v366
    %v2077 = vunpack.c.h.b16 %v366
    %v2078 = vunpack.c.l.b16 %v367
    %v2079 = vunpack.c.h.b16 %v367
    %v2080 = vunpack.c.l.b16 %v368
    %v2081 = vunpack.c.h.b16 %v368
    %v2082 = vunpack.c.l.b16 %v369
    %v2083 = vunpack.c.h.b16 %v369
    %v2084 = vunpack.c.l.b16 %v370
    %v2085 = vunpack.c.h.b16 %v370
    %v2086 = vunpack.c.l.b16 %v371
    %v2087 = vunpack.c.h.b16 %v371
    %v2088 = vunpack.c.l.b16 %v372
    %v2089 = vunpack.c.h.b16 %v372
    %v2090 = vunpack.c.l.b16 %v373
    %v2091 = vunpack.c.h.b16 %v373
    %v2092 = vunpack.c.l.b16 %v374
    %v2093 = vunpack.c.h.b16 %v374
    %v2094 = vunpack.c.l.b16 %v375
    %v2095 = vunpack.c.h.b16 %v375
    %v2096 = vunpack.c.l.b16 %v376
    %v2097 = vunpack.c.h.b16 %v376
    %v2098 = vunpack.c.l.b16 %v377
    %v2099 = vunpack.c.h.b16 %v377
    %v2100 = vunpack.c.l.b16 %v378
    %v2101 = vunpack.c.h.b16 %v378
    %v2102 = vunpack.c.l.b16 %v379
    %v2103 = vunpack.c.h.b16 %v379
    %v2104 = vunpack.c.l.b16 %v380
    %v2105 = vunpack.c.h.b16 %v380
    %v2106 = vunpack.c.l.b16 %v381
    %v2107 = vunpack.c.h.b16 %v381
    %v2108 = vunpack.c.l.b16 %v382
    %v2109 = vunpack.c.h.b16 %v382
    %v2110 = vunpack.c.l.b16 %v383
    %v2111 = vunpack.c.h.b16 %v383
    %v2112 = vunpack.c.l.b16 %v384
    %v2113 = vunpack.c.h.b16 %v384
    %v2114 = vunpack.c.l.b16 %v385
    %v2115 = vunpack.c.h.b16 %v385
    %v2116 = vunpack.c.l.b16 %v386
    %v2117 = vunpack.c.h.b16 %v386
    %v2118 = vunpack.c.l.b16 %v387
    %v2119 = vunpack.c.h.b16 %v387
    %v2120 = vunpack.c.l.b16 %v388
    %v2121 = vunpack.c.h.b16 %v388
    %v2122 = vunpack.c.l.b16 %v389
    %v2123 = vunpack.c.h.b16 %v389
    %v2124 = vunpack.c.l.b16 %v390
    %v2125 = vunpack.c.h.b16 %v390
    %v2126 = vunpack.c.l.b16 %v391
    %v2127 = vunpack.c.h.b16 %v391
    %v2128 = vunpack.c.l.b16 %v392
    %v2129 = vunpack.c.h.b16 %v392
    %v2130 = vunpack.c.l.b16 %v393
    %v2131 = vunpack.c.h.b16 %v393
    %v2132 = vunpack.c.l.b16 %v394
    %v2133 = vunpack.c.h.b16 %v394
    %v2134 = vunpack.c.l.b16 %v395
    %v2135 = vunpack.c.h.b16 %v395
    %v2136 = vunpack.c.l.b16 %v396
    %v2137 = vunpack.c.h.b16 %v396
    %v2138 = vunpack.c.l.b16 %v397
    %v2139 = vunpack.c.h.b16 %v397
    %v2140 = vunpack.c.l.b16 %v398
    %v2141 = vunpack.c.h.b16 %v398
    %v2142 = vunpack.c.l.b16 %v399
    %v2143 = vunpack.c.h.b16 %v399
    %v2144 = vunpack.c.l.b16 %v400
    %v2145 = vunpack.c.h.b16 %v400
    %v2146 = vunpack.c.l.b16 %v401
    %v2147 = vunpack.c.h.b16 %v401
    %v2148 = vunpack.c.l.b16 %v402
    %v2149 = vunpack.c.h.b16 %v402
    %v2150 = vunpack.c.l.b16 %v403
    %v2151 = vunpack.c.h.b16 %v403
    %v2152 = vunpack.c.l.b16 %v404
    %v2153 = vunpack.c.h.b16 %v404
    %v2154 = vunpack.c.l.b16 %v405
    %v2155 = vunpack.c.h.b16 %v405
    %v2156 = vunpack.c.l.b16 %v406
    %v2157 = vunpack.c.h.b16 %v406
    %v2158 = vunpack.c.l.b16 %v407
    %v2159 = vunpack.c.h.b16 %v407
    %v2160 = vunpack.c.l.b16 %v408
    %v2161 = vunpack.c.h.b16 %v408
    %v2162 = vunpack.c.l.b16 %v409
    %v2163 = vunpack.c.h.b16 %v409
    %v2164 = vunpack.c.l.b16 %v410
    %v2165 = vunpack.c.h.b16 %v410
    %v2166 = vunpack.c.l.b16 %v411
    %v2167 = vunpack.c.h.b16 %v411
    %v2168 = vunpack.c.l.b16 %v412
    %v2169 = vunpack.c.h.b16 %v412
    %v2170 = vunpack.c.l.b16 %v413
    %v2171 = vunpack.c.h.b16 %v413
    %v2172 = vunpack.c.l.b16 %v414
    %v2173 = vunpack.c.h.b16 %v414
    %v2174 = vunpack.c.l.b16 %v415
    %v2175 = vunpack.c.h.b16 %v415
    %v2176 = vunpack.c.l.b16 %v416
    %v2177 = vunpack.c.h.b16 %v416
    %v2178 = vunpack.c.l.b16 %v417
    %v2179 = vunpack.c.h.b16 %v417
    %v2180 = vunpack.c.l.b16 %v418
    %v2181 = vunpack.c.h.b16 %v418
    %v2182 = vunpack.c.l.b16 %v419
    %v2183 = vunpack.c.h.b16 %v419
    %v2184 = vunpack.c.l.b16 %v420
    %v2185 = vunpack.c.h.b16 %v420
    %v2186 = vunpack.c.l.b16 %v421
    %v2187 = vunpack.c.h.b16 %v421
    %v2188 = vunpack.c.l.b16 %v422
    %v2189 = vunpack.c.h.b16 %v422
    %v2190 = vunpack.c.l.b16 %v423
    %v2191 = vunpack.c.h.b16 %v423
    %v2192 = vunpack.c.l.b16 %v424
    %v2193 = vunpack.c.h.b16 %v424
    %v2194 = vunpack.c.l.b16 %v425
    %v2195 = vunpack.c.h.b16 %v425
    %v2196 = vunpack.c.l.b16 %v426
    %v2197 = vunpack.c.h.b16 %v426
    %v2198 = vunpack.c.l.b16 %v427
    %v2199 = vunpack.c.h.b16 %v427
    %v2200 = vunpack.c.l.b16 %v428
    %v2201 = vunpack.c.h.b16 %v428
    %v2202 = vunpack.c.l.b16 %v429
    %v2203 = vunpack.c.h.b16 %v429
    %v2204 = vunpack.c.l.b16 %v430
    %v2205 = vunpack.c.h.b16 %v430
    %v2206 = vunpack.c.l.b16 %v431
    %v2207 = vunpack.c.h.b16 %v431
    %v2208 = vunpack.c.l.b16 %v432
    %v2209 = vunpack.c.h.b16 %v432
    %v2210 = vunpack.c.l.b16 %v433
    %v2211 = vunpack.c.h.b16 %v433
    %v2212 = vunpack.c.l.b16 %v434
    %v2213 = vunpack.c.h.b16 %v434
    %v2214 = vunpack.c.l.b16 %v435
    %v2215 = vunpack.c.h.b16 %v435
    %v2216 = vunpack.c.l.b16 %v436
    %v2217 = vunpack.c.h.b16 %v436
    %v2218 = vunpack.c.l.b16 %v437
    %v2219 = vunpack.c.h.b16 %v437
    %v2220 = vunpack.c.l.b16 %v438
    %v2221 = vunpack.c.h.b16 %v438
    %v2222 = vunpack.c.l.b16 %v439
    %v2223 = vunpack.c.h.b16 %v439
    %v2224 = vunpack.c.l.b16 %v440
    %v2225 = vunpack.c.h.b16 %v440
    %v2226 = vunpack.c.l.b16 %v441
    %v2227 = vunpack.c.h.b16 %v441
    %v2228 = vunpack.c.l.b16 %v442
    %v2229 = vunpack.c.h.b16 %v442
    %v2230 = vunpack.c.l.b16 %v443
    %v2231 = vunpack.c.h.b16 %v443
    %v2232 = vunpack.c.l.b16 %v444
    %v2233 = vunpack.c.h.b16 %v444
    %v2234 = vunpack.c.l.b16 %v445
    %v2235 = vunpack.c.h.b16 %v445
    %v2236 = vunpack.c.l.b16 %v446
    %v2237 = vunpack.c.h.b16 %v446
    %v2238 = vunpack.c.l.b16 %v447
    %v2239 = vunpack.c.h.b16 %v447
    %v2240 = vunpack.c.l.b16 %v448
    %v2241 = vunpack.c.h.b16 %v448
    %v2242 = vunpack.c.l.b16 %v449
    %v2243 = vunpack.c.h.b16 %v449
    %v2244 = vunpack.c.l.b16 %v450
    %v2245 = vunpack.c.h.b16 %v450
    %v2246 = vunpack.c.l.b16 %v451
    %v2247 = vunpack.c.h.b16 %v451
    %v2248 = vunpack.c.l.b16 %v452
    %v2249 = vunpack.c.h.b16 %v452
    %v2250 = vunpack.c.l.b16 %v453
    %v2251 = vunpack.c.h.b16 %v453
    %v2252 = vunpack.c.l.b16 %v454
    %v2253 = vunpack.c.h.b16 %v454
    %v2254 = vunpack.c.l.b16 %v455
    %v2255 = vunpack.c.h.b16 %v455
    %v2256 = vunpack.c.l.b16 %v456
    %v2257 = vunpack.c.h.b16 %v456
    %v2258 = vunpack.c.l.b16 %v457
    %v2259 = vunpack.c.h.b16 %v457
    %v2260 = vunpack.c.l.b16 %v458
    %v2261 = vunpack.c.h.b16 %v458
    %v2262 = vunpack.c.l.b16 %v459
    %v2263 = vunpack.c.h.b16 %v459
    %v2264 = vunpack.c.l.b16 %v460
    %v2265 = vunpack.c.h.b16 %v460
    %v2266 = vunpack.c.l.b16 %v461
    %v2267 = vunpack.c.h.b16 %v461
    %v2268 = vunpack.c.l.b16 %v462
    %v2269 = vunpack.c.h.b16 %v462
    %v2270 = vunpack.c.l.b16 %v463
    %v2271 = vunpack.c.h.b16 %v463
    %v2272 = vunpack.c.l.b16 %v464
    %v2273 = vunpack.c.h.b16 %v464
    %v2274 = vunpack.c.l.b16 %v465
    %v2275 = vunpack.c.h.b16 %v465
    %v2276 = vunpack.c.l.b16 %v466
    %v2277 = vunpack.c.h.b16 %v466
    %v2278 = vunpack.c.l.b16 %v467
    %v2279 = vunpack.c.h.b16 %v467
    %v2280 = vunpack.c.l.b16 %v468
    %v2281 = vunpack.c.h.b16 %v468
    %v2282 = vunpack.c.l.b16 %v469
    %v2283 = vunpack.c.h.b16 %v469
    %v2284 = vunpack.c.l.b16 %v470
    %v2285 = vunpack.c.h.b16 %v470
    %v2286 = vunpack.c.l.b16 %v471
    %v2287 = vunpack.c.h.b16 %v471
    %v2288 = vunpack.c.l.b16 %v472
    %v2289 = vunpack.c.h.b16 %v472
    %v2290 = vunpack.c.l.b16 %v473
    %v2291 = vunpack.c.h.b16 %v473
    %v2292 = vunpack.c.l.b16 %v474
    %v2293 = vunpack.c.h.b16 %v474
    %v2294 = vunpack.c.l.b16 %v475
    %v2295 = vunpack.c.h.b16 %v475
    %v2296 = vunpack.c.l.b16 %v476
    %v2297 = vunpack.c.h.b16 %v476
    %v2298 = vunpack.c.l.b16 %v477
    %v2299 = vunpack.c.h.b16 %v477
    %v2300 = vunpack.c.l.b16 %v478
    %v2301 = vunpack.c.h.b16 %v478
    %v2302 = vunpack.c.l.b16 %v479
    %v2303 = vunpack.c.h.b16 %v479
    %v2304 = vunpack.c.l.b16 %v480
    %v2305 = vunpack.c.h.b16 %v480
    %v2306 = vunpack.c.l.b16 %v481
    %v2307 = vunpack.c.h.b16 %v481
    %v2308 = vunpack.c.l.b16 %v482
    %v2309 = vunpack.c.h.b16 %v482
    %v2310 = vunpack.c.l.b16 %v483
    %v2311 = vunpack.c.h.b16 %v483
    %v2312 = vunpack.c.l.b16 %v484
    %v2313 = vunpack.c.h.b16 %v484
    %v2314 = vunpack.c.l.b16 %v485
    %v2315 = vunpack.c.h.b16 %v485
    %v2316 = vunpack.c.l.b16 %v486
    %v2317 = vunpack.c.h.b16 %v486
    %v2318 = vunpack.c.l.b16 %v487
    %v2319 = vunpack.c.h.b16 %v487
    %v2320 = vunpack.c.l.b16 %v488
    %v2321 = vunpack.c.h.b16 %v488
    %v2322 = vunpack.c.l.b16 %v489
    %v2323 = vunpack.c.h.b16 %v489
    %v2324 = vunpack.c.l.b16 %v490
    %v2325 = vunpack.c.h.b16 %v490
    %v2326 = vunpack.c.l.b16 %v491
    %v2327 = vunpack.c.h.b16 %v491
    %v2328 = vunpack.c.l.b16 %v492
    %v2329 = vunpack.c.h.b16 %v492
    %v2330 = vunpack.c.l.b16 %v493
    %v2331 = vunpack.c.h.b16 %v493
    %v2332 = vunpack.c.l.b16 %v494
    %v2333 = vunpack.c.h.b16 %v494
    %v2334 = vunpack.c.l.b16 %v495
    %v2335 = vunpack.c.h.b16 %v495
    %v2336 = vunpack.c.l.b16 %v496
    %v2337 = vunpack.c.h.b16 %v496
    %v2338 = vunpack.c.l.b16 %v497
    %v2339 = vunpack.c.h.b16 %v497
    %v2340 = vunpack.c.l.b16 %v498
    %v2341 = vunpack.c.h.b16 %v498
    %v2342 = vunpack.c.l.b16 %v499
    %v2343 = vunpack.c.h.b16 %v499
    %v2344 = vunpack.c.l.b16 %v500
    %v2345 = vunpack.c.h.b16 %v500
    %v2346 = vunpack.c.l.b16 %v501
    %v2347 = vunpack.c.h.b16 %v501
    %v2348 = vunpack.c.l.b16 %v502
    %v2349 = vunpack.c.h.b16 %v502
    %v2350 = vunpack.c.l.b16 %v503
    %v2351 = vunpack.c.h.b16 %v503
    %v2352 = vunpack.c.l.b16 %v504
    %v2353 = vunpack.c.h.b16 %v504
    %v2354 = vunpack.c.l.b16 %v505
    %v2355 = vunpack.c.h.b16 %v505
    %v2356 = vunpack.c.l.b16 %v506
    %v2357 = vunpack.c.h.b16 %v506
    %v2358 = vunpack.c.l.b16 %v507
    %v2359 = vunpack.c.h.b16 %v507
    %v2360 = vunpack.c.l.b16 %v508
    %v2361 = vunpack.c.h.b16 %v508
    %v2362 = vunpack.c.l.b16 %v509
    %v2363 = vunpack.c.h.b16 %v509
    %v2364 = vunpack.c.l.b16 %v510
    %v2365 = vunpack.c.h.b16 %v510
    %v2366 = vunpack.c.l.b16 %v511
    %v2367 = vunpack.c.h.b16 %v511
    %v2368 = vunpack.c.l.b16 %v512
    %v2369 = vunpack.c.h.b16 %v512
    %v2370 = vunpack.c.l.b16 %v513
    %v2371 = vunpack.c.h.b16 %v513
    %v2372 = vunpack.c.l.b16 %v514
    %v2373 = vunpack.c.h.b16 %v514
    %v2374 = vunpack.c.l.b16 %v515
    %v2375 = vunpack.c.h.b16 %v515
    %v2376 = vunpack.c.l.b16 %v516
    %v2377 = vunpack.c.h.b16 %v516
    %v2378 = vunpack.c.l.b16 %v517
    %v2379 = vunpack.c.h.b16 %v517
    %v2380 = vunpack.c.l.b16 %v518
    %v2381 = vunpack.c.h.b16 %v518
    %v2382 = vunpack.c.l.b16 %v519
    %v2383 = vunpack.c.h.b16 %v519
    %v2384 = vunpack.c.l.b16 %v520
    %v2385 = vunpack.c.h.b16 %v520
    %v2386 = vunpack.c.l.b16 %v521
    %v2387 = vunpack.c.h.b16 %v521
    %v2388 = vunpack.c.l.b16 %v522
    %v2389 = vunpack.c.h.b16 %v522
    %v2390 = vunpack.c.l.b16 %v523
    %v2391 = vunpack.c.h.b16 %v523
    %v2392 = vunpack.c.l.b16 %v524
    %v2393 = vunpack.c.h.b16 %v524
    %v2394 = vunpack.c.l.b16 %v525
    %v2395 = vunpack.c.h.b16 %v525
    %v2396 = vunpack.c.l.b16 %v526
    %v2397 = vunpack.c.h.b16 %v526
    %v2398 = vunpack.c.l.b16 %v527
    %v2399 = vunpack.c.h.b16 %v527
    %v2400 = vunpack.c.l.b16 %v528
    %v2401 = vunpack.c.h.b16 %v528
    %v2402 = vunpack.c.l.b16 %v529
    %v2403 = vunpack.c.h.b16 %v529
    %v2404 = vunpack.c.l.b16 %v530
    %v2405 = vunpack.c.h.b16 %v530
    %v2406 = vunpack.c.l.b16 %v531
    %v2407 = vunpack.c.h.b16 %v531
    %v2408 = vunpack.c.l.b16 %v532
    %v2409 = vunpack.c.h.b16 %v532
    %v2410 = vunpack.c.l.b16 %v533
    %v2411 = vunpack.c.h.b16 %v533
    %v2412 = vunpack.c.l.b16 %v534
    %v2413 = vunpack.c.h.b16 %v534
    %v2414 = vunpack.c.l.b16 %v535
    %v2415 = vunpack.c.h.b16 %v535
    %v2416 = vunpack.c.l.b16 %v536
    %v2417 = vunpack.c.h.b16 %v536
    %v2418 = vunpack.c.l.b16 %v537
    %v2419 = vunpack.c.h.b16 %v537
    %v2420 = vunpack.c.l.b16 %v538
    %v2421 = vunpack.c.h.b16 %v538
    %v2422 = vunpack.c.l.b16 %v539
    %v2423 = vunpack.c.h.b16 %v539
    %v2424 = vunpack.c.l.b16 %v540
    %v2425 = vunpack.c.h.b16 %v540
    %v2426 = vunpack.c.l.b16 %v541
    %v2427 = vunpack.c.h.b16 %v541
    %v2428 = vunpack.c.l.b16 %v542
    %v2429 = vunpack.c.h.b16 %v542
    %v2430 = vunpack.c.l.b16 %v543
    %v2431 = vunpack.c.h.b16 %v543
    %v2432 = vunpack.c.l.b16 %v544
    %v2433 = vunpack.c.h.b16 %v544
    %v2434 = vunpack.c.l.b16 %v545
    %v2435 = vunpack.c.h.b16 %v545
    %v2436 = vunpack.c.l.b16 %v546
    %v2437 = vunpack.c.h.b16 %v546
    %v2438 = vunpack.c.l.b16 %v547
    %v2439 = vunpack.c.h.b16 %v547
    %v2440 = vunpack.c.l.b16 %v548
    %v2441 = vunpack.c.h.b16 %v548
    %v2442 = vunpack.c.l.b16 %v549
    %v2443 = vunpack.c.h.b16 %v549
    %v2444 = vunpack.c.l.b16 %v550
    %v2445 = vunpack.c.h.b16 %v550
    %v2446 = vunpack.c.l.b16 %v551
    %v2447 = vunpack.c.h.b16 %v551
    %v2448 = vunpack.c.l.b16 %v552
    %v2449 = vunpack.c.h.b16 %v552
    %v2450 = vunpack.c.l.b16 %v553
    %v2451 = vunpack.c.h.b16 %v553
    %v2452 = vunpack.c.l.b16 %v554
    %v2453 = vunpack.c.h.b16 %v554
    %v2454 = vunpack.c.l.b16 %v555
    %v2455 = vunpack.c.h.b16 %v555
    %v2456 = vunpack.c.l.b16 %v556
    %v2457 = vunpack.c.h.b16 %v556
    %v2458 = vunpack.c.l.b16 %v557
    %v2459 = vunpack.c.h.b16 %v557
    %v2460 = vunpack.c.l.b16 %v558
    %v2461 = vunpack.c.h.b16 %v558
    %v2462 = vunpack.c.l.b16 %v559
    %v2463 = vunpack.c.h.b16 %v559
    %v2464 = vunpack.c.l.b16 %v560
    %v2465 = vunpack.c.h.b16 %v560
    %v2466 = vunpack.c.l.b16 %v561
    %v2467 = vunpack.c.h.b16 %v561
    %v2468 = vunpack.c.l.b16 %v562
    %v2469 = vunpack.c.h.b16 %v562
    %v2470 = vunpack.c.l.b16 %v563
    %v2471 = vunpack.c.h.b16 %v563
    %v2472 = vunpack.c.l.b16 %v564
    %v2473 = vunpack.c.h.b16 %v564
    %v2474 = vunpack.c.l.b16 %v565
    %v2475 = vunpack.c.h.b16 %v565
    %v2476 = vunpack.c.l.b16 %v566
    %v2477 = vunpack.c.h.b16 %v566
    %v2478 = vunpack.c.l.b16 %v567
    %v2479 = vunpack.c.h.b16 %v567
    %v2480 = vunpack.c.l.b16 %v568
    %v2481 = vunpack.c.h.b16 %v568
    %v2482 = vunpack.c.l.b16 %v569
    %v2483 = vunpack.c.h.b16 %v569
    %v2484 = vunpack.c.l.b16 %v570
    %v2485 = vunpack.c.h.b16 %v570
    %v2486 = vunpack.c.l.b16 %v571
    %v2487 = vunpack.c.h.b16 %v571
    %v2488 = vunpack.c.l.b16 %v572
    %v2489 = vunpack.c.h.b16 %v572
    %v2490 = vunpack.c.l.b16 %v573
    %v2491 = vunpack.c.h.b16 %v573
    %v2492 = vunpack.c.l.b16 %v574
    %v2493 = vunpack.c.h.b16 %v574
    %v2494 = vunpack.c.l.b16 %v575
    %v2495 = vunpack.c.h.b16 %v575
    %v2496 = vunpack.c.l.b16 %v576
    %v2497 = vunpack.c.h.b16 %v576
    %v2498 = vunpack.c.l.b16 %v577
    %v2499 = vunpack.c.h.b16 %v577
    %v2500 = vunpack.c.l.b16 %v578
    %v2501 = vunpack.c.h.b16 %v578
    %v2502 = vunpack.c.l.b16 %v579
    %v2503 = vunpack.c.h.b16 %v579
    %v2504 = vunpack.c.l.b16 %v580
    %v2505 = vunpack.c.h.b16 %v580
    %v2506 = vunpack.c.l.b16 %v581
    %v2507 = vunpack.c.h.b16 %v581
    %v2508 = vunpack.c.l.b16 %v582
    %v2509 = vunpack.c.h.b16 %v582
    %v2510 = vunpack.c.l.b16 %v583
    %v2511 = vunpack.c.h.b16 %v583
    %v2512 = vunpack.c.l.b16 %v584
    %v2513 = vunpack.c.h.b16 %v584
    %v2514 = vunpack.c.l.b16 %v585
    %v2515 = vunpack.c.h.b16 %v585
    %v2516 = vunpack.c.l.b16 %v586
    %v2517 = vunpack.c.h.b16 %v586
    %v2518 = vunpack.c.l.b16 %v587
    %v2519 = vunpack.c.h.b16 %v587
    %v2520 = vunpack.c.l.b16 %v588
    %v2521 = vunpack.c.h.b16 %v588
    %v2522 = vunpack.c.l.b16 %v589
    %v2523 = vunpack.c.h.b16 %v589
    %v2524 = vunpack.c.l.b16 %v590
    %v2525 = vunpack.c.h.b16 %v590
    %v2526 = vunpack.c.l.b16 %v591
    %v2527 = vunpack.c.h.b16 %v591
    %v2528 = vunpack.c.l.b16 %v592
    %v2529 = vunpack.c.h.b16 %v592
    %v2530 = vunpack.c.l.b16 %v593
    %v2531 = vunpack.c.h.b16 %v593
    %v2532 = vunpack.c.l.b16 %v594
    %v2533 = vunpack.c.h.b16 %v594
    %v2534 = vunpack.c.l.b16 %v595
    %v2535 = vunpack.c.h.b16 %v595
    %v2536 = vunpack.c.l.b16 %v596
    %v2537 = vunpack.c.h.b16 %v596
    %v2538 = vunpack.c.l.b16 %v597
    %v2539 = vunpack.c.h.b16 %v597
    %v2540 = vunpack.c.l.b16 %v598
    %v2541 = vunpack.c.h.b16 %v598
    %v2542 = vunpack.c.l.b16 %v599
    %v2543 = vunpack.c.h.b16 %v599
    %v2544 = vunpack.c.l.b16 %v600
    %v2545 = vunpack.c.h.b16 %v600
    %v2546 = vunpack.c.l.b16 %v601
    %v2547 = vunpack.c.h.b16 %v601
    %v2548 = vunpack.c.l.b16 %v602
    %v2549 = vunpack.c.h.b16 %v602
    %v2550 = vunpack.c.l.b16 %v603
    %v2551 = vunpack.c.h.b16 %v603
    %v2552 = vunpack.c.l.b16 %v604
    %v2553 = vunpack.c.h.b16 %v604
    %v2554 = vunpack.c.l.b16 %v605
    %v2555 = vunpack.c.h.b16 %v605
    %v2556 = vunpack.c.l.b16 %v606
    %v2557 = vunpack.c.h.b16 %v606
    %v2558 = vunpack.c.l.b16 %v607
    %v2559 = vunpack.c.h.b16 %v607
    %v2560 = vunpack.c.l.b16 %v608
    %v2561 = vunpack.c.h.b16 %v608
    %v2562 = vunpack.c.l.b16 %v609
    %v2563 = vunpack.c.h.b16 %v609
    %v2564 = vunpack.c.l.b16 %v610
    %v2565 = vunpack.c.h.b16 %v610
    %v2566 = vunpack.c.l.b16 %v611
    %v2567 = vunpack.c.h.b16 %v611
    %v2568 = vunpack.c.l.b16 %v612
    %v2569 = vunpack.c.h.b16 %v612
    %v2570 = vunpack.c.l.b16 %v613
    %v2571 = vunpack.c.h.b16 %v613
    %v2572 = vunpack.c.l.b16 %v614
    %v2573 = vunpack.c.h.b16 %v614
    %v2574 = vunpack.c.l.b16 %v615
    %v2575 = vunpack.c.h.b16 %v615
    %v2576 = vunpack.c.l.b16 %v616
    %v2577 = vunpack.c.h.b16 %v616
    %v2578 = vunpack.c.l.b16 %v617
    %v2579 = vunpack.c.h.b16 %v617
    %v2580 = vunpack.c.l.b16 %v618
    %v2581 = vunpack.c.h.b16 %v618
    %v2582 = vunpack.c.l.b16 %v619
    %v2583 = vunpack.c.h.b16 %v619
    %v2584 = vunpack.c.l.b16 %v620
    %v2585 = vunpack.c.h.b16 %v620
    %v2586 = vunpack.c.l.b16 %v621
    %v2587 = vunpack.c.h.b16 %v621
    %v2588 = vunpack.c.l.b16 %v622
    %v2589 = vunpack.c.h.b16 %v622
    %v2590 = vunpack.c.l.b16 %v623
    %v2591 = vunpack.c.h.b16 %v623
    %v2592 = vunpack.c.l.b16 %v624
    %v2593 = vunpack.c.h.b16 %v624
    %v2594 = vunpack.c.l.b16 %v625
    %v2595 = vunpack.c.h.b16 %v625
    %v2596 = vunpack.c.l.b16 %v626
    %v2597 = vunpack.c.h.b16 %v626
    %v2598 = vunpack.c.l.b16 %v627
    %v2599 = vunpack.c.h.b16 %v627
    %v2600 = vunpack.c.l.b16 %v628
    %v2601 = vunpack.c.h.b16 %v628
    %v2602 = vunpack.c.l.b16 %v629
    %v2603 = vunpack.c.h.b16 %v629
    %v2604 = vunpack.c.l.b16 %v630
    %v2605 = vunpack.c.h.b16 %v630
    %v2606 = vunpack.c.l.b16 %v631
    %v2607 = vunpack.c.h.b16 %v631
    %v2608 = vunpack.c.l.b16 %v632
    %v2609 = vunpack.c.h.b16 %v632
    %v2610 = vunpack.c.l.b16 %v633
    %v2611 = vunpack.c.h.b16 %v633
    %v2612 = vunpack.c.l.b16 %v634
    %v2613 = vunpack.c.h.b16 %v634
    %v2614 = vunpack.c.l.b16 %v635
    %v2615 = vunpack.c.h.b16 %v635
    %v2616 = vunpack.c.l.b16 %v636
    %v2617 = vunpack.c.h.b16 %v636
    %v2618 = vunpack.c.l.b16 %v637
    %v2619 = vunpack.c.h.b16 %v637
    %v2620 = vunpack.c.l.b16 %v638
    %v2621 = vunpack.c.h.b16 %v638
    %v2622 = vunpack.c.l.b16 %v639
    %v2623 = vunpack.c.h.b16 %v639
    %v2624 = vunpack.c.l.b16 %v640
    %v2625 = vunpack.c.h.b16 %v640
    %v2626 = vunpack.c.l.b16 %v641
    %v2627 = vunpack.c.h.b16 %v641
    %v2628 = vunpack.c.l.b16 %v642
    %v2629 = vunpack.c.h.b16 %v642
    %v2630 = vunpack.c.l.b16 %v643
    %v2631 = vunpack.c.h.b16 %v643
    %v2632 = vunpack.c.l.b16 %v644
    %v2633 = vunpack.c.h.b16 %v644
    %v2634 = vunpack.c.l.b16 %v645
    %v2635 = vunpack.c.h.b16 %v645
    %v2636 = vunpack.c.l.b16 %v646
    %v2637 = vunpack.c.h.b16 %v646
    %v2638 = vunpack.c.l.b16 %v647
    %v2639 = vunpack.c.h.b16 %v647
    %v2640 = vunpack.c.l.b16 %v648
    %v2641 = vunpack.c.h.b16 %v648
    %v2642 = vunpack.c.l.b16 %v649
    %v2643 = vunpack.c.h.b16 %v649
    %v2644 = vunpack.c.l.b16 %v650
    %v2645 = vunpack.c.h.b16 %v650
    %v2646 = vunpack.c.l.b16 %v651
    %v2647 = vunpack.c.h.b16 %v651
    %v2648 = vunpack.c.l.b16 %v652
    %v2649 = vunpack.c.h.b16 %v652
    %v2650 = vunpack.c.l.b16 %v653
    %v2651 = vunpack.c.h.b16 %v653
    %v2652 = vunpack.c.l.b16 %v654
    %v2653 = vunpack.c.h.b16 %v654
    %v2654 = vunpack.c.l.b16 %v655
    %v2655 = vunpack.c.h.b16 %v655
    %v2656 = vunpack.c.l.b16 %v656
    %v2657 = vunpack.c.h.b16 %v656
    %v2658 = vunpack.c.l.b16 %v657
    %v2659 = vunpack.c.h.b16 %v657
    %v2660 = vunpack.c.l.b16 %v658
    %v2661 = vunpack.c.h.b16 %v658
    %v2662 = vunpack.c.l.b16 %v659
    %v2663 = vunpack.c.h.b16 %v659
    %v2664 = vunpack.c.l.b16 %v660
    %v2665 = vunpack.c.h.b16 %v660
    %v2666 = vunpack.c.l.b16 %v661
    %v2667 = vunpack.c.h.b16 %v661
    %v2668 = vunpack.c.l.b16 %v662
    %v2669 = vunpack.c.h.b16 %v662
    %v2670 = vunpack.c.l.b16 %v663
    %v2671 = vunpack.c.h.b16 %v663
    %v2672 = vunpack.c.l.b16 %v664
    %v2673 = vunpack.c.h.b16 %v664
    %v2674 = vunpack.c.l.b16 %v665
    %v2675 = vunpack.c.h.b16 %v665
    %v2676 = vunpack.c.l.b16 %v666
    %v2677 = vunpack.c.h.b16 %v666
    %v2678 = vunpack.c.l.b16 %v667
    %v2679 = vunpack.c.h.b16 %v667
    %v2680 = vunpack.c.l.b16 %v668
    %v2681 = vunpack.c.h.b16 %v668
    %v2682 = vunpack.c.l.b16 %v669
    %v2683 = vunpack.c.h.b16 %v669
    %v2684 = vunpack.c.l.b16 %v670
    %v2685 = vunpack.c.h.b16 %v670
    %v2686 = vunpack.c.l.b16 %v671
    %v2687 = vunpack.c.h.b16 %v671
    %v2688 = vunpack.c.l.b16 %v672
    %v2689 = vunpack.c.h.b16 %v672
    %v2690 = vunpack.c.l.b16 %v673
    %v2691 = vunpack.c.h.b16 %v673
    %v2692 = vunpack.c.l.b16 %v674
    %v2693 = vunpack.c.h.b16 %v674
    %v2694 = vunpack.c.l.b16 %v675
    %v2695 = vunpack.c.h.b16 %v675
    %v2696 = vunpack.c.l.b16 %v676
    %v2697 = vunpack.c.h.b16 %v676
    %v2698 = vunpack.c.l.b16 %v677
    %v2699 = vunpack.c.h.b16 %v677
    %v2700 = vunpack.c.l.b16 %v678
    %v2701 = vunpack.c.h.b16 %v678
    %v2702 = vunpack.c.l.b16 %v679
    %v2703 = vunpack.c.h.b16 %v679
    %v2704 = vunpack.c.l.b16 %v680
    %v2705 = vunpack.c.h.b16 %v680
    %v2706 = vunpack.c.l.b16 %v681
    %v2707 = vunpack.c.h.b16 %v681
    %v2708 = vunpack.c.l.b16 %v682
    %v2709 = vunpack.c.h.b16 %v682
    %v2710 = vunpack.c.l.b16 %v683
    %v2711 = vunpack.c.h.b16 %v683
    %v2712 = vunpack.c.l.b16 %v684
    %v2713 = vunpack.c.h.b16 %v684
    %v2714 = vunpack.c.l.b16 %v685
    %v2715 = vunpack.c.h.b16 %v685
    %v2716 = vunpack.c.l.b16 %v686
    %v2717 = vunpack.c.h.b16 %v686
    %v2718 = vunpack.c.l.b16 %v687
    %v2719 = vunpack.c.h.b16 %v687
    %v2720 = vunpack.c.l.b16 %v688
    %v2721 = vunpack.c.h.b16 %v688
    %v2722 = vunpack.c.l.b16 %v689
    %v2723 = vunpack.c.h.b16 %v689
    %v2724 = vunpack.c.l.b16 %v690
    %v2725 = vunpack.c.h.b16 %v690
    %v2726 = vunpack.c.l.b16 %v691
    %v2727 = vunpack.c.h.b16 %v691
    %v2728 = vunpack.c.l.b16 %v692
    %v2729 = vunpack.c.h.b16 %v692
    %v2730 = vunpack.c.l.b16 %v693
    %v2731 = vunpack.c.h.b16 %v693
    %v2732 = vunpack.c.l.b16 %v694
    %v2733 = vunpack.c.h.b16 %v694
    %v2734 = vunpack.c.l.b16 %v695
    %v2735 = vunpack.c.h.b16 %v695
    %v2736 = vunpack.c.l.b16 %v696
    %v2737 = vunpack.c.h.b16 %v696
    %v2738 = vunpack.c.l.b16 %v697
    %v2739 = vunpack.c.h.b16 %v697
    %v2740 = vunpack.c.l.b16 %v698
    %v2741 = vunpack.c.h.b16 %v698
    %v2742 = vunpack.c.l.b16 %v699
    %v2743 = vunpack.c.h.b16 %v699
    %v2744 = vunpack.c.l.b16 %v700
    %v2745 = vunpack.c.h.b16 %v700
    %v2746 = vunpack.c.l.b16 %v701
    %v2747 = vunpack.c.h.b16 %v701
    %v2748 = vunpack.c.l.b16 %v702
    %v2749 = vunpack.c.h.b16 %v702
    %v2750 = vunpack.c.l.b16 %v703
    %v2751 = vunpack.c.h.b16 %v703
    %v2752 = vunpack.c.l.b16 %v704
    %v2753 = vunpack.c.h.b16 %v704
    %v2754 = vunpack.c.l.b16 %v705
    %v2755 = vunpack.c.h.b16 %v705
    %v2756 = vunpack.c.l.b16 %v706
    %v2757 = vunpack.c.h.b16 %v706
    %v2758 = vunpack.c.l.b16 %v707
    %v2759 = vunpack.c.h.b16 %v707
    %v2760 = vunpack.c.l.b16 %v708
    %v2761 = vunpack.c.h.b16 %v708
    %v2762 = vunpack.c.l.b16 %v709
    %v2763 = vunpack.c.h.b16 %v709
    %v2764 = vunpack.c.l.b16 %v710
    %v2765 = vunpack.c.h.b16 %v710
    %v2766 = vunpack.c.l.b16 %v711
    %v2767 = vunpack.c.h.b16 %v711
    %v2768 = vunpack.c.l.b16 %v712
    %v2769 = vunpack.c.h.b16 %v712
    %v2770 = vunpack.c.l.b16 %v713
    %v2771 = vunpack.c.h.b16 %v713
    %v2772 = vunpack.c.l.b16 %v714
    %v2773 = vunpack.c.h.b16 %v714
    %v2774 = vunpack.c.l.b16 %v715
    %v2775 = vunpack.c.h.b16 %v715
    %v2776 = vunpack.c.l.b16 %v716
    %v2777 = vunpack.c.h.b16 %v716
    %v2778 = vunpack.c.l.b16 %v717
    %v2779 = vunpack.c.h.b16 %v717
    %v2780 = vunpack.c.l.b16 %v718
    %v2781 = vunpack.c.h.b16 %v718
    %v2782 = vunpack.c.l.b16 %v719
    %v2783 = vunpack.c.h.b16 %v719
    %v2784 = vunpack.c.l.b16 %v720
    %v2785 = vunpack.c.h.b16 %v720
    %v2786 = vunpack.c.l.b16 %v721
    %v2787 = vunpack.c.h.b16 %v721
    %v2788 = vunpack.c.l.b16 %v722
    %v2789 = vunpack.c.h.b16 %v722
    %v2790 = vunpack.c.l.b16 %v723
    %v2791 = vunpack.c.h.b16 %v723
    %v2792 = vunpack.c.l.b16 %v724
    %v2793 = vunpack.c.h.b16 %v724
    %v2794 = vunpack.c.l.b16 %v725
    %v2795 = vunpack.c.h.b16 %v725
    %v2796 = vunpack.c.l.b16 %v726
    %v2797 = vunpack.c.h.b16 %v726
    %v2798 = vunpack.c.l.b16 %v727
    %v2799 = vunpack.c.h.b16 %v727
    %v2800 = vunpack.c.l.b16 %v728
    %v2801 = vunpack.c.h.b16 %v728
    %v2802 = vunpack.c.l.b16 %v729
    %v2803 = vunpack.c.h.b16 %v729
    %v2804 = vunpack.c.l.b16 %v730
    %v2805 = vunpack.c.h.b16 %v730
    %v2806 = vunpack.c.l.b16 %v731
    %v2807 = vunpack.c.h.b16 %v731
    %v2808 = vunpack.c.l.b16 %v732
    %v2809 = vunpack.c.h.b16 %v732
    %v2810 = vunpack.c.l.b16 %v733
    %v2811 = vunpack.c.h.b16 %v733
    %v2812 = vunpack.c.l.b16 %v734
    %v2813 = vunpack.c.h.b16 %v734
    %v2814 = vunpack.c.l.b16 %v735
    %v2815 = vunpack.c.h.b16 %v735
    %v2816 = vunpack.c.l.b16 %v736
    %v2817 = vunpack.c.h.b16 %v736
    %v2818 = vunpack.c.l.b16 %v737
    %v2819 = vunpack.c.h.b16 %v737
    %v2820 = vunpack.c.l.b16 %v738
    %v2821 = vunpack.c.h.b16 %v738
    %v2822 = vunpack.c.l.b16 %v739
    %v2823 = vunpack.c.h.b16 %v739
    %v2824 = vunpack.c.l.b16 %v740
    %v2825 = vunpack.c.h.b16 %v740
    %v2826 = vunpack.c.l.b16 %v741
    %v2827 = vunpack.c.h.b16 %v741
    %v2828 = vunpack.c.l.b16 %v742
    %v2829 = vunpack.c.h.b16 %v742
    %v2830 = vunpack.c.l.b16 %v743
    %v2831 = vunpack.c.h.b16 %v743
    %v2832 = vunpack.c.l.b16 %v744
    %v2833 = vunpack.c.h.b16 %v744
    %v2834 = vunpack.c.l.b16 %v745
    %v2835 = vunpack.c.h.b16 %v745
    %v2836 = vunpack.c.l.b16 %v746
    %v2837 = vunpack.c.h.b16 %v746
    %v2838 = vunpack.c.l.b16 %v747
    %v2839 = vunpack.c.h.b16 %v747
    %v2840 = vunpack.c.l.b16 %v748
    %v2841 = vunpack.c.h.b16 %v748
    %v2842 = vunpack.c.l.b16 %v749
    %v2843 = vunpack.c.h.b16 %v749
    %v2844 = vunpack.c.l.b16 %v750
    %v2845 = vunpack.c.h.b16 %v750
    %v2846 = vunpack.c.l.b16 %v751
    %v2847 = vunpack.c.h.b16 %v751
    %v2848 = vunpack.c.l.b16 %v752
    %v2849 = vunpack.c.h.b16 %v752
    %v2850 = vunpack.c.l.b16 %v753
    %v2851 = vunpack.c.h.b16 %v753
    %v2852 = vunpack.c.l.b16 %v754
    %v2853 = vunpack.c.h.b16 %v754
    %v2854 = vunpack.c.l.b16 %v755
    %v2855 = vunpack.c.h.b16 %v755
    %v2856 = vunpack.c.l.b16 %v756
    %v2857 = vunpack.c.h.b16 %v756
    %v2858 = vunpack.c.l.b16 %v757
    %v2859 = vunpack.c.h.b16 %v757
    %v2860 = vunpack.c.l.b16 %v758
    %v2861 = vunpack.c.h.b16 %v758
    %v2862 = vunpack.c.l.b16 %v759
    %v2863 = vunpack.c.h.b16 %v759
    %v2864 = vunpack.c.l.b16 %v760
    %v2865 = vunpack.c.h.b16 %v760
    %v2866 = vunpack.c.l.b16 %v761
    %v2867 = vunpack.c.h.b16 %v761
    %v2868 = vunpack.c.l.b16 %v762
    %v2869 = vunpack.c.h.b16 %v762
    %v2870 = vunpack.c.l.b16 %v763
    %v2871 = vunpack.c.h.b16 %v763
    %v2872 = vunpack.c.l.b16 %v764
    %v2873 = vunpack.c.h.b16 %v764
    %v2874 = vunpack.c.l.b16 %v765
    %v2875 = vunpack.c.h.b16 %v765
    %v2876 = vunpack.c.l.b16 %v766
    %v2877 = vunpack.c.h.b16 %v766
    %v2878 = vunpack.c.l.b16 %v767
    %v2879 = vunpack.c.h.b16 %v767
    %v2880 = vunpack.c.l.b16 %v768
    %v2881 = vunpack.c.h.b16 %v768
    %v2882 = vunpack.c.l.b16 %v769
    %v2883 = vunpack.c.h.b16 %v769
    %v2884 = vunpack.c.l.b16 %v770
    %v2885 = vunpack.c.h.b16 %v770
    %v2886 = vunpack.c.l.b16 %v771
    %v2887 = vunpack.c.h.b16 %v771
    %v2888 = vunpack.c.l.b16 %v772
    %v2889 = vunpack.c.h.b16 %v772
    %v2890 = vunpack.c.l.b16 %v773
    %v2891 = vunpack.c.h.b16 %v773
    %v2892 = vunpack.c.l.b16 %v774
    %v2893 = vunpack.c.h.b16 %v774
    %v2894 = vunpack.c.l.b16 %v775
    %v2895 = vunpack.c.h.b16 %v775
    %v2896 = vunpack.c.l.b16 %v776
    %v2897 = vunpack.c.h.b16 %v776
    %v2898 = vunpack.c.l.b16 %v777
    %v2899 = vunpack.c.h.b16 %v777
    %v2900 = vunpack.c.l.b16 %v778
    %v2901 = vunpack.c.h.b16 %v778
    %v2902 = vunpack.c.l.b16 %v779
    %v2903 = vunpack.c.h.b16 %v779
    %v2904 = vunpack.c.l.b16 %v780
    %v2905 = vunpack.c.h.b16 %v780
    %v2906 = vunpack.c.l.b16 %v781
    %v2907 = vunpack.c.h.b16 %v781
    %v2908 = vunpack.c.l.b16 %v782
    %v2909 = vunpack.c.h.b16 %v782
    %v2910 = vunpack.c.l.b16 %v783
    %v2911 = vunpack.c.h.b16 %v783
    %v2912 = vunpack.c.l.b16 %v784
    %v2913 = vunpack.c.h.b16 %v784
    %v2914 = vunpack.c.l.b16 %v785
    %v2915 = vunpack.c.h.b16 %v785
    %v2916 = vunpack.c.l.b16 %v786
    %v2917 = vunpack.c.h.b16 %v786
    %v2918 = vunpack.c.l.b16 %v787
    %v2919 = vunpack.c.h.b16 %v787
    %v2920 = vunpack.c.l.b16 %v788
    %v2921 = vunpack.c.h.b16 %v788
    %v2922 = vunpack.c.l.b16 %v789
    %v2923 = vunpack.c.h.b16 %v789
    %v2924 = vunpack.c.l.b16 %v790
    %v2925 = vunpack.c.h.b16 %v790
    %v2926 = vunpack.c.l.b16 %v791
    %v2927 = vunpack.c.h.b16 %v791
    %v2928 = vunpack.c.l.b16 %v792
    %v2929 = vunpack.c.h.b16 %v792
    %v2930 = vunpack.c.l.b16 %v793
    %v2931 = vunpack.c.h.b16 %v793
    %v2932 = vunpack.c.l.b16 %v794
    %v2933 = vunpack.c.h.b16 %v794
    %v2934 = vunpack.c.l.b16 %v795
    %v2935 = vunpack.c.h.b16 %v795
    %v2936 = vunpack.c.l.b16 %v796
    %v2937 = vunpack.c.h.b16 %v796
    %v2938 = vunpack.c.l.b16 %v797
    %v2939 = vunpack.c.h.b16 %v797
    %v2940 = vunpack.c.l.b16 %v798
    %v2941 = vunpack.c.h.b16 %v798
    %v2942 = vunpack.c.l.b16 %v799
    %v2943 = vunpack.c.h.b16 %v799
    %v2944 = vunpack.c.l.b16 %v800
    %v2945 = vunpack.c.h.b16 %v800
    %v2946 = vunpack.c.l.b16 %v801
    %v2947 = vunpack.c.h.b16 %v801
    %v2948 = vunpack.c.l.b16 %v802
    %v2949 = vunpack.c.h.b16 %v802
    %v2950 = vunpack.c.l.b16 %v803
    %v2951 = vunpack.c.h.b16 %v803
    %v2952 = vunpack.c.l.b16 %v804
    %v2953 = vunpack.c.h.b16 %v804
    %v2954 = vunpack.c.l.b16 %v805
    %v2955 = vunpack.c.h.b16 %v805
    %v2956 = vunpack.c.l.b16 %v806
    %v2957 = vunpack.c.h.b16 %v806
    %v2958 = vunpack.c.l.b16 %v807
    %v2959 = vunpack.c.h.b16 %v807
    %v2960 = vunpack.c.l.b16 %v808
    %v2961 = vunpack.c.h.b16 %v808
    %v2962 = vunpack.c.l.b16 %v809
    %v2963 = vunpack.c.h.b16 %v809
    %v2964 = vunpack.c.l.b16 %v810
    %v2965 = vunpack.c.h.b16 %v810
    %v2966 = vunpack.c.l.b16 %v811
    %v2967 = vunpack.c.h.b16 %v811
    %v2968 = vunpack.c.l.b16 %v812
    %v2969 = vunpack.c.h.b16 %v812
    %v2970 = vunpack.c.l.b16 %v813
    %v2971 = vunpack.c.h.b16 %v813
    %v2972 = vunpack.c.l.b16 %v814
    %v2973 = vunpack.c.h.b16 %v814
    %v2974 = vunpack.c.l.b16 %v815
    %v2975 = vunpack.c.h.b16 %v815
    %v2976 = vunpack.c.l.b16 %v816
    %v2977 = vunpack.c.h.b16 %v816
    %v2978 = vunpack.c.l.b16 %v817
    %v2979 = vunpack.c.h.b16 %v817
    %v2980 = vunpack.c.l.b16 %v818
    %v2981 = vunpack.c.h.b16 %v818
    %v2982 = vunpack.c.l.b16 %v819
    %v2983 = vunpack.c.h.b16 %v819
    %v2984 = vunpack.c.l.b16 %v820
    %v2985 = vunpack.c.h.b16 %v820
    %v2986 = vunpack.c.l.b16 %v821
    %v2987 = vunpack.c.h.b16 %v821
    %v2988 = vunpack.c.l.b16 %v822
    %v2989 = vunpack.c.h.b16 %v822
    %v2990 = vunpack.c.l.b16 %v823
    %v2991 = vunpack.c.h.b16 %v823
    %v2992 = vunpack.c.l.b16 %v824
    %v2993 = vunpack.c.h.b16 %v824
    %v2994 = vunpack.c.l.b16 %v825
    %v2995 = vunpack.c.h.b16 %v825
    %v2996 = vunpack.c.l.b16 %v826
    %v2997 = vunpack.c.h.b16 %v826
    %v2998 = vunpack.c.l.b16 %v827
    %v2999 = vunpack.c.h.b16 %v827
    %v3000 = vunpack.c.l.b16 %v828
    %v3001 = vunpack.c.h.b16 %v828
    %v3002 = vunpack.c.l.b16 %v829
    %v3003 = vunpack.c.h.b16 %v829
    %v3004 = vunpack.c.l.b16 %v830
    %v3005 = vunpack.c.h.b16 %v830
    %v3006 = vunpack.c.l.b16 %v831
    %v3007 = vunpack.c.h.b16 %v831
    %v3008 = vunpack.c.l.b16 %v832
    %v3009 = vunpack.c.h.b16 %v832
    %v3010 = vunpack.c.l.b16 %v833
    %v3011 = vunpack.c.h.b16 %v833
    %v3012 = vunpack.c.l.b16 %v834
    %v3013 = vunpack.c.h.b16 %v834
    %v3014 = vunpack.c.l.b16 %v835
    %v3015 = vunpack.c.h.b16 %v835
    %v3016 = vunpack.c.l.b16 %v836
    %v3017 = vunpack.c.h.b16 %v836
    %v3018 = vunpack.c.l.b16 %v837
    %v3019 = vunpack.c.h.b16 %v837
    %v3020 = vunpack.c.l.b16 %v838
    %v3021 = vunpack.c.h.b16 %v838
    %v3022 = vunpack.c.l.b16 %v839
    %v3023 = vunpack.c.h.b16 %v839
    %v3024 = vunpack.c.l.b16 %v840
    %v3025 = vunpack.c.h.b16 %v840
    %v3026 = vunpack.c.l.b16 %v841
    %v3027 = vunpack.c.h.b16 %v841
    %v3028 = vunpack.c.l.b16 %v842
    %v3029 = vunpack.c.h.b16 %v842
    %v3030 = vunpack.c.l.b16 %v843
    %v3031 = vunpack.c.h.b16 %v843
    %v3032 = vunpack.c.l.b16 %v844
    %v3033 = vunpack.c.h.b16 %v844
    %v3034 = vunpack.c.l.b16 %v845
    %v3035 = vunpack.c.h.b16 %v845
    %v3036 = vunpack.c.l.b16 %v846
    %v3037 = vunpack.c.h.b16 %v846
    %v3038 = vunpack.c.l.b16 %v847
    %v3039 = vunpack.c.h.b16 %v847
    %v3040 = vunpack.c.l.b16 %v848
    %v3041 = vunpack.c.h.b16 %v848
    %v3042 = vunpack.c.l.b16 %v849
    %v3043 = vunpack.c.h.b16 %v849
    %v3044 = vunpack.c.l.b16 %v850
    %v3045 = vunpack.c.h.b16 %v850
    %v3046 = vunpack.c.l.b16 %v851
    %v3047 = vunpack.c.h.b16 %v851
    %v3048 = vunpack.c.l.b16 %v852
    %v3049 = vunpack.c.h.b16 %v852
    %v3050 = vunpack.c.l.b16 %v853
    %v3051 = vunpack.c.h.b16 %v853
    %v3052 = vunpack.c.l.b16 %v854
    %v3053 = vunpack.c.h.b16 %v854
    %v3054 = vunpack.c.l.b16 %v855
    %v3055 = vunpack.c.h.b16 %v855
    %v3056 = vunpack.c.l.b16 %v856
    %v3057 = vunpack.c.h.b16 %v856
    %v3058 = vunpack.c.l.b16 %v857
    %v3059 = vunpack.c.h.b16 %v857
    %v3060 = vunpack.c.l.b16 %v858
    %v3061 = vunpack.c.h.b16 %v858
    %v3062 = vunpack.c.l.b16 %v859
    %v3063 = vunpack.c.h.b16 %v859
    %v3064 = vunpack.c.l.b16 %v860
    %v3065 = vunpack.c.h.b16 %v860
    %v3066 = vunpack.c.l.b16 %v861
    %v3067 = vunpack.c.h.b16 %v861
    %v3068 = vunpack.c.l.b16 %v862
    %v3069 = vunpack.c.h.b16 %v862
    %v3070 = vunpack.c.l.b16 %v863
    %v3071 = vunpack.c.h.b16 %v863
    %v3072 = vunpack.c.l.b16 %v864
    %v3073 = vunpack.c.h.b16 %v864
    %v3074 = vunpack.c.l.b16 %v865
    %v3075 = vunpack.c.h.b16 %v865
    %v3076 = vunpack.c.l.b16 %v866
    %v3077 = vunpack.c.h.b16 %v866
    %v3078 = vunpack.c.l.b16 %v867
    %v3079 = vunpack.c.h.b16 %v867
    %v3080 = vunpack.c.l.b16 %v868
    %v3081 = vunpack.c.h.b16 %v868
    %v3082 = vunpack.c.l.b16 %v869
    %v3083 = vunpack.c.h.b16 %v869
    %v3084 = vunpack.c.l.b16 %v870
    %v3085 = vunpack.c.h.b16 %v870
    %v3086 = vunpack.c.l.b16 %v871
    %v3087 = vunpack.c.h.b16 %v871
    %v3088 = vunpack.c.l.b16 %v872
    %v3089 = vunpack.c.h.b16 %v872
    %v3090 = vunpack.c.l.b16 %v873
    %v3091 = vunpack.c.h.b16 %v873
    %v3092 = vunpack.c.l.b16 %v874
    %v3093 = vunpack.c.h.b16 %v874
    %v3094 = vunpack.c.l.b16 %v875
    %v3095 = vunpack.c.h.b16 %v875
    %v3096 = vunpack.c.l.b16 %v876
    %v3097 = vunpack.c.h.b16 %v876
    %v3098 = vunpack.c.l.b16 %v877
    %v3099 = vunpack.c.h.b16 %v877
    %v3100 = vunpack.c.l.b16 %v878
    %v3101 = vunpack.c.h.b16 %v878
    %v3102 = vunpack.c.l.b16 %v879
    %v3103 = vunpack.c.h.b16 %v879
    %v3104 = vunpack.c.l.b16 %v880
    %v3105 = vunpack.c.h.b16 %v880
    %v3106 = vunpack.c.l.b16 %v881
    %v3107 = vunpack.c.h.b16 %v881
    %v3108 = vunpack.c.l.b16 %v882
    %v3109 = vunpack.c.h.b16 %v882
    %v3110 = vunpack.c.l.b16 %v883
    %v3111 = vunpack.c.h.b16 %v883
    %v3112 = vunpack.c.l.b16 %v884
    %v3113 = vunpack.c.h.b16 %v884
    %v3114 = vunpack.c.l.b16 %v885
    %v3115 = vunpack.c.h.b16 %v885
    %v3116 = vunpack.c.l.b16 %v886
    %v3117 = vunpack.c.h.b16 %v886
    %v3118 = vunpack.c.l.b16 %v887
    %v3119 = vunpack.c.h.b16 %v887
    %v3120 = vunpack.c.l.b16 %v888
    %v3121 = vunpack.c.h.b16 %v888
    %v3122 = vunpack.c.l.b16 %v889
    %v3123 = vunpack.c.h.b16 %v889
    %v3124 = vunpack.c.l.b16 %v890
    %v3125 = vunpack.c.h.b16 %v890
    %v3126 = vunpack.c.l.b16 %v891
    %v3127 = vunpack.c.h.b16 %v891
    %v3128 = vunpack.c.l.b16 %v892
    %v3129 = vunpack.c.h.b16 %v892
    %v3130 = vunpack.c.l.b16 %v893
    %v3131 = vunpack.c.h.b16 %v893
    %v3132 = vunpack.c.l.b16 %v894
    %v3133 = vunpack.c.h.b16 %v894
    %v3134 = vunpack.c.l.b16 %v895
    %v3135 = vunpack.c.h.b16 %v895
    %v3136 = vunpack.c.l.b16 %v896
    %v3137 = vunpack.c.h.b16 %v896
    %v3138 = vunpack.c.l.b16 %v897
    %v3139 = vunpack.c.h.b16 %v897
    %v3140 = vunpack.c.l.b16 %v898
    %v3141 = vunpack.c.h.b16 %v898
    %v3142 = vunpack.c.l.b16 %v899
    %v3143 = vunpack.c.h.b16 %v899
    %v3144 = vunpack.c.l.b16 %v900
    %v3145 = vunpack.c.h.b16 %v900
    %v3146 = vunpack.c.l.b16 %v901
    %v3147 = vunpack.c.h.b16 %v901
    %v3148 = vunpack.c.l.b16 %v902
    %v3149 = vunpack.c.h.b16 %v902
    %v3150 = vunpack.c.l.b16 %v903
    %v3151 = vunpack.c.h.b16 %v903
    %v3152 = vunpack.c.l.b16 %v904
    %v3153 = vunpack.c.h.b16 %v904
    %v3154 = vunpack.c.l.b16 %v905
    %v3155 = vunpack.c.h.b16 %v905
    %v3156 = vunpack.c.l.b16 %v906
    %v3157 = vunpack.c.h.b16 %v906
    %v3158 = vunpack.c.l.b16 %v907
    %v3159 = vunpack.c.h.b16 %v907
    %v3160 = vunpack.c.l.b16 %v908
    %v3161 = vunpack.c.h.b16 %v908
    %v3162 = vunpack.c.l.b16 %v909
    %v3163 = vunpack.c.h.b16 %v909
    %v3164 = vunpack.c.l.b16 %v910
    %v3165 = vunpack.c.h.b16 %v910
    %v3166 = vunpack.c.l.b16 %v911
    %v3167 = vunpack.c.h.b16 %v911
    %v3168 = vunpack.c.l.b16 %v912
    %v3169 = vunpack.c.h.b16 %v912
    %v3170 = vunpack.c.l.b16 %v913
    %v3171 = vunpack.c.h.b16 %v913
    %v3172 = vunpack.c.l.b16 %v914
    %v3173 = vunpack.c.h.b16 %v914
    %v3174 = vunpack.c.l.b16 %v915
    %v3175 = vunpack.c.h.b16 %v915
    %v3176 = vunpack.c.l.b16 %v916
    %v3177 = vunpack.c.h.b16 %v916
    %v3178 = vunpack.c.l.b16 %v917
    %v3179 = vunpack.c.h.b16 %v917
    %v3180 = vunpack.c.l.b16 %v918
    %v3181 = vunpack.c.h.b16 %v918
    %v3182 = vunpack.c.l.b16 %v919
    %v3183 = vunpack.c.h.b16 %v919
    %v3184 = vunpack.c.l.b16 %v920
    %v3185 = vunpack.c.h.b16 %v920
    %v3186 = vunpack.c.l.b16 %v921
    %v3187 = vunpack.c.h.b16 %v921
    %v3188 = vunpack.c.l.b16 %v922
    %v3189 = vunpack.c.h.b16 %v922
    %v3190 = vunpack.c.l.b16 %v923
    %v3191 = vunpack.c.h.b16 %v923
    %v3192 = vunpack.c.l.b16 %v924
    %v3193 = vunpack.c.h.b16 %v924
    %v3194 = vunpack.c.l.b16 %v925
    %v3195 = vunpack.c.h.b16 %v925
    %v3196 = vunpack.c.l.b16 %v926
    %v3197 = vunpack.c.h.b16 %v926
    %v3198 = vunpack.c.l.b16 %v927
    %v3199 = vunpack.c.h.b16 %v927
    %v3200 = vunpack.c.l.b16 %v928
    %v3201 = vunpack.c.h.b16 %v928
    %v3202 = vunpack.c.l.b16 %v929
    %v3203 = vunpack.c.h.b16 %v929
    %v3204 = vunpack.c.l.b16 %v930
    %v3205 = vunpack.c.h.b16 %v930
    %v3206 = vunpack.c.l.b16 %v931
    %v3207 = vunpack.c.h.b16 %v931
    %v3208 = vunpack.c.l.b16 %v932
    %v3209 = vunpack.c.h.b16 %v932
    %v3210 = vunpack.c.l.b16 %v933
    %v3211 = vunpack.c.h.b16 %v933
    %v3212 = vunpack.c.l.b16 %v934
    %v3213 = vunpack.c.h.b16 %v934
    %v3214 = vunpack.c.l.b16 %v935
    %v3215 = vunpack.c.h.b16 %v935
    %v3216 = vunpack.c.l.b16 %v936
    %v3217 = vunpack.c.h.b16 %v936
    %v3218 = vunpack.c.l.b16 %v937
    %v3219 = vunpack.c.h.b16 %v937
    %v3220 = vunpack.c.l.b16 %v938
    %v3221 = vunpack.c.h.b16 %v938
    %v3222 = vunpack.c.l.b16 %v939
    %v3223 = vunpack.c.h.b16 %v939
    %v3224 = vunpack.c.l.b16 %v940
    %v3225 = vunpack.c.h.b16 %v940
    %v3226 = vunpack.c.l.b16 %v941
    %v3227 = vunpack.c.h.b16 %v941
    %v3228 = vunpack.c.l.b16 %v942
    %v3229 = vunpack.c.h.b16 %v942
    %v3230 = vunpack.c.l.b16 %v943
    %v3231 = vunpack.c.h.b16 %v943
    %v3232 = vunpack.c.l.b16 %v944
    %v3233 = vunpack.c.h.b16 %v944
    %v3234 = vunpack.c.l.b16 %v945
    %v3235 = vunpack.c.h.b16 %v945
    %v3236 = vunpack.c.l.b16 %v946
    %v3237 = vunpack.c.h.b16 %v946
    %v3238 = vunpack.c.l.b16 %v947
    %v3239 = vunpack.c.h.b16 %v947
    %v3240 = vunpack.c.l.b16 %v948
    %v3241 = vunpack.c.h.b16 %v948
    %v3242 = vunpack.c.l.b16 %v949
    %v3243 = vunpack.c.h.b16 %v949
    %v3244 = vunpack.c.l.b16 %v950
    %v3245 = vunpack.c.h.b16 %v950
    %v3246 = vunpack.c.l.b16 %v951
    %v3247 = vunpack.c.h.b16 %v951
    %v3248 = vunpack.c.l.b16 %v952
    %v3249 = vunpack.c.h.b16 %v952
    %v3250 = vunpack.c.l.b16 %v953
    %v3251 = vunpack.c.h.b16 %v953
    %v3252 = vunpack.c.l.b16 %v954
    %v3253 = vunpack.c.h.b16 %v954
    %v3254 = vunpack.c.l.b16 %v955
    %v3255 = vunpack.c.h.b16 %v955
    %v3256 = vunpack.c.l.b16 %v956
    %v3257 = vunpack.c.h.b16 %v956
    %v3258 = vunpack.c.l.b16 %v957
    %v3259 = vunpack.c.h.b16 %v957
    %v3260 = vunpack.c.l.b16 %v958
    %v3261 = vunpack.c.h.b16 %v958
    %v3262 = vunpack.c.l.b16 %v959
    %v3263 = vunpack.c.h.b16 %v959
    %v3264 = vunpack.c.l.b16 %v960
    %v3265 = vunpack.c.h.b16 %v960
    %v3266 = vunpack.c.l.b16 %v961
    %v3267 = vunpack.c.h.b16 %v961
    %v3268 = vunpack.c.l.b16 %v962
    %v3269 = vunpack.c.h.b16 %v962
    %v3270 = vunpack.c.l.b16 %v963
    %v3271 = vunpack.c.h.b16 %v963
    %v3272 = vunpack.c.l.b16 %v964
    %v3273 = vunpack.c.h.b16 %v964
    %v3274 = vunpack.c.l.b16 %v965
    %v3275 = vunpack.c.h.b16 %v965
    %v3276 = vunpack.c.l.b16 %v966
    %v3277 = vunpack.c.h.b16 %v966
    %v3278 = vunpack.c.l.b16 %v967
    %v3279 = vunpack.c.h.b16 %v967
    %v3280 = vunpack.c.l.b16 %v968
    %v3281 = vunpack.c.h.b16 %v968
    %v3282 = vunpack.c.l.b16 %v969
    %v3283 = vunpack.c.h.b16 %v969
    %v3284 = vunpack.c.l.b16 %v970
    %v3285 = vunpack.c.h.b16 %v970
    %v3286 = vunpack.c.l.b16 %v971
    %v3287 = vunpack.c.h.b16 %v971
    %v3288 = vunpack.c.l.b16 %v972
    %v3289 = vunpack.c.h.b16 %v972
    %v3290 = vunpack.c.l.b16 %v973
    %v3291 = vunpack.c.h.b16 %v973
    %v3292 = vunpack.c.l.b16 %v974
    %v3293 = vunpack.c.h.b16 %v974
    %v3294 = vunpack.c.l.b16 %v975
    %v3295 = vunpack.c.h.b16 %v975
    %v3296 = vunpack.c.l.b16 %v976
    %v3297 = vunpack.c.h.b16 %v976
    %v3298 = vunpack.c.l.b16 %v977
    %v3299 = vunpack.c.h.b16 %v977
    %v3300 = vunpack.c.l.b16 %v978
    %v3301 = vunpack.c.h.b16 %v978
    %v3302 = vunpack.c.l.b16 %v979
    %v3303 = vunpack.c.h.b16 %v979
    %v3304 = vunpack.c.l.b16 %v980
    %v3305 = vunpack.c.h.b16 %v980
    %v3306 = vunpack.c.l.b16 %v981
    %v3307 = vunpack.c.h.b16 %v981
    %v3308 = vunpack.c.l.b16 %v982
    %v3309 = vunpack.c.h.b16 %v982
    %v3310 = vunpack.c.l.b16 %v983
    %v3311 = vunpack.c.h.b16 %v983
    %v3312 = vunpack.c.l.b16 %v984
    %v3313 = vunpack.c.h.b16 %v984
    %v3314 = vunpack.c.l.b16 %v985
    %v3315 = vunpack.c.h.b16 %v985
    %v3316 = vunpack.c.l.b16 %v986
    %v3317 = vunpack.c.h.b16 %v986
    %v3318 = vunpack.c.l.b16 %v987
    %v3319 = vunpack.c.h.b16 %v987
    %v3320 = vunpack.c.l.b16 %v988
    %v3321 = vunpack.c.h.b16 %v988
    %v3322 = vunpack.c.l.b16 %v989
    %v3323 = vunpack.c.h.b16 %v989
    %v3324 = vunpack.c.l.b16 %v990
    %v3325 = vunpack.c.h.b16 %v990
    %v3326 = vunpack.c.l.b16 %v991
    %v3327 = vunpack.c.h.b16 %v991
    %v3328 = vunpack.c.l.b16 %v992
    %v3329 = vunpack.c.h.b16 %v992
    %v3330 = vunpack.c.l.b16 %v993
    %v3331 = vunpack.c.h.b16 %v993
    %v3332 = vunpack.c.l.b16 %v994
    %v3333 = vunpack.c.h.b16 %v994
    %v3334 = vunpack.c.l.b16 %v995
    %v3335 = vunpack.c.h.b16 %v995
    %v3336 = vunpack.c.l.b16 %v996
    %v3337 = vunpack.c.h.b16 %v996
    %v3338 = vunpack.c.l.b16 %v997
    %v3339 = vunpack.c.h.b16 %v997
    %v3340 = vunpack.c.l.b16 %v998
    %v3341 = vunpack.c.h.b16 %v998
    %v3342 = vunpack.c.l.b16 %v999
    %v3343 = vunpack.c.h.b16 %v999
    %v3344 = vunpack.c.l.b16 %v1000
    %v3345 = vunpack.c.h.b16 %v1000
    %v3346 = vunpack.c.l.b16 %v1001
    %v3347 = vunpack.c.h.b16 %v1001
    %v3348 = vunpack.c.l.b16 %v1002
    %v3349 = vunpack.c.h.b16 %v1002
    %v3350 = vunpack.c.l.b16 %v1003
    %v3351 = vunpack.c.h.b16 %v1003
    %v3352 = vunpack.c.l.b16 %v1004
    %v3353 = vunpack.c.h.b16 %v1004
    %v3354 = vunpack.c.l.b16 %v1005
    %v3355 = vunpack.c.h.b16 %v1005
    %v3356 = vunpack.c.l.b16 %v1006
    %v3357 = vunpack.c.h.b16 %v1006
    %v3358 = vunpack.c.l.b16 %v1007
    %v3359 = vunpack.c.h.b16 %v1007
    %v3360 = vunpack.c.l.b16 %v1008
    %v3361 = vunpack.c.h.b16 %v1008
    %v3362 = vunpack.c.l.b16 %v1009
    %v3363 = vunpack.c.h.b16 %v1009
    %v3364 = vunpack.c.l.b16 %v1010
    %v3365 = vunpack.c.h.b16 %v1010
    %v3366 = vunpack.c.l.b16 %v1011
    %v3367 = vunpack.c.h.b16 %v1011
    %v3368 = vunpack.c.l.b16 %v1012
    %v3369 = vunpack.c.h.b16 %v1012
    %v3370 = vunpack.c.l.b16 %v1013
    %v3371 = vunpack.c.h.b16 %v1013
    %v3372 = vunpack.c.l.b16 %v1014
    %v3373 = vunpack.c.h.b16 %v1014
    %v3374 = vunpack.c.l.b16 %v1015
    %v3375 = vunpack.c.h.b16 %v1015
    %v3376 = vunpack.c.l.b16 %v1016
    %v3377 = vunpack.c.h.b16 %v1016
    %v3378 = vunpack.c.l.b16 %v1017
    %v3379 = vunpack.c.h.b16 %v1017
    %v3380 = vunpack.c.l.b16 %v1018
    %v3381 = vunpack.c.h.b16 %v1018
    %v3382 = vunpack.c.l.b16 %v1019
    %v3383 = vunpack.c.h.b16 %v1019
    %v3384 = vunpack.c.l.b16 %v1020
    %v3385 = vunpack.c.h.b16 %v1020
    %v3386 = vunpack.c.l.b16 %v1021
    %v3387 = vunpack.c.h.b16 %v1021
    %v3388 = vunpack.c.l.b16 %v1022
    %v3389 = vunpack.c.h.b16 %v1022
    %v3390 = vunpack.c.l.b16 %v1023
    %v3391 = vunpack.c.h.b16 %v1023
    %v3392 = vunpack.c.l.b16 %v1024
    %v3393 = vunpack.c.h.b16 %v1024
    %v3394 = vunpack.c.l.b16 %v1025
    %v3395 = vunpack.c.h.b16 %v1025
    %v3396 = vunpack.c.l.b16 %v1026
    %v3397 = vunpack.c.h.b16 %v1026
    %v3398 = vunpack.c.l.b16 %v1027
    %v3399 = vunpack.c.h.b16 %v1027
    %v3400 = vunpack.c.l.b16 %v1028
    %v3401 = vunpack.c.h.b16 %v1028
    %v3402 = vunpack.c.l.b16 %v1029
    %v3403 = vunpack.c.h.b16 %v1029
    %v3404 = vpack.c.b16 %v1840, %v1836
    %v3405 = vpack.c.b16 %v1841, %v1837
    %v3406 = vpack.c.b16 %v1842, %v1838
    %v3407 = vpack.c.b16 %v1843, %v1839
    %v3408 = vpack.c.b16 %v1848, %v1844
    %v3409 = vpack.c.b16 %v1849, %v1845
    %v3410 = vpack.c.b16 %v1850, %v1846
    %v3411 = vpack.c.b16 %v1851, %v1847
    %v3412 = vpack.c.b16 %v1856, %v1852
    %v3413 = vpack.c.b16 %v1857, %v1853
    %v3414 = vpack.c.b16 %v1858, %v1854
    %v3415 = vpack.c.b16 %v1859, %v1855
    %v3416 = vpack.c.b16 %v1864, %v1860
    %v3417 = vpack.c.b16 %v1865, %v1861
    %v3418 = vpack.c.b16 %v1866, %v1862
    %v3419 = vpack.c.b16 %v1867, %v1863
    %v3420 = vpack.c.b16 %v1872, %v1868
    %v3421 = vpack.c.b16 %v1873, %v1869
    %v3422 = vpack.c.b16 %v1874, %v1870
    %v3423 = vpack.c.b16 %v1875, %v1871
    %v3424 = vpack.c.b16 %v1880, %v1876
    %v3425 = vpack.c.b16 %v1881, %v1877
    %v3426 = vpack.c.b16 %v1882, %v1878
    %v3427 = vpack.c.b16 %v1883, %v1879
    %v3428 = vpack.c.b16 %v1888, %v1884
    %v3429 = vpack.c.b16 %v1889, %v1885
    %v3430 = vpack.c.b16 %v1890, %v1886
    %v3431 = vpack.c.b16 %v1891, %v1887
    %v3432 = vpack.c.b16 %v1896, %v1892
    %v3433 = vpack.c.b16 %v1897, %v1893
    %v3434 = vpack.c.b16 %v1898, %v1894
    %v3435 = vpack.c.b16 %v1899, %v1895
    %v3436 = vpack.c.b16 %v1904, %v1900
    %v3437 = vpack.c.b16 %v1905, %v1901
    %v3438 = vpack.c.b16 %v1906, %v1902
    %v3439 = vpack.c.b16 %v1907, %v1903
    %v3440 = vpack.c.b16 %v1912, %v1908
    %v3441 = vpack.c.b16 %v1913, %v1909
    %v3442 = vpack.c.b16 %v1914, %v1910
    %v3443 = vpack.c.b16 %v1915, %v1911
    %v3444 = vpack.c.b16 %v1920, %v1916
    %v3445 = vpack.c.b16 %v1921, %v1917
    %v3446 = vpack.c.b16 %v1922, %v1918
    %v3447 = vpack.c.b16 %v1923, %v1919
    %v3448 = vpack.c.b16 %v1928, %v1924
    %v3449 = vpack.c.b16 %v1929, %v1925
    %v3450 = vpack.c.b16 %v1930, %v1926
    %v3451 = vpack.c.b16 %v1931, %v1927
    %v3452 = vpack.c.b16 %v1936, %v1932
    %v3453 = vpack.c.b16 %v1937, %v1933
    %v3454 = vpack.c.b16 %v1938, %v1934
    %v3455 = vpack.c.b16 %v1939, %v1935
    %v3456 = vpack.c.b16 %v1944, %v1940
    %v3457 = vpack.c.b16 %v1945, %v1941
    %v3458 = vpack.c.b16 %v1946, %v1942
    %v3459 = vpack.c.b16 %v1947, %v1943
    %v3460 = vpack.c.b16 %v1952, %v1948
    %v3461 = vpack.c.b16 %v1953, %v1949
    %v3462 = vpack.c.b16 %v1954, %v1950
    %v3463 = vpack.c.b16 %v1955, %v1951
    %v3464 = vpack.c.b16 %v1960, %v1956
    %v3465 = vpack.c.b16 %v1961, %v1957
    %v3466 = vpack.c.b16 %v1962, %v1958
    %v3467 = vpack.c.b16 %v1963, %v1959
    %v3468 = vpack.c.b16 %v1968, %v1964
    %v3469 = vpack.c.b16 %v1969, %v1965
    %v3470 = vpack.c.b16 %v1970, %v1966
    %v3471 = vpack.c.b16 %v1971, %v1967
    %v3472 = vpack.c.b16 %v1976, %v1972
    %v3473 = vpack.c.b16 %v1977, %v1973
    %v3474 = vpack.c.b16 %v1978, %v1974
    %v3475 = vpack.c.b16 %v1979, %v1975
    %v3476 = vpack.c.b16 %v1984, %v1980
    %v3477 = vpack.c.b16 %v1985, %v1981
    %v3478 = vpack.c.b16 %v1986, %v1982
    %v3479 = vpack.c.b16 %v1987, %v1983
    %v3480 = vpack.c.b16 %v1992, %v1988
    %v3481 = vpack.c.b16 %v1993, %v1989
    %v3482 = vpack.c.b16 %v1994, %v1990
    %v3483 = vpack.c.b16 %v1995, %v1991
    %v3484 = vpack.c.b16 %v2000, %v1996
    %v3485 = vpack.c.b16 %v2001, %v1997
    %v3486 = vpack.c.b16 %v2002, %v1998
    %v3487 = vpack.c.b16 %v2003, %v1999
    %v3488 = vpack.c.b16 %v2008, %v2004
    %v3489 = vpack.c.b16 %v2009, %v2005
    %v3490 = vpack.c.b16 %v2010, %v2006
    %v3491 = vpack.c.b16 %v2011, %v2007
    %v3492 = vpack.c.b16 %v2016, %v2012
    %v3493 = vpack.c.b16 %v2017, %v2013
    %v3494 = vpack.c.b16 %v2018, %v2014
    %v3495 = vpack.c.b16 %v2019, %v2015
    %v3496 = vpack.c.b16 %v2024, %v2020
    %v3497 = vpack.c.b16 %v2025, %v2021
    %v3498 = vpack.c.b16 %v2026, %v2022
    %v3499 = vpack.c.b16 %v2027, %v2023
    %v3500 = vpack.c.b16 %v2032, %v2028
    %v3501 = vpack.c.b16 %v2033, %v2029
    %v3502 = vpack.c.b16 %v2034, %v2030
    %v3503 = vpack.c.b16 %v2035, %v2031
    %v3504 = vpack.c.b16 %v2040, %v2036
    %v3505 = vpack.c.b16 %v2041, %v2037
    %v3506 = vpack.c.b16 %v2042, %v2038
    %v3507 = vpack.c.b16 %v2043, %v2039
    %v3508 = vpack.c.b16 %v2048, %v2044
    %v3509 = vpack.c.b16 %v2049, %v2045
    %v3510 = vpack.c.b16 %v2050, %v2046
    %v3511 = vpack.c.b16 %v2051, %v2047
    %v3512 = vpack.c.b16 %v2056, %v2052
    %v3513 = vpack.c.b16 %v2057, %v2053
    %v3514 = vpack.c.b16 %v2058, %v2054
    %v3515 = vpack.c.b16 %v2059, %v2055
    %v3516 = vpack.c.b16 %v2064, %v2060
    %v3517 = vpack.c.b16 %v2065, %v2061
    %v3518 = vpack.c.b16 %v2066, %v2062
    %v3519 = vpack.c.b16 %v2067, %v2063
    %v3520 = vpack.c.b16 %v2072, %v2068
    %v3521 = vpack.c.b16 %v2073, %v2069
    %v3522 = vpack.c.b16 %v2074, %v2070
    %v3523 = vpack.c.b16 %v2075, %v2071
    %v3524 = vpack.c.b16 %v2080, %v2076
    %v3525 = vpack.c.b16 %v2081, %v2077
    %v3526 = vpack.c.b16 %v2082, %v2078
    %v3527 = vpack.c.b16 %v2083, %v2079
    %v3528 = vpack.c.b16 %v2088, %v2084
    %v3529 = vpack.c.b16 %v2089, %v2085
    %v3530 = vpack.c.b16 %v2090, %v2086
    %v3531 = vpack.c.b16 %v2091, %v2087
    %v3532 = vpack.c.b16 %v2096, %v2092
    %v3533 = vpack.c.b16 %v2097, %v2093
    %v3534 = vpack.c.b16 %v2098, %v2094
    %v3535 = vpack.c.b16 %v2099, %v2095
    %v3536 = vpack.c.b16 %v2104, %v2100
    %v3537 = vpack.c.b16 %v2105, %v2101
    %v3538 = vpack.c.b16 %v2106, %v2102
    %v3539 = vpack.c.b16 %v2107, %v2103
    %v3540 = vpack.c.b16 %v2112, %v2108
    %v3541 = vpack.c.b16 %v2113, %v2109
    %v3542 = vpack.c.b16 %v2114, %v2110
    %v3543 = vpack.c.b16 %v2115, %v2111
    %v3544 = vpack.c.b16 %v2120, %v2116
    %v3545 = vpack.c.b16 %v2121, %v2117
    %v3546 = vpack.c.b16 %v2122, %v2118
    %v3547 = vpack.c.b16 %v2123, %v2119
    %v3548 = vpack.c.b16 %v2128, %v2124
    %v3549 = vpack.c.b16 %v2129, %v2125
    %v3550 = vpack.c.b16 %v2130, %v2126
    %v3551 = vpack.c.b16 %v2131, %v2127
    %v3552 = vpack.c.b16 %v2136, %v2132
    %v3553 = vpack.c.b16 %v2137, %v2133
    %v3554 = vpack.c.b16 %v2138, %v2134
    %v3555 = vpack.c.b16 %v2139, %v2135
    %v3556 = vpack.c.b16 %v2144, %v2140
    %v3557 = vpack.c.b16 %v2145, %v2141
    %v3558 = vpack.c.b16 %v2146, %v2142
    %v3559 = vpack.c.b16 %v2147, %v2143
    %v3560 = vpack.c.b16 %v2152, %v2148
    %v3561 = vpack.c.b16 %v2153, %v2149
    %v3562 = vpack.c.b16 %v2154, %v2150
    %v3563 = vpack.c.b16 %v2155, %v2151
    %v3564 = vpack.c.b16 %v2160, %v2156
    %v3565 = vpack.c.b16 %v2161, %v2157
    %v3566 = vpack.c.b16 %v2162, %v2158
    %v3567 = vpack.c.b16 %v2163, %v2159
    %v3568 = vpack.c.b16 %v2168, %v2164
    %v3569 = vpack.c.b16 %v2169, %v2165
    %v3570 = vpack.c.b16 %v2170, %v2166
    %v3571 = vpack.c.b16 %v2171, %v2167
    %v3572 = vpack.c.b16 %v2176, %v2172
    %v3573 = vpack.c.b16 %v2177, %v2173
    %v3574 = vpack.c.b16 %v2178, %v2174
    %v3575 = vpack.c.b16 %v2179, %v2175
    %v3576 = vpack.c.b16 %v2184, %v2180
    %v3577 = vpack.c.b16 %v2185, %v2181
    %v3578 = vpack.c.b16 %v2186, %v2182
    %v3579 = vpack.c.b16 %v2187, %v2183
    %v3580 = vpack.c.b16 %v2192, %v2188
    %v3581 = vpack.c.b16 %v2193, %v2189
    %v3582 = vpack.c.b16 %v2194, %v2190
    %v3583 = vpack.c.b16 %v2195, %v2191
    %v3584 = vpack.c.b16 %v2200, %v2196
    %v3585 = vpack.c.b16 %v2201, %v2197
    %v3586 = vpack.c.b16 %v2202, %v2198
    %v3587 = vpack.c.b16 %v2203, %v2199
    %v3588 = vpack.c.b16 %v2208, %v2204
    %v3589 = vpack.c.b16 %v2209, %v2205
    %v3590 = vpack.c.b16 %v2210, %v2206
    %v3591 = vpack.c.b16 %v2211, %v2207
    %v3592 = vpack.c.b16 %v2216, %v2212
    %v3593 = vpack.c.b16 %v2217, %v2213
    %v3594 = vpack.c.b16 %v2218, %v2214
    %v3595 = vpack.c.b16 %v2219, %v2215
    %v3596 = vpack.c.b16 %v2224, %v2220
    %v3597 = vpack.c.b16 %v2225, %v2221
    %v3598 = vpack.c.b16 %v2226, %v2222
    %v3599 = vpack.c.b16 %v2227, %v2223
    %v3600 = vpack.c.b16 %v2232, %v2228
    %v3601 = vpack.c.b16 %v2233, %v2229
    %v3602 = vpack.c.b16 %v2234, %v2230
    %v3603 = vpack.c.b16 %v2235, %v2231
    %v3604 = vpack.c.b16 %v2240, %v2236
    %v3605 = vpack.c.b16 %v2241, %v2237
    %v3606 = vpack.c.b16 %v2242, %v2238
    %v3607 = vpack.c.b16 %v2243, %v2239
    %v3608 = vpack.c.b16 %v2248, %v2244
    %v3609 = vpack.c.b16 %v2249, %v2245
    %v3610 = vpack.c.b16 %v2250, %v2246
    %v3611 = vpack.c.b16 %v2251, %v2247
    %v3612 = vpack.c.b16 %v2256, %v2252
    %v3613 = vpack.c.b16 %v2257, %v2253
    %v3614 = vpack.c.b16 %v2258, %v2254
    %v3615 = vpack.c.b16 %v2259, %v2255
    %v3616 = vpack.c.b16 %v2264, %v2260
    %v3617 = vpack.c.b16 %v2265, %v2261
    %v3618 = vpack.c.b16 %v2266, %v2262
    %v3619 = vpack.c.b16 %v2267, %v2263
    %v3620 = vpack.c.b16 %v2272, %v2268
    %v3621 = vpack.c.b16 %v2273, %v2269
    %v3622 = vpack.c.b16 %v2274, %v2270
    %v3623 = vpack.c.b16 %v2275, %v2271
    %v3624 = vpack.c.b16 %v2280, %v2276
    %v3625 = vpack.c.b16 %v2281, %v2277
    %v3626 = vpack.c.b16 %v2282, %v2278
    %v3627 = vpack.c.b16 %v2283, %v2279
    %v3628 = vpack.c.b16 %v2288, %v2284
    %v3629 = vpack.c.b16 %v2289, %v2285
    %v3630 = vpack.c.b16 %v2290, %v2286
    %v3631 = vpack.c.b16 %v2291, %v2287
    %v3632 = vpack.c.b16 %v2296, %v2292
    %v3633 = vpack.c.b16 %v2297, %v2293
    %v3634 = vpack.c.b16 %v2298, %v2294
    %v3635 = vpack.c.b16 %v2299, %v2295
    %v3636 = vpack.c.b16 %v2304, %v2300
    %v3637 = vpack.c.b16 %v2305, %v2301
    %v3638 = vpack.c.b16 %v2306, %v2302
    %v3639 = vpack.c.b16 %v2307, %v2303
    %v3640 = vpack.c.b16 %v2312, %v2308
    %v3641 = vpack.c.b16 %v2313, %v2309
    %v3642 = vpack.c.b16 %v2314, %v2310
    %v3643 = vpack.c.b16 %v2315, %v2311
    %v3644 = vpack.c.b16 %v2320, %v2316
    %v3645 = vpack.c.b16 %v2321, %v2317
    %v3646 = vpack.c.b16 %v2322, %v2318
    %v3647 = vpack.c.b16 %v2323, %v2319
    %v3648 = vpack.c.b16 %v2328, %v2324
    %v3649 = vpack.c.b16 %v2329, %v2325
    %v3650 = vpack.c.b16 %v2330, %v2326
    %v3651 = vpack.c.b16 %v2331, %v2327
    %v3652 = vpack.c.b16 %v2336, %v2332
    %v3653 = vpack.c.b16 %v2337, %v2333
    %v3654 = vpack.c.b16 %v2338, %v2334
    %v3655 = vpack.c.b16 %v2339, %v2335
    %v3656 = vpack.c.b16 %v2344, %v2340
    %v3657 = vpack.c.b16 %v2345, %v2341
    %v3658 = vpack.c.b16 %v2346, %v2342
    %v3659 = vpack.c.b16 %v2347, %v2343
    %v3660 = vpack.c.b16 %v2352, %v2348
    %v3661 = vpack.c.b16 %v2353, %v2349
    %v3662 = vpack.c.b16 %v2354, %v2350
    %v3663 = vpack.c.b16 %v2355, %v2351
    %v3664 = vpack.c.b16 %v2360, %v2356
    %v3665 = vpack.c.b16 %v2361, %v2357
    %v3666 = vpack.c.b16 %v2362, %v2358
    %v3667 = vpack.c.b16 %v2363, %v2359
    %v3668 = vpack.c.b16 %v2368, %v2364
    %v3669 = vpack.c.b16 %v2369, %v2365
    %v3670 = vpack.c.b16 %v2370, %v2366
    %v3671 = vpack.c.b16 %v2371, %v2367
    %v3672 = vpack.c.b16 %v2376, %v2372
    %v3673 = vpack.c.b16 %v2377, %v2373
    %v3674 = vpack.c.b16 %v2378, %v2374
    %v3675 = vpack.c.b16 %v2379, %v2375
    %v3676 = vpack.c.b16 %v2384, %v2380
    %v3677 = vpack.c.b16 %v2385, %v2381
    %v3678 = vpack.c.b16 %v2386, %v2382
    %v3679 = vpack.c.b16 %v2387, %v2383
    %v3680 = vpack.c.b16 %v2392, %v2388
    %v3681 = vpack.c.b16 %v2393, %v2389
    %v3682 = vpack.c.b16 %v2394, %v2390
    %v3683 = vpack.c.b16 %v2395, %v2391
    %v3684 = vpack.c.b16 %v2400, %v2396
    %v3685 = vpack.c.b16 %v2401, %v2397
    %v3686 = vpack.c.b16 %v2402, %v2398
    %v3687 = vpack.c.b16 %v2403, %v2399
    %v3688 = vpack.c.b16 %v2408, %v2404
    %v3689 = vpack.c.b16 %v2409, %v2405
    %v3690 = vpack.c.b16 %v2410, %v2406
    %v3691 = vpack.c.b16 %v2411, %v2407
    %v3692 = vpack.c.b16 %v2416, %v2412
    %v3693 = vpack.c.b16 %v2417, %v2413
    %v3694 = vpack.c.b16 %v2418, %v2414
    %v3695 = vpack.c.b16 %v2419, %v2415
    %v3696 = vpack.c.b16 %v2424, %v2420
    %v3697 = vpack.c.b16 %v2425, %v2421
    %v3698 = vpack.c.b16 %v2426, %v2422
    %v3699 = vpack.c.b16 %v2427, %v2423
    %v3700 = vpack.c.b16 %v2432, %v2428
    %v3701 = vpack.c.b16 %v2433, %v2429
    %v3702 = vpack.c.b16 %v2434, %v2430
    %v3703 = vpack.c.b16 %v2435, %v2431
    %v3704 = vpack.c.b16 %v2440, %v2436
    %v3705 = vpack.c.b16 %v2441, %v2437
    %v3706 = vpack.c.b16 %v2442, %v2438
    %v3707 = vpack.c.b16 %v2443, %v2439
    %v3708 = vpack.c.b16 %v2448, %v2444
    %v3709 = vpack.c.b16 %v2449, %v2445
    %v3710 = vpack.c.b16 %v2450, %v2446
    %v3711 = vpack.c.b16 %v2451, %v2447
    %v3712 = vpack.c.b16 %v2456, %v2452
    %v3713 = vpack.c.b16 %v2457, %v2453
    %v3714 = vpack.c.b16 %v2458, %v2454
    %v3715 = vpack.c.b16 %v2459, %v2455
    %v3716 = vpack.c.b16 %v2464, %v2460
    %v3717 = vpack.c.b16 %v2465, %v2461
    %v3718 = vpack.c.b16 %v2466, %v2462
    %v3719 = vpack.c.b16 %v2467, %v2463
    %v3720 = vpack.c.b16 %v2472, %v2468
    %v3721 = vpack.c.b16 %v2473, %v2469
    %v3722 = vpack.c.b16 %v2474, %v2470
    %v3723 = vpack.c.b16 %v2475, %v2471
    %v3724 = vpack.c.b16 %v2480, %v2476
    %v3725 = vpack.c.b16 %v2481, %v2477
    %v3726 = vpack.c.b16 %v2482, %v2478
    %v3727 = vpack.c.b16 %v2483, %v2479
    %v3728 = vpack.c.b16 %v2488, %v2484
    %v3729 = vpack.c.b16 %v2489, %v2485
    %v3730 = vpack.c.b16 %v2490, %v2486
    %v3731 = vpack.c.b16 %v2491, %v2487
    %v3732 = vpack.c.b16 %v2496, %v2492
    %v3733 = vpack.c.b16 %v2497, %v2493
    %v3734 = vpack.c.b16 %v2498, %v2494
    %v3735 = vpack.c.b16 %v2499, %v2495
    %v3736 = vpack.c.b16 %v2504, %v2500
    %v3737 = vpack.c.b16 %v2505, %v2501
    %v3738 = vpack.c.b16 %v2506, %v2502
    %v3739 = vpack.c.b16 %v2507, %v2503
    %v3740 = vpack.c.b16 %v2512, %v2508
    %v3741 = vpack.c.b16 %v2513, %v2509
    %v3742 = vpack.c.b16 %v2514, %v2510
    %v3743 = vpack.c.b16 %v2515, %v2511
    %v3744 = vpack.c.b16 %v2520, %v2516
    %v3745 = vpack.c.b16 %v2521, %v2517
    %v3746 = vpack.c.b16 %v2522, %v2518
    %v3747 = vpack.c.b16 %v2523, %v2519
    %v3748 = vpack.c.b16 %v2528, %v2524
    %v3749 = vpack.c.b16 %v2529, %v2525
    %v3750 = vpack.c.b16 %v2530, %v2526
    %v3751 = vpack.c.b16 %v2531, %v2527
    %v3752 = vpack.c.b16 %v2536, %v2532
    %v3753 = vpack.c.b16 %v2537, %v2533
    %v3754 = vpack.c.b16 %v2538, %v2534
    %v3755 = vpack.c.b16 %v2539, %v2535
    %v3756 = vpack.c.b16 %v2544, %v2540
    %v3757 = vpack.c.b16 %v2545, %v2541
    %v3758 = vpack.c.b16 %v2546, %v2542
    %v3759 = vpack.c.b16 %v2547, %v2543
    %v3760 = vpack.c.b16 %v2552, %v2548
    %v3761 = vpack.c.b16 %v2553, %v2549
    %v3762 = vpack.c.b16 %v2554, %v2550
    %v3763 = vpack.c.b16 %v2555, %v2551
    %v3764 = vpack.c.b16 %v2560, %v2556
    %v3765 = vpack.c.b16 %v2561, %v2557
    %v3766 = vpack.c.b16 %v2562, %v2558
    %v3767 = vpack.c.b16 %v2563, %v2559
    %v3768 = vpack.c.b16 %v2568, %v2564
    %v3769 = vpack.c.b16 %v2569, %v2565
    %v3770 = vpack.c.b16 %v2570, %v2566
    %v3771 = vpack.c.b16 %v2571, %v2567
    %v3772 = vpack.c.b16 %v2576, %v2572
    %v3773 = vpack.c.b16 %v2577, %v2573
    %v3774 = vpack.c.b16 %v2578, %v2574
    %v3775 = vpack.c.b16 %v2579, %v2575
    %v3776 = vpack.c.b16 %v2584, %v2580
    %v3777 = vpack.c.b16 %v2585, %v2581
    %v3778 = vpack.c.b16 %v2586, %v2582
    %v3779 = vpack.c.b16 %v2587, %v2583
    %v3780 = vpack.c.b16 %v2592, %v2588
    %v3781 = vpack.c.b16 %v2593, %v2589
    %v3782 = vpack.c.b16 %v2594, %v2590
    %v3783 = vpack.c.b16 %v2595, %v2591
    %v3784 = vpack.c.b16 %v2600, %v2596
    %v3785 = vpack.c.b16 %v2601, %v2597
    %v3786 = vpack.c.b16 %v2602, %v2598
    %v3787 = vpack.c.b16 %v2603, %v2599
    %v3788 = vpack.c.b16 %v2608, %v2604
    %v3789 = vpack.c.b16 %v2609, %v2605
    %v3790 = vpack.c.b16 %v2610, %v2606
    %v3791 = vpack.c.b16 %v2611, %v2607
    %v3792 = vpack.c.b16 %v2616, %v2612
    %v3793 = vpack.c.b16 %v2617, %v2613
    %v3794 = vpack.c.b16 %v2618, %v2614
    %v3795 = vpack.c.b16 %v2619, %v2615
    %v3796 = vpack.c.b16 %v2624, %v2620
    %v3797 = vpack.c.b16 %v2625, %v2621
    %v3798 = vpack.c.b16 %v2626, %v2622
    %v3799 = vpack.c.b16 %v2627, %v2623
    %v3800 = vpack.c.b16 %v2632, %v2628
    %v3801 = vpack.c.b16 %v2633, %v2629
    %v3802 = vpack.c.b16 %v2634, %v2630
    %v3803 = vpack.c.b16 %v2635, %v2631
    %v3804 = vpack.c.b16 %v2640, %v2636
    %v3805 = vpack.c.b16 %v2641, %v2637
    %v3806 = vpack.c.b16 %v2642, %v2638
    %v3807 = vpack.c.b16 %v2643, %v2639
    %v3808 = vpack.c.b16 %v2648, %v2644
    %v3809 = vpack.c.b16 %v2649, %v2645
    %v3810 = vpack.c.b16 %v2650, %v2646
    %v3811 = vpack.c.b16 %v2651, %v2647
    %v3812 = vpack.c.b16 %v2656, %v2652
    %v3813 = vpack.c.b16 %v2657, %v2653
    %v3814 = vpack.c.b16 %v2658, %v2654
    %v3815 = vpack.c.b16 %v2659, %v2655
    %v3816 = vpack.c.b16 %v2664, %v2660
    %v3817 = vpack.c.b16 %v2665, %v2661
    %v3818 = vpack.c.b16 %v2666, %v2662
    %v3819 = vpack.c.b16 %v2667, %v2663
    %v3820 = vpack.c.b16 %v2672, %v2668
    %v3821 = vpack.c.b16 %v2673, %v2669
    %v3822 = vpack.c.b16 %v2674, %v2670
    %v3823 = vpack.c.b16 %v2675, %v2671
    %v3824 = vpack.c.b16 %v2680, %v2676
    %v3825 = vpack.c.b16 %v2681, %v2677
    %v3826 = vpack.c.b16 %v2682, %v2678
    %v3827 = vpack.c.b16 %v2683, %v2679
    %v3828 = vpack.c.b16 %v2688, %v2684
    %v3829 = vpack.c.b16 %v2689, %v2685
    %v3830 = vpack.c.b16 %v2690, %v2686
    %v3831 = vpack.c.b16 %v2691, %v2687
    %v3832 = vpack.c.b16 %v2696, %v2692
    %v3833 = vpack.c.b16 %v2697, %v2693
    %v3834 = vpack.c.b16 %v2698, %v2694
    %v3835 = vpack.c.b16 %v2699, %v2695
    %v3836 = vpack.c.b16 %v2704, %v2700
    %v3837 = vpack.c.b16 %v2705, %v2701
    %v3838 = vpack.c.b16 %v2706, %v2702
    %v3839 = vpack.c.b16 %v2707, %v2703
    %v3840 = vpack.c.b16 %v2712, %v2708
    %v3841 = vpack.c.b16 %v2713, %v2709
    %v3842 = vpack.c.b16 %v2714, %v2710
    %v3843 = vpack.c.b16 %v2715, %v2711
    %v3844 = vpack.c.b16 %v2720, %v2716
    %v3845 = vpack.c.b16 %v2721, %v2717
    %v3846 = vpack.c.b16 %v2722, %v2718
    %v3847 = vpack.c.b16 %v2723, %v2719
    %v3848 = vpack.c.b16 %v2728, %v2724
    %v3849 = vpack.c.b16 %v2729, %v2725
    %v3850 = vpack.c.b16 %v2730, %v2726
    %v3851 = vpack.c.b16 %v2731, %v2727
    %v3852 = vpack.c.b16 %v2736, %v2732
    %v3853 = vpack.c.b16 %v2737, %v2733
    %v3854 = vpack.c.b16 %v2738, %v2734
    %v3855 = vpack.c.b16 %v2739, %v2735
    %v3856 = vpack.c.b16 %v2744, %v2740
    %v3857 = vpack.c.b16 %v2745, %v2741
    %v3858 = vpack.c.b16 %v2746, %v2742
    %v3859 = vpack.c.b16 %v2747, %v2743
    %v3860 = vpack.c.b16 %v2752, %v2748
    %v3861 = vpack.c.b16 %v2753, %v2749
    %v3862 = vpack.c.b16 %v2754, %v2750
    %v3863 = vpack.c.b16 %v2755, %v2751
    %v3864 = vpack.c.b16 %v2760, %v2756
    %v3865 = vpack.c.b16 %v2761, %v2757
    %v3866 = vpack.c.b16 %v2762, %v2758
    %v3867 = vpack.c.b16 %v2763, %v2759
    %v3868 = vpack.c.b16 %v2768, %v2764
    %v3869 = vpack.c.b16 %v2769, %v2765
    %v3870 = vpack.c.b16 %v2770, %v2766
    %v3871 = vpack.c.b16 %v2771, %v2767
    %v3872 = vpack.c.b16 %v2776, %v2772
    %v3873 = vpack.c.b16 %v2777, %v2773
    %v3874 = vpack.c.b16 %v2778, %v2774
    %v3875 = vpack.c.b16 %v2779, %v2775
    %v3876 = vpack.c.b16 %v2784, %v2780
    %v3877 = vpack.c.b16 %v2785, %v2781
    %v3878 = vpack.c.b16 %v2786, %v2782
    %v3879 = vpack.c.b16 %v2787, %v2783
    %v3880 = vpack.c.b16 %v2792, %v2788
    %v3881 = vpack.c.b16 %v2793, %v2789
    %v3882 = vpack.c.b16 %v2794, %v2790
    %v3883 = vpack.c.b16 %v2795, %v2791
    %v3884 = vpack.c.b16 %v2800, %v2796
    %v3885 = vpack.c.b16 %v2801, %v2797
    %v3886 = vpack.c.b16 %v2802, %v2798
    %v3887 = vpack.c.b16 %v2803, %v2799
    %v3888 = vpack.c.b16 %v2808, %v2804
    %v3889 = vpack.c.b16 %v2809, %v2805
    %v3890 = vpack.c.b16 %v2810, %v2806
    %v3891 = vpack.c.b16 %v2811, %v2807
    %v3892 = vpack.c.b16 %v2816, %v2812
    %v3893 = vpack.c.b16 %v2817, %v2813
    %v3894 = vpack.c.b16 %v2818, %v2814
    %v3895 = vpack.c.b16 %v2819, %v2815
    %v3896 = vpack.c.b16 %v2824, %v2820
    %v3897 = vpack.c.b16 %v2825, %v2821
    %v3898 = vpack.c.b16 %v2826, %v2822
    %v3899 = vpack.c.b16 %v2827, %v2823
    %v3900 = vpack.c.b16 %v2832, %v2828
    %v3901 = vpack.c.b16 %v2833, %v2829
    %v3902 = vpack.c.b16 %v2834, %v2830
    %v3903 = vpack.c.b16 %v2835, %v2831
    %v3904 = vpack.c.b16 %v2840, %v2836
    %v3905 = vpack.c.b16 %v2841, %v2837
    %v3906 = vpack.c.b16 %v2842, %v2838
    %v3907 = vpack.c.b16 %v2843, %v2839
    %v3908 = vpack.c.b16 %v2848, %v2844
    %v3909 = vpack.c.b16 %v2849, %v2845
    %v3910 = vpack.c.b16 %v2850, %v2846
    %v3911 = vpack.c.b16 %v2851, %v2847
    %v3912 = vpack.c.b16 %v2856, %v2852
    %v3913 = vpack.c.b16 %v2857, %v2853
    %v3914 = vpack.c.b16 %v2858, %v2854
    %v3915 = vpack.c.b16 %v2859, %v2855
    %v3916 = vpack.c.b16 %v2864, %v2860
    %v3917 = vpack.c.b16 %v2865, %v2861
    %v3918 = vpack.c.b16 %v2866, %v2862
    %v3919 = vpack.c.b16 %v2867, %v2863
    %v3920 = vpack.c.b16 %v2872, %v2868
    %v3921 = vpack.c.b16 %v2873, %v2869
    %v3922 = vpack.c.b16 %v2874, %v2870
    %v3923 = vpack.c.b16 %v2875, %v2871
    %v3924 = vpack.c.b16 %v2880, %v2876
    %v3925 = vpack.c.b16 %v2881, %v2877
    %v3926 = vpack.c.b16 %v2882, %v2878
    %v3927 = vpack.c.b16 %v2883, %v2879
    %v3928 = vpack.c.b16 %v2888, %v2884
    %v3929 = vpack.c.b16 %v2889, %v2885
    %v3930 = vpack.c.b16 %v2890, %v2886
    %v3931 = vpack.c.b16 %v2891, %v2887
    %v3932 = vpack.c.b16 %v2896, %v2892
    %v3933 = vpack.c.b16 %v2897, %v2893
    %v3934 = vpack.c.b16 %v2898, %v2894
    %v3935 = vpack.c.b16 %v2899, %v2895
    %v3936 = vpack.c.b16 %v2904, %v2900
    %v3937 = vpack.c.b16 %v2905, %v2901
    %v3938 = vpack.c.b16 %v2906, %v2902
    %v3939 = vpack.c.b16 %v2907, %v2903
    %v3940 = vpack.c.b16 %v2912, %v2908
    %v3941 = vpack.c.b16 %v2913, %v2909
    %v3942 = vpack.c.b16 %v2914, %v2910
    %v3943 = vpack.c.b16 %v2915, %v2911
    %v3944 = vpack.c.b16 %v2920, %v2916
    %v3945 = vpack.c.b16 %v2921, %v2917
    %v3946 = vpack.c.b16 %v2922, %v2918
    %v3947 = vpack.c.b16 %v2923, %v2919
    %v3948 = vpack.c.b16 %v2928, %v2924
    %v3949 = vpack.c.b16 %v2929, %v2925
    %v3950 = vpack.c.b16 %v2930, %v2926
    %v3951 = vpack.c.b16 %v2931, %v2927
    %v3952 = vpack.c.b16 %v2936, %v2932
    %v3953 = vpack.c.b16 %v2937, %v2933
    %v3954 = vpack.c.b16 %v2938, %v2934
    %v3955 = vpack.c.b16 %v2939, %v2935
    %v3956 = vpack.c.b16 %v2944, %v2940
    %v3957 = vpack.c.b16 %v2945, %v2941
    %v3958 = vpack.c.b16 %v2946, %v2942
    %v3959 = vpack.c.b16 %v2947, %v2943
    %v3960 = vpack.c.b16 %v2952, %v2948
    %v3961 = vpack.c.b16 %v2953, %v2949
    %v3962 = vpack.c.b16 %v2954, %v2950
    %v3963 = vpack.c.b16 %v2955, %v2951
    %v3964 = vpack.c.b16 %v2960, %v2956
    %v3965 = vpack.c.b16 %v2961, %v2957
    %v3966 = vpack.c.b16 %v2962, %v2958
    %v3967 = vpack.c.b16 %v2963, %v2959
    %v3968 = vpack.c.b16 %v2968, %v2964
    %v3969 = vpack.c.b16 %v2969, %v2965
    %v3970 = vpack.c.b16 %v2970, %v2966
    %v3971 = vpack.c.b16 %v2971, %v2967
    %v3972 = vpack.c.b16 %v2976, %v2972
    %v3973 = vpack.c.b16 %v2977, %v2973
    %v3974 = vpack.c.b16 %v2978, %v2974
    %v3975 = vpack.c.b16 %v2979, %v2975
    %v3976 = vpack.c.b16 %v2984, %v2980
    %v3977 = vpack.c.b16 %v2985, %v2981
    %v3978 = vpack.c.b16 %v2986, %v2982
    %v3979 = vpack.c.b16 %v2987, %v2983
    %v3980 = vpack.c.b16 %v2992, %v2988
    %v3981 = vpack.c.b16 %v2993, %v2989
    %v3982 = vpack.c.b16 %v2994, %v2990
    %v3983 = vpack.c.b16 %v2995, %v2991
    %v3984 = vpack.c.b16 %v3000, %v2996
    %v3985 = vpack.c.b16 %v3001, %v2997
    %v3986 = vpack.c.b16 %v3002, %v2998
    %v3987 = vpack.c.b16 %v3003, %v2999
    %v3988 = vpack.c.b16 %v3008, %v3004
    %v3989 = vpack.c.b16 %v3009, %v3005
    %v3990 = vpack.c.b16 %v3010, %v3006
    %v3991 = vpack.c.b16 %v3011, %v3007
    %v3992 = vpack.c.b16 %v3016, %v3012
    %v3993 = vpack.c.b16 %v3017, %v3013
    %v3994 = vpack.c.b16 %v3018, %v3014
    %v3995 = vpack.c.b16 %v3019, %v3015
    %v3996 = vpack.c.b16 %v3024, %v3020
    %v3997 = vpack.c.b16 %v3025, %v3021
    %v3998 = vpack.c.b16 %v3026, %v3022
    %v3999 = vpack.c.b16 %v3027, %v3023
    %v4000 = vpack.c.b16 %v3032, %v3028
    %v4001 = vpack.c.b16 %v3033, %v3029
    %v4002 = vpack.c.b16 %v3034, %v3030
    %v4003 = vpack.c.b16 %v3035, %v3031
    %v4004 = vpack.c.b16 %v3040, %v3036
    %v4005 = vpack.c.b16 %v3041, %v3037
    %v4006 = vpack.c.b16 %v3042, %v3038
    %v4007 = vpack.c.b16 %v3043, %v3039
    %v4008 = vpack.c.b16 %v3048, %v3044
    %v4009 = vpack.c.b16 %v3049, %v3045
    %v4010 = vpack.c.b16 %v3050, %v3046
    %v4011 = vpack.c.b16 %v3051, %v3047
    %v4012 = vpack.c.b16 %v3056, %v3052
    %v4013 = vpack.c.b16 %v3057, %v3053
    %v4014 = vpack.c.b16 %v3058, %v3054
    %v4015 = vpack.c.b16 %v3059, %v3055
    %v4016 = vpack.c.b16 %v3064, %v3060
    %v4017 = vpack.c.b16 %v3065, %v3061
    %v4018 = vpack.c.b16 %v3066, %v3062
    %v4019 = vpack.c.b16 %v3067, %v3063
    %v4020 = vpack.c.b16 %v3072, %v3068
    %v4021 = vpack.c.b16 %v3073, %v3069
    %v4022 = vpack.c.b16 %v3074, %v3070
    %v4023 = vpack.c.b16 %v3075, %v3071
    %v4024 = vpack.c.b16 %v3080, %v3076
    %v4025 = vpack.c.b16 %v3081, %v3077
    %v4026 = vpack.c.b16 %v3082, %v3078
    %v4027 = vpack.c.b16 %v3083, %v3079
    %v4028 = vpack.c.b16 %v3088, %v3084
    %v4029 = vpack.c.b16 %v3089, %v3085
    %v4030 = vpack.c.b16 %v3090, %v3086
    %v4031 = vpack.c.b16 %v3091, %v3087
    %v4032 = vpack.c.b16 %v3096, %v3092
    %v4033 = vpack.c.b16 %v3097, %v3093
    %v4034 = vpack.c.b16 %v3098, %v3094
    %v4035 = vpack.c.b16 %v3099, %v3095
    %v4036 = vpack.c.b16 %v3104, %v3100
    %v4037 = vpack.c.b16 %v3105, %v3101
    %v4038 = vpack.c.b16 %v3106, %v3102
    %v4039 = vpack.c.b16 %v3107, %v3103
    %v4040 = vpack.c.b16 %v3112, %v3108
    %v4041 = vpack.c.b16 %v3113, %v3109
    %v4042 = vpack.c.b16 %v3114, %v3110
    %v4043 = vpack.c.b16 %v3115, %v3111
    %v4044 = vpack.c.b16 %v3120, %v3116
    %v4045 = vpack.c.b16 %v3121, %v3117
    %v4046 = vpack.c.b16 %v3122, %v3118
    %v4047 = vpack.c.b16 %v3123, %v3119
    %v4048 = vpack.c.b16 %v3128, %v3124
    %v4049 = vpack.c.b16 %v3129, %v3125
    %v4050 = vpack.c.b16 %v3130, %v3126
    %v4051 = vpack.c.b16 %v3131, %v3127
    %v4052 = vpack.c.b16 %v3136, %v3132
    %v4053 = vpack.c.b16 %v3137, %v3133
    %v4054 = vpack.c.b16 %v3138, %v3134
    %v4055 = vpack.c.b16 %v3139, %v3135
    %v4056 = vpack.c.b16 %v3144, %v3140
    %v4057 = vpack.c.b16 %v3145, %v3141
    %v4058 = vpack.c.b16 %v3146, %v3142
    %v4059 = vpack.c.b16 %v3147, %v3143
    %v4060 = vpack.c.b16 %v3152, %v3148
    %v4061 = vpack.c.b16 %v3153, %v3149
    %v4062 = vpack.c.b16 %v3154, %v3150
    %v4063 = vpack.c.b16 %v3155, %v3151
    %v4064 = vpack.c.b16 %v3160, %v3156
    %v4065 = vpack.c.b16 %v3161, %v3157
    %v4066 = vpack.c.b16 %v3162, %v3158
    %v4067 = vpack.c.b16 %v3163, %v3159
    %v4068 = vpack.c.b16 %v3168, %v3164
    %v4069 = vpack.c.b16 %v3169, %v3165
    %v4070 = vpack.c.b16 %v3170, %v3166
    %v4071 = vpack.c.b16 %v3171, %v3167
    %v4072 = vpack.c.b16 %v3176, %v3172
    %v4073 = vpack.c.b16 %v3177, %v3173
    %v4074 = vpack.c.b16 %v3178, %v3174
    %v4075 = vpack.c.b16 %v3179, %v3175
    %v4076 = vpack.c.b16 %v3184, %v3180
    %v4077 = vpack.c.b16 %v3185, %v3181
    %v4078 = vpack.c.b16 %v3186, %v3182
    %v4079 = vpack.c.b16 %v3187, %v3183
    %v4080 = vpack.c.b16 %v3192, %v3188
    %v4081 = vpack.c.b16 %v3193, %v3189
    %v4082 = vpack.c.b16 %v3194, %v3190
    %v4083 = vpack.c.b16 %v3195, %v3191
    %v4084 = vpack.c.b16 %v3200, %v3196
    %v4085 = vpack.c.b16 %v3201, %v3197
    %v4086 = vpack.c.b16 %v3202, %v3198
    %v4087 = vpack.c.b16 %v3203, %v3199
    %v4088 = vpack.c.b16 %v3208, %v3204
    %v4089 = vpack.c.b16 %v3209, %v3205
    %v4090 = vpack.c.b16 %v3210, %v3206
    %v4091 = vpack.c.b16 %v3211, %v3207
    %v4092 = vpack.c.b16 %v3216, %v3212
    %v4093 = vpack.c.b16 %v3217, %v3213
    %v4094 = vpack.c.b16 %v3218, %v3214
    %v4095 = vpack.c.b16 %v3219, %v3215
    %v4096 = vpack.c.b16 %v3224, %v3220
    %v4097 = vpack.c.b16 %v3225, %v3221
    %v4098 = vpack.c.b16 %v3226, %v3222
    %v4099 = vpack.c.b16 %v3227, %v3223
    %v4100 = vpack.c.b16 %v3232, %v3228
    %v4101 = vpack.c.b16 %v3233, %v3229
    %v4102 = vpack.c.b16 %v3234, %v3230
    %v4103 = vpack.c.b16 %v3235, %v3231
    %v4104 = vpack.c.b16 %v3240, %v3236
    %v4105 = vpack.c.b16 %v3241, %v3237
    %v4106 = vpack.c.b16 %v3242, %v3238
    %v4107 = vpack.c.b16 %v3243, %v3239
    %v4108 = vpack.c.b16 %v3248, %v3244
    %v4109 = vpack.c.b16 %v3249, %v3245
    %v4110 = vpack.c.b16 %v3250, %v3246
    %v4111 = vpack.c.b16 %v3251, %v3247
    %v4112 = vpack.c.b16 %v3256, %v3252
    %v4113 = vpack.c.b16 %v3257, %v3253
    %v4114 = vpack.c.b16 %v3258, %v3254
    %v4115 = vpack.c.b16 %v3259, %v3255
    %v4116 = vpack.c.b16 %v3264, %v3260
    %v4117 = vpack.c.b16 %v3265, %v3261
    %v4118 = vpack.c.b16 %v3266, %v3262
    %v4119 = vpack.c.b16 %v3267, %v3263
    %v4120 = vpack.c.b16 %v3272, %v3268
    %v4121 = vpack.c.b16 %v3273, %v3269
    %v4122 = vpack.c.b16 %v3274, %v3270
    %v4123 = vpack.c.b16 %v3275, %v3271
    %v4124 = vpack.c.b16 %v3280, %v3276
    %v4125 = vpack.c.b16 %v3281, %v3277
    %v4126 = vpack.c.b16 %v3282, %v3278
    %v4127 = vpack.c.b16 %v3283, %v3279
    %v4128 = vpack.c.b16 %v3288, %v3284
    %v4129 = vpack.c.b16 %v3289, %v3285
    %v4130 = vpack.c.b16 %v3290, %v3286
    %v4131 = vpack.c.b16 %v3291, %v3287
    %v4132 = vpack.c.b16 %v3296, %v3292
    %v4133 = vpack.c.b16 %v3297, %v3293
    %v4134 = vpack.c.b16 %v3298, %v3294
    %v4135 = vpack.c.b16 %v3299, %v3295
    %v4136 = vpack.c.b16 %v3304, %v3300
    %v4137 = vpack.c.b16 %v3305, %v3301
    %v4138 = vpack.c.b16 %v3306, %v3302
    %v4139 = vpack.c.b16 %v3307, %v3303
    %v4140 = vpack.c.b16 %v3312, %v3308
    %v4141 = vpack.c.b16 %v3313, %v3309
    %v4142 = vpack.c.b16 %v3314, %v3310
    %v4143 = vpack.c.b16 %v3315, %v3311
    %v4144 = vpack.c.b16 %v3320, %v3316
    %v4145 = vpack.c.b16 %v3321, %v3317
    %v4146 = vpack.c.b16 %v3322, %v3318
    %v4147 = vpack.c.b16 %v3323, %v3319
    %v4148 = vpack.c.b16 %v3328, %v3324
    %v4149 = vpack.c.b16 %v3329, %v3325
    %v4150 = vpack.c.b16 %v3330, %v3326
    %v4151 = vpack.c.b16 %v3331, %v3327
    %v4152 = vpack.c.b16 %v3336, %v3332
    %v4153 = vpack.c.b16 %v3337, %v3333
    %v4154 = vpack.c.b16 %v3338, %v3334
    %v4155 = vpack.c.b16 %v3339, %v3335
    %v4156 = vpack.c.b16 %v3344, %v3340
    %v4157 = vpack.c.b16 %v3345, %v3341
    %v4158 = vpack.c.b16 %v3346, %v3342
    %v4159 = vpack.c.b16 %v3347, %v3343
    %v4160 = vpack.c.b16 %v3352, %v3348
    %v4161 = vpack.c.b16 %v3353, %v3349
    %v4162 = vpack.c.b16 %v3354, %v3350
    %v4163 = vpack.c.b16 %v3355, %v3351
    %v4164 = vpack.c.b16 %v3360, %v3356
    %v4165 = vpack.c.b16 %v3361, %v3357
    %v4166 = vpack.c.b16 %v3362, %v3358
    %v4167 = vpack.c.b16 %v3363, %v3359
    %v4168 = vpack.c.b16 %v3368, %v3364
    %v4169 = vpack.c.b16 %v3369, %v3365
    %v4170 = vpack.c.b16 %v3370, %v3366
    %v4171 = vpack.c.b16 %v3371, %v3367
    %v4172 = vpack.c.b16 %v3376, %v3372
    %v4173 = vpack.c.b16 %v3377, %v3373
    %v4174 = vpack.c.b16 %v3378, %v3374
    %v4175 = vpack.c.b16 %v3379, %v3375
    %v4176 = vpack.c.b16 %v3384, %v3380
    %v4177 = vpack.c.b16 %v3385, %v3381
    %v4178 = vpack.c.b16 %v3386, %v3382
    %v4179 = vpack.c.b16 %v3387, %v3383
    %v4180 = vpack.c.b16 %v3392, %v3388
    %v4181 = vpack.c.b16 %v3393, %v3389
    %v4182 = vpack.c.b16 %v3394, %v3390
    %v4183 = vpack.c.b16 %v3395, %v3391
    %v4184 = vpack.c.b16 %v3400, %v3396
    %v4185 = vpack.c.b16 %v3401, %v3397
    %v4186 = vpack.c.b16 %v3402, %v3398
    %v4187 = vpack.c.b16 %v3403, %v3399
    %vm4972 = vcmask 523264
    %v4974 = vsel %vm4972, %v245, 0
    %4976 = vmatprep.subr.bf16.mxu0 %v3405
    %4977 = vmatpush1.bf16.msra.mxu0 %v3404
    %4978 = vmatprep.subr.bf16.mxu0 %v3409
    %4979 = vmatpush1.bf16.msra.mxu0 %v3408
    %4980 = vmatprep.subr.bf16.mxu0 %v3413
    %4981 = vmatpush1.bf16.msra.mxu0 %v3412
    %4982 = vmatprep.subr.bf16.mxu0 %v3417
    %4983 = vmatpush1.bf16.msra.mxu0 %v3416
    %4984 = vmatprep.subr.bf16.mxu0 %v3421
    %4985 = vmatpush1.bf16.msra.mxu0 %v3420
    %4986 = vmatprep.subr.bf16.mxu0 %v3425
    %4987 = vmatpush1.bf16.msra.mxu0 %v3424
    %4988 = vmatprep.subr.bf16.mxu0 %v3429
    %4989 = vmatpush1.bf16.msra.mxu0 %v3428
    %4990 = vmatprep.subr.bf16.mxu0 %v3433
    %4991 = vmatpush1.bf16.msra.mxu0 %v3432
    %4992 = vmatprep.subr.bf16.mxu0 %v3437
    %4993 = vmatpush1.bf16.msra.mxu0 %v3436
    %4994 = vmatprep.subr.bf16.mxu0 %v3441
    %4995 = vmatpush1.bf16.msra.mxu0 %v3440
    %4996 = vmatprep.subr.bf16.mxu0 %v3445
    %4997 = vmatpush1.bf16.msra.mxu0 %v3444
    %4998 = vmatprep.subr.bf16.mxu0 %v3449
    %4999 = vmatpush1.bf16.msra.mxu0 %v3448
    %5000 = vmatprep.subr.bf16.mxu0 %v3453
    %5001 = vmatpush1.bf16.msra.mxu0 %v3452
    %5002 = vmatprep.subr.bf16.mxu0 %v3457
    %5003 = vmatpush1.bf16.msra.mxu0 %v3456
    %5004 = vmatprep.subr.bf16.mxu0 %v3461
    %5005 = vmatpush1.bf16.msra.mxu0 %v3460
    %5006 = vmatprep.subr.bf16.mxu0 %v3465
    %5007 = vmatpush1.bf16.msra.mxu0 %v3464
    %5008 = vmatprep.mubr.bf16.mxu0 %v222
    %5009 = vmatmul.mubr.bf16.gmra.mrb[0].mxu0 %v221
    %v5010 = vpop.f32.mrb[0].mxu0
    %v5011 = vadd.f32 %v1035, %v5010
    %v5012 = vpop.f32.mrb[0].mxu0
    %v5013 = vadd.f32 %v1039, %v5012
    %v5014 = vpop.f32.mrb[0].mxu0
    %v5015 = vpop.f32.mrb[0].mxu0
    %5016 = vdwg.mxu0
    %5017 = vmatprep.subr.bf16.mxu0 %v3469
    %5018 = vmatpush1.bf16.msra.mxu0 %v3468
    %5019 = vmatprep.subr.bf16.mxu0 %v3473
    %5020 = vmatpush1.bf16.msra.mxu0 %v3472
    %5021 = vmatprep.subr.bf16.mxu0 %v3477
    %5022 = vmatpush1.bf16.msra.mxu0 %v3476
    %5023 = vmatprep.subr.bf16.mxu0 %v3481
    %5024 = vmatpush1.bf16.msra.mxu0 %v3480
    %5025 = vmatprep.subr.bf16.mxu0 %v3485
    %5026 = vmatpush1.bf16.msra.mxu0 %v3484
    %5027 = vmatprep.subr.bf16.mxu0 %v3489
    %5028 = vmatpush1.bf16.msra.mxu0 %v3488
    %5029 = vmatprep.subr.bf16.mxu0 %v3493
    %5030 = vmatpush1.bf16.msra.mxu0 %v3492
    %5031 = vmatprep.subr.bf16.mxu0 %v3497
    %5032 = vmatpush1.bf16.msra.mxu0 %v3496
    %5033 = vmatprep.subr.bf16.mxu0 %v3501
    %5034 = vmatpush1.bf16.msra.mxu0 %v3500
    %5035 = vmatprep.subr.bf16.mxu0 %v3505
    %5036 = vmatpush1.bf16.msra.mxu0 %v3504
    %5037 = vmatprep.subr.bf16.mxu0 %v3509
    %5038 = vmatpush1.bf16.msra.mxu0 %v3508
    %5039 = vmatprep.subr.bf16.mxu0 %v3513
    %5040 = vmatpush1.bf16.msra.mxu0 %v3512
    %5041 = vmatprep.subr.bf16.mxu0 %v3517
    %5042 = vmatpush1.bf16.msra.mxu0 %v3516
    %5043 = vmatprep.subr.bf16.mxu0 %v3521
    %5044 = vmatpush1.bf16.msra.mxu0 %v3520
    %5045 = vmatprep.subr.bf16.mxu0 %v3525
    %5046 = vmatpush1.bf16.msra.mxu0 %v3524
    %5047 = vmatprep.subr.bf16.mxu0 %v3529
    %5048 = vmatpush1.bf16.msra.mxu0 %v3528
    %5049 = vmatprep.mubr.bf16.mxu0 %v224
    %5050 = vmatmul.mubr.bf16.gmra.mrb[0].mxu0 %v223
    %v5051 = vpop.f32.mrb[0].mxu0
    %v5052 = vadd.f32 %v5011, %v5051
    %v5053 = vpop.f32.mrb[0].mxu0
    %v5054 = vadd.f32 %v5013, %v5053
    %v5055 = vpop.f32.mrb[0].mxu0
    %v5056 = vpop.f32.mrb[0].mxu0
    %5057 = vdwg.mxu0
    %5058 = vmatprep.subr.bf16.mxu0 %v3533
    %5059 = vmatpush1.bf16.msra.mxu0 %v3532
    %5060 = vmatprep.subr.bf16.mxu0 %v3537
    %5061 = vmatpush1.bf16.msra.mxu0 %v3536
    %5062 = vmatprep.subr.bf16.mxu0 %v3541
    %5063 = vmatpush1.bf16.msra.mxu0 %v3540
    %5064 = vmatprep.subr.bf16.mxu0 %v3545
    %5065 = vmatpush1.bf16.msra.mxu0 %v3544
    %5066 = vmatprep.subr.bf16.mxu0 %v3549
    %5067 = vmatpush1.bf16.msra.mxu0 %v3548
    %5068 = vmatprep.subr.bf16.mxu0 %v3553
    %5069 = vmatpush1.bf16.msra.mxu0 %v3552
    %5070 = vmatprep.subr.bf16.mxu0 %v3557
    %5071 = vmatpush1.bf16.msra.mxu0 %v3556
    %5072 = vmatprep.subr.bf16.mxu0 %v3561
    %5073 = vmatpush1.bf16.msra.mxu0 %v3560
    %5074 = vmatprep.subr.bf16.mxu0 %v3565
    %5075 = vmatpush1.bf16.msra.mxu0 %v3564
    %5076 = vmatprep.subr.bf16.mxu0 %v3569
    %5077 = vmatpush1.bf16.msra.mxu0 %v3568
    %5078 = vmatprep.subr.bf16.mxu0 %v3573
    %5079 = vmatpush1.bf16.msra.mxu0 %v3572
    %5080 = vmatprep.subr.bf16.mxu0 %v3577
    %5081 = vmatpush1.bf16.msra.mxu0 %v3576
    %5082 = vmatprep.subr.bf16.mxu0 %v3581
    %5083 = vmatpush1.bf16.msra.mxu0 %v3580
    %5084 = vmatprep.subr.bf16.mxu0 %v3585
    %5085 = vmatpush1.bf16.msra.mxu0 %v3584
    %5086 = vmatprep.subr.bf16.mxu0 %v3589
    %5087 = vmatpush1.bf16.msra.mxu0 %v3588
    %5088 = vmatprep.subr.bf16.mxu0 %v3593
    %5089 = vmatpush1.bf16.msra.mxu0 %v3592
    %5090 = vmatprep.mubr.bf16.mxu0 %v226
    %5091 = vmatmul.mubr.bf16.gmra.mrb[0].mxu0 %v225
    %v5092 = vpop.f32.mrb[0].mxu0
    %v5093 = vadd.f32 %v5052, %v5092
    %v5094 = vpop.f32.mrb[0].mxu0
    %v5095 = vadd.f32 %v5054, %v5094
    %v5096 = vpop.f32.mrb[0].mxu0
    %v5097 = vpop.f32.mrb[0].mxu0
    %5098 = vdwg.mxu0
    %5099 = vmatprep.subr.bf16.mxu0 %v3597
    %5100 = vmatpush1.bf16.msra.mxu0 %v3596
    %5101 = vmatprep.subr.bf16.mxu0 %v3601
    %5102 = vmatpush1.bf16.msra.mxu0 %v3600
    %5103 = vmatprep.subr.bf16.mxu0 %v3605
    %5104 = vmatpush1.bf16.msra.mxu0 %v3604
    %5105 = vmatprep.subr.bf16.mxu0 %v3609
    %5106 = vmatpush1.bf16.msra.mxu0 %v3608
    %5107 = vmatprep.subr.bf16.mxu0 %v3613
    %5108 = vmatpush1.bf16.msra.mxu0 %v3612
    %5109 = vmatprep.subr.bf16.mxu0 %v3617
    %5110 = vmatpush1.bf16.msra.mxu0 %v3616
    %5111 = vmatprep.subr.bf16.mxu0 %v3621
    %5112 = vmatpush1.bf16.msra.mxu0 %v3620
    %5113 = vmatprep.subr.bf16.mxu0 %v3625
    %5114 = vmatpush1.bf16.msra.mxu0 %v3624
    %5115 = vmatprep.subr.bf16.mxu0 %v3629
    %5116 = vmatpush1.bf16.msra.mxu0 %v3628
    %5117 = vmatprep.subr.bf16.mxu0 %v3633
    %5118 = vmatpush1.bf16.msra.mxu0 %v3632
    %5119 = vmatprep.subr.bf16.mxu0 %v3637
    %5120 = vmatpush1.bf16.msra.mxu0 %v3636
    %5121 = vmatprep.subr.bf16.mxu0 %v3641
    %5122 = vmatpush1.bf16.msra.mxu0 %v3640
    %5123 = vmatprep.subr.bf16.mxu0 %v3645
    %5124 = vmatpush1.bf16.msra.mxu0 %v3644
    %5125 = vmatprep.subr.bf16.mxu0 %v3649
    %5126 = vmatpush1.bf16.msra.mxu0 %v3648
    %5127 = vmatprep.subr.bf16.mxu0 %v3653
    %5128 = vmatpush1.bf16.msra.mxu0 %v3652
    %5129 = vmatprep.subr.bf16.mxu0 %v3657
    %5130 = vmatpush1.bf16.msra.mxu0 %v3656
    %5131 = vmatprep.mubr.bf16.mxu0 %v228
    %5132 = vmatmul.mubr.bf16.gmra.mrb[0].mxu0 %v227
    %v5133 = vpop.f32.mrb[0].mxu0
    %v5134 = vadd.f32 %v5093, %v5133
    %v5135 = vpop.f32.mrb[0].mxu0
    %v5136 = vadd.f32 %v5095, %v5135
    %v5137 = vpop.f32.mrb[0].mxu0
    %v5138 = vpop.f32.mrb[0].mxu0
    %5139 = vdwg.mxu0
    %5140 = vmatprep.subr.bf16.mxu0 %v3661
    %5141 = vmatpush1.bf16.msra.mxu0 %v3660
    %5142 = vmatprep.subr.bf16.mxu0 %v3665
    %5143 = vmatpush1.bf16.msra.mxu0 %v3664
    %5144 = vmatprep.subr.bf16.mxu0 %v3669
    %5145 = vmatpush1.bf16.msra.mxu0 %v3668
    %5146 = vmatprep.subr.bf16.mxu0 %v3673
    %5147 = vmatpush1.bf16.msra.mxu0 %v3672
    %5148 = vmatprep.subr.bf16.mxu0 %v3677
    %5149 = vmatpush1.bf16.msra.mxu0 %v3676
    %5150 = vmatprep.subr.bf16.mxu0 %v3681
    %5151 = vmatpush1.bf16.msra.mxu0 %v3680
    %5152 = vmatprep.subr.bf16.mxu0 %v3685
    %5153 = vmatpush1.bf16.msra.mxu0 %v3684
    %5154 = vmatprep.subr.bf16.mxu0 %v3689
    %5155 = vmatpush1.bf16.msra.mxu0 %v3688
    %5156 = vmatprep.subr.bf16.mxu0 %v3693
    %5157 = vmatpush1.bf16.msra.mxu0 %v3692
    %5158 = vmatprep.subr.bf16.mxu0 %v3697
    %5159 = vmatpush1.bf16.msra.mxu0 %v3696
    %5160 = vmatprep.subr.bf16.mxu0 %v3701
    %5161 = vmatpush1.bf16.msra.mxu0 %v3700
    %5162 = vmatprep.subr.bf16.mxu0 %v3705
    %5163 = vmatpush1.bf16.msra.mxu0 %v3704
    %5164 = vmatprep.subr.bf16.mxu0 %v3709
    %5165 = vmatpush1.bf16.msra.mxu0 %v3708
    %5166 = vmatprep.subr.bf16.mxu0 %v3713
    %5167 = vmatpush1.bf16.msra.mxu0 %v3712
    %5168 = vmatprep.subr.bf16.mxu0 %v3717
    %5169 = vmatpush1.bf16.msra.mxu0 %v3716
    %5170 = vmatprep.subr.bf16.mxu0 %v3721
    %5171 = vmatpush1.bf16.msra.mxu0 %v3720
    %5172 = vmatprep.mubr.bf16.mxu0 %v230
    %5173 = vmatmul.mubr.bf16.gmra.mrb[0].mxu0 %v229
    %v5174 = vpop.f32.mrb[0].mxu0
    %v5175 = vadd.f32 %v5134, %v5174
    %v5176 = vpop.f32.mrb[0].mxu0
    %v5177 = vadd.f32 %v5136, %v5176
    %v5178 = vpop.f32.mrb[0].mxu0
    %v5179 = vpop.f32.mrb[0].mxu0
    %5180 = vdwg.mxu0
    %5181 = vmatprep.subr.bf16.mxu0 %v3725
    %5182 = vmatpush1.bf16.msra.mxu0 %v3724
    %5183 = vmatprep.subr.bf16.mxu0 %v3729
    %5184 = vmatpush1.bf16.msra.mxu0 %v3728
    %5185 = vmatprep.subr.bf16.mxu0 %v3733
    %5186 = vmatpush1.bf16.msra.mxu0 %v3732
    %5187 = vmatprep.subr.bf16.mxu0 %v3737
    %5188 = vmatpush1.bf16.msra.mxu0 %v3736
    %5189 = vmatprep.subr.bf16.mxu0 %v3741
    %5190 = vmatpush1.bf16.msra.mxu0 %v3740
    %5191 = vmatprep.subr.bf16.mxu0 %v3745
    %5192 = vmatpush1.bf16.msra.mxu0 %v3744
    %5193 = vmatprep.subr.bf16.mxu0 %v3749
    %5194 = vmatpush1.bf16.msra.mxu0 %v3748
    %5195 = vmatprep.subr.bf16.mxu0 %v3753
    %5196 = vmatpush1.bf16.msra.mxu0 %v3752
    %5197 = vmatprep.subr.bf16.mxu0 %v3757
    %5198 = vmatpush1.bf16.msra.mxu0 %v3756
    %5199 = vmatprep.subr.bf16.mxu0 %v3761
    %5200 = vmatpush1.bf16.msra.mxu0 %v3760
    %5201 = vmatprep.subr.bf16.mxu0 %v3765
    %5202 = vmatpush1.bf16.msra.mxu0 %v3764
    %5203 = vmatprep.subr.bf16.mxu0 %v3769
    %5204 = vmatpush1.bf16.msra.mxu0 %v3768
    %5205 = vmatprep.subr.bf16.mxu0 %v3773
    %5206 = vmatpush1.bf16.msra.mxu0 %v3772
    %5207 = vmatprep.subr.bf16.mxu0 %v3777
    %5208 = vmatpush1.bf16.msra.mxu0 %v3776
    %5209 = vmatprep.subr.bf16.mxu0 %v3781
    %5210 = vmatpush1.bf16.msra.mxu0 %v3780
    %5211 = vmatprep.subr.bf16.mxu0 %v3785
    %5212 = vmatpush1.bf16.msra.mxu0 %v3784
    %5213 = vmatprep.mubr.bf16.mxu0 %v232
    %5214 = vmatmul.mubr.bf16.gmra.mrb[0].mxu0 %v231
    %v5215 = vpop.f32.mrb[0].mxu0
    %v5216 = vadd.f32 %v5175, %v5215
    %v5217 = vpop.f32.mrb[0].mxu0
    %v5218 = vadd.f32 %v5177, %v5217
    %v5219 = vpop.f32.mrb[0].mxu0
    %v5220 = vpop.f32.mrb[0].mxu0
    %5221 = vdwg.mxu0
    %5222 = vmatprep.subr.bf16.mxu0 %v3789
    %5223 = vmatpush1.bf16.msra.mxu0 %v3788
    %5224 = vmatprep.subr.bf16.mxu0 %v3793
    %5225 = vmatpush1.bf16.msra.mxu0 %v3792
    %5226 = vmatprep.subr.bf16.mxu0 %v3797
    %5227 = vmatpush1.bf16.msra.mxu0 %v3796
    %5228 = vmatprep.subr.bf16.mxu0 %v3801
    %5229 = vmatpush1.bf16.msra.mxu0 %v3800
    %5230 = vmatprep.subr.bf16.mxu0 %v3805
    %5231 = vmatpush1.bf16.msra.mxu0 %v3804
    %5232 = vmatprep.subr.bf16.mxu0 %v3809
    %5233 = vmatpush1.bf16.msra.mxu0 %v3808
    %5234 = vmatprep.subr.bf16.mxu0 %v3813
    %5235 = vmatpush1.bf16.msra.mxu0 %v3812
    %5236 = vmatprep.subr.bf16.mxu0 %v3817
    %5237 = vmatpush1.bf16.msra.mxu0 %v3816
    %5238 = vmatprep.subr.bf16.mxu0 %v3821
    %5239 = vmatpush1.bf16.msra.mxu0 %v3820
    %5240 = vmatprep.subr.bf16.mxu0 %v3825
    %5241 = vmatpush1.bf16.msra.mxu0 %v3824
    %5242 = vmatprep.subr.bf16.mxu0 %v3829
    %5243 = vmatpush1.bf16.msra.mxu0 %v3828
    %5244 = vmatprep.subr.bf16.mxu0 %v3833
    %5245 = vmatpush1.bf16.msra.mxu0 %v3832
    %5246 = vmatprep.subr.bf16.mxu0 %v3837
    %5247 = vmatpush1.bf16.msra.mxu0 %v3836
    %5248 = vmatprep.subr.bf16.mxu0 %v3841
    %5249 = vmatpush1.bf16.msra.mxu0 %v3840
    %5250 = vmatprep.subr.bf16.mxu0 %v3845
    %5251 = vmatpush1.bf16.msra.mxu0 %v3844
    %5252 = vmatprep.subr.bf16.mxu0 %v3849
    %5253 = vmatpush1.bf16.msra.mxu0 %v3848
    %5254 = vmatprep.mubr.bf16.mxu0 %v234
    %5255 = vmatmul.mubr.bf16.gmra.mrb[0].mxu0 %v233
    %v5256 = vpop.f32.mrb[0].mxu0
    %v5257 = vadd.f32 %v5216, %v5256
    %v5258 = vpop.f32.mrb[0].mxu0
    %v5259 = vadd.f32 %v5218, %v5258
    %v5260 = vpop.f32.mrb[0].mxu0
    %v5261 = vpop.f32.mrb[0].mxu0
    %5262 = vdwg.mxu0
    %5263 = vmatprep.subr.bf16.mxu0 %v3853
    %5264 = vmatpush1.bf16.msra.mxu0 %v3852
    %5265 = vmatprep.subr.bf16.mxu0 %v3857
    %5266 = vmatpush1.bf16.msra.mxu0 %v3856
    %5267 = vmatprep.subr.bf16.mxu0 %v3861
    %5268 = vmatpush1.bf16.msra.mxu0 %v3860
    %5269 = vmatprep.subr.bf16.mxu0 %v3865
    %5270 = vmatpush1.bf16.msra.mxu0 %v3864
    %5271 = vmatprep.subr.bf16.mxu0 %v3869
    %5272 = vmatpush1.bf16.msra.mxu0 %v3868
    %5273 = vmatprep.subr.bf16.mxu0 %v3873
    %5274 = vmatpush1.bf16.msra.mxu0 %v3872
    %5275 = vmatprep.subr.bf16.mxu0 %v3877
    %5276 = vmatpush1.bf16.msra.mxu0 %v3876
    %5277 = vmatprep.subr.bf16.mxu0 %v3881
    %5278 = vmatpush1.bf16.msra.mxu0 %v3880
    %5279 = vmatprep.subr.bf16.mxu0 %v3885
    %5280 = vmatpush1.bf16.msra.mxu0 %v3884
    %5281 = vmatprep.subr.bf16.mxu0 %v3889
    %5282 = vmatpush1.bf16.msra.mxu0 %v3888
    %5283 = vmatprep.subr.bf16.mxu0 %v3893
    %5284 = vmatpush1.bf16.msra.mxu0 %v3892
    %5285 = vmatprep.subr.bf16.mxu0 %v3897
    %5286 = vmatpush1.bf16.msra.mxu0 %v3896
    %5287 = vmatprep.subr.bf16.mxu0 %v3901
    %5288 = vmatpush1.bf16.msra.mxu0 %v3900
    %5289 = vmatprep.subr.bf16.mxu0 %v3905
    %5290 = vmatpush1.bf16.msra.mxu0 %v3904
    %5291 = vmatprep.subr.bf16.mxu0 %v3909
    %5292 = vmatpush1.bf16.msra.mxu0 %v3908
    %5293 = vmatprep.subr.bf16.mxu0 %v3913
    %5294 = vmatpush1.bf16.msra.mxu0 %v3912
    %5295 = vmatprep.mubr.bf16.mxu0 %v236
    %5296 = vmatmul.mubr.bf16.gmra.mrb[0].mxu0 %v235
    %v5297 = vpop.f32.mrb[0].mxu0
    %v5298 = vadd.f32 %v5257, %v5297
    %v5299 = vpop.f32.mrb[0].mxu0
    %v5300 = vadd.f32 %v5259, %v5299
    %v5301 = vpop.f32.mrb[0].mxu0
    %v5302 = vpop.f32.mrb[0].mxu0
    %5303 = vdwg.mxu0
    %5304 = vmatprep.subr.bf16.mxu0 %v3917
    %5305 = vmatpush1.bf16.msra.mxu0 %v3916
    %5306 = vmatprep.subr.bf16.mxu0 %v3921
    %5307 = vmatpush1.bf16.msra.mxu0 %v3920
    %5308 = vmatprep.subr.bf16.mxu0 %v3925
    %5309 = vmatpush1.bf16.msra.mxu0 %v3924
    %5310 = vmatprep.subr.bf16.mxu0 %v3929
    %5311 = vmatpush1.bf16.msra.mxu0 %v3928
    %5312 = vmatprep.subr.bf16.mxu0 %v3933
    %5313 = vmatpush1.bf16.msra.mxu0 %v3932
    %5314 = vmatprep.subr.bf16.mxu0 %v3937
    %5315 = vmatpush1.bf16.msra.mxu0 %v3936
    %5316 = vmatprep.subr.bf16.mxu0 %v3941
    %5317 = vmatpush1.bf16.msra.mxu0 %v3940
    %5318 = vmatprep.subr.bf16.mxu0 %v3945
    %5319 = vmatpush1.bf16.msra.mxu0 %v3944
    %5320 = vmatprep.subr.bf16.mxu0 %v3949
    %5321 = vmatpush1.bf16.msra.mxu0 %v3948
    %5322 = vmatprep.subr.bf16.mxu0 %v3953
    %5323 = vmatpush1.bf16.msra.mxu0 %v3952
    %5324 = vmatprep.subr.bf16.mxu0 %v3957
    %5325 = vmatpush1.bf16.msra.mxu0 %v3956
    %5326 = vmatprep.subr.bf16.mxu0 %v3961
    %5327 = vmatpush1.bf16.msra.mxu0 %v3960
    %5328 = vmatprep.subr.bf16.mxu0 %v3965
    %5329 = vmatpush1.bf16.msra.mxu0 %v3964
    %5330 = vmatprep.subr.bf16.mxu0 %v3969
    %5331 = vmatpush1.bf16.msra.mxu0 %v3968
    %5332 = vmatprep.subr.bf16.mxu0 %v3973
    %5333 = vmatpush1.bf16.msra.mxu0 %v3972
    %5334 = vmatprep.subr.bf16.mxu0 %v3977
    %5335 = vmatpush1.bf16.msra.mxu0 %v3976
    %5336 = vmatprep.mubr.bf16.mxu0 %v238
    %5337 = vmatmul.mubr.bf16.gmra.mrb[0].mxu0 %v237
    %v5338 = vpop.f32.mrb[0].mxu0
    %v5339 = vadd.f32 %v5298, %v5338
    %v5340 = vpop.f32.mrb[0].mxu0
    %v5341 = vadd.f32 %v5300, %v5340
    %v5342 = vpop.f32.mrb[0].mxu0
    %v5343 = vpop.f32.mrb[0].mxu0
    %5344 = vdwg.mxu0
    %5345 = vmatprep.subr.bf16.mxu0 %v3981
    %5346 = vmatpush1.bf16.msra.mxu0 %v3980
    %5347 = vmatprep.subr.bf16.mxu0 %v3985
    %5348 = vmatpush1.bf16.msra.mxu0 %v3984
    %5349 = vmatprep.subr.bf16.mxu0 %v3989
    %5350 = vmatpush1.bf16.msra.mxu0 %v3988
    %5351 = vmatprep.subr.bf16.mxu0 %v3993
    %5352 = vmatpush1.bf16.msra.mxu0 %v3992
    %5353 = vmatprep.subr.bf16.mxu0 %v3997
    %5354 = vmatpush1.bf16.msra.mxu0 %v3996
    %5355 = vmatprep.subr.bf16.mxu0 %v4001
    %5356 = vmatpush1.bf16.msra.mxu0 %v4000
    %5357 = vmatprep.subr.bf16.mxu0 %v4005
    %5358 = vmatpush1.bf16.msra.mxu0 %v4004
    %5359 = vmatprep.subr.bf16.mxu0 %v4009
    %5360 = vmatpush1.bf16.msra.mxu0 %v4008
    %5361 = vmatprep.subr.bf16.mxu0 %v4013
    %5362 = vmatpush1.bf16.msra.mxu0 %v4012
    %5363 = vmatprep.subr.bf16.mxu0 %v4017
    %5364 = vmatpush1.bf16.msra.mxu0 %v4016
    %5365 = vmatprep.subr.bf16.mxu0 %v4021
    %5366 = vmatpush1.bf16.msra.mxu0 %v4020
    %5367 = vmatprep.subr.bf16.mxu0 %v4025
    %5368 = vmatpush1.bf16.msra.mxu0 %v4024
    %5369 = vmatprep.subr.bf16.mxu0 %v4029
    %5370 = vmatpush1.bf16.msra.mxu0 %v4028
    %5371 = vmatprep.subr.bf16.mxu0 %v4033
    %5372 = vmatpush1.bf16.msra.mxu0 %v4032
    %5373 = vmatprep.subr.bf16.mxu0 %v4037
    %5374 = vmatpush1.bf16.msra.mxu0 %v4036
    %5375 = vmatprep.subr.bf16.mxu0 %v4041
    %5376 = vmatpush1.bf16.msra.mxu0 %v4040
    %5377 = vmatprep.mubr.bf16.mxu0 %v240
    %5378 = vmatmul.mubr.bf16.gmra.mrb[0].mxu0 %v239
    %v5379 = vpop.f32.mrb[0].mxu0
    %v5380 = vadd.f32 %v5339, %v5379
    %v5381 = vpop.f32.mrb[0].mxu0
    %v5382 = vadd.f32 %v5341, %v5381
    %v5383 = vpop.f32.mrb[0].mxu0
    %v5384 = vpop.f32.mrb[0].mxu0
    %5385 = vdwg.mxu0
    %5386 = vmatprep.subr.bf16.mxu0 %v4045
    %5387 = vmatpush1.bf16.msra.mxu0 %v4044
    %5388 = vmatprep.subr.bf16.mxu0 %v4049
    %5389 = vmatpush1.bf16.msra.mxu0 %v4048
    %5390 = vmatprep.subr.bf16.mxu0 %v4053
    %5391 = vmatpush1.bf16.msra.mxu0 %v4052
    %5392 = vmatprep.subr.bf16.mxu0 %v4057
    %5393 = vmatpush1.bf16.msra.mxu0 %v4056
    %5394 = vmatprep.subr.bf16.mxu0 %v4061
    %5395 = vmatpush1.bf16.msra.mxu0 %v4060
    %5396 = vmatprep.subr.bf16.mxu0 %v4065
    %5397 = vmatpush1.bf16.msra.mxu0 %v4064
    %5398 = vmatprep.subr.bf16.mxu0 %v4069
    %5399 = vmatpush1.bf16.msra.mxu0 %v4068
    %5400 = vmatprep.subr.bf16.mxu0 %v4073
    %5401 = vmatpush1.bf16.msra.mxu0 %v4072
    %5402 = vmatprep.subr.bf16.mxu0 %v4077
    %5403 = vmatpush1.bf16.msra.mxu0 %v4076
    %5404 = vmatprep.subr.bf16.mxu0 %v4081
    %5405 = vmatpush1.bf16.msra.mxu0 %v4080
    %5406 = vmatprep.subr.bf16.mxu0 %v4085
    %5407 = vmatpush1.bf16.msra.mxu0 %v4084
    %5408 = vmatprep.subr.bf16.mxu0 %v4089
    %5409 = vmatpush1.bf16.msra.mxu0 %v4088
    %5410 = vmatprep.subr.bf16.mxu0 %v4093
    %5411 = vmatpush1.bf16.msra.mxu0 %v4092
    %5412 = vmatprep.subr.bf16.mxu0 %v4097
    %5413 = vmatpush1.bf16.msra.mxu0 %v4096
    %5414 = vmatprep.subr.bf16.mxu0 %v4101
    %5415 = vmatpush1.bf16.msra.mxu0 %v4100
    %5416 = vmatprep.subr.bf16.mxu0 %v4105
    %5417 = vmatpush1.bf16.msra.mxu0 %v4104
    %5418 = vmatprep.mubr.bf16.mxu0 %v242
    %5419 = vmatmul.mubr.bf16.gmra.mrb[0].mxu0 %v241
    %v5420 = vpop.f32.mrb[0].mxu0
    %v5421 = vadd.f32 %v5380, %v5420
    %v5422 = vpop.f32.mrb[0].mxu0
    %v5423 = vadd.f32 %v5382, %v5422
    %v5424 = vpop.f32.mrb[0].mxu0
    %v5425 = vpop.f32.mrb[0].mxu0
    %5426 = vdwg.mxu0
    %5427 = vmatprep.subr.bf16.mxu0 %v4109
    %5428 = vmatpush1.bf16.msra.mxu0 %v4108
    %5429 = vmatprep.subr.bf16.mxu0 %v4113
    %5430 = vmatpush1.bf16.msra.mxu0 %v4112
    %5431 = vmatprep.subr.bf16.mxu0 %v4117
    %5432 = vmatpush1.bf16.msra.mxu0 %v4116
    %5433 = vmatprep.subr.bf16.mxu0 %v4121
    %5434 = vmatpush1.bf16.msra.mxu0 %v4120
    %5435 = vmatprep.subr.bf16.mxu0 %v4125
    %5436 = vmatpush1.bf16.msra.mxu0 %v4124
    %5437 = vmatprep.subr.bf16.mxu0 %v4129
    %5438 = vmatpush1.bf16.msra.mxu0 %v4128
    %5439 = vmatprep.subr.bf16.mxu0 %v4133
    %5440 = vmatpush1.bf16.msra.mxu0 %v4132
    %5441 = vmatprep.subr.bf16.mxu0 %v4137
    %5442 = vmatpush1.bf16.msra.mxu0 %v4136
    %5443 = vmatprep.subr.bf16.mxu0 %v4141
    %5444 = vmatpush1.bf16.msra.mxu0 %v4140
    %5445 = vmatprep.subr.bf16.mxu0 %v4145
    %5446 = vmatpush1.bf16.msra.mxu0 %v4144
    %5447 = vmatprep.subr.bf16.mxu0 %v4149
    %5448 = vmatpush1.bf16.msra.mxu0 %v4148
    %5449 = vmatprep.subr.bf16.mxu0 %v4153
    %5450 = vmatpush1.bf16.msra.mxu0 %v4152
    %5451 = vmatprep.subr.bf16.mxu0 %v4157
    %5452 = vmatpush1.bf16.msra.mxu0 %v4156
    %5453 = vmatprep.subr.bf16.mxu0 %v4161
    %5454 = vmatpush1.bf16.msra.mxu0 %v4160
    %5455 = vmatprep.subr.bf16.mxu0 %v4165
    %5456 = vmatpush1.bf16.msra.mxu0 %v4164
    %5457 = vmatprep.subr.bf16.mxu0 %v4169
    %5458 = vmatpush1.bf16.msra.mxu0 %v4168
    %5459 = vmatprep.mubr.bf16.mxu0 %v244
    %5460 = vmatmul.mubr.bf16.gmra.mrb[0].mxu0 %v243
    %v5461 = vpop.f32.mrb[0].mxu0
    %v5462 = vadd.f32 %v5421, %v5461
    %v5463 = vpop.f32.mrb[0].mxu0
    %v5464 = vadd.f32 %v5423, %v5463
    %v5465 = vpop.f32.mrb[0].mxu0
    %v5466 = vpop.f32.mrb[0].mxu0
    %5467 = vdwg.mxu0
    %5468 = vmatprep.subr.bf16.mxu0 %v4173
    %5469 = vmatpush1.bf16.msra.mxu0 %v4172
    %5470 = vmatprep.subr.bf16.mxu0 %v4177
    %5471 = vmatpush1.bf16.msra.mxu0 %v4176
    %5472 = vmatprep.subr.bf16.mxu0 %v4181
    %5473 = vmatpush1.bf16.msra.mxu0 %v4180
    %5474 = vmatprep.subr.bf16.mxu0 %v4185
    %5475 = vmatpush1.bf16.msra.mxu0 %v4184
    %5476 = vmatprep.subr.bf16.mxu0 0
    %5477 = vmatpush1.bf16.msra.mxu0 0
    %5478 = vmatprep.subr.bf16.mxu0 0
    %5479 = vmatpush1.bf16.msra.mxu0 0
    %5480 = vmatprep.subr.bf16.mxu0 0
    %5481 = vmatpush1.bf16.msra.mxu0 0
    %5482 = vmatprep.subr.bf16.mxu0 0
    %5483 = vmatpush1.bf16.msra.mxu0 0
    %5484 = vmatprep.subr.bf16.mxu0 0
    %5485 = vmatpush1.bf16.msra.mxu0 0
    %5486 = vmatprep.subr.bf16.mxu0 0
    %5487 = vmatpush1.bf16.msra.mxu0 0
    %5488 = vmatprep.subr.bf16.mxu0 0
    %5489 = vmatpush1.bf16.msra.mxu0 0
    %5490 = vmatprep.subr.bf16.mxu0 0
    %5491 = vmatpush1.bf16.msra.mxu0 0
    %5492 = vmatprep.subr.bf16.mxu0 0
    %5493 = vmatpush1.bf16.msra.mxu0 0
    %5494 = vmatprep.subr.bf16.mxu0 0
    %5495 = vmatpush1.bf16.msra.mxu0 0
    %5496 = vmatprep.subr.bf16.mxu0 0
    %5497 = vmatpush1.bf16.msra.mxu0 0
    %5498 = vmatprep.subr.bf16.mxu0 0
    %5499 = vmatpush1.bf16.msra.mxu0 0
    %5500 = vmatprep.mubr.bf16.mxu0 0
    %5501 = vmatmul.mubr.bf16.gmra.mrb[0].mxu0 %v4974
    %v5502 = vpop.f32.mrb[0].mxu0
    %v5503 = vadd.f32 %v5462, %v5502
    %v5504 = vpop.f32.mrb[0].mxu0
    %v5505 = vadd.f32 %v5464, %v5504
    %v5506 = vpop.f32.mrb[0].mxu0
    %v5507 = vpop.f32.mrb[0].mxu0
    %5508 = vdwg.mxu0
    %5509 = vmatprep.subr.bf16.mxu0 %v3407
    %5510 = vmatpush1.bf16.msra.mxu0 %v3406
    %5511 = vmatprep.subr.bf16.mxu0 %v3411
    %5512 = vmatpush1.bf16.msra.mxu0 %v3410
    %5513 = vmatprep.subr.bf16.mxu0 %v3415
    %5514 = vmatpush1.bf16.msra.mxu0 %v3414
    %5515 = vmatprep.subr.bf16.mxu0 %v3419
    %5516 = vmatpush1.bf16.msra.mxu0 %v3418
    %5517 = vmatprep.subr.bf16.mxu0 %v3423
    %5518 = vmatpush1.bf16.msra.mxu0 %v3422
    %5519 = vmatprep.subr.bf16.mxu0 %v3427
    %5520 = vmatpush1.bf16.msra.mxu0 %v3426
    %5521 = vmatprep.subr.bf16.mxu0 %v3431
    %5522 = vmatpush1.bf16.msra.mxu0 %v3430
    %5523 = vmatprep.subr.bf16.mxu0 %v3435
    %5524 = vmatpush1.bf16.msra.mxu0 %v3434
    %5525 = vmatprep.subr.bf16.mxu0 %v3439
    %5526 = vmatpush1.bf16.msra.mxu0 %v3438
    %5527 = vmatprep.subr.bf16.mxu0 %v3443
    %5528 = vmatpush1.bf16.msra.mxu0 %v3442
    %5529 = vmatprep.subr.bf16.mxu0 %v3447
    %5530 = vmatpush1.bf16.msra.mxu0 %v3446
    %5531 = vmatprep.subr.bf16.mxu0 %v3451
    %5532 = vmatpush1.bf16.msra.mxu0 %v3450
    %5533 = vmatprep.subr.bf16.mxu0 %v3455
    %5534 = vmatpush1.bf16.msra.mxu0 %v3454
    %5535 = vmatprep.subr.bf16.mxu0 %v3459
    %5536 = vmatpush1.bf16.msra.mxu0 %v3458
    %5537 = vmatprep.subr.bf16.mxu0 %v3463
    %5538 = vmatpush1.bf16.msra.mxu0 %v3462
    %5539 = vmatprep.subr.bf16.mxu0 %v3467
    %5540 = vmatpush1.bf16.msra.mxu0 %v3466
    %5541 = vmatprep.mubr.bf16.mxu0 %v222
    %5542 = vmatmul.mubr.bf16.gmra.mrb[0].mxu0 %v221
    %v5543 = vpop.f32.mrb[0].mxu0
    %v5544 = vadd.f32 %v1043, %v5543
    %v5545 = vpop.f32.mrb[0].mxu0
    %v5546 = vadd.f32 %v1047, %v5545
    %v5547 = vpop.f32.mrb[0].mxu0
    %v5548 = vpop.f32.mrb[0].mxu0
    %5549 = vdwg.mxu0
    %5550 = vmatprep.subr.bf16.mxu0 %v3471
    %5551 = vmatpush1.bf16.msra.mxu0 %v3470
    %5552 = vmatprep.subr.bf16.mxu0 %v3475
    %5553 = vmatpush1.bf16.msra.mxu0 %v3474
    %5554 = vmatprep.subr.bf16.mxu0 %v3479
    %5555 = vmatpush1.bf16.msra.mxu0 %v3478
    %5556 = vmatprep.subr.bf16.mxu0 %v3483
    %5557 = vmatpush1.bf16.msra.mxu0 %v3482
    %5558 = vmatprep.subr.bf16.mxu0 %v3487
    %5559 = vmatpush1.bf16.msra.mxu0 %v3486
    %5560 = vmatprep.subr.bf16.mxu0 %v3491
    %5561 = vmatpush1.bf16.msra.mxu0 %v3490
    %5562 = vmatprep.subr.bf16.mxu0 %v3495
    %5563 = vmatpush1.bf16.msra.mxu0 %v3494
    %5564 = vmatprep.subr.bf16.mxu0 %v3499
    %5565 = vmatpush1.bf16.msra.mxu0 %v3498
    %5566 = vmatprep.subr.bf16.mxu0 %v3503
    %5567 = vmatpush1.bf16.msra.mxu0 %v3502
    %5568 = vmatprep.subr.bf16.mxu0 %v3507
    %5569 = vmatpush1.bf16.msra.mxu0 %v3506
    %5570 = vmatprep.subr.bf16.mxu0 %v3511
    %5571 = vmatpush1.bf16.msra.mxu0 %v3510
    %5572 = vmatprep.subr.bf16.mxu0 %v3515
    %5573 = vmatpush1.bf16.msra.mxu0 %v3514
    %5574 = vmatprep.subr.bf16.mxu0 %v3519
    %5575 = vmatpush1.bf16.msra.mxu0 %v3518
    %5576 = vmatprep.subr.bf16.mxu0 %v3523
    %5577 = vmatpush1.bf16.msra.mxu0 %v3522
    %5578 = vmatprep.subr.bf16.mxu0 %v3527
    %5579 = vmatpush1.bf16.msra.mxu0 %v3526
    %5580 = vmatprep.subr.bf16.mxu0 %v3531
    %5581 = vmatpush1.bf16.msra.mxu0 %v3530
    %5582 = vmatprep.mubr.bf16.mxu0 %v224
    %5583 = vmatmul.mubr.bf16.gmra.mrb[0].mxu0 %v223
    %v5584 = vpop.f32.mrb[0].mxu0
    %v5585 = vadd.f32 %v5544, %v5584
    %v5586 = vpop.f32.mrb[0].mxu0
    %v5587 = vadd.f32 %v5546, %v5586
    %v5588 = vpop.f32.mrb[0].mxu0
    %v5589 = vpop.f32.mrb[0].mxu0
    %5590 = vdwg.mxu0
    %5591 = vmatprep.subr.bf16.mxu0 %v3535
    %5592 = vmatpush1.bf16.msra.mxu0 %v3534
    %5593 = vmatprep.subr.bf16.mxu0 %v3539
    %5594 = vmatpush1.bf16.msra.mxu0 %v3538
    %5595 = vmatprep.subr.bf16.mxu0 %v3543
    %5596 = vmatpush1.bf16.msra.mxu0 %v3542
    %5597 = vmatprep.subr.bf16.mxu0 %v3547
    %5598 = vmatpush1.bf16.msra.mxu0 %v3546
    %5599 = vmatprep.subr.bf16.mxu0 %v3551
    %5600 = vmatpush1.bf16.msra.mxu0 %v3550
    %5601 = vmatprep.subr.bf16.mxu0 %v3555
    %5602 = vmatpush1.bf16.msra.mxu0 %v3554
    %5603 = vmatprep.subr.bf16.mxu0 %v3559
    %5604 = vmatpush1.bf16.msra.mxu0 %v3558
    %5605 = vmatprep.subr.bf16.mxu0 %v3563
    %5606 = vmatpush1.bf16.msra.mxu0 %v3562
    %5607 = vmatprep.subr.bf16.mxu0 %v3567
    %5608 = vmatpush1.bf16.msra.mxu0 %v3566
    %5609 = vmatprep.subr.bf16.mxu0 %v3571
    %5610 = vmatpush1.bf16.msra.mxu0 %v3570
    %5611 = vmatprep.subr.bf16.mxu0 %v3575
    %5612 = vmatpush1.bf16.msra.mxu0 %v3574
    %5613 = vmatprep.subr.bf16.mxu0 %v3579
    %5614 = vmatpush1.bf16.msra.mxu0 %v3578
    %5615 = vmatprep.subr.bf16.mxu0 %v3583
    %5616 = vmatpush1.bf16.msra.mxu0 %v3582
    %5617 = vmatprep.subr.bf16.mxu0 %v3587
    %5618 = vmatpush1.bf16.msra.mxu0 %v3586
    %5619 = vmatprep.subr.bf16.mxu0 %v3591
    %5620 = vmatpush1.bf16.msra.mxu0 %v3590
    %5621 = vmatprep.subr.bf16.mxu0 %v3595
    %5622 = vmatpush1.bf16.msra.mxu0 %v3594
    %5623 = vmatprep.mubr.bf16.mxu0 %v226
    %5624 = vmatmul.mubr.bf16.gmra.mrb[0].mxu0 %v225
    %v5625 = vpop.f32.mrb[0].mxu0
    %v5626 = vadd.f32 %v5585, %v5625
    %v5627 = vpop.f32.mrb[0].mxu0
    %v5628 = vadd.f32 %v5587, %v5627
    %v5629 = vpop.f32.mrb[0].mxu0
    %v5630 = vpop.f32.mrb[0].mxu0
    %5631 = vdwg.mxu0
    %5632 = vmatprep.subr.bf16.mxu0 %v3599
    %5633 = vmatpush1.bf16.msra.mxu0 %v3598
    %5634 = vmatprep.subr.bf16.mxu0 %v3603
    %5635 = vmatpush1.bf16.msra.mxu0 %v3602
    %5636 = vmatprep.subr.bf16.mxu0 %v3607
    %5637 = vmatpush1.bf16.msra.mxu0 %v3606
    %5638 = vmatprep.subr.bf16.mxu0 %v3611
    %5639 = vmatpush1.bf16.msra.mxu0 %v3610
    %5640 = vmatprep.subr.bf16.mxu0 %v3615
    %5641 = vmatpush1.bf16.msra.mxu0 %v3614
    %5642 = vmatprep.subr.bf16.mxu0 %v3619
    %5643 = vmatpush1.bf16.msra.mxu0 %v3618
    %5644 = vmatprep.subr.bf16.mxu0 %v3623
    %5645 = vmatpush1.bf16.msra.mxu0 %v3622
    %5646 = vmatprep.subr.bf16.mxu0 %v3627
    %5647 = vmatpush1.bf16.msra.mxu0 %v3626
    %5648 = vmatprep.subr.bf16.mxu0 %v3631
    %5649 = vmatpush1.bf16.msra.mxu0 %v3630
    %5650 = vmatprep.subr.bf16.mxu0 %v3635
    %5651 = vmatpush1.bf16.msra.mxu0 %v3634
    %5652 = vmatprep.subr.bf16.mxu0 %v3639
    %5653 = vmatpush1.bf16.msra.mxu0 %v3638
    %5654 = vmatprep.subr.bf16.mxu0 %v3643
    %5655 = vmatpush1.bf16.msra.mxu0 %v3642
    %5656 = vmatprep.subr.bf16.mxu0 %v3647
    %5657 = vmatpush1.bf16.msra.mxu0 %v3646
    %5658 = vmatprep.subr.bf16.mxu0 %v3651
    %5659 = vmatpush1.bf16.msra.mxu0 %v3650
    %5660 = vmatprep.subr.bf16.mxu0 %v3655
    %5661 = vmatpush1.bf16.msra.mxu0 %v3654
    %5662 = vmatprep.subr.bf16.mxu0 %v3659
    %5663 = vmatpush1.bf16.msra.mxu0 %v3658
    %5664 = vmatprep.mubr.bf16.mxu0 %v228
    %5665 = vmatmul.mubr.bf16.gmra.mrb[0].mxu0 %v227
    %v5666 = vpop.f32.mrb[0].mxu0
    %v5667 = vadd.f32 %v5626, %v5666
    %v5668 = vpop.f32.mrb[0].mxu0
    %v5669 = vadd.f32 %v5628, %v5668
    %v5670 = vpop.f32.mrb[0].mxu0
    %v5671 = vpop.f32.mrb[0].mxu0
    %5672 = vdwg.mxu0
    %5673 = vmatprep.subr.bf16.mxu0 %v3663
    %5674 = vmatpush1.bf16.msra.mxu0 %v3662
    %5675 = vmatprep.subr.bf16.mxu0 %v3667
    %5676 = vmatpush1.bf16.msra.mxu0 %v3666
    %5677 = vmatprep.subr.bf16.mxu0 %v3671
    %5678 = vmatpush1.bf16.msra.mxu0 %v3670
    %5679 = vmatprep.subr.bf16.mxu0 %v3675
    %5680 = vmatpush1.bf16.msra.mxu0 %v3674
    %5681 = vmatprep.subr.bf16.mxu0 %v3679
    %5682 = vmatpush1.bf16.msra.mxu0 %v3678
    %5683 = vmatprep.subr.bf16.mxu0 %v3683
    %5684 = vmatpush1.bf16.msra.mxu0 %v3682
    %5685 = vmatprep.subr.bf16.mxu0 %v3687
    %5686 = vmatpush1.bf16.msra.mxu0 %v3686
    %5687 = vmatprep.subr.bf16.mxu0 %v3691
    %5688 = vmatpush1.bf16.msra.mxu0 %v3690
    %5689 = vmatprep.subr.bf16.mxu0 %v3695
    %5690 = vmatpush1.bf16.msra.mxu0 %v3694
    %5691 = vmatprep.subr.bf16.mxu0 %v3699
    %5692 = vmatpush1.bf16.msra.mxu0 %v3698
    %5693 = vmatprep.subr.bf16.mxu0 %v3703
    %5694 = vmatpush1.bf16.msra.mxu0 %v3702
    %5695 = vmatprep.subr.bf16.mxu0 %v3707
    %5696 = vmatpush1.bf16.msra.mxu0 %v3706
    %5697 = vmatprep.subr.bf16.mxu0 %v3711
    %5698 = vmatpush1.bf16.msra.mxu0 %v3710
    %5699 = vmatprep.subr.bf16.mxu0 %v3715
    %5700 = vmatpush1.bf16.msra.mxu0 %v3714
    %5701 = vmatprep.subr.bf16.mxu0 %v3719
    %5702 = vmatpush1.bf16.msra.mxu0 %v3718
    %5703 = vmatprep.subr.bf16.mxu0 %v3723
    %5704 = vmatpush1.bf16.msra.mxu0 %v3722
    %5705 = vmatprep.mubr.bf16.mxu0 %v230
    %5706 = vmatmul.mubr.bf16.gmra.mrb[0].mxu0 %v229
    %v5707 = vpop.f32.mrb[0].mxu0
    %v5708 = vadd.f32 %v5667, %v5707
    %v5709 = vpop.f32.mrb[0].mxu0
    %v5710 = vadd.f32 %v5669, %v5709
    %v5711 = vpop.f32.mrb[0].mxu0
    %v5712 = vpop.f32.mrb[0].mxu0
    %5713 = vdwg.mxu0
    %5714 = vmatprep.subr.bf16.mxu0 %v3727
    %5715 = vmatpush1.bf16.msra.mxu0 %v3726
    %5716 = vmatprep.subr.bf16.mxu0 %v3731
    %5717 = vmatpush1.bf16.msra.mxu0 %v3730
    %5718 = vmatprep.subr.bf16.mxu0 %v3735
    %5719 = vmatpush1.bf16.msra.mxu0 %v3734
    %5720 = vmatprep.subr.bf16.mxu0 %v3739
    %5721 = vmatpush1.bf16.msra.mxu0 %v3738
    %5722 = vmatprep.subr.bf16.mxu0 %v3743
    %5723 = vmatpush1.bf16.msra.mxu0 %v3742
    %5724 = vmatprep.subr.bf16.mxu0 %v3747
    %5725 = vmatpush1.bf16.msra.mxu0 %v3746
    %5726 = vmatprep.subr.bf16.mxu0 %v3751
    %5727 = vmatpush1.bf16.msra.mxu0 %v3750
    %5728 = vmatprep.subr.bf16.mxu0 %v3755
    %5729 = vmatpush1.bf16.msra.mxu0 %v3754
    %5730 = vmatprep.subr.bf16.mxu0 %v3759
    %5731 = vmatpush1.bf16.msra.mxu0 %v3758
    %5732 = vmatprep.subr.bf16.mxu0 %v3763
    %5733 = vmatpush1.bf16.msra.mxu0 %v3762
    %5734 = vmatprep.subr.bf16.mxu0 %v3767
    %5735 = vmatpush1.bf16.msra.mxu0 %v3766
    %5736 = vmatprep.subr.bf16.mxu0 %v3771
    %5737 = vmatpush1.bf16.msra.mxu0 %v3770
    %5738 = vmatprep.subr.bf16.mxu0 %v3775
    %5739 = vmatpush1.bf16.msra.mxu0 %v3774
    %5740 = vmatprep.subr.bf16.mxu0 %v3779
    %5741 = vmatpush1.bf16.msra.mxu0 %v3778
    %5742 = vmatprep.subr.bf16.mxu0 %v3783
    %5743 = vmatpush1.bf16.msra.mxu0 %v3782
    %5744 = vmatprep.subr.bf16.mxu0 %v3787
    %5745 = vmatpush1.bf16.msra.mxu0 %v3786
    %5746 = vmatprep.mubr.bf16.mxu0 %v232
    %5747 = vmatmul.mubr.bf16.gmra.mrb[0].mxu0 %v231
    %v5748 = vpop.f32.mrb[0].mxu0
    %v5749 = vadd.f32 %v5708, %v5748
    %v5750 = vpop.f32.mrb[0].mxu0
    %v5751 = vadd.f32 %v5710, %v5750
    %v5752 = vpop.f32.mrb[0].mxu0
    %v5753 = vpop.f32.mrb[0].mxu0
    %5754 = vdwg.mxu0
    %5755 = vmatprep.subr.bf16.mxu0 %v3791
    %5756 = vmatpush1.bf16.msra.mxu0 %v3790
    %5757 = vmatprep.subr.bf16.mxu0 %v3795
    %5758 = vmatpush1.bf16.msra.mxu0 %v3794
    %5759 = vmatprep.subr.bf16.mxu0 %v3799
    %5760 = vmatpush1.bf16.msra.mxu0 %v3798
    %5761 = vmatprep.subr.bf16.mxu0 %v3803
    %5762 = vmatpush1.bf16.msra.mxu0 %v3802
    %5763 = vmatprep.subr.bf16.mxu0 %v3807
    %5764 = vmatpush1.bf16.msra.mxu0 %v3806
    %5765 = vmatprep.subr.bf16.mxu0 %v3811
    %5766 = vmatpush1.bf16.msra.mxu0 %v3810
    %5767 = vmatprep.subr.bf16.mxu0 %v3815
    %5768 = vmatpush1.bf16.msra.mxu0 %v3814
    %5769 = vmatprep.subr.bf16.mxu0 %v3819
    %5770 = vmatpush1.bf16.msra.mxu0 %v3818
    %5771 = vmatprep.subr.bf16.mxu0 %v3823
    %5772 = vmatpush1.bf16.msra.mxu0 %v3822
    %5773 = vmatprep.subr.bf16.mxu0 %v3827
    %5774 = vmatpush1.bf16.msra.mxu0 %v3826
    %5775 = vmatprep.subr.bf16.mxu0 %v3831
    %5776 = vmatpush1.bf16.msra.mxu0 %v3830
    %5777 = vmatprep.subr.bf16.mxu0 %v3835
    %5778 = vmatpush1.bf16.msra.mxu0 %v3834
    %5779 = vmatprep.subr.bf16.mxu0 %v3839
    %5780 = vmatpush1.bf16.msra.mxu0 %v3838
    %5781 = vmatprep.subr.bf16.mxu0 %v3843
    %5782 = vmatpush1.bf16.msra.mxu0 %v3842
    %5783 = vmatprep.subr.bf16.mxu0 %v3847
    %5784 = vmatpush1.bf16.msra.mxu0 %v3846
    %5785 = vmatprep.subr.bf16.mxu0 %v3851
    %5786 = vmatpush1.bf16.msra.mxu0 %v3850
    %5787 = vmatprep.mubr.bf16.mxu0 %v234
    %5788 = vmatmul.mubr.bf16.gmra.mrb[0].mxu0 %v233
    %v5789 = vpop.f32.mrb[0].mxu0
    %v5790 = vadd.f32 %v5749, %v5789
    %v5791 = vpop.f32.mrb[0].mxu0
    %v5792 = vadd.f32 %v5751, %v5791
    %v5793 = vpop.f32.mrb[0].mxu0
    %v5794 = vpop.f32.mrb[0].mxu0
    %5795 = vdwg.mxu0
    %5796 = vmatprep.subr.bf16.mxu0 %v3855
    %5797 = vmatpush1.bf16.msra.mxu0 %v3854
    %5798 = vmatprep.subr.bf16.mxu0 %v3859
    %5799 = vmatpush1.bf16.msra.mxu0 %v3858
    %5800 = vmatprep.subr.bf16.mxu0 %v3863
    %5801 = vmatpush1.bf16.msra.mxu0 %v3862
    %5802 = vmatprep.subr.bf16.mxu0 %v3867
    %5803 = vmatpush1.bf16.msra.mxu0 %v3866
    %5804 = vmatprep.subr.bf16.mxu0 %v3871
    %5805 = vmatpush1.bf16.msra.mxu0 %v3870
    %5806 = vmatprep.subr.bf16.mxu0 %v3875
    %5807 = vmatpush1.bf16.msra.mxu0 %v3874
    %5808 = vmatprep.subr.bf16.mxu0 %v3879
    %5809 = vmatpush1.bf16.msra.mxu0 %v3878
    %5810 = vmatprep.subr.bf16.mxu0 %v3883
    %5811 = vmatpush1.bf16.msra.mxu0 %v3882
    %5812 = vmatprep.subr.bf16.mxu0 %v3887
    %5813 = vmatpush1.bf16.msra.mxu0 %v3886
    %5814 = vmatprep.subr.bf16.mxu0 %v3891
    %5815 = vmatpush1.bf16.msra.mxu0 %v3890
    %5816 = vmatprep.subr.bf16.mxu0 %v3895
    %5817 = vmatpush1.bf16.msra.mxu0 %v3894
    %5818 = vmatprep.subr.bf16.mxu0 %v3899
    %5819 = vmatpush1.bf16.msra.mxu0 %v3898
    %5820 = vmatprep.subr.bf16.mxu0 %v3903
    %5821 = vmatpush1.bf16.msra.mxu0 %v3902
    %5822 = vmatprep.subr.bf16.mxu0 %v3907
    %5823 = vmatpush1.bf16.msra.mxu0 %v3906
    %5824 = vmatprep.subr.bf16.mxu0 %v3911
    %5825 = vmatpush1.bf16.msra.mxu0 %v3910
    %5826 = vmatprep.subr.bf16.mxu0 %v3915
    %5827 = vmatpush1.bf16.msra.mxu0 %v3914
    %5828 = vmatprep.mubr.bf16.mxu0 %v236
    %5829 = vmatmul.mubr.bf16.gmra.mrb[0].mxu0 %v235
    %v5830 = vpop.f32.mrb[0].mxu0
    %v5831 = vadd.f32 %v5790, %v5830
    %v5832 = vpop.f32.mrb[0].mxu0
    %v5833 = vadd.f32 %v5792, %v5832
    %v5834 = vpop.f32.mrb[0].mxu0
    %v5835 = vpop.f32.mrb[0].mxu0
    %5836 = vdwg.mxu0
    %5837 = vmatprep.subr.bf16.mxu0 %v3919
    %5838 = vmatpush1.bf16.msra.mxu0 %v3918
    %5839 = vmatprep.subr.bf16.mxu0 %v3923
    %5840 = vmatpush1.bf16.msra.mxu0 %v3922
    %5841 = vmatprep.subr.bf16.mxu0 %v3927
    %5842 = vmatpush1.bf16.msra.mxu0 %v3926
    %5843 = vmatprep.subr.bf16.mxu0 %v3931
    %5844 = vmatpush1.bf16.msra.mxu0 %v3930
    %5845 = vmatprep.subr.bf16.mxu0 %v3935
    %5846 = vmatpush1.bf16.msra.mxu0 %v3934
    %5847 = vmatprep.subr.bf16.mxu0 %v3939
    %5848 = vmatpush1.bf16.msra.mxu0 %v3938
    %5849 = vmatprep.subr.bf16.mxu0 %v3943
    %5850 = vmatpush1.bf16.msra.mxu0 %v3942
    %5851 = vmatprep.subr.bf16.mxu0 %v3947
    %5852 = vmatpush1.bf16.msra.mxu0 %v3946
    %5853 = vmatprep.subr.bf16.mxu0 %v3951
    %5854 = vmatpush1.bf16.msra.mxu0 %v3950
    %5855 = vmatprep.subr.bf16.mxu0 %v3955
    %5856 = vmatpush1.bf16.msra.mxu0 %v3954
    %5857 = vmatprep.subr.bf16.mxu0 %v3959
    %5858 = vmatpush1.bf16.msra.mxu0 %v3958
    %5859 = vmatprep.subr.bf16.mxu0 %v3963
    %5860 = vmatpush1.bf16.msra.mxu0 %v3962
    %5861 = vmatprep.subr.bf16.mxu0 %v3967
    %5862 = vmatpush1.bf16.msra.mxu0 %v3966
    %5863 = vmatprep.subr.bf16.mxu0 %v3971
    %5864 = vmatpush1.bf16.msra.mxu0 %v3970
    %5865 = vmatprep.subr.bf16.mxu0 %v3975
    %5866 = vmatpush1.bf16.msra.mxu0 %v3974
    %5867 = vmatprep.subr.bf16.mxu0 %v3979
    %5868 = vmatpush1.bf16.msra.mxu0 %v3978
    %5869 = vmatprep.mubr.bf16.mxu0 %v238
    %5870 = vmatmul.mubr.bf16.gmra.mrb[0].mxu0 %v237
    %v5871 = vpop.f32.mrb[0].mxu0
    %v5872 = vadd.f32 %v5831, %v5871
    %v5873 = vpop.f32.mrb[0].mxu0
    %v5874 = vadd.f32 %v5833, %v5873
    %v5875 = vpop.f32.mrb[0].mxu0
    %v5876 = vpop.f32.mrb[0].mxu0
    %5877 = vdwg.mxu0
    %5878 = vmatprep.subr.bf16.mxu0 %v3983
    %5879 = vmatpush1.bf16.msra.mxu0 %v3982
    %5880 = vmatprep.subr.bf16.mxu0 %v3987
    %5881 = vmatpush1.bf16.msra.mxu0 %v3986
    %5882 = vmatprep.subr.bf16.mxu0 %v3991
    %5883 = vmatpush1.bf16.msra.mxu0 %v3990
    %5884 = vmatprep.subr.bf16.mxu0 %v3995
    %5885 = vmatpush1.bf16.msra.mxu0 %v3994
    %5886 = vmatprep.subr.bf16.mxu0 %v3999
    %5887 = vmatpush1.bf16.msra.mxu0 %v3998
    %5888 = vmatprep.subr.bf16.mxu0 %v4003
    %5889 = vmatpush1.bf16.msra.mxu0 %v4002
    %5890 = vmatprep.subr.bf16.mxu0 %v4007
    %5891 = vmatpush1.bf16.msra.mxu0 %v4006
    %5892 = vmatprep.subr.bf16.mxu0 %v4011
    %5893 = vmatpush1.bf16.msra.mxu0 %v4010
    %5894 = vmatprep.subr.bf16.mxu0 %v4015
    %5895 = vmatpush1.bf16.msra.mxu0 %v4014
    %5896 = vmatprep.subr.bf16.mxu0 %v4019
    %5897 = vmatpush1.bf16.msra.mxu0 %v4018
    %5898 = vmatprep.subr.bf16.mxu0 %v4023
    %5899 = vmatpush1.bf16.msra.mxu0 %v4022
    %5900 = vmatprep.subr.bf16.mxu0 %v4027
    %5901 = vmatpush1.bf16.msra.mxu0 %v4026
    %5902 = vmatprep.subr.bf16.mxu0 %v4031
    %5903 = vmatpush1.bf16.msra.mxu0 %v4030
    %5904 = vmatprep.subr.bf16.mxu0 %v4035
    %5905 = vmatpush1.bf16.msra.mxu0 %v4034
    %5906 = vmatprep.subr.bf16.mxu0 %v4039
    %5907 = vmatpush1.bf16.msra.mxu0 %v4038
    %5908 = vmatprep.subr.bf16.mxu0 %v4043
    %5909 = vmatpush1.bf16.msra.mxu0 %v4042
    %5910 = vmatprep.mubr.bf16.mxu0 %v240
    %5911 = vmatmul.mubr.bf16.gmra.mrb[0].mxu0 %v239
    %v5912 = vpop.f32.mrb[0].mxu0
    %v5913 = vadd.f32 %v5872, %v5912
    %v5914 = vpop.f32.mrb[0].mxu0
    %v5915 = vadd.f32 %v5874, %v5914
    %v5916 = vpop.f32.mrb[0].mxu0
    %v5917 = vpop.f32.mrb[0].mxu0
    %5918 = vdwg.mxu0
    %5919 = vmatprep.subr.bf16.mxu0 %v4047
    %5920 = vmatpush1.bf16.msra.mxu0 %v4046
    %5921 = vmatprep.subr.bf16.mxu0 %v4051
    %5922 = vmatpush1.bf16.msra.mxu0 %v4050
    %5923 = vmatprep.subr.bf16.mxu0 %v4055
    %5924 = vmatpush1.bf16.msra.mxu0 %v4054
    %5925 = vmatprep.subr.bf16.mxu0 %v4059
    %5926 = vmatpush1.bf16.msra.mxu0 %v4058
    %5927 = vmatprep.subr.bf16.mxu0 %v4063
    %5928 = vmatpush1.bf16.msra.mxu0 %v4062
    %5929 = vmatprep.subr.bf16.mxu0 %v4067
    %5930 = vmatpush1.bf16.msra.mxu0 %v4066
    %5931 = vmatprep.subr.bf16.mxu0 %v4071
    %5932 = vmatpush1.bf16.msra.mxu0 %v4070
    %5933 = vmatprep.subr.bf16.mxu0 %v4075
    %5934 = vmatpush1.bf16.msra.mxu0 %v4074
    %5935 = vmatprep.subr.bf16.mxu0 %v4079
    %5936 = vmatpush1.bf16.msra.mxu0 %v4078
    %5937 = vmatprep.subr.bf16.mxu0 %v4083
    %5938 = vmatpush1.bf16.msra.mxu0 %v4082
    %5939 = vmatprep.subr.bf16.mxu0 %v4087
    %5940 = vmatpush1.bf16.msra.mxu0 %v4086
    %5941 = vmatprep.subr.bf16.mxu0 %v4091
    %5942 = vmatpush1.bf16.msra.mxu0 %v4090
    %5943 = vmatprep.subr.bf16.mxu0 %v4095
    %5944 = vmatpush1.bf16.msra.mxu0 %v4094
    %5945 = vmatprep.subr.bf16.mxu0 %v4099
    %5946 = vmatpush1.bf16.msra.mxu0 %v4098
    %5947 = vmatprep.subr.bf16.mxu0 %v4103
    %5948 = vmatpush1.bf16.msra.mxu0 %v4102
    %5949 = vmatprep.subr.bf16.mxu0 %v4107
    %5950 = vmatpush1.bf16.msra.mxu0 %v4106
    %5951 = vmatprep.mubr.bf16.mxu0 %v242
    %5952 = vmatmul.mubr.bf16.gmra.mrb[0].mxu0 %v241
    %v5953 = vpop.f32.mrb[0].mxu0
    %v5954 = vadd.f32 %v5913, %v5953
    %v5955 = vpop.f32.mrb[0].mxu0
    %v5956 = vadd.f32 %v5915, %v5955
    %v5957 = vpop.f32.mrb[0].mxu0
    %v5958 = vpop.f32.mrb[0].mxu0
    %5959 = vdwg.mxu0
    %5960 = vmatprep.subr.bf16.mxu0 %v4111
    %5961 = vmatpush1.bf16.msra.mxu0 %v4110
    %5962 = vmatprep.subr.bf16.mxu0 %v4115
    %5963 = vmatpush1.bf16.msra.mxu0 %v4114
    %5964 = vmatprep.subr.bf16.mxu0 %v4119
    %5965 = vmatpush1.bf16.msra.mxu0 %v4118
    %5966 = vmatprep.subr.bf16.mxu0 %v4123
    %5967 = vmatpush1.bf16.msra.mxu0 %v4122
    %5968 = vmatprep.subr.bf16.mxu0 %v4127
    %5969 = vmatpush1.bf16.msra.mxu0 %v4126
    %5970 = vmatprep.subr.bf16.mxu0 %v4131
    %5971 = vmatpush1.bf16.msra.mxu0 %v4130
    %5972 = vmatprep.subr.bf16.mxu0 %v4135
    %5973 = vmatpush1.bf16.msra.mxu0 %v4134
    %5974 = vmatprep.subr.bf16.mxu0 %v4139
    %5975 = vmatpush1.bf16.msra.mxu0 %v4138
    %5976 = vmatprep.subr.bf16.mxu0 %v4143
    %5977 = vmatpush1.bf16.msra.mxu0 %v4142
    %5978 = vmatprep.subr.bf16.mxu0 %v4147
    %5979 = vmatpush1.bf16.msra.mxu0 %v4146
    %5980 = vmatprep.subr.bf16.mxu0 %v4151
    %5981 = vmatpush1.bf16.msra.mxu0 %v4150
    %5982 = vmatprep.subr.bf16.mxu0 %v4155
    %5983 = vmatpush1.bf16.msra.mxu0 %v4154
    %5984 = vmatprep.subr.bf16.mxu0 %v4159
    %5985 = vmatpush1.bf16.msra.mxu0 %v4158
    %5986 = vmatprep.subr.bf16.mxu0 %v4163
    %5987 = vmatpush1.bf16.msra.mxu0 %v4162
    %5988 = vmatprep.subr.bf16.mxu0 %v4167
    %5989 = vmatpush1.bf16.msra.mxu0 %v4166
    %5990 = vmatprep.subr.bf16.mxu0 %v4171
    %5991 = vmatpush1.bf16.msra.mxu0 %v4170
    %5992 = vmatprep.mubr.bf16.mxu0 %v244
    %5993 = vmatmul.mubr.bf16.gmra.mrb[0].mxu0 %v243
    %v5994 = vpop.f32.mrb[0].mxu0
    %v5995 = vadd.f32 %v5954, %v5994
    %v5996 = vpop.f32.mrb[0].mxu0
    %v5997 = vadd.f32 %v5956, %v5996
    %v5998 = vpop.f32.mrb[0].mxu0
    %v5999 = vpop.f32.mrb[0].mxu0
    %6000 = vdwg.mxu0
    %6001 = vmatprep.subr.bf16.mxu0 %v4175
    %6002 = vmatpush1.bf16.msra.mxu0 %v4174
    %6003 = vmatprep.subr.bf16.mxu0 %v4179
    %6004 = vmatpush1.bf16.msra.mxu0 %v4178
    %6005 = vmatprep.subr.bf16.mxu0 %v4183
    %6006 = vmatpush1.bf16.msra.mxu0 %v4182
    %6007 = vmatprep.subr.bf16.mxu0 %v4187
    %6008 = vmatpush1.bf16.msra.mxu0 %v4186
    %6009 = vmatprep.subr.bf16.mxu0 0
    %6010 = vmatpush1.bf16.msra.mxu0 0
    %6011 = vmatprep.subr.bf16.mxu0 0
    %6012 = vmatpush1.bf16.msra.mxu0 0
    %6013 = vmatprep.subr.bf16.mxu0 0
    %6014 = vmatpush1.bf16.msra.mxu0 0
    %6015 = vmatprep.subr.bf16.mxu0 0
    %6016 = vmatpush1.bf16.msra.mxu0 0
    %6017 = vmatprep.subr.bf16.mxu0 0
    %6018 = vmatpush1.bf16.msra.mxu0 0
    %6019 = vmatprep.subr.bf16.mxu0 0
    %6020 = vmatpush1.bf16.msra.mxu0 0
    %6021 = vmatprep.subr.bf16.mxu0 0
    %6022 = vmatpush1.bf16.msra.mxu0 0
    %6023 = vmatprep.subr.bf16.mxu0 0
    %6024 = vmatpush1.bf16.msra.mxu0 0
    %6025 = vmatprep.subr.bf16.mxu0 0
    %6026 = vmatpush1.bf16.msra.mxu0 0
    %6027 = vmatprep.subr.bf16.mxu0 0
    %6028 = vmatpush1.bf16.msra.mxu0 0
    %6029 = vmatprep.subr.bf16.mxu0 0
    %6030 = vmatpush1.bf16.msra.mxu0 0
    %6031 = vmatprep.subr.bf16.mxu0 0
    %6032 = vmatpush1.bf16.msra.mxu0 0
    %6033 = vmatprep.mubr.bf16.mxu0 0
    %6034 = vmatmul.mubr.bf16.gmra.mrb[0].mxu0 %v4974
    %v6035 = vpop.f32.mrb[0].mxu0
    %v6036 = vadd.f32 %v5995, %v6035
    %v6037 = vpop.f32.mrb[0].mxu0
    %v6038 = vadd.f32 %v5997, %v6037
    %v6039 = vpop.f32.mrb[0].mxu0
    %v6040 = vpop.f32.mrb[0].mxu0
    %6041 = vdwg.mxu0
    %v6042 = vmax.f32 %v5503, 0.0
    %v6043 = vmax.f32 %v5505, 0.0
    %v6044 = vmax.f32 %v6036, 0.0
    %v6045 = vmax.f32 %v6038, 0.0
    %v6046 = vpack.c.bf16 %v6042, %v6042
    %v6047 = vpack.c.bf16 %v6043, %v6043
    %v6048 = vpack.c.bf16 %v6044, %v6044
    %v6049 = vpack.c.bf16 %v6045, %v6045
    %v6050 = vld [vmem:[#allocation7] sm:$0xff]
    %v6051 = vld [vmem:[#allocation7 + $0x8] sm:$0xff]
    %v6052 = vld [vmem:[#allocation7 + $0x10] sm:$0xf]
    %v6053 = vld [vmem:[#allocation7 + $0x14] sm:$0xff]
    %v6054 = vld [vmem:[#allocation7 + $0x1c] sm:$0xff]
    %v6055 = vld [vmem:[#allocation7 + $0x24] sm:$0xf]
    %v6056 = vld [vmem:[#allocation7 + $0x28] sm:$0xff]
    %v6057 = vld [vmem:[#allocation7 + $0x30] sm:$0xff]
    %v6058 = vld [vmem:[#allocation7 + $0x38] sm:$0xf]
    %v6059 = vld [vmem:[#allocation7 + $0x3c] sm:$0xff]
    %v6060 = vld [vmem:[#allocation7 + $0x44] sm:$0xff]
    %v6061 = vld [vmem:[#allocation7 + $0x4c] sm:$0xf]
    %v6062 = vld [vmem:[#allocation7 + $0x50] sm:$0xff]
    %v6063 = vld [vmem:[#allocation7 + $0x58] sm:$0xff]
    %v6064 = vld [vmem:[#allocation7 + $0x60] sm:$0xf]
    %v6065 = vld [vmem:[#allocation7 + $0x64] sm:$0xff]
    %v6066 = vld [vmem:[#allocation7 + $0x6c] sm:$0xff]
    %v6067 = vld [vmem:[#allocation7 + $0x74] sm:$0xf]
    %v6068 = vld [vmem:[#allocation7 + $0x78] sm:$0xff]
    %v6069 = vld [vmem:[#allocation7 + $0x80] sm:$0xff]
    %v6070 = vld [vmem:[#allocation7 + $0x88] sm:$0xf]
    %v6071 = vld [vmem:[#allocation7 + $0x8c] sm:$0xff]
    %v6072 = vld [vmem:[#allocation7 + $0x94] sm:$0xff]
    %v6073 = vld [vmem:[#allocation7 + $0x9c] sm:$0xf]
    %v6074 = vld [vmem:[#allocation7 + $0xa0] sm:$0xff]
    %v6075 = vld [vmem:[#allocation7 + $0xa8] sm:$0xff]
    %v6076 = vld [vmem:[#allocation7 + $0xb0] sm:$0xf]
    %v6077 = vld [vmem:[#allocation7 + $0xb4] sm:$0xff]
    %v6078 = vld [vmem:[#allocation7 + $0xbc] sm:$0xff]
    %v6079 = vld [vmem:[#allocation7 + $0xc4] sm:$0xf]
    %v6080 = vld [vmem:[#allocation7 + $0xc8] sm:$0xff]
    %v6081 = vld [vmem:[#allocation7 + $0xd0] sm:$0xff]
    %v6082 = vld [vmem:[#allocation7 + $0xd8] sm:$0xf]
    %v6083 = vld [vmem:[#allocation7 + $0xdc] sm:$0xff]
    %v6084 = vld [vmem:[#allocation7 + $0xe4] sm:$0xff]
    %v6085 = vld [vmem:[#allocation7 + $0xec] sm:$0xf]
    %v6086 = vld [vmem:[#allocation7 + $0xf0] sm:$0xff]
    %v6087 = vld [vmem:[#allocation7 + $0xf8] sm:$0xff]
    %v6088 = vld [vmem:[#allocation7 + $0x100] sm:$0xf]
    %v6089 = vld [vmem:[#allocation7 + $0x104] sm:$0xff]
    %v6090 = vld [vmem:[#allocation7 + $0x10c] sm:$0xff]
    %v6091 = vld [vmem:[#allocation7 + $0x114] sm:$0xf]
    %v6092 = vld [vmem:[#allocation7 + $0x118] sm:$0xff]
    %v6093 = vld [vmem:[#allocation7 + $0x120] sm:$0xff]
    %v6094 = vld [vmem:[#allocation7 + $0x128] sm:$0xf]
    %v6095 = vld [vmem:[#allocation7 + $0x12c] sm:$0xff]
    %v6096 = vld [vmem:[#allocation7 + $0x134] sm:$0xff]
    %v6097 = vld [vmem:[#allocation7 + $0x13c] sm:$0xf]
    %v6098 = vld [vmem:[#allocation7 + $0x140] sm:$0xff]
    %v6099 = vld [vmem:[#allocation7 + $0x148] sm:$0xff]
    %v6100 = vld [vmem:[#allocation7 + $0x150] sm:$0xf]
    %v6101 = vld [vmem:[#allocation7 + $0x154] sm:$0xff]
    %v6102 = vld [vmem:[#allocation7 + $0x15c] sm:$0xff]
    %v6103 = vld [vmem:[#allocation7 + $0x164] sm:$0xf]
    %v6104 = vld [vmem:[#allocation7 + $0x168] sm:$0xff]
    %v6105 = vld [vmem:[#allocation7 + $0x170] sm:$0xff]
    %v6106 = vld [vmem:[#allocation7 + $0x178] sm:$0xf]
    %v6107 = vld [vmem:[#allocation7 + $0x17c] sm:$0xff]
    %v6108 = vld [vmem:[#allocation7 + $0x184] sm:$0xff]
    %v6109 = vld [vmem:[#allocation7 + $0x18c] sm:$0xf]
    %v6110 = vld [vmem:[#allocation7 + $0x190] sm:$0xff]
    %v6111 = vld [vmem:[#allocation7 + $0x198] sm:$0xff]
    %v6112 = vld [vmem:[#allocation7 + $0x1a0] sm:$0xf]
    %v6113 = vld [vmem:[#allocation7 + $0x1a4] sm:$0xff]
    %v6114 = vld [vmem:[#allocation7 + $0x1ac] sm:$0xff]
    %v6115 = vld [vmem:[#allocation7 + $0x1b4] sm:$0xf]
    %v6116 = vld [vmem:[#allocation7 + $0x1b8] sm:$0xff]
    %v6117 = vld [vmem:[#allocation7 + $0x1c0] sm:$0xff]
    %v6118 = vld [vmem:[#allocation7 + $0x1c8] sm:$0xf]
    %v6119 = vld [vmem:[#allocation7 + $0x1cc] sm:$0xff]
    %v6120 = vld [vmem:[#allocation7 + $0x1d4] sm:$0xff]
    %v6121 = vld [vmem:[#allocation7 + $0x1dc] sm:$0xf]
    %v6122 = vld [vmem:[#allocation7 + $0x1e0] sm:$0xff]
    %v6123 = vld [vmem:[#allocation7 + $0x1e8] sm:$0xff]
    %v6124 = vld [vmem:[#allocation7 + $0x1f0] sm:$0xf]
    %v6125 = vld [vmem:[#allocation7 + $0x1f4] sm:$0xff]
    %v6126 = vld [vmem:[#allocation7 + $0x1fc] sm:$0xff]
    %v6127 = vld [vmem:[#allocation7 + $0x204] sm:$0xf]
    %v6128 = vld [vmem:[#allocation7 + $0x208] sm:$0xff]
    %v6129 = vld [vmem:[#allocation7 + $0x210] sm:$0xff]
    %v6130 = vld [vmem:[#allocation7 + $0x218] sm:$0xf]
    %v6131 = vld [vmem:[#allocation7 + $0x21c] sm:$0xff]
    %v6132 = vld [vmem:[#allocation7 + $0x224] sm:$0xff]
    %v6133 = vld [vmem:[#allocation7 + $0x22c] sm:$0xf]
    %v6134 = vld [vmem:[#allocation7 + $0x230] sm:$0xff]
    %v6135 = vld [vmem:[#allocation7 + $0x238] sm:$0xff]
    %v6136 = vld [vmem:[#allocation7 + $0x240] sm:$0xf]
    %v6137 = vld [vmem:[#allocation7 + $0x244] sm:$0xff]
    %v6138 = vld [vmem:[#allocation7 + $0x24c] sm:$0xff]
    %v6139 = vld [vmem:[#allocation7 + $0x254] sm:$0xf]
    %v6140 = vld [vmem:[#allocation7 + $0x258] sm:$0xff]
    %v6141 = vld [vmem:[#allocation7 + $0x260] sm:$0xff]
    %v6142 = vld [vmem:[#allocation7 + $0x268] sm:$0xf]
    %v6143 = vld [vmem:[#allocation7 + $0x26c] sm:$0xff]
    %v6144 = vld [vmem:[#allocation7 + $0x274] sm:$0xff]
    %v6145 = vld [vmem:[#allocation7 + $0x27c] sm:$0xf]
    %v6146 = vld [vmem:[#allocation7 + $0x280] sm:$0xff]
    %v6147 = vld [vmem:[#allocation7 + $0x288] sm:$0xff]
    %v6148 = vld [vmem:[#allocation7 + $0x290] sm:$0xf]
    %v6149 = vld [vmem:[#allocation7 + $0x294] sm:$0xff]
    %v6150 = vld [vmem:[#allocation7 + $0x29c] sm:$0xff]
    %v6151 = vld [vmem:[#allocation7 + $0x2a4] sm:$0xf]
    %v6152 = vld [vmem:[#allocation7 + $0x2a8] sm:$0xff]
    %v6153 = vld [vmem:[#allocation7 + $0x2b0] sm:$0xff]
    %v6154 = vld [vmem:[#allocation7 + $0x2b8] sm:$0xf]
    %v6155 = vld [vmem:[#allocation7 + $0x2bc] sm:$0xff]
    %v6156 = vld [vmem:[#allocation7 + $0x2c4] sm:$0xff]
    %v6157 = vld [vmem:[#allocation7 + $0x2cc] sm:$0xf]
    %v6158 = vld [vmem:[#allocation7 + $0x2d0] sm:$0xff]
    %v6159 = vld [vmem:[#allocation7 + $0x2d8] sm:$0xff]
    %v6160 = vld [vmem:[#allocation7 + $0x2e0] sm:$0xf]
    %v6161 = vld [vmem:[#allocation7 + $0x2e4] sm:$0xff]
    %v6162 = vld [vmem:[#allocation7 + $0x2ec] sm:$0xff]
    %v6163 = vld [vmem:[#allocation7 + $0x2f4] sm:$0xf]
    %v6164 = vld [vmem:[#allocation7 + $0x2f8] sm:$0xff]
    %v6165 = vld [vmem:[#allocation7 + $0x300] sm:$0xff]
    %v6166 = vld [vmem:[#allocation7 + $0x308] sm:$0xf]
    %v6167 = vld [vmem:[#allocation7 + $0x30c] sm:$0xff]
    %v6168 = vld [vmem:[#allocation7 + $0x314] sm:$0xff]
    %v6169 = vld [vmem:[#allocation7 + $0x31c] sm:$0xf]
    %v6170 = vld [vmem:[#allocation7 + $0x320] sm:$0xff]
    %v6171 = vld [vmem:[#allocation7 + $0x328] sm:$0xff]
    %v6172 = vld [vmem:[#allocation7 + $0x330] sm:$0xf]
    %v6173 = vld [vmem:[#allocation7 + $0x334] sm:$0xff]
    %v6174 = vld [vmem:[#allocation7 + $0x33c] sm:$0xff]
    %v6175 = vld [vmem:[#allocation7 + $0x344] sm:$0xf]
    %v6176 = vld [vmem:[#allocation7 + $0x348] sm:$0xff]
    %v6177 = vld [vmem:[#allocation7 + $0x350] sm:$0xff]
    %v6178 = vld [vmem:[#allocation7 + $0x358] sm:$0xf]
    %v6179 = vld [vmem:[#allocation7 + $0x35c] sm:$0xff]
    %v6180 = vld [vmem:[#allocation7 + $0x364] sm:$0xff]
    %v6181 = vld [vmem:[#allocation7 + $0x36c] sm:$0xf]
    %v6182 = vld [vmem:[#allocation7 + $0x370] sm:$0xff]
    %v6183 = vld [vmem:[#allocation7 + $0x378] sm:$0xff]
    %v6184 = vld [vmem:[#allocation7 + $0x380] sm:$0xf]
    %v6185 = vld [vmem:[#allocation7 + $0x384] sm:$0xff]
    %v6186 = vld [vmem:[#allocation7 + $0x38c] sm:$0xff]
    %v6187 = vld [vmem:[#allocation7 + $0x394] sm:$0xf]
    %v6188 = vld [vmem:[#allocation7 + $0x398] sm:$0xff]
    %v6189 = vld [vmem:[#allocation7 + $0x3a0] sm:$0xff]
    %v6190 = vld [vmem:[#allocation7 + $0x3a8] sm:$0xf]
    %v6191 = vld [vmem:[#allocation7 + $0x3ac] sm:$0xff]
    %v6192 = vld [vmem:[#allocation7 + $0x3b4] sm:$0xff]
    %v6193 = vld [vmem:[#allocation7 + $0x3bc] sm:$0xf]
    %v6194 = vld [vmem:[#allocation7 + $0x3c0] sm:$0xff]
    %v6195 = vld [vmem:[#allocation7 + $0x3c8] sm:$0xff]
    %v6196 = vld [vmem:[#allocation7 + $0x3d0] sm:$0xf]
    %v6197 = vld [vmem:[#allocation7 + $0x3d4] sm:$0xff]
    %v6198 = vld [vmem:[#allocation7 + $0x3dc] sm:$0xff]
    %v6199 = vld [vmem:[#allocation7 + $0x3e4] sm:$0xf]
    %v6200 = vld [vmem:[#allocation7 + $0x3e8] sm:$0xff]
    %v6201 = vld [vmem:[#allocation7 + $0x3f0] sm:$0xff]
    %v6202 = vld [vmem:[#allocation7 + $0x3f8] sm:$0xf]
    %v6203 = vld [vmem:[#allocation7 + $0x3fc] sm:$0xff]
    %v6204 = vld [vmem:[#allocation7 + $0x404] sm:$0xff]
    %v6205 = vld [vmem:[#allocation7 + $0x40c] sm:$0xf]
    %v6206 = vld [vmem:[#allocation7 + $0x410] sm:$0xff]
    %v6207 = vld [vmem:[#allocation7 + $0x418] sm:$0xff]
    %v6208 = vld [vmem:[#allocation7 + $0x420] sm:$0xf]
    %v6209 = vld [vmem:[#allocation7 + $0x424] sm:$0xff]
    %v6210 = vld [vmem:[#allocation7 + $0x42c] sm:$0xff]
    %v6211 = vld [vmem:[#allocation7 + $0x434] sm:$0xf]
    %v6212 = vld [vmem:[#allocation7 + $0x438] sm:$0xff]
    %v6213 = vld [vmem:[#allocation7 + $0x440] sm:$0xff]
    %v6214 = vld [vmem:[#allocation7 + $0x448] sm:$0xf]
    %v6215 = vld [vmem:[#allocation7 + $0x44c] sm:$0xff]
    %v6216 = vld [vmem:[#allocation7 + $0x454] sm:$0xff]
    %v6217 = vld [vmem:[#allocation7 + $0x45c] sm:$0xf]
    %v6218 = vld [vmem:[#allocation7 + $0x460] sm:$0xff]
    %v6219 = vld [vmem:[#allocation7 + $0x468] sm:$0xff]
    %v6220 = vld [vmem:[#allocation7 + $0x470] sm:$0xf]
    %v6221 = vld [vmem:[#allocation7 + $0x474] sm:$0xff]
    %v6222 = vld [vmem:[#allocation7 + $0x47c] sm:$0xff]
    %v6223 = vld [vmem:[#allocation7 + $0x484] sm:$0xf]
    %v6224 = vld [vmem:[#allocation7 + $0x488] sm:$0xff]
    %v6225 = vld [vmem:[#allocation7 + $0x490] sm:$0xff]
    %v6226 = vld [vmem:[#allocation7 + $0x498] sm:$0xf]
    %v6227 = vld [vmem:[#allocation7 + $0x49c] sm:$0xff]
    %v6228 = vld [vmem:[#allocation7 + $0x4a4] sm:$0xff]
    %v6229 = vld [vmem:[#allocation7 + $0x4ac] sm:$0xf]
    %v6230 = vld [vmem:[#allocation7 + $0x4b0] sm:$0xff]
    %v6231 = vld [vmem:[#allocation7 + $0x4b8] sm:$0xff]
    %v6232 = vld [vmem:[#allocation7 + $0x4c0] sm:$0xf]
    %v6233 = vld [vmem:[#allocation7 + $0x4c4] sm:$0xff]
    %v6234 = vld [vmem:[#allocation7 + $0x4cc] sm:$0xff]
    %v6235 = vld [vmem:[#allocation7 + $0x4d4] sm:$0xf]
    %v6236 = vld [vmem:[#allocation7 + $0x4d8] sm:$0xff]
    %v6237 = vld [vmem:[#allocation7 + $0x4e0] sm:$0xff]
    %v6238 = vld [vmem:[#allocation7 + $0x4e8] sm:$0xf]
    %v6239 = vld [vmem:[#allocation7 + $0x4ec] sm:$0xff]
    %v6240 = vld [vmem:[#allocation7 + $0x4f4] sm:$0xff]
    %v6241 = vld [vmem:[#allocation7 + $0x4fc] sm:$0xf]
    %v6242 = vld [vmem:[#allocation8] sm:$0x1f]
    %v6244 = vlaneseq
    %v6245 = vshrl.u32 %v6244, 7
    %v6246 = vsub.s32 0, %v6245
    %v6247 = vrot.slane %v6242, %v6246
    %v6248 = vlaneseq
    %v6249 = vshrl.u32 %v6248, 7
    %v6250 = vsub.s32 1, %v6249
    %v6251 = vrot.slane %v6242, %v6250
    %v6252 = vlaneseq
    %v6253 = vshrl.u32 %v6252, 7
    %v6254 = vsub.s32 2, %v6253
    %v6255 = vrot.slane %v6242, %v6254
    %v6256 = vlaneseq
    %v6257 = vshrl.u32 %v6256, 7
    %v6258 = vsub.s32 3, %v6257
    %v6259 = vrot.slane %v6242, %v6258
    %v6260 = vlaneseq
    %v6261 = vshrl.u32 %v6260, 7
    %v6262 = vsub.s32 4, %v6261
    %v6263 = vrot.slane %v6242, %v6262
    %v6461 = vunpack.c.l.b16 %v6050
    %v6462 = vunpack.c.h.b16 %v6050
    %v6463 = vunpack.c.l.b16 %v6051
    %v6464 = vunpack.c.h.b16 %v6051
    %v6465 = vunpack.c.l.b16 %v6052
    %v6466 = vunpack.c.l.b16 %v6053
    %v6467 = vunpack.c.h.b16 %v6053
    %v6468 = vunpack.c.l.b16 %v6054
    %v6469 = vunpack.c.h.b16 %v6054
    %v6470 = vunpack.c.l.b16 %v6055
    %v6471 = vunpack.c.l.b16 %v6056
    %v6472 = vunpack.c.h.b16 %v6056
    %v6473 = vunpack.c.l.b16 %v6057
    %v6474 = vunpack.c.h.b16 %v6057
    %v6475 = vunpack.c.l.b16 %v6058
    %v6476 = vunpack.c.l.b16 %v6059
    %v6477 = vunpack.c.h.b16 %v6059
    %v6478 = vunpack.c.l.b16 %v6060
    %v6479 = vunpack.c.h.b16 %v6060
    %v6480 = vunpack.c.l.b16 %v6061
    %v6481 = vunpack.c.l.b16 %v6062
    %v6482 = vunpack.c.h.b16 %v6062
    %v6483 = vunpack.c.l.b16 %v6063
    %v6484 = vunpack.c.h.b16 %v6063
    %v6485 = vunpack.c.l.b16 %v6064
    %v6486 = vunpack.c.l.b16 %v6065
    %v6487 = vunpack.c.h.b16 %v6065
    %v6488 = vunpack.c.l.b16 %v6066
    %v6489 = vunpack.c.h.b16 %v6066
    %v6490 = vunpack.c.l.b16 %v6067
    %v6491 = vunpack.c.l.b16 %v6068
    %v6492 = vunpack.c.h.b16 %v6068
    %v6493 = vunpack.c.l.b16 %v6069
    %v6494 = vunpack.c.h.b16 %v6069
    %v6495 = vunpack.c.l.b16 %v6070
    %v6496 = vunpack.c.l.b16 %v6071
    %v6497 = vunpack.c.h.b16 %v6071
    %v6498 = vunpack.c.l.b16 %v6072
    %v6499 = vunpack.c.h.b16 %v6072
    %v6500 = vunpack.c.l.b16 %v6073
    %v6501 = vunpack.c.l.b16 %v6074
    %v6502 = vunpack.c.h.b16 %v6074
    %v6503 = vunpack.c.l.b16 %v6075
    %v6504 = vunpack.c.h.b16 %v6075
    %v6505 = vunpack.c.l.b16 %v6076
    %v6506 = vunpack.c.l.b16 %v6077
    %v6507 = vunpack.c.h.b16 %v6077
    %v6508 = vunpack.c.l.b16 %v6078
    %v6509 = vunpack.c.h.b16 %v6078
    %v6510 = vunpack.c.l.b16 %v6079
    %v6511 = vunpack.c.l.b16 %v6080
    %v6512 = vunpack.c.h.b16 %v6080
    %v6513 = vunpack.c.l.b16 %v6081
    %v6514 = vunpack.c.h.b16 %v6081
    %v6515 = vunpack.c.l.b16 %v6082
    %v6516 = vunpack.c.l.b16 %v6083
    %v6517 = vunpack.c.h.b16 %v6083
    %v6518 = vunpack.c.l.b16 %v6084
    %v6519 = vunpack.c.h.b16 %v6084
    %v6520 = vunpack.c.l.b16 %v6085
    %v6521 = vunpack.c.l.b16 %v6086
    %v6522 = vunpack.c.h.b16 %v6086
    %v6523 = vunpack.c.l.b16 %v6087
    %v6524 = vunpack.c.h.b16 %v6087
    %v6525 = vunpack.c.l.b16 %v6088
    %v6526 = vunpack.c.l.b16 %v6089
    %v6527 = vunpack.c.h.b16 %v6089
    %v6528 = vunpack.c.l.b16 %v6090
    %v6529 = vunpack.c.h.b16 %v6090
    %v6530 = vunpack.c.l.b16 %v6091
    %v6531 = vunpack.c.l.b16 %v6092
    %v6532 = vunpack.c.h.b16 %v6092
    %v6533 = vunpack.c.l.b16 %v6093
    %v6534 = vunpack.c.h.b16 %v6093
    %v6535 = vunpack.c.l.b16 %v6094
    %v6536 = vunpack.c.l.b16 %v6095
    %v6537 = vunpack.c.h.b16 %v6095
    %v6538 = vunpack.c.l.b16 %v6096
    %v6539 = vunpack.c.h.b16 %v6096
    %v6540 = vunpack.c.l.b16 %v6097
    %v6541 = vunpack.c.l.b16 %v6098
    %v6542 = vunpack.c.h.b16 %v6098
    %v6543 = vunpack.c.l.b16 %v6099
    %v6544 = vunpack.c.h.b16 %v6099
    %v6545 = vunpack.c.l.b16 %v6100
    %v6546 = vunpack.c.l.b16 %v6101
    %v6547 = vunpack.c.h.b16 %v6101
    %v6548 = vunpack.c.l.b16 %v6102
    %v6549 = vunpack.c.h.b16 %v6102
    %v6550 = vunpack.c.l.b16 %v6103
    %v6551 = vunpack.c.l.b16 %v6104
    %v6552 = vunpack.c.h.b16 %v6104
    %v6553 = vunpack.c.l.b16 %v6105
    %v6554 = vunpack.c.h.b16 %v6105
    %v6555 = vunpack.c.l.b16 %v6106
    %v6556 = vunpack.c.l.b16 %v6107
    %v6557 = vunpack.c.h.b16 %v6107
    %v6558 = vunpack.c.l.b16 %v6108
    %v6559 = vunpack.c.h.b16 %v6108
    %v6560 = vunpack.c.l.b16 %v6109
    %v6561 = vunpack.c.l.b16 %v6110
    %v6562 = vunpack.c.h.b16 %v6110
    %v6563 = vunpack.c.l.b16 %v6111
    %v6564 = vunpack.c.h.b16 %v6111
    %v6565 = vunpack.c.l.b16 %v6112
    %v6566 = vunpack.c.l.b16 %v6113
    %v6567 = vunpack.c.h.b16 %v6113
    %v6568 = vunpack.c.l.b16 %v6114
    %v6569 = vunpack.c.h.b16 %v6114
    %v6570 = vunpack.c.l.b16 %v6115
    %v6571 = vunpack.c.l.b16 %v6116
    %v6572 = vunpack.c.h.b16 %v6116
    %v6573 = vunpack.c.l.b16 %v6117
    %v6574 = vunpack.c.h.b16 %v6117
    %v6575 = vunpack.c.l.b16 %v6118
    %v6576 = vunpack.c.l.b16 %v6119
    %v6577 = vunpack.c.h.b16 %v6119
    %v6578 = vunpack.c.l.b16 %v6120
    %v6579 = vunpack.c.h.b16 %v6120
    %v6580 = vunpack.c.l.b16 %v6121
    %v6581 = vunpack.c.l.b16 %v6122
    %v6582 = vunpack.c.h.b16 %v6122
    %v6583 = vunpack.c.l.b16 %v6123
    %v6584 = vunpack.c.h.b16 %v6123
    %v6585 = vunpack.c.l.b16 %v6124
    %v6586 = vunpack.c.l.b16 %v6125
    %v6587 = vunpack.c.h.b16 %v6125
    %v6588 = vunpack.c.l.b16 %v6126
    %v6589 = vunpack.c.h.b16 %v6126
    %v6590 = vunpack.c.l.b16 %v6127
    %v6591 = vunpack.c.l.b16 %v6128
    %v6592 = vunpack.c.h.b16 %v6128
    %v6593 = vunpack.c.l.b16 %v6129
    %v6594 = vunpack.c.h.b16 %v6129
    %v6595 = vunpack.c.l.b16 %v6130
    %v6596 = vunpack.c.l.b16 %v6131
    %v6597 = vunpack.c.h.b16 %v6131
    %v6598 = vunpack.c.l.b16 %v6132
    %v6599 = vunpack.c.h.b16 %v6132
    %v6600 = vunpack.c.l.b16 %v6133
    %v6601 = vunpack.c.l.b16 %v6134
    %v6602 = vunpack.c.h.b16 %v6134
    %v6603 = vunpack.c.l.b16 %v6135
    %v6604 = vunpack.c.h.b16 %v6135
    %v6605 = vunpack.c.l.b16 %v6136
    %v6606 = vunpack.c.l.b16 %v6137
    %v6607 = vunpack.c.h.b16 %v6137
    %v6608 = vunpack.c.l.b16 %v6138
    %v6609 = vunpack.c.h.b16 %v6138
    %v6610 = vunpack.c.l.b16 %v6139
    %v6611 = vunpack.c.l.b16 %v6140
    %v6612 = vunpack.c.h.b16 %v6140
    %v6613 = vunpack.c.l.b16 %v6141
    %v6614 = vunpack.c.h.b16 %v6141
    %v6615 = vunpack.c.l.b16 %v6142
    %v6616 = vunpack.c.l.b16 %v6143
    %v6617 = vunpack.c.h.b16 %v6143
    %v6618 = vunpack.c.l.b16 %v6144
    %v6619 = vunpack.c.h.b16 %v6144
    %v6620 = vunpack.c.l.b16 %v6145
    %v6621 = vunpack.c.l.b16 %v6146
    %v6622 = vunpack.c.h.b16 %v6146
    %v6623 = vunpack.c.l.b16 %v6147
    %v6624 = vunpack.c.h.b16 %v6147
    %v6625 = vunpack.c.l.b16 %v6148
    %v6626 = vunpack.c.l.b16 %v6149
    %v6627 = vunpack.c.h.b16 %v6149
    %v6628 = vunpack.c.l.b16 %v6150
    %v6629 = vunpack.c.h.b16 %v6150
    %v6630 = vunpack.c.l.b16 %v6151
    %v6631 = vunpack.c.l.b16 %v6152
    %v6632 = vunpack.c.h.b16 %v6152
    %v6633 = vunpack.c.l.b16 %v6153
    %v6634 = vunpack.c.h.b16 %v6153
    %v6635 = vunpack.c.l.b16 %v6154
    %v6636 = vunpack.c.l.b16 %v6155
    %v6637 = vunpack.c.h.b16 %v6155
    %v6638 = vunpack.c.l.b16 %v6156
    %v6639 = vunpack.c.h.b16 %v6156
    %v6640 = vunpack.c.l.b16 %v6157
    %v6641 = vunpack.c.l.b16 %v6158
    %v6642 = vunpack.c.h.b16 %v6158
    %v6643 = vunpack.c.l.b16 %v6159
    %v6644 = vunpack.c.h.b16 %v6159
    %v6645 = vunpack.c.l.b16 %v6160
    %v6646 = vunpack.c.l.b16 %v6161
    %v6647 = vunpack.c.h.b16 %v6161
    %v6648 = vunpack.c.l.b16 %v6162
    %v6649 = vunpack.c.h.b16 %v6162
    %v6650 = vunpack.c.l.b16 %v6163
    %v6651 = vunpack.c.l.b16 %v6164
    %v6652 = vunpack.c.h.b16 %v6164
    %v6653 = vunpack.c.l.b16 %v6165
    %v6654 = vunpack.c.h.b16 %v6165
    %v6655 = vunpack.c.l.b16 %v6166
    %v6656 = vunpack.c.l.b16 %v6167
    %v6657 = vunpack.c.h.b16 %v6167
    %v6658 = vunpack.c.l.b16 %v6168
    %v6659 = vunpack.c.h.b16 %v6168
    %v6660 = vunpack.c.l.b16 %v6169
    %v6661 = vunpack.c.l.b16 %v6170
    %v6662 = vunpack.c.h.b16 %v6170
    %v6663 = vunpack.c.l.b16 %v6171
    %v6664 = vunpack.c.h.b16 %v6171
    %v6665 = vunpack.c.l.b16 %v6172
    %v6666 = vunpack.c.l.b16 %v6173
    %v6667 = vunpack.c.h.b16 %v6173
    %v6668 = vunpack.c.l.b16 %v6174
    %v6669 = vunpack.c.h.b16 %v6174
    %v6670 = vunpack.c.l.b16 %v6175
    %v6671 = vunpack.c.l.b16 %v6176
    %v6672 = vunpack.c.h.b16 %v6176
    %v6673 = vunpack.c.l.b16 %v6177
    %v6674 = vunpack.c.h.b16 %v6177
    %v6675 = vunpack.c.l.b16 %v6178
    %v6676 = vunpack.c.l.b16 %v6179
    %v6677 = vunpack.c.h.b16 %v6179
    %v6678 = vunpack.c.l.b16 %v6180
    %v6679 = vunpack.c.h.b16 %v6180
    %v6680 = vunpack.c.l.b16 %v6181
    %v6681 = vunpack.c.l.b16 %v6182
    %v6682 = vunpack.c.h.b16 %v6182
    %v6683 = vunpack.c.l.b16 %v6183
    %v6684 = vunpack.c.h.b16 %v6183
    %v6685 = vunpack.c.l.b16 %v6184
    %v6686 = vunpack.c.l.b16 %v6185
    %v6687 = vunpack.c.h.b16 %v6185
    %v6688 = vunpack.c.l.b16 %v6186
    %v6689 = vunpack.c.h.b16 %v6186
    %v6690 = vunpack.c.l.b16 %v6187
    %v6691 = vunpack.c.l.b16 %v6188
    %v6692 = vunpack.c.h.b16 %v6188
    %v6693 = vunpack.c.l.b16 %v6189
    %v6694 = vunpack.c.h.b16 %v6189
    %v6695 = vunpack.c.l.b16 %v6190
    %v6696 = vunpack.c.l.b16 %v6191
    %v6697 = vunpack.c.h.b16 %v6191
    %v6698 = vunpack.c.l.b16 %v6192
    %v6699 = vunpack.c.h.b16 %v6192
    %v6700 = vunpack.c.l.b16 %v6193
    %v6701 = vunpack.c.l.b16 %v6194
    %v6702 = vunpack.c.h.b16 %v6194
    %v6703 = vunpack.c.l.b16 %v6195
    %v6704 = vunpack.c.h.b16 %v6195
    %v6705 = vunpack.c.l.b16 %v6196
    %v6706 = vunpack.c.l.b16 %v6197
    %v6707 = vunpack.c.h.b16 %v6197
    %v6708 = vunpack.c.l.b16 %v6198
    %v6709 = vunpack.c.h.b16 %v6198
    %v6710 = vunpack.c.l.b16 %v6199
    %v6711 = vunpack.c.l.b16 %v6200
    %v6712 = vunpack.c.h.b16 %v6200
    %v6713 = vunpack.c.l.b16 %v6201
    %v6714 = vunpack.c.h.b16 %v6201
    %v6715 = vunpack.c.l.b16 %v6202
    %v6716 = vunpack.c.l.b16 %v6203
    %v6717 = vunpack.c.h.b16 %v6203
    %v6718 = vunpack.c.l.b16 %v6204
    %v6719 = vunpack.c.h.b16 %v6204
    %v6720 = vunpack.c.l.b16 %v6205
    %v6721 = vunpack.c.l.b16 %v6206
    %v6722 = vunpack.c.h.b16 %v6206
    %v6723 = vunpack.c.l.b16 %v6207
    %v6724 = vunpack.c.h.b16 %v6207
    %v6725 = vunpack.c.l.b16 %v6208
    %v6726 = vunpack.c.l.b16 %v6209
    %v6727 = vunpack.c.h.b16 %v6209
    %v6728 = vunpack.c.l.b16 %v6210
    %v6729 = vunpack.c.h.b16 %v6210
    %v6730 = vunpack.c.l.b16 %v6211
    %v6731 = vunpack.c.l.b16 %v6212
    %v6732 = vunpack.c.h.b16 %v6212
    %v6733 = vunpack.c.l.b16 %v6213
    %v6734 = vunpack.c.h.b16 %v6213
    %v6735 = vunpack.c.l.b16 %v6214
    %v6736 = vunpack.c.l.b16 %v6215
    %v6737 = vunpack.c.h.b16 %v6215
    %v6738 = vunpack.c.l.b16 %v6216
    %v6739 = vunpack.c.h.b16 %v6216
    %v6740 = vunpack.c.l.b16 %v6217
    %v6741 = vunpack.c.l.b16 %v6218
    %v6742 = vunpack.c.h.b16 %v6218
    %v6743 = vunpack.c.l.b16 %v6219
    %v6744 = vunpack.c.h.b16 %v6219
    %v6745 = vunpack.c.l.b16 %v6220
    %v6746 = vunpack.c.l.b16 %v6221
    %v6747 = vunpack.c.h.b16 %v6221
    %v6748 = vunpack.c.l.b16 %v6222
    %v6749 = vunpack.c.h.b16 %v6222
    %v6750 = vunpack.c.l.b16 %v6223
    %v6751 = vunpack.c.l.b16 %v6224
    %v6752 = vunpack.c.h.b16 %v6224
    %v6753 = vunpack.c.l.b16 %v6225
    %v6754 = vunpack.c.h.b16 %v6225
    %v6755 = vunpack.c.l.b16 %v6226
    %v6756 = vunpack.c.l.b16 %v6227
    %v6757 = vunpack.c.h.b16 %v6227
    %v6758 = vunpack.c.l.b16 %v6228
    %v6759 = vunpack.c.h.b16 %v6228
    %v6760 = vunpack.c.l.b16 %v6229
    %v6761 = vunpack.c.l.b16 %v6230
    %v6762 = vunpack.c.h.b16 %v6230
    %v6763 = vunpack.c.l.b16 %v6231
    %v6764 = vunpack.c.h.b16 %v6231
    %v6765 = vunpack.c.l.b16 %v6232
    %v6766 = vunpack.c.l.b16 %v6233
    %v6767 = vunpack.c.h.b16 %v6233
    %v6768 = vunpack.c.l.b16 %v6234
    %v6769 = vunpack.c.h.b16 %v6234
    %v6770 = vunpack.c.l.b16 %v6235
    %v6771 = vunpack.c.l.b16 %v6236
    %v6772 = vunpack.c.h.b16 %v6236
    %v6773 = vunpack.c.l.b16 %v6237
    %v6774 = vunpack.c.h.b16 %v6237
    %v6775 = vunpack.c.l.b16 %v6238
    %v6776 = vunpack.c.l.b16 %v6239
    %v6777 = vunpack.c.h.b16 %v6239
    %v6778 = vunpack.c.l.b16 %v6240
    %v6779 = vunpack.c.h.b16 %v6240
    %v6780 = vunpack.c.l.b16 %v6241
    %v6781 = vpack.c.b16 %v6466, %v6461
    %v6782 = vpack.c.b16 %v6467, %v6462
    %v6783 = vpack.c.b16 %v6468, %v6463
    %v6784 = vpack.c.b16 %v6469, %v6464
    %v6785 = vpack.c.b16 %v6470, %v6465
    %v6786 = vpack.c.b16 %v6476, %v6471
    %v6787 = vpack.c.b16 %v6477, %v6472
    %v6788 = vpack.c.b16 %v6478, %v6473
    %v6789 = vpack.c.b16 %v6479, %v6474
    %v6790 = vpack.c.b16 %v6480, %v6475
    %v6791 = vpack.c.b16 %v6486, %v6481
    %v6792 = vpack.c.b16 %v6487, %v6482
    %v6793 = vpack.c.b16 %v6488, %v6483
    %v6794 = vpack.c.b16 %v6489, %v6484
    %v6795 = vpack.c.b16 %v6490, %v6485
    %v6796 = vpack.c.b16 %v6496, %v6491
    %v6797 = vpack.c.b16 %v6497, %v6492
    %v6798 = vpack.c.b16 %v6498, %v6493
    %v6799 = vpack.c.b16 %v6499, %v6494
    %v6800 = vpack.c.b16 %v6500, %v6495
    %v6801 = vpack.c.b16 %v6506, %v6501
    %v6802 = vpack.c.b16 %v6507, %v6502
    %v6803 = vpack.c.b16 %v6508, %v6503
    %v6804 = vpack.c.b16 %v6509, %v6504
    %v6805 = vpack.c.b16 %v6510, %v6505
    %v6806 = vpack.c.b16 %v6516, %v6511
    %v6807 = vpack.c.b16 %v6517, %v6512
    %v6808 = vpack.c.b16 %v6518, %v6513
    %v6809 = vpack.c.b16 %v6519, %v6514
    %v6810 = vpack.c.b16 %v6520, %v6515
    %v6811 = vpack.c.b16 %v6526, %v6521
    %v6812 = vpack.c.b16 %v6527, %v6522
    %v6813 = vpack.c.b16 %v6528, %v6523
    %v6814 = vpack.c.b16 %v6529, %v6524
    %v6815 = vpack.c.b16 %v6530, %v6525
    %v6816 = vpack.c.b16 %v6536, %v6531
    %v6817 = vpack.c.b16 %v6537, %v6532
    %v6818 = vpack.c.b16 %v6538, %v6533
    %v6819 = vpack.c.b16 %v6539, %v6534
    %v6820 = vpack.c.b16 %v6540, %v6535
    %v6821 = vpack.c.b16 %v6546, %v6541
    %v6822 = vpack.c.b16 %v6547, %v6542
    %v6823 = vpack.c.b16 %v6548, %v6543
    %v6824 = vpack.c.b16 %v6549, %v6544
    %v6825 = vpack.c.b16 %v6550, %v6545
    %v6826 = vpack.c.b16 %v6556, %v6551
    %v6827 = vpack.c.b16 %v6557, %v6552
    %v6828 = vpack.c.b16 %v6558, %v6553
    %v6829 = vpack.c.b16 %v6559, %v6554
    %v6830 = vpack.c.b16 %v6560, %v6555
    %v6831 = vpack.c.b16 %v6566, %v6561
    %v6832 = vpack.c.b16 %v6567, %v6562
    %v6833 = vpack.c.b16 %v6568, %v6563
    %v6834 = vpack.c.b16 %v6569, %v6564
    %v6835 = vpack.c.b16 %v6570, %v6565
    %v6836 = vpack.c.b16 %v6576, %v6571
    %v6837 = vpack.c.b16 %v6577, %v6572
    %v6838 = vpack.c.b16 %v6578, %v6573
    %v6839 = vpack.c.b16 %v6579, %v6574
    %v6840 = vpack.c.b16 %v6580, %v6575
    %v6841 = vpack.c.b16 %v6586, %v6581
    %v6842 = vpack.c.b16 %v6587, %v6582
    %v6843 = vpack.c.b16 %v6588, %v6583
    %v6844 = vpack.c.b16 %v6589, %v6584
    %v6845 = vpack.c.b16 %v6590, %v6585
    %v6846 = vpack.c.b16 %v6596, %v6591
    %v6847 = vpack.c.b16 %v6597, %v6592
    %v6848 = vpack.c.b16 %v6598, %v6593
    %v6849 = vpack.c.b16 %v6599, %v6594
    %v6850 = vpack.c.b16 %v6600, %v6595
    %v6851 = vpack.c.b16 %v6606, %v6601
    %v6852 = vpack.c.b16 %v6607, %v6602
    %v6853 = vpack.c.b16 %v6608, %v6603
    %v6854 = vpack.c.b16 %v6609, %v6604
    %v6855 = vpack.c.b16 %v6610, %v6605
    %v6856 = vpack.c.b16 %v6616, %v6611
    %v6857 = vpack.c.b16 %v6617, %v6612
    %v6858 = vpack.c.b16 %v6618, %v6613
    %v6859 = vpack.c.b16 %v6619, %v6614
    %v6860 = vpack.c.b16 %v6620, %v6615
    %v6861 = vpack.c.b16 %v6626, %v6621
    %v6862 = vpack.c.b16 %v6627, %v6622
    %v6863 = vpack.c.b16 %v6628, %v6623
    %v6864 = vpack.c.b16 %v6629, %v6624
    %v6865 = vpack.c.b16 %v6630, %v6625
    %v6866 = vpack.c.b16 %v6636, %v6631
    %v6867 = vpack.c.b16 %v6637, %v6632
    %v6868 = vpack.c.b16 %v6638, %v6633
    %v6869 = vpack.c.b16 %v6639, %v6634
    %v6870 = vpack.c.b16 %v6640, %v6635
    %v6871 = vpack.c.b16 %v6646, %v6641
    %v6872 = vpack.c.b16 %v6647, %v6642
    %v6873 = vpack.c.b16 %v6648, %v6643
    %v6874 = vpack.c.b16 %v6649, %v6644
    %v6875 = vpack.c.b16 %v6650, %v6645
    %v6876 = vpack.c.b16 %v6656, %v6651
    %v6877 = vpack.c.b16 %v6657, %v6652
    %v6878 = vpack.c.b16 %v6658, %v6653
    %v6879 = vpack.c.b16 %v6659, %v6654
    %v6880 = vpack.c.b16 %v6660, %v6655
    %v6881 = vpack.c.b16 %v6666, %v6661
    %v6882 = vpack.c.b16 %v6667, %v6662
    %v6883 = vpack.c.b16 %v6668, %v6663
    %v6884 = vpack.c.b16 %v6669, %v6664
    %v6885 = vpack.c.b16 %v6670, %v6665
    %v6886 = vpack.c.b16 %v6676, %v6671
    %v6887 = vpack.c.b16 %v6677, %v6672
    %v6888 = vpack.c.b16 %v6678, %v6673
    %v6889 = vpack.c.b16 %v6679, %v6674
    %v6890 = vpack.c.b16 %v6680, %v6675
    %v6891 = vpack.c.b16 %v6686, %v6681
    %v6892 = vpack.c.b16 %v6687, %v6682
    %v6893 = vpack.c.b16 %v6688, %v6683
    %v6894 = vpack.c.b16 %v6689, %v6684
    %v6895 = vpack.c.b16 %v6690, %v6685
    %v6896 = vpack.c.b16 %v6696, %v6691
    %v6897 = vpack.c.b16 %v6697, %v6692
    %v6898 = vpack.c.b16 %v6698, %v6693
    %v6899 = vpack.c.b16 %v6699, %v6694
    %v6900 = vpack.c.b16 %v6700, %v6695
    %v6901 = vpack.c.b16 %v6706, %v6701
    %v6902 = vpack.c.b16 %v6707, %v6702
    %v6903 = vpack.c.b16 %v6708, %v6703
    %v6904 = vpack.c.b16 %v6709, %v6704
    %v6905 = vpack.c.b16 %v6710, %v6705
    %v6906 = vpack.c.b16 %v6716, %v6711
    %v6907 = vpack.c.b16 %v6717, %v6712
    %v6908 = vpack.c.b16 %v6718, %v6713
    %v6909 = vpack.c.b16 %v6719, %v6714
    %v6910 = vpack.c.b16 %v6720, %v6715
    %v6911 = vpack.c.b16 %v6726, %v6721
    %v6912 = vpack.c.b16 %v6727, %v6722
    %v6913 = vpack.c.b16 %v6728, %v6723
    %v6914 = vpack.c.b16 %v6729, %v6724
    %v6915 = vpack.c.b16 %v6730, %v6725
    %v6916 = vpack.c.b16 %v6736, %v6731
    %v6917 = vpack.c.b16 %v6737, %v6732
    %v6918 = vpack.c.b16 %v6738, %v6733
    %v6919 = vpack.c.b16 %v6739, %v6734
    %v6920 = vpack.c.b16 %v6740, %v6735
    %v6921 = vpack.c.b16 %v6746, %v6741
    %v6922 = vpack.c.b16 %v6747, %v6742
    %v6923 = vpack.c.b16 %v6748, %v6743
    %v6924 = vpack.c.b16 %v6749, %v6744
    %v6925 = vpack.c.b16 %v6750, %v6745
    %v6926 = vpack.c.b16 %v6756, %v6751
    %v6927 = vpack.c.b16 %v6757, %v6752
    %v6928 = vpack.c.b16 %v6758, %v6753
    %v6929 = vpack.c.b16 %v6759, %v6754
    %v6930 = vpack.c.b16 %v6760, %v6755
    %v6931 = vpack.c.b16 %v6766, %v6761
    %v6932 = vpack.c.b16 %v6767, %v6762
    %v6933 = vpack.c.b16 %v6768, %v6763
    %v6934 = vpack.c.b16 %v6769, %v6764
    %v6935 = vpack.c.b16 %v6770, %v6765
    %v6936 = vpack.c.b16 %v6776, %v6771
    %v6937 = vpack.c.b16 %v6777, %v6772
    %v6938 = vpack.c.b16 %v6778, %v6773
    %v6939 = vpack.c.b16 %v6779, %v6774
    %v6940 = vpack.c.b16 %v6780, %v6775
    %7101 = vmatprep.subr.bf16.mxu0 %v6782
    %7102 = vmatpush1.bf16.msra.mxu0 %v6781
    %7103 = vmatprep.subr.bf16.mxu0 %v6787
    %7104 = vmatpush1.bf16.msra.mxu0 %v6786
    %7105 = vmatprep.subr.bf16.mxu0 %v6792
    %7106 = vmatpush1.bf16.msra.mxu0 %v6791
    %7107 = vmatprep.subr.bf16.mxu0 %v6797
    %7108 = vmatpush1.bf16.msra.mxu0 %v6796
    %7109 = vmatprep.subr.bf16.mxu0 %v6802
    %7110 = vmatpush1.bf16.msra.mxu0 %v6801
    %7111 = vmatprep.subr.bf16.mxu0 %v6807
    %7112 = vmatpush1.bf16.msra.mxu0 %v6806
    %7113 = vmatprep.subr.bf16.mxu0 %v6812
    %7114 = vmatpush1.bf16.msra.mxu0 %v6811
    %7115 = vmatprep.subr.bf16.mxu0 %v6817
    %7116 = vmatpush1.bf16.msra.mxu0 %v6816
    %7117 = vmatprep.subr.bf16.mxu0 %v6822
    %7118 = vmatpush1.bf16.msra.mxu0 %v6821
    %7119 = vmatprep.subr.bf16.mxu0 %v6827
    %7120 = vmatpush1.bf16.msra.mxu0 %v6826
    %7121 = vmatprep.subr.bf16.mxu0 %v6832
    %7122 = vmatpush1.bf16.msra.mxu0 %v6831
    %7123 = vmatprep.subr.bf16.mxu0 %v6837
    %7124 = vmatpush1.bf16.msra.mxu0 %v6836
    %7125 = vmatprep.subr.bf16.mxu0 %v6842
    %7126 = vmatpush1.bf16.msra.mxu0 %v6841
    %7127 = vmatprep.subr.bf16.mxu0 %v6847
    %7128 = vmatpush1.bf16.msra.mxu0 %v6846
    %7129 = vmatprep.subr.bf16.mxu0 %v6852
    %7130 = vmatpush1.bf16.msra.mxu0 %v6851
    %7131 = vmatprep.subr.bf16.mxu0 %v6857
    %7132 = vmatpush1.bf16.msra.mxu0 %v6856
    %7133 = vmatprep.mubr.bf16.mxu0 %v6047
    %7134 = vmatmul.mubr.bf16.gmra.mrb[0].mxu0 %v6046
    %v7135 = vpop.f32.mrb[0].mxu0
    %v7136 = vadd.f32 %v6247, %v7135
    %v7137 = vpop.f32.mrb[0].mxu0
    %v7138 = vadd.f32 %v6251, %v7137
    %v7139 = vpop.f32.mrb[0].mxu0
    %v7140 = vpop.f32.mrb[0].mxu0
    %7141 = vdwg.mxu0
    %7142 = vmatprep.subr.bf16.mxu0 %v6862
    %7143 = vmatpush1.bf16.msra.mxu0 %v6861
    %7144 = vmatprep.subr.bf16.mxu0 %v6867
    %7145 = vmatpush1.bf16.msra.mxu0 %v6866
    %7146 = vmatprep.subr.bf16.mxu0 %v6872
    %7147 = vmatpush1.bf16.msra.mxu0 %v6871
    %7148 = vmatprep.subr.bf16.mxu0 %v6877
    %7149 = vmatpush1.bf16.msra.mxu0 %v6876
    %7150 = vmatprep.subr.bf16.mxu0 %v6882
    %7151 = vmatpush1.bf16.msra.mxu0 %v6881
    %7152 = vmatprep.subr.bf16.mxu0 %v6887
    %7153 = vmatpush1.bf16.msra.mxu0 %v6886
    %7154 = vmatprep.subr.bf16.mxu0 %v6892
    %7155 = vmatpush1.bf16.msra.mxu0 %v6891
    %7156 = vmatprep.subr.bf16.mxu0 %v6897
    %7157 = vmatpush1.bf16.msra.mxu0 %v6896
    %7158 = vmatprep.subr.bf16.mxu0 %v6902
    %7159 = vmatpush1.bf16.msra.mxu0 %v6901
    %7160 = vmatprep.subr.bf16.mxu0 %v6907
    %7161 = vmatpush1.bf16.msra.mxu0 %v6906
    %7162 = vmatprep.subr.bf16.mxu0 %v6912
    %7163 = vmatpush1.bf16.msra.mxu0 %v6911
    %7164 = vmatprep.subr.bf16.mxu0 %v6917
    %7165 = vmatpush1.bf16.msra.mxu0 %v6916
    %7166 = vmatprep.subr.bf16.mxu0 %v6922
    %7167 = vmatpush1.bf16.msra.mxu0 %v6921
    %7168 = vmatprep.subr.bf16.mxu0 %v6927
    %7169 = vmatpush1.bf16.msra.mxu0 %v6926
    %7170 = vmatprep.subr.bf16.mxu0 %v6932
    %7171 = vmatpush1.bf16.msra.mxu0 %v6931
    %7172 = vmatprep.subr.bf16.mxu0 %v6937
    %7173 = vmatpush1.bf16.msra.mxu0 %v6936
    %7174 = vmatprep.mubr.bf16.mxu0 %v6049
    %7175 = vmatmul.mubr.bf16.gmra.mrb[0].mxu0 %v6048
    %v7176 = vpop.f32.mrb[0].mxu0
    %v7177 = vadd.f32 %v7136, %v7176
    %v7178 = vpop.f32.mrb[0].mxu0
    %v7179 = vadd.f32 %v7138, %v7178
    %v7180 = vpop.f32.mrb[0].mxu0
    %v7181 = vpop.f32.mrb[0].mxu0
    %7182 = vdwg.mxu0
    %7183 = vmatprep.subr.bf16.mxu0 %v6784
    %7184 = vmatpush1.bf16.msra.mxu0 %v6783
    %7185 = vmatprep.subr.bf16.mxu0 %v6789
    %7186 = vmatpush1.bf16.msra.mxu0 %v6788
    %7187 = vmatprep.subr.bf16.mxu0 %v6794
    %7188 = vmatpush1.bf16.msra.mxu0 %v6793
    %7189 = vmatprep.subr.bf16.mxu0 %v6799
    %7190 = vmatpush1.bf16.msra.mxu0 %v6798
    %7191 = vmatprep.subr.bf16.mxu0 %v6804
    %7192 = vmatpush1.bf16.msra.mxu0 %v6803
    %7193 = vmatprep.subr.bf16.mxu0 %v6809
    %7194 = vmatpush1.bf16.msra.mxu0 %v6808
    %7195 = vmatprep.subr.bf16.mxu0 %v6814
    %7196 = vmatpush1.bf16.msra.mxu0 %v6813
    %7197 = vmatprep.subr.bf16.mxu0 %v6819
    %7198 = vmatpush1.bf16.msra.mxu0 %v6818
    %7199 = vmatprep.subr.bf16.mxu0 %v6824
    %7200 = vmatpush1.bf16.msra.mxu0 %v6823
    %7201 = vmatprep.subr.bf16.mxu0 %v6829
    %7202 = vmatpush1.bf16.msra.mxu0 %v6828
    %7203 = vmatprep.subr.bf16.mxu0 %v6834
    %7204 = vmatpush1.bf16.msra.mxu0 %v6833
    %7205 = vmatprep.subr.bf16.mxu0 %v6839
    %7206 = vmatpush1.bf16.msra.mxu0 %v6838
    %7207 = vmatprep.subr.bf16.mxu0 %v6844
    %7208 = vmatpush1.bf16.msra.mxu0 %v6843
    %7209 = vmatprep.subr.bf16.mxu0 %v6849
    %7210 = vmatpush1.bf16.msra.mxu0 %v6848
    %7211 = vmatprep.subr.bf16.mxu0 %v6854
    %7212 = vmatpush1.bf16.msra.mxu0 %v6853
    %7213 = vmatprep.subr.bf16.mxu0 %v6859
    %7214 = vmatpush1.bf16.msra.mxu0 %v6858
    %7215 = vmatprep.mubr.bf16.mxu0 %v6047
    %7216 = vmatmul.mubr.bf16.gmra.mrb[0].mxu0 %v6046
    %v7217 = vpop.f32.mrb[0].mxu0
    %v7218 = vadd.f32 %v6255, %v7217
    %v7219 = vpop.f32.mrb[0].mxu0
    %v7220 = vadd.f32 %v6259, %v7219
    %v7221 = vpop.f32.mrb[0].mxu0
    %v7222 = vpop.f32.mrb[0].mxu0
    %7223 = vdwg.mxu0
    %7224 = vmatprep.subr.bf16.mxu0 %v6864
    %7225 = vmatpush1.bf16.msra.mxu0 %v6863
    %7226 = vmatprep.subr.bf16.mxu0 %v6869
    %7227 = vmatpush1.bf16.msra.mxu0 %v6868
    %7228 = vmatprep.subr.bf16.mxu0 %v6874
    %7229 = vmatpush1.bf16.msra.mxu0 %v6873
    %7230 = vmatprep.subr.bf16.mxu0 %v6879
    %7231 = vmatpush1.bf16.msra.mxu0 %v6878
    %7232 = vmatprep.subr.bf16.mxu0 %v6884
    %7233 = vmatpush1.bf16.msra.mxu0 %v6883
    %7234 = vmatprep.subr.bf16.mxu0 %v6889
    %7235 = vmatpush1.bf16.msra.mxu0 %v6888
    %7236 = vmatprep.subr.bf16.mxu0 %v6894
    %7237 = vmatpush1.bf16.msra.mxu0 %v6893
    %7238 = vmatprep.subr.bf16.mxu0 %v6899
    %7239 = vmatpush1.bf16.msra.mxu0 %v6898
    %7240 = vmatprep.subr.bf16.mxu0 %v6904
    %7241 = vmatpush1.bf16.msra.mxu0 %v6903
    %7242 = vmatprep.subr.bf16.mxu0 %v6909
    %7243 = vmatpush1.bf16.msra.mxu0 %v6908
    %7244 = vmatprep.subr.bf16.mxu0 %v6914
    %7245 = vmatpush1.bf16.msra.mxu0 %v6913
    %7246 = vmatprep.subr.bf16.mxu0 %v6919
    %7247 = vmatpush1.bf16.msra.mxu0 %v6918
    %7248 = vmatprep.subr.bf16.mxu0 %v6924
    %7249 = vmatpush1.bf16.msra.mxu0 %v6923
    %7250 = vmatprep.subr.bf16.mxu0 %v6929
    %7251 = vmatpush1.bf16.msra.mxu0 %v6928
    %7252 = vmatprep.subr.bf16.mxu0 %v6934
    %7253 = vmatpush1.bf16.msra.mxu0 %v6933
    %7254 = vmatprep.subr.bf16.mxu0 %v6939
    %7255 = vmatpush1.bf16.msra.mxu0 %v6938
    %7256 = vmatprep.mubr.bf16.mxu0 %v6049
    %7257 = vmatmul.mubr.bf16.gmra.mrb[0].mxu0 %v6048
    %v7258 = vpop.f32.mrb[0].mxu0
    %v7259 = vadd.f32 %v7218, %v7258
    %v7260 = vpop.f32.mrb[0].mxu0
    %v7261 = vadd.f32 %v7220, %v7260
    %v7262 = vpop.f32.mrb[0].mxu0
    %v7263 = vpop.f32.mrb[0].mxu0
    %7264 = vdwg.mxu0
    %7265 = vmatprep.subr.bf16.mxu0 0
    %7266 = vmatpush1.bf16.msra.mxu0 %v6785
    %7267 = vmatprep.subr.bf16.mxu0 0
    %7268 = vmatpush1.bf16.msra.mxu0 %v6790
    %7269 = vmatprep.subr.bf16.mxu0 0
    %7270 = vmatpush1.bf16.msra.mxu0 %v6795
    %7271 = vmatprep.subr.bf16.mxu0 0
    %7272 = vmatpush1.bf16.msra.mxu0 %v6800
    %7273 = vmatprep.subr.bf16.mxu0 0
    %7274 = vmatpush1.bf16.msra.mxu0 %v6805
    %7275 = vmatprep.subr.bf16.mxu0 0
    %7276 = vmatpush1.bf16.msra.mxu0 %v6810
    %7277 = vmatprep.subr.bf16.mxu0 0
    %7278 = vmatpush1.bf16.msra.mxu0 %v6815
    %7279 = vmatprep.subr.bf16.mxu0 0
    %7280 = vmatpush1.bf16.msra.mxu0 %v6820
    %7281 = vmatprep.subr.bf16.mxu0 0
    %7282 = vmatpush1.bf16.msra.mxu0 %v6825
    %7283 = vmatprep.subr.bf16.mxu0 0
    %7284 = vmatpush1.bf16.msra.mxu0 %v6830
    %7285 = vmatprep.subr.bf16.mxu0 0
    %7286 = vmatpush1.bf16.msra.mxu0 %v6835
    %7287 = vmatprep.subr.bf16.mxu0 0
    %7288 = vmatpush1.bf16.msra.mxu0 %v6840
    %7289 = vmatprep.subr.bf16.mxu0 0
    %7290 = vmatpush1.bf16.msra.mxu0 %v6845
    %7291 = vmatprep.subr.bf16.mxu0 0
    %7292 = vmatpush1.bf16.msra.mxu0 %v6850
    %7293 = vmatprep.subr.bf16.mxu0 0
    %7294 = vmatpush1.bf16.msra.mxu0 %v6855
    %7295 = vmatprep.subr.bf16.mxu0 0
    %7296 = vmatpush1.bf16.msra.mxu0 %v6860
    %7297 = vmatprep.mubr.bf16.mxu0 %v6047
    %7298 = vmatmul.mubr.bf16.gmra.mrb[0].mxu0 %v6046
    %v7299 = vpop.f32.mrb[0].mxu0
    %v7300 = vadd.f32 %v6263, %v7299
    %v7301 = vpop.f32.mrb[0].mxu0
    %v7302 = vpop.f32.mrb[0].mxu0
    %v7303 = vpop.f32.mrb[0].mxu0
    %7304 = vdwg.mxu0
    %7305 = vmatprep.subr.bf16.mxu0 0
    %7306 = vmatpush1.bf16.msra.mxu0 %v6865
    %7307 = vmatprep.subr.bf16.mxu0 0
    %7308 = vmatpush1.bf16.msra.mxu0 %v6870
    %7309 = vmatprep.subr.bf16.mxu0 0
    %7310 = vmatpush1.bf16.msra.mxu0 %v6875
    %7311 = vmatprep.subr.bf16.mxu0 0
    %7312 = vmatpush1.bf16.msra.mxu0 %v6880
    %7313 = vmatprep.subr.bf16.mxu0 0
    %7314 = vmatpush1.bf16.msra.mxu0 %v6885
    %7315 = vmatprep.subr.bf16.mxu0 0
    %7316 = vmatpush1.bf16.msra.mxu0 %v6890
    %7317 = vmatprep.subr.bf16.mxu0 0
    %7318 = vmatpush1.bf16.msra.mxu0 %v6895
    %7319 = vmatprep.subr.bf16.mxu0 0
    %7320 = vmatpush1.bf16.msra.mxu0 %v6900
    %7321 = vmatprep.subr.bf16.mxu0 0
    %7322 = vmatpush1.bf16.msra.mxu0 %v6905
    %7323 = vmatprep.subr.bf16.mxu0 0
    %7324 = vmatpush1.bf16.msra.mxu0 %v6910
    %7325 = vmatprep.subr.bf16.mxu0 0
    %7326 = vmatpush1.bf16.msra.mxu0 %v6915
    %7327 = vmatprep.subr.bf16.mxu0 0
    %7328 = vmatpush1.bf16.msra.mxu0 %v6920
    %7329 = vmatprep.subr.bf16.mxu0 0
    %7330 = vmatpush1.bf16.msra.mxu0 %v6925
    %7331 = vmatprep.subr.bf16.mxu0 0
    %7332 = vmatpush1.bf16.msra.mxu0 %v6930
    %7333 = vmatprep.subr.bf16.mxu0 0
    %7334 = vmatpush1.bf16.msra.mxu0 %v6935
    %7335 = vmatprep.subr.bf16.mxu0 0
    %7336 = vmatpush1.bf16.msra.mxu0 %v6940
    %7337 = vmatprep.mubr.bf16.mxu0 %v6049
    %7338 = vmatmul.mubr.bf16.gmra.mrb[0].mxu0 %v6048
    %v7339 = vpop.f32.mrb[0].mxu0
    %v7340 = vadd.f32 %v7300, %v7339
    %v7341 = vpop.f32.mrb[0].mxu0
    %v7342 = vpop.f32.mrb[0].mxu0
    %v7343 = vpop.f32.mrb[0].mxu0
    %7344 = vdwg.mxu0
    %v7350 = vcombine.low %v7177, %v7179
    %v7351 = vcombine.low %v7259, %v7261
    %v7353 = vunpack.c.l.s4 1983009808
    %v7354 = vunpack.c.0.s8 %v7353
    %v7355 = vlaneseq
    %v7356 = vshrl.u32 %v7355, 7
    %v7357 = vsub.s32 %v7354, %v7356
    %v7358 = vrot.slane %v7350, %v7357
    %v7360 = vunpack.c.l.s4 1983009808
    %v7361 = vunpack.c.0.s8 %v7360
    %v7362 = vlaneseq
    %v7363 = vshrl.u32 %v7362, 7
    %v7364 = vsub.s32 %v7361, %v7363
    %v7365 = vrot.slane %v7351, %v7364
    %v7366 = vcombine.low %v7358, %v7365
    %v7368 = vunpack.c.l.s4 1983009808
    %v7369 = vunpack.c.0.s8 %v7368
    %v7370 = vlaneseq
    %v7371 = vshrl.u32 %v7370, 7
    %v7372 = vsub.s32 %v7369, %v7371
    %v7373 = vrot.slane %v7340, %v7372
    %7376 = vst [vmem:[#allocation10] sm:$0xff] %v7366
    %7377 = vst [vmem:[#allocation10 + $0x8] sm:$0x3] %v7373
    // Predicated region
    $region38: #{dqn_forward.3} parent=1 // pred_check
      _
    $region39: #{dqn_forward.3} parent=1 // pred_check_branch
      %7379 = sbr.rel (0) target = $region41
    $region40: #{dqn_forward.3} parent=1 // pred_region
      %s7381 = ssub.s32 160, 160
      %7382 = vsyncadd [#allocation4], %s7381
      %s7384 = sshll.u32 [#allocation10], 4
      %s7385 = int_to_ptr.vmem [resolvable:$true] %s7384
      %7387 = dma.vmem_to_hbm [thread:$0]  %s7385, 160, %s5, [#allocation4]
    $region41: #{dqn_forward.3} parent=1 // pred_fallthru
      _
    // Predicated region
    $region42: #{dqn_forward.3} parent=1 // pred_check
      _
    $region43: #{dqn_forward.3} parent=1 // pred_check_branch
      %7389 = sbr.rel (0) target = $region45
    $region44: #{dqn_forward.3} parent=1 // pred_region
      %7390 = dma.done [#allocation4], 160
    $region45: #{dqn_forward.3} parent=1 // pred_fallthru
      _
    %7391 = vsyncpa [#allocation3], 1
    %7392 = vsyncpa [#allocation6], 1
    %7393 = vsyncpa [#allocation9], 1
    %7394 = vsyncpa [#allocation4], 1

</llo_original>
